<compile_context>
chip_gen: v6e
topology: v6e:2x2x1
jax: 0.10.0
libtpu: 0.0.40
codegen_flags: <defaults>
</compile_context>

<pallas_src>
import jax
import jax.numpy as jnp
from jax.experimental import pallas as pl
from jax.experimental.pallas import tpu as pltpu


# ---- hyperparameters (hp) from the reference module, hard-coded in-script ----
class HP:
    outputs_per_step = 1
    num_mels = 16
    use_gta_mode = False
    use_linear_spec = False      # -> linear_outputs is None, post_cbhg unused
    use_stop_token = True
    teacher_forcing_schema = "full"


hp = HP()

B = 2                                   # batch_size
T_IN = 8                                # max_input_len
T_OUT = 8                               # max_target_len (from mel_target)
V = 32                                  # vocab size
E = 32                                  # encoder output dim
M = hp.num_mels * hp.outputs_per_step   # decoder_output_size == prenet_input_size
P = 32                                  # prenet units
A = 32                                  # attention units
U = 32                                  # decoder_lstm_units (decoder_lstm_layers = 1)
C = 32                                  # postnet conv channels
R = hp.outputs_per_step

F32 = jnp.float32


# --------------------------- fused Tacotron kernel ----------------------------
def _tacotron_kernel(
        # inputs
        emb_ref, mel_ref,
        enc_w, enc_b,
        wp1, bp1, wp2, bp2,
        wq, wm, va,
        wih_p, wih_c, whh, blstm,
        wout_h, wout_c, bout,
        wstop_h, wstop_c, bstop,
        post_w0, post_w1, post_w2, post_bc, post_wproj, post_bproj,
        # outputs
        dec_ref, mel_out_ref, stop_ref, align_ref,
        # scratch
        gpi_scr, gpf_scr, gpg_scr, gpo_scr,
        h_all, ctx_all, aln_all,
        h_scr, c_scr):

    # ---------------- encoder (batched, hoisted, 2-D matmul) ----------------
    emb2d = emb_ref[...].reshape(B * T_IN, E)
    mem2d = jnp.tanh(
        jnp.dot(emb2d, enc_w[...], preferred_element_type=F32) + enc_b[...])
    mem = mem2d.reshape(B, T_IN, E)                                   # attention memory

    # attention memory projection computed once (not per step)
    pm = jnp.dot(mem2d, wm[...], preferred_element_type=F32).reshape(B, T_IN, A)
    va_b = va[...].reshape(1, 1, A)

    # ---- teacher forcing ('full'): decoder input at step t is mel_target[:, t-1],
    # ---- zeros at t == 0.  Shift + prenet + LSTM input projection hoisted for all t.
    mel = mel_ref[...]                                                # [B, T_out, M]
    x_in = jnp.concatenate(
        [jnp.zeros((B, 1, M), F32), mel[:, :T_OUT - 1, :]], axis=1)   # [B, T_out, M]
    x_tm = jnp.transpose(x_in, (1, 0, 2)).reshape(T_OUT * B, M)       # time-major rows

    h1 = jnp.maximum(
        jnp.dot(x_tm, wp1[...], preferred_element_type=F32) + bp1[...], 0.0)
    h2 = jnp.maximum(
        jnp.dot(h1, wp2[...], preferred_element_type=F32) + bp2[...], 0.0)
    gp = jnp.dot(h2, wih_p[...], preferred_element_type=F32) + blstm[...]   # [T*B, 4U]
    gp3 = gp.reshape(T_OUT, B, 4 * U)
    # per-gate prenet+bias contributions, split once (outside the recurrence)
    gpi_scr[...] = gp3[:, :, 0 * U:1 * U]
    gpf_scr[...] = gp3[:, :, 1 * U:2 * U]
    gpg_scr[...] = gp3[:, :, 2 * U:3 * U]
    gpo_scr[...] = gp3[:, :, 3 * U:4 * U]

    # per-gate [ctx ; h] -> gate weights, sliced/stacked once
    wc = wih_c[...]
    wh = whh[...]
    wcq_i = jnp.concatenate([wc[:, 0 * U:1 * U], wh[:, 0 * U:1 * U]], axis=0)
    wcq_f = jnp.concatenate([wc[:, 1 * U:2 * U], wh[:, 1 * U:2 * U]], axis=0)
    wcq_g = jnp.concatenate([wc[:, 2 * U:3 * U], wh[:, 2 * U:3 * U]], axis=0)
    wcq_o = jnp.concatenate([wc[:, 3 * U:4 * U], wh[:, 3 * U:4 * U]], axis=0)
    wq_v = wq[...]

    h_scr[...] = jnp.zeros((B, U), F32)
    c_scr[...] = jnp.zeros((B, U), F32)

    # ---------------- sequential decoder recurrence ----------------
    @pl.loop(0, T_OUT, unroll=True)
    def _step(t):
        q = h_scr[...]                                                # [B, U]

        # additive (Bahdanau) attention: score matvec on VPU + XLU reduce (no MXU)
        pq = jnp.dot(q, wq_v, preferred_element_type=F32)             # [B, A]
        scores = jnp.tanh(pm + pq[:, None, :])                        # [B, T_in, A]
        e = jnp.sum(scores * va_b, axis=-1)                           # [B, T_in]
        e_max = jnp.max(e, axis=-1, keepdims=True)
        pe = jnp.exp(e - e_max)
        align = pe / jnp.sum(pe, axis=-1, keepdims=True)              # [B, T_in]
        ctx = jnp.sum(align[:, :, None] * mem, axis=1)                # [B, E]

        # LSTM cell: per-gate matmuls, no 128-lane gate slicing in the hot loop
        cq = jnp.concatenate([ctx, q], axis=-1)                       # [B, E+U]
        i_g = jax.nn.sigmoid(
            gpi_scr[t] + jnp.dot(cq, wcq_i, preferred_element_type=F32))
        f_g = jax.nn.sigmoid(
            gpf_scr[t] + jnp.dot(cq, wcq_f, preferred_element_type=F32))
        g_g = jnp.tanh(
            gpg_scr[t] + jnp.dot(cq, wcq_g, preferred_element_type=F32))
        o_g = jax.nn.sigmoid(
            gpo_scr[t] + jnp.dot(cq, wcq_o, preferred_element_type=F32))
        c_new = f_g * c_scr[...] + i_g * g_g
        h_new = o_g * jnp.tanh(c_new)
        h_scr[...] = h_new
        c_scr[...] = c_new

        # buffer per-step state; projections & output writes happen after the loop
        h_all[t] = h_new
        ctx_all[t] = ctx
        aln_all[t] = align

    # ------------- frame & stop projections, batched over all steps -------------
    H = h_all[...].reshape(T_OUT * B, U)
    CX = ctx_all[...].reshape(T_OUT * B, E)
    dec2d = (jnp.dot(H, wout_h[...], preferred_element_type=F32)
             + jnp.dot(CX, wout_c[...], preferred_element_type=F32) + bout[...])
    stop2d = jax.nn.sigmoid(
        jnp.dot(H, wstop_h[...], preferred_element_type=F32)
        + jnp.dot(CX, wstop_c[...], preferred_element_type=F32) + bstop[...])

    dec = jnp.transpose(dec2d.reshape(T_OUT, B, M), (1, 0, 2))        # [B, T_out, M]
    dec_ref[...] = dec
    stop_ref[...] = jnp.transpose(stop2d.reshape(T_OUT, B, R), (1, 0, 2))
    align_ref[...] = jnp.transpose(aln_all[...], (1, 0, 2))

    # ------------- postnet (k=3 'same' conv as one concatenated matmul) ---------
    zpad = jnp.zeros((B, 1, M), F32)
    x_prev = jnp.concatenate([zpad, dec[:, :T_OUT - 1, :]], axis=1)
    x_next = jnp.concatenate([dec[:, 1:, :], zpad], axis=1)
    x3 = jnp.concatenate([x_prev, dec, x_next], axis=-1).reshape(B * T_OUT, 3 * M)
    w_stack = jnp.concatenate([post_w0[...], post_w1[...], post_w2[...]], axis=0)
    hpost = jnp.tanh(
        jnp.dot(x3, w_stack, preferred_element_type=F32) + post_bc[...])
    post = jnp.dot(hpost, post_wproj[...], preferred_element_type=F32) + post_bproj[...]
    mel_out_ref[...] = dec + post.reshape(B, T_OUT, M)


def tacotron_pallas(emb, mel_target, p):
    vmem = pl.BlockSpec(memory_space=pltpu.MemorySpace.VMEM)
    out_shape = [
        jax.ShapeDtypeStruct((B, T_OUT, M), F32),      # decoder_outputs
        jax.ShapeDtypeStruct((B, T_OUT, M), F32),      # mel_outputs
        jax.ShapeDtypeStruct((B, T_OUT, R), F32),      # stop_token_prediction
        jax.ShapeDtypeStruct((B, T_OUT, T_IN), F32),   # alignments
    ]
    return pl.pallas_call(
        _tacotron_kernel,
        out_shape=out_shape,
        in_specs=[vmem] * 27,
        out_specs=[vmem] * 4,
        scratch_shapes=[
            pltpu.VMEM((T_OUT, B, U), F32),     # gate-pre i
            pltpu.VMEM((T_OUT, B, U), F32),     # gate-pre f
            pltpu.VMEM((T_OUT, B, U), F32),     # gate-pre g
            pltpu.VMEM((T_OUT, B, U), F32),     # gate-pre o
            pltpu.VMEM((T_OUT, B, U), F32),     # h per step
            pltpu.VMEM((T_OUT, B, E), F32),     # ctx per step
            pltpu.VMEM((T_OUT, B, T_IN), F32),  # align per step
            pltpu.VMEM((B, U), F32),            # h state
            pltpu.VMEM((B, U), F32),            # c state
        ],
    )(emb, mel_target,
      p["enc_w"], p["enc_b"],
      p["wp1"], p["bp1"], p["wp2"], p["bp2"],
      p["wq"], p["wm"], p["va"],
      p["wih_p"], p["wih_c"], p["whh"], p["blstm"],
      p["wout_h"], p["wout_c"], p["bout"],
      p["wstop_h"], p["wstop_c"], p["bstop"],
      p["post_w0"], p["post_w1"], p["post_w2"], p["post_bc"],
      p["post_wproj"], p["post_bproj"])


# ------------------------------- parameters ----------------------------------
def init_params(key):
    def nrm(k, shape, scale=0.1):
        return scale * jax.random.normal(k, shape, dtype=F32)

    ks = jax.random.split(key, 18)
    p = {}
    p["emb"] = nrm(ks[0], (V, E), 1.0)
    p["enc_w"] = nrm(ks[1], (E, E))
    p["enc_b"] = jnp.zeros((1, E), F32)
    p["wp1"] = nrm(ks[2], (M, P));  p["bp1"] = jnp.zeros((1, P), F32)
    p["wp2"] = nrm(ks[3], (P, P));  p["bp2"] = jnp.zeros((1, P), F32)
    p["wq"] = nrm(ks[4], (U, A))
    p["wm"] = nrm(ks[5], (E, A))
    p["va"] = nrm(ks[6], (1, A))
    p["wih_p"] = nrm(ks[7], (P, 4 * U))
    p["wih_c"] = nrm(ks[8], (E, 4 * U))
    p["whh"] = nrm(ks[9], (U, 4 * U))
    p["blstm"] = jnp.zeros((1, 4 * U), F32)
    p["wout_h"] = nrm(ks[10], (U, M))
    p["wout_c"] = nrm(ks[11], (E, M))
    p["bout"] = jnp.zeros((1, M), F32)
    p["wstop_h"] = nrm(ks[12], (U, R))
    p["wstop_c"] = nrm(ks[13], (E, R))
    p["bstop"] = jnp.zeros((1, R), F32)
    p["post_w0"] = nrm(ks[14], (M, C))
    p["post_w1"] = nrm(ks[15], (M, C))
    p["post_w2"] = nrm(ks[16], (M, C))
    p["post_bc"] = jnp.zeros((1, C), F32)
    p["post_wproj"] = nrm(ks[17], (C, M))
    p["post_bproj"] = jnp.zeros((1, M), F32)
    return p


# --------------------------------- forward -----------------------------------
def tacotron_forward(params, input_seqs, mel_target):
    """Training-mode forward, full teacher forcing.

    Returns (decoder_outputs, mel_outputs, linear_outputs,
             stop_token_prediction, alignments)."""
    assert mel_target is not None
    emb = jnp.take(params["emb"], input_seqs, axis=0)   # glue: embedding gather
    (decoder_outputs, mel_outputs,
     stop_token_prediction, alignments) = tacotron_pallas(emb, mel_target, params)
    # TODO(synk): hp.use_linear_spec path (post_cbhg + F.linear with fresh random
    # weights each call) is disabled here (use_linear_spec=False).
    linear_outputs = None
    # TODO(synk): eval-mode data-dependent early break on rounded stop tokens has
    # no clean static-shape Pallas equivalent; training-mode loop runs all steps.
    if not hp.use_stop_token:
        stop_token_prediction = None
    return (decoder_outputs, mel_outputs, linear_outputs,
            stop_token_prediction, alignments)


if __name__ == "__main__":
    key = jax.random.PRNGKey(0)
    pk, ik, mk = jax.random.split(key, 3)
    params = init_params(pk)
    input_seqs = jax.random.randint(ik, (B, T_IN), 0, V, dtype=jnp.int32)
    mel_target = 0.1 * jax.random.normal(mk, (B, T_OUT, M), dtype=F32)

    outs = tacotron_forward(params, input_seqs, mel_target)
    decoder_outputs, mel_outputs, linear_outputs, stop_pred, alignments = outs
    jax.block_until_ready((decoder_outputs, mel_outputs, stop_pred, alignments))

    assert decoder_outputs.shape == (B, T_OUT, M)
    assert mel_outputs.shape == (B, T_OUT, M)
    assert stop_pred.shape == (B, T_OUT, R)
    assert alignments.shape == (B, T_OUT, T_IN)
    assert bool(jnp.all(jnp.isfinite(decoder_outputs)))
    assert bool(jnp.all(jnp.isfinite(mel_outputs)))
    print("KERNEL_OK")
</pallas_src>

<mosaic_0001>
module attributes {stable_mosaic.version = 11 : i64} {
  func.func @_tacotron_kernel(%arg0: memref<2x8x32xf32, #tpu.memory_space<vmem>>, %arg1: memref<2x8x16xf32, #tpu.memory_space<vmem>>, %arg2: memref<32x32xf32, #tpu.memory_space<vmem>>, %arg3: memref<1x32xf32, #tpu.memory_space<vmem>>, %arg4: memref<16x32xf32, #tpu.memory_space<vmem>>, %arg5: memref<1x32xf32, #tpu.memory_space<vmem>>, %arg6: memref<32x32xf32, #tpu.memory_space<vmem>>, %arg7: memref<1x32xf32, #tpu.memory_space<vmem>>, %arg8: memref<32x32xf32, #tpu.memory_space<vmem>>, %arg9: memref<32x32xf32, #tpu.memory_space<vmem>>, %arg10: memref<1x32xf32, #tpu.memory_space<vmem>>, %arg11: memref<32x128xf32, #tpu.memory_space<vmem>>, %arg12: memref<32x128xf32, #tpu.memory_space<vmem>>, %arg13: memref<32x128xf32, #tpu.memory_space<vmem>>, %arg14: memref<1x128xf32, #tpu.memory_space<vmem>>, %arg15: memref<32x16xf32, #tpu.memory_space<vmem>>, %arg16: memref<32x16xf32, #tpu.memory_space<vmem>>, %arg17: memref<1x16xf32, #tpu.memory_space<vmem>>, %arg18: memref<32x1xf32, #tpu.memory_space<vmem>>, %arg19: memref<32x1xf32, #tpu.memory_space<vmem>>, %arg20: memref<1x1xf32, #tpu.memory_space<vmem>>, %arg21: memref<16x32xf32, #tpu.memory_space<vmem>>, %arg22: memref<16x32xf32, #tpu.memory_space<vmem>>, %arg23: memref<16x32xf32, #tpu.memory_space<vmem>>, %arg24: memref<1x32xf32, #tpu.memory_space<vmem>>, %arg25: memref<32x16xf32, #tpu.memory_space<vmem>>, %arg26: memref<1x16xf32, #tpu.memory_space<vmem>>, %arg27: memref<2x8x16xf32, #tpu.memory_space<vmem>>, %arg28: memref<2x8x16xf32, #tpu.memory_space<vmem>>, %arg29: memref<2x8x1xf32, #tpu.memory_space<vmem>>, %arg30: memref<2x8x8xf32, #tpu.memory_space<vmem>>, %arg31: memref<8x2x32xf32, #tpu.memory_space<vmem>>, %arg32: memref<8x2x32xf32, #tpu.memory_space<vmem>>, %arg33: memref<8x2x32xf32, #tpu.memory_space<vmem>>, %arg34: memref<8x2x32xf32, #tpu.memory_space<vmem>>, %arg35: memref<8x2x32xf32, #tpu.memory_space<vmem>>, %arg36: memref<8x2x32xf32, #tpu.memory_space<vmem>>, %arg37: memref<8x2x8xf32, #tpu.memory_space<vmem>>, %arg38: memref<2x32xf32, #tpu.memory_space<vmem>>, %arg39: memref<2x32xf32, #tpu.memory_space<vmem>>) attributes {dimension_semantics = [], scalar_prefetch = 0 : i64, scratch_operands = 9 : i64, tpu.core_type = #tpu.core_type<tc>} {
    %c0 = arith.constant 0 : index
    %c0_0 = arith.constant 0 : index
    %c0_1 = arith.constant 0 : index
    %0 = vector.load %arg0[%c0, %c0_0, %c0_1] : memref<2x8x32xf32, #tpu.memory_space<vmem>>, vector<2x8x32xf32>
    %1 = vector.shape_cast %0 : vector<2x8x32xf32> to vector<16x32xf32>
    %c0_2 = arith.constant 0 : index
    %c0_3 = arith.constant 0 : index
    %2 = vector.load %arg2[%c0_2, %c0_3] : memref<32x32xf32, #tpu.memory_space<vmem>>, vector<32x32xf32>
    %cst = arith.constant dense<0.000000e+00> : vector<16x32xf32>
    %3 = tpu.matmul %1, %2, %cst {dimension_numbers = #tpu.dot_dimension_numbers<[1], [0], [0], [1], [0, 0, 1, 1], [], []>} : vector<16x32xf32>, vector<32x32xf32>, vector<16x32xf32> -> vector<16x32xf32>
    %c0_4 = arith.constant 0 : index
    %c0_5 = arith.constant 0 : index
    %4 = vector.load %arg3[%c0_4, %c0_5] : memref<1x32xf32, #tpu.memory_space<vmem>>, vector<1x32xf32>
    %5 = vector.broadcast %4 : vector<1x32xf32> to vector<16x32xf32>
    %6 = arith.addf %3, %5 : vector<16x32xf32>
    %7 = math.tanh %6 : vector<16x32xf32>
    %8 = vector.shape_cast %7 : vector<16x32xf32> to vector<2x8x32xf32>
    %c0_6 = arith.constant 0 : index
    %c0_7 = arith.constant 0 : index
    %9 = vector.load %arg9[%c0_6, %c0_7] : memref<32x32xf32, #tpu.memory_space<vmem>>, vector<32x32xf32>
    %cst_8 = arith.constant dense<0.000000e+00> : vector<16x32xf32>
    %10 = tpu.matmul %7, %9, %cst_8 {dimension_numbers = #tpu.dot_dimension_numbers<[1], [0], [0], [1], [0, 0, 1, 1], [], []>} : vector<16x32xf32>, vector<32x32xf32>, vector<16x32xf32> -> vector<16x32xf32>
    %11 = vector.shape_cast %10 : vector<16x32xf32> to vector<2x8x32xf32>
    %c0_9 = arith.constant 0 : index
    %c0_10 = arith.constant 0 : index
    %12 = vector.load %arg10[%c0_9, %c0_10] : memref<1x32xf32, #tpu.memory_space<vmem>>, vector<1x32xf32>
    %13 = vector.shape_cast %12 : vector<1x32xf32> to vector<1x1x32xf32>
    %c0_11 = arith.constant 0 : index
    %c0_12 = arith.constant 0 : index
    %c0_13 = arith.constant 0 : index
    %14 = vector.load %arg1[%c0_11, %c0_12, %c0_13] : memref<2x8x16xf32, #tpu.memory_space<vmem>>, vector<2x8x16xf32>
    %cst_14 = arith.constant 0.000000e+00 : f32
    %15 = vector.broadcast %cst_14 : f32 to vector<2x1x16xf32>
    %16 = vector.extract_strided_slice %14 {offsets = [0, 0, 0], sizes = [2, 7, 16], strides = [1, 1, 1]} : vector<2x8x16xf32> to vector<2x7x16xf32>
    %17 = tpu.concatenate %15, %16 in 1 : vector<2x1x16xf32>, vector<2x7x16xf32> -> vector<2x8x16xf32>
    %18 = tpu.transpose %17, [1, 0, 2] : vector<2x8x16xf32> -> vector<8x2x16xf32>
    %19 = vector.shape_cast %18 : vector<8x2x16xf32> to vector<16x16xf32>
    %c0_15 = arith.constant 0 : index
    %c0_16 = arith.constant 0 : index
    %20 = vector.load %arg4[%c0_15, %c0_16] : memref<16x32xf32, #tpu.memory_space<vmem>>, vector<16x32xf32>
    %cst_17 = arith.constant dense<0.000000e+00> : vector<16x32xf32>
    %21 = tpu.matmul %19, %20, %cst_17 {dimension_numbers = #tpu.dot_dimension_numbers<[1], [0], [0], [1], [0, 0, 1, 1], [], []>} : vector<16x16xf32>, vector<16x32xf32>, vector<16x32xf32> -> vector<16x32xf32>
    %c0_18 = arith.constant 0 : index
    %c0_19 = arith.constant 0 : index
    %22 = vector.load %arg5[%c0_18, %c0_19] : memref<1x32xf32, #tpu.memory_space<vmem>>, vector<1x32xf32>
    %23 = vector.broadcast %22 : vector<1x32xf32> to vector<16x32xf32>
    %24 = arith.addf %21, %23 : vector<16x32xf32>
    %cst_20 = arith.constant 0.000000e+00 : f32
    %25 = vector.broadcast %cst_20 : f32 to vector<16x32xf32>
    %26 = arith.maximumf %24, %25 : vector<16x32xf32>
    %c0_21 = arith.constant 0 : index
    %c0_22 = arith.constant 0 : index
    %27 = vector.load %arg6[%c0_21, %c0_22] : memref<32x32xf32, #tpu.memory_space<vmem>>, vector<32x32xf32>
    %cst_23 = arith.constant dense<0.000000e+00> : vector<16x32xf32>
    %28 = tpu.matmul %26, %27, %cst_23 {dimension_numbers = #tpu.dot_dimension_numbers<[1], [0], [0], [1], [0, 0, 1, 1], [], []>} : vector<16x32xf32>, vector<32x32xf32>, vector<16x32xf32> -> vector<16x32xf32>
    %c0_24 = arith.constant 0 : index
    %c0_25 = arith.constant 0 : index
    %29 = vector.load %arg7[%c0_24, %c0_25] : memref<1x32xf32, #tpu.memory_space<vmem>>, vector<1x32xf32>
    %30 = vector.broadcast %29 : vector<1x32xf32> to vector<16x32xf32>
    %31 = arith.addf %28, %30 : vector<16x32xf32>
    %cst_26 = arith.constant 0.000000e+00 : f32
    %32 = vector.broadcast %cst_26 : f32 to vector<16x32xf32>
    %33 = arith.maximumf %31, %32 : vector<16x32xf32>
    %c0_27 = arith.constant 0 : index
    %c0_28 = arith.constant 0 : index
    %34 = vector.load %arg11[%c0_27, %c0_28] : memref<32x128xf32, #tpu.memory_space<vmem>>, vector<32x128xf32>
    %cst_29 = arith.constant dense<0.000000e+00> : vector<16x128xf32>
    %35 = tpu.matmul %33, %34, %cst_29 {dimension_numbers = #tpu.dot_dimension_numbers<[1], [0], [0], [1], [0, 0, 1, 1], [], []>} : vector<16x32xf32>, vector<32x128xf32>, vector<16x128xf32> -> vector<16x128xf32>
    %c0_30 = arith.constant 0 : index
    %c0_31 = arith.constant 0 : index
    %36 = vector.load %arg14[%c0_30, %c0_31] : memref<1x128xf32, #tpu.memory_space<vmem>>, vector<1x128xf32>
    %37 = vector.broadcast %36 : vector<1x128xf32> to vector<16x128xf32>
    %38 = arith.addf %35, %37 : vector<16x128xf32>
    %39 = vector.shape_cast %38 : vector<16x128xf32> to vector<8x2x128xf32>
    %40 = vector.extract_strided_slice %39 {offsets = [0, 0, 0], sizes = [8, 2, 32], strides = [1, 1, 1]} : vector<8x2x128xf32> to vector<8x2x32xf32>
    %c0_32 = arith.constant 0 : index
    %c0_33 = arith.constant 0 : index
    %c0_34 = arith.constant 0 : index
    %41 = vector.load %arg31[%c0_32, %c0_33, %c0_34] : memref<8x2x32xf32, #tpu.memory_space<vmem>>, vector<8x2x32xf32>
    tpu.vector_store %arg31[%c0_32, %c0_33, %c0_34], %40 {strides = array<i32>} : memref<8x2x32xf32, #tpu.memory_space<vmem>>, vector<8x2x32xf32>,
    %42 = vector.extract_strided_slice %39 {offsets = [0, 0, 32], sizes = [8, 2, 32], strides = [1, 1, 1]} : vector<8x2x128xf32> to vector<8x2x32xf32>
    %c0_35 = arith.constant 0 : index
    %c0_36 = arith.constant 0 : index
    %c0_37 = arith.constant 0 : index
    %43 = vector.load %arg32[%c0_35, %c0_36, %c0_37] : memref<8x2x32xf32, #tpu.memory_space<vmem>>, vector<8x2x32xf32>
    tpu.vector_store %arg32[%c0_35, %c0_36, %c0_37], %42 {strides = array<i32>} : memref<8x2x32xf32, #tpu.memory_space<vmem>>, vector<8x2x32xf32>,
    %44 = vector.extract_strided_slice %39 {offsets = [0, 0, 64], sizes = [8, 2, 32], strides = [1, 1, 1]} : vector<8x2x128xf32> to vector<8x2x32xf32>
    %c0_38 = arith.constant 0 : index
    %c0_39 = arith.constant 0 : index
    %c0_40 = arith.constant 0 : index
    %45 = vector.load %arg33[%c0_38, %c0_39, %c0_40] : memref<8x2x32xf32, #tpu.memory_space<vmem>>, vector<8x2x32xf32>
    tpu.vector_store %arg33[%c0_38, %c0_39, %c0_40], %44 {strides = array<i32>} : memref<8x2x32xf32, #tpu.memory_space<vmem>>, vector<8x2x32xf32>,
    %46 = vector.extract_strided_slice %39 {offsets = [0, 0, 96], sizes = [8, 2, 32], strides = [1, 1, 1]} : vector<8x2x128xf32> to vector<8x2x32xf32>
    %c0_41 = arith.constant 0 : index
    %c0_42 = arith.constant 0 : index
    %c0_43 = arith.constant 0 : index
    %47 = vector.load %arg34[%c0_41, %c0_42, %c0_43] : memref<8x2x32xf32, #tpu.memory_space<vmem>>, vector<8x2x32xf32>
    tpu.vector_store %arg34[%c0_41, %c0_42, %c0_43], %46 {strides = array<i32>} : memref<8x2x32xf32, #tpu.memory_space<vmem>>, vector<8x2x32xf32>,
    %c0_44 = arith.constant 0 : index
    %c0_45 = arith.constant 0 : index
    %48 = vector.load %arg12[%c0_44, %c0_45] : memref<32x128xf32, #tpu.memory_space<vmem>>, vector<32x128xf32>
    %c0_46 = arith.constant 0 : index
    %c0_47 = arith.constant 0 : index
    %49 = vector.load %arg13[%c0_46, %c0_47] : memref<32x128xf32, #tpu.memory_space<vmem>>, vector<32x128xf32>
    %50 = vector.extract_strided_slice %48 {offsets = [0, 0], sizes = [32, 32], strides = [1, 1]} : vector<32x128xf32> to vector<32x32xf32>
    %51 = vector.extract_strided_slice %49 {offsets = [0, 0], sizes = [32, 32], strides = [1, 1]} : vector<32x128xf32> to vector<32x32xf32>
    %52 = tpu.concatenate %50, %51 in 0 : vector<32x32xf32>, vector<32x32xf32> -> vector<64x32xf32>
    %53 = vector.extract_strided_slice %48 {offsets = [0, 32], sizes = [32, 32], strides = [1, 1]} : vector<32x128xf32> to vector<32x32xf32>
    %54 = vector.extract_strided_slice %49 {offsets = [0, 32], sizes = [32, 32], strides = [1, 1]} : vector<32x128xf32> to vector<32x32xf32>
    %55 = tpu.concatenate %53, %54 in 0 : vector<32x32xf32>, vector<32x32xf32> -> vector<64x32xf32>
    %56 = vector.extract_strided_slice %48 {offsets = [0, 64], sizes = [32, 32], strides = [1, 1]} : vector<32x128xf32> to vector<32x32xf32>
    %57 = vector.extract_strided_slice %49 {offsets = [0, 64], sizes = [32, 32], strides = [1, 1]} : vector<32x128xf32> to vector<32x32xf32>
    %58 = tpu.concatenate %56, %57 in 0 : vector<32x32xf32>, vector<32x32xf32> -> vector<64x32xf32>
    %59 = vector.extract_strided_slice %48 {offsets = [0, 96], sizes = [32, 32], strides = [1, 1]} : vector<32x128xf32> to vector<32x32xf32>
    %60 = vector.extract_strided_slice %49 {offsets = [0, 96], sizes = [32, 32], strides = [1, 1]} : vector<32x128xf32> to vector<32x32xf32>
    %61 = tpu.concatenate %59, %60 in 0 : vector<32x32xf32>, vector<32x32xf32> -> vector<64x32xf32>
    %c0_48 = arith.constant 0 : index
    %c0_49 = arith.constant 0 : index
    %62 = vector.load %arg8[%c0_48, %c0_49] : memref<32x32xf32, #tpu.memory_space<vmem>>, vector<32x32xf32>
    %cst_50 = arith.constant 0.000000e+00 : f32
    %63 = vector.broadcast %cst_50 : f32 to vector<2x32xf32>
    %c0_51 = arith.constant 0 : index
    %c0_52 = arith.constant 0 : index
    %64 = vector.load %arg38[%c0_51, %c0_52] : memref<2x32xf32, #tpu.memory_space<vmem>>, vector<2x32xf32>
    tpu.vector_store %arg38[%c0_51, %c0_52], %63 {strides = array<i32>} : memref<2x32xf32, #tpu.memory_space<vmem>>, vector<2x32xf32>,
    %cst_53 = arith.constant 0.000000e+00 : f32
    %65 = vector.broadcast %cst_53 : f32 to vector<2x32xf32>
    %c0_54 = arith.constant 0 : index
    %c0_55 = arith.constant 0 : index
    %66 = vector.load %arg39[%c0_54, %c0_55] : memref<2x32xf32, #tpu.memory_space<vmem>>, vector<2x32xf32>
    tpu.vector_store %arg39[%c0_54, %c0_55], %65 {strides = array<i32>} : memref<2x32xf32, #tpu.memory_space<vmem>>, vector<2x32xf32>,
    %c0_i32 = arith.constant 0 : i32
    %c1_i32 = arith.constant 1 : i32
    %67 = arith.muli %c0_i32, %c1_i32 : i32
    %c0_i32_56 = arith.constant 0 : i32
    %68 = arith.addi %c0_i32_56, %67 : i32
    %c0_57 = arith.constant 0 : index
    %c0_58 = arith.constant 0 : index
    %69 = vector.load %arg38[%c0_57, %c0_58] : memref<2x32xf32, #tpu.memory_space<vmem>>, vector<2x32xf32>
    %cst_59 = arith.constant dense<0.000000e+00> : vector<2x32xf32>
    %70 = tpu.matmul %69, %62, %cst_59 {dimension_numbers = #tpu.dot_dimension_numbers<[1], [0], [0], [1], [0, 0, 1, 1], [], []>} : vector<2x32xf32>, vector<32x32xf32>, vector<2x32xf32> -> vector<2x32xf32>
    %71 = vector.shape_cast %70 : vector<2x32xf32> to vector<2x1x32xf32>
    %72 = vector.broadcast %71 : vector<2x1x32xf32> to vector<2x8x32xf32>
    %73 = arith.addf %11, %72 : vector<2x8x32xf32>
    %74 = math.tanh %73 : vector<2x8x32xf32>
    %75 = vector.broadcast %13 : vector<1x1x32xf32> to vector<2x8x32xf32>
    %76 = arith.mulf %74, %75 : vector<2x8x32xf32>
    %cst_60 = arith.constant dense<0.000000e+00> : vector<2x8xf32>
    %77 = vector.multi_reduction <add>, %76, %cst_60 [2] : vector<2x8x32xf32> to vector<2x8xf32>
    %cst_61 = arith.constant dense<0xFF800000> : vector<2xf32>
    %78 = vector.multi_reduction <maximumf>, %77, %cst_61 [1] : vector<2x8xf32> to vector<2xf32>
    %79 = vector.shape_cast %78 : vector<2xf32> to vector<2x1xf32>
    %80 = vector.broadcast %79 : vector<2x1xf32> to vector<2x8xf32>
    %81 = arith.subf %77, %80 : vector<2x8xf32>
    %82 = math.exp %81 : vector<2x8xf32>
    %cst_62 = arith.constant dense<0.000000e+00> : vector<2xf32>
    %83 = vector.multi_reduction <add>, %82, %cst_62 [1] : vector<2x8xf32> to vector<2xf32>
    %84 = vector.shape_cast %83 : vector<2xf32> to vector<2x1xf32>
    %85 = vector.broadcast %84 : vector<2x1xf32> to vector<2x8xf32>
    %86 = arith.divf %82, %85 : vector<2x8xf32>
    %87 = vector.shape_cast %86 : vector<2x8xf32> to vector<2x8x1xf32>
    %88 = vector.broadcast %87 : vector<2x8x1xf32> to vector<2x8x32xf32>
    %89 = arith.mulf %88, %8 : vector<2x8x32xf32>
    %cst_63 = arith.constant dense<0.000000e+00> : vector<2x32xf32>
    %90 = vector.multi_reduction <add>, %89, %cst_63 [1] : vector<2x8x32xf32> to vector<2x32xf32>
    %91 = tpu.concatenate %90, %69 in 1 : vector<2x32xf32>, vector<2x32xf32> -> vector<2x64xf32>
    %92 = arith.index_cast %68 : i32 to index
    %c0_64 = arith.constant 0 : index
    %c0_65 = arith.constant 0 : index
    %93 = vector.load %arg31[%92, %c0_64, %c0_65] : memref<8x2x32xf32, #tpu.memory_space<vmem>>, vector<1x2x32xf32>
    %94 = vector.shape_cast %93 : vector<1x2x32xf32> to vector<2x32xf32>
    %cst_66 = arith.constant dense<0.000000e+00> : vector<2x32xf32>
    %95 = tpu.matmul %91, %52, %cst_66 {dimension_numbers = #tpu.dot_dimension_numbers<[1], [0], [0], [1], [0, 0, 1, 1], [], []>} : vector<2x64xf32>, vector<64x32xf32>, vector<2x32xf32> -> vector<2x32xf32>
    %96 = arith.addf %94, %95 : vector<2x32xf32>
    %97 = arith.negf %96 : vector<2x32xf32>
    %98 = math.exp %97 : vector<2x32xf32>
    %cst_67 = arith.constant 1.000000e+00 : f32
    %99 = vector.broadcast %cst_67 : f32 to vector<2x32xf32>
    %100 = arith.addf %99, %98 : vector<2x32xf32>
    %101 = arith.divf %99, %100 : vector<2x32xf32>
    %102 = arith.index_cast %68 : i32 to index
    %c0_68 = arith.constant 0 : index
    %c0_69 = arith.constant 0 : index
    %103 = vector.load %arg32[%102, %c0_68, %c0_69] : memref<8x2x32xf32, #tpu.memory_space<vmem>>, vector<1x2x32xf32>
    %104 = vector.shape_cast %103 : vector<1x2x32xf32> to vector<2x32xf32>
    %cst_70 = arith.constant dense<0.000000e+00> : vector<2x32xf32>
    %105 = tpu.matmul %91, %55, %cst_70 {dimension_numbers = #tpu.dot_dimension_numbers<[1], [0], [0], [1], [0, 0, 1, 1], [], []>} : vector<2x64xf32>, vector<64x32xf32>, vector<2x32xf32> -> vector<2x32xf32>
    %106 = arith.addf %104, %105 : vector<2x32xf32>
    %107 = arith.negf %106 : vector<2x32xf32>
    %108 = math.exp %107 : vector<2x32xf32>
    %cst_71 = arith.constant 1.000000e+00 : f32
    %109 = vector.broadcast %cst_71 : f32 to vector<2x32xf32>
    %110 = arith.addf %109, %108 : vector<2x32xf32>
    %111 = arith.divf %109, %110 : vector<2x32xf32>
    %112 = arith.index_cast %68 : i32 to index
    %c0_72 = arith.constant 0 : index
    %c0_73 = arith.constant 0 : index
    %113 = vector.load %arg33[%112, %c0_72, %c0_73] : memref<8x2x32xf32, #tpu.memory_space<vmem>>, vector<1x2x32xf32>
    %114 = vector.shape_cast %113 : vector<1x2x32xf32> to vector<2x32xf32>
    %cst_74 = arith.constant dense<0.000000e+00> : vector<2x32xf32>
    %115 = tpu.matmul %91, %58, %cst_74 {dimension_numbers = #tpu.dot_dimension_numbers<[1], [0], [0], [1], [0, 0, 1, 1], [], []>} : vector<2x64xf32>, vector<64x32xf32>, vector<2x32xf32> -> vector<2x32xf32>
    %116 = arith.addf %114, %115 : vector<2x32xf32>
    %117 = math.tanh %116 : vector<2x32xf32>
    %118 = arith.index_cast %68 : i32 to index
    %c0_75 = arith.constant 0 : index
    %c0_76 = arith.constant 0 : index
    %119 = vector.load %arg34[%118, %c0_75, %c0_76] : memref<8x2x32xf32, #tpu.memory_space<vmem>>, vector<1x2x32xf32>
    %120 = vector.shape_cast %119 : vector<1x2x32xf32> to vector<2x32xf32>
    %cst_77 = arith.constant dense<0.000000e+00> : vector<2x32xf32>
    %121 = tpu.matmul %91, %61, %cst_77 {dimension_numbers = #tpu.dot_dimension_numbers<[1], [0], [0], [1], [0, 0, 1, 1], [], []>} : vector<2x64xf32>, vector<64x32xf32>, vector<2x32xf32> -> vector<2x32xf32>
    %122 = arith.addf %120, %121 : vector<2x32xf32>
    %123 = arith.negf %122 : vector<2x32xf32>
    %124 = math.exp %123 : vector<2x32xf32>
    %cst_78 = arith.constant 1.000000e+00 : f32
    %125 = vector.broadcast %cst_78 : f32 to vector<2x32xf32>
    %126 = arith.addf %125, %124 : vector<2x32xf32>
    %127 = arith.divf %125, %126 : vector<2x32xf32>
    %c0_79 = arith.constant 0 : index
    %c0_80 = arith.constant 0 : index
    %128 = vector.load %arg39[%c0_79, %c0_80] : memref<2x32xf32, #tpu.memory_space<vmem>>, vector<2x32xf32>
    %129 = arith.mulf %111, %128 : vector<2x32xf32>
    %130 = arith.mulf %101, %117 : vector<2x32xf32>
    %131 = arith.addf %129, %130 : vector<2x32xf32>
    %132 = math.tanh %131 : vector<2x32xf32>
    %133 = arith.mulf %127, %132 : vector<2x32xf32>
    %c0_81 = arith.constant 0 : index
    %c0_82 = arith.constant 0 : index
    %134 = vector.load %arg38[%c0_81, %c0_82] : memref<2x32xf32, #tpu.memory_space<vmem>>, vector<2x32xf32>
    tpu.vector_store %arg38[%c0_81, %c0_82], %133 {strides = array<i32>} : memref<2x32xf32, #tpu.memory_space<vmem>>, vector<2x32xf32>,
    %c0_83 = arith.constant 0 : index
    %c0_84 = arith.constant 0 : index
    %135 = vector.load %arg39[%c0_83, %c0_84] : memref<2x32xf32, #tpu.memory_space<vmem>>, vector<2x32xf32>
    tpu.vector_store %arg39[%c0_83, %c0_84], %131 {strides = array<i32>} : memref<2x32xf32, #tpu.memory_space<vmem>>, vector<2x32xf32>,
    %136 = arith.index_cast %68 : i32 to index
    %c0_85 = arith.constant 0 : index
    %c0_86 = arith.constant 0 : index
    %137 = vector.load %arg35[%136, %c0_85, %c0_86] : memref<8x2x32xf32, #tpu.memory_space<vmem>>, vector<1x2x32xf32>
    %138 = vector.shape_cast %137 : vector<1x2x32xf32> to vector<2x32xf32>
    %139 = vector.shape_cast %133 : vector<2x32xf32> to vector<1x2x32xf32>
    tpu.vector_store %arg35[%136, %c0_85, %c0_86], %139 {strides = array<i32>} : memref<8x2x32xf32, #tpu.memory_space<vmem>>, vector<1x2x32xf32>,
    %140 = arith.index_cast %68 : i32 to index
    %c0_87 = arith.constant 0 : index
    %c0_88 = arith.constant 0 : index
    %141 = vector.load %arg36[%140, %c0_87, %c0_88] : memref<8x2x32xf32, #tpu.memory_space<vmem>>, vector<1x2x32xf32>
    %142 = vector.shape_cast %141 : vector<1x2x32xf32> to vector<2x32xf32>
    %143 = vector.shape_cast %90 : vector<2x32xf32> to vector<1x2x32xf32>
    tpu.vector_store %arg36[%140, %c0_87, %c0_88], %143 {strides = array<i32>} : memref<8x2x32xf32, #tpu.memory_space<vmem>>, vector<1x2x32xf32>,
    %144 = arith.index_cast %68 : i32 to index
    %c0_89 = arith.constant 0 : index
    %c0_90 = arith.constant 0 : index
    %145 = vector.load %arg37[%144, %c0_89, %c0_90] : memref<8x2x8xf32, #tpu.memory_space<vmem>>, vector<1x2x8xf32>
    %146 = vector.shape_cast %145 : vector<1x2x8xf32> to vector<2x8xf32>
    %147 = vector.shape_cast %86 : vector<2x8xf32> to vector<1x2x8xf32>
    tpu.vector_store %arg37[%144, %c0_89, %c0_90], %147 {strides = array<i32>} : memref<8x2x8xf32, #tpu.memory_space<vmem>>, vector<1x2x8xf32>,
    %c1_i32_91 = arith.constant 1 : i32
    %c1_i32_92 = arith.constant 1 : i32
    %148 = arith.muli %c1_i32_91, %c1_i32_92 : i32
    %c0_i32_93 = arith.constant 0 : i32
    %149 = arith.addi %c0_i32_93, %148 : i32
    %c0_94 = arith.constant 0 : index
    %c0_95 = arith.constant 0 : index
    %150 = vector.load %arg38[%c0_94, %c0_95] : memref<2x32xf32, #tpu.memory_space<vmem>>, vector<2x32xf32>
    %cst_96 = arith.constant dense<0.000000e+00> : vector<2x32xf32>
    %151 = tpu.matmul %150, %62, %cst_96 {dimension_numbers = #tpu.dot_dimension_numbers<[1], [0], [0], [1], [0, 0, 1, 1], [], []>} : vector<2x32xf32>, vector<32x32xf32>, vector<2x32xf32> -> vector<2x32xf32>
    %152 = vector.shape_cast %151 : vector<2x32xf32> to vector<2x1x32xf32>
    %153 = vector.broadcast %152 : vector<2x1x32xf32> to vector<2x8x32xf32>
    %154 = arith.addf %11, %153 : vector<2x8x32xf32>
    %155 = math.tanh %154 : vector<2x8x32xf32>
    %156 = vector.broadcast %13 : vector<1x1x32xf32> to vector<2x8x32xf32>
    %157 = arith.mulf %155, %156 : vector<2x8x32xf32>
    %cst_97 = arith.constant dense<0.000000e+00> : vector<2x8xf32>
    %158 = vector.multi_reduction <add>, %157, %cst_97 [2] : vector<2x8x32xf32> to vector<2x8xf32>
    %cst_98 = arith.constant dense<0xFF800000> : vector<2xf32>
    %159 = vector.multi_reduction <maximumf>, %158, %cst_98 [1] : vector<2x8xf32> to vector<2xf32>
    %160 = vector.shape_cast %159 : vector<2xf32> to vector<2x1xf32>
    %161 = vector.broadcast %160 : vector<2x1xf32> to vector<2x8xf32>
    %162 = arith.subf %158, %161 : vector<2x8xf32>
    %163 = math.exp %162 : vector<2x8xf32>
    %cst_99 = arith.constant dense<0.000000e+00> : vector<2xf32>
    %164 = vector.multi_reduction <add>, %163, %cst_99 [1] : vector<2x8xf32> to vector<2xf32>
    %165 = vector.shape_cast %164 : vector<2xf32> to vector<2x1xf32>
    %166 = vector.broadcast %165 : vector<2x1xf32> to vector<2x8xf32>
    %167 = arith.divf %163, %166 : vector<2x8xf32>
    %168 = vector.shape_cast %167 : vector<2x8xf32> to vector<2x8x1xf32>
    %169 = vector.broadcast %168 : vector<2x8x1xf32> to vector<2x8x32xf32>
    %170 = arith.mulf %169, %8 : vector<2x8x32xf32>
    %cst_100 = arith.constant dense<0.000000e+00> : vector<2x32xf32>
    %171 = vector.multi_reduction <add>, %170, %cst_100 [1] : vector<2x8x32xf32> to vector<2x32xf32>
    %172 = tpu.concatenate %171, %150 in 1 : vector<2x32xf32>, vector<2x32xf32> -> vector<2x64xf32>
    %173 = arith.index_cast %149 : i32 to index
    %c0_101 = arith.constant 0 : index
    %c0_102 = arith.constant 0 : index
    %174 = vector.load %arg31[%173, %c0_101, %c0_102] : memref<8x2x32xf32, #tpu.memory_space<vmem>>, vector<1x2x32xf32>
    %175 = vector.shape_cast %174 : vector<1x2x32xf32> to vector<2x32xf32>
    %cst_103 = arith.constant dense<0.000000e+00> : vector<2x32xf32>
    %176 = tpu.matmul %172, %52, %cst_103 {dimension_numbers = #tpu.dot_dimension_numbers<[1], [0], [0], [1], [0, 0, 1, 1], [], []>} : vector<2x64xf32>, vector<64x32xf32>, vector<2x32xf32> -> vector<2x32xf32>
    %177 = arith.addf %175, %176 : vector<2x32xf32>
    %178 = arith.negf %177 : vector<2x32xf32>
    %179 = math.exp %178 : vector<2x32xf32>
    %cst_104 = arith.constant 1.000000e+00 : f32
    %180 = vector.broadcast %cst_104 : f32 to vector<2x32xf32>
    %181 = arith.addf %180, %179 : vector<2x32xf32>
    %182 = arith.divf %180, %181 : vector<2x32xf32>
    %183 = arith.index_cast %149 : i32 to index
    %c0_105 = arith.constant 0 : index
    %c0_106 = arith.constant 0 : index
    %184 = vector.load %arg32[%183, %c0_105, %c0_106] : memref<8x2x32xf32, #tpu.memory_space<vmem>>, vector<1x2x32xf32>
    %185 = vector.shape_cast %184 : vector<1x2x32xf32> to vector<2x32xf32>
    %cst_107 = arith.constant dense<0.000000e+00> : vector<2x32xf32>
    %186 = tpu.matmul %172, %55, %cst_107 {dimension_numbers = #tpu.dot_dimension_numbers<[1], [0], [0], [1], [0, 0, 1, 1], [], []>} : vector<2x64xf32>, vector<64x32xf32>, vector<2x32xf32> -> vector<2x32xf32>
    %187 = arith.addf %185, %186 : vector<2x32xf32>
    %188 = arith.negf %187 : vector<2x32xf32>
    %189 = math.exp %188 : vector<2x32xf32>
    %cst_108 = arith.constant 1.000000e+00 : f32
    %190 = vector.broadcast %cst_108 : f32 to vector<2x32xf32>
    %191 = arith.addf %190, %189 : vector<2x32xf32>
    %192 = arith.divf %190, %191 : vector<2x32xf32>
    %193 = arith.index_cast %149 : i32 to index
    %c0_109 = arith.constant 0 : index
    %c0_110 = arith.constant 0 : index
    %194 = vector.load %arg33[%193, %c0_109, %c0_110] : memref<8x2x32xf32, #tpu.memory_space<vmem>>, vector<1x2x32xf32>
    %195 = vector.shape_cast %194 : vector<1x2x32xf32> to vector<2x32xf32>
    %cst_111 = arith.constant dense<0.000000e+00> : vector<2x32xf32>
    %196 = tpu.matmul %172, %58, %cst_111 {dimension_numbers = #tpu.dot_dimension_numbers<[1], [0], [0], [1], [0, 0, 1, 1], [], []>} : vector<2x64xf32>, vector<64x32xf32>, vector<2x32xf32> -> vector<2x32xf32>
    %197 = arith.addf %195, %196 : vector<2x32xf32>
    %198 = math.tanh %197 : vector<2x32xf32>
    %199 = arith.index_cast %149 : i32 to index
    %c0_112 = arith.constant 0 : index
    %c0_113 = arith.constant 0 : index
    %200 = vector.load %arg34[%199, %c0_112, %c0_113] : memref<8x2x32xf32, #tpu.memory_space<vmem>>, vector<1x2x32xf32>
    %201 = vector.shape_cast %200 : vector<1x2x32xf32> to vector<2x32xf32>
    %cst_114 = arith.constant dense<0.000000e+00> : vector<2x32xf32>
    %202 = tpu.matmul %172, %61, %cst_114 {dimension_numbers = #tpu.dot_dimension_numbers<[1], [0], [0], [1], [0, 0, 1, 1], [], []>} : vector<2x64xf32>, vector<64x32xf32>, vector<2x32xf32> -> vector<2x32xf32>
    %203 = arith.addf %201, %202 : vector<2x32xf32>
    %204 = arith.negf %203 : vector<2x32xf32>
    %205 = math.exp %204 : vector<2x32xf32>
    %cst_115 = arith.constant 1.000000e+00 : f32
    %206 = vector.broadcast %cst_115 : f32 to vector<2x32xf32>
    %207 = arith.addf %206, %205 : vector<2x32xf32>
    %208 = arith.divf %206, %207 : vector<2x32xf32>
    %c0_116 = arith.constant 0 : index
    %c0_117 = arith.constant 0 : index
    %209 = vector.load %arg39[%c0_116, %c0_117] : memref<2x32xf32, #tpu.memory_space<vmem>>, vector<2x32xf32>
    %210 = arith.mulf %192, %209 : vector<2x32xf32>
    %211 = arith.mulf %182, %198 : vector<2x32xf32>
    %212 = arith.addf %210, %211 : vector<2x32xf32>
    %213 = math.tanh %212 : vector<2x32xf32>
    %214 = arith.mulf %208, %213 : vector<2x32xf32>
    %c0_118 = arith.constant 0 : index
    %c0_119 = arith.constant 0 : index
    %215 = vector.load %arg38[%c0_118, %c0_119] : memref<2x32xf32, #tpu.memory_space<vmem>>, vector<2x32xf32>
    tpu.vector_store %arg38[%c0_118, %c0_119], %214 {strides = array<i32>} : memref<2x32xf32, #tpu.memory_space<vmem>>, vector<2x32xf32>,
    %c0_120 = arith.constant 0 : index
    %c0_121 = arith.constant 0 : index
    %216 = vector.load %arg39[%c0_120, %c0_121] : memref<2x32xf32, #tpu.memory_space<vmem>>, vector<2x32xf32>
    tpu.vector_store %arg39[%c0_120, %c0_121], %212 {strides = array<i32>} : memref<2x32xf32, #tpu.memory_space<vmem>>, vector<2x32xf32>,
    %217 = arith.index_cast %149 : i32 to index
    %c0_122 = arith.constant 0 : index
    %c0_123 = arith.constant 0 : index
    %218 = vector.load %arg35[%217, %c0_122, %c0_123] : memref<8x2x32xf32, #tpu.memory_space<vmem>>, vector<1x2x32xf32>
    %219 = vector.shape_cast %218 : vector<1x2x32xf32> to vector<2x32xf32>
    %220 = vector.shape_cast %214 : vector<2x32xf32> to vector<1x2x32xf32>
    tpu.vector_store %arg35[%217, %c0_122, %c0_123], %220 {strides = array<i32>} : memref<8x2x32xf32, #tpu.memory_space<vmem>>, vector<1x2x32xf32>,
    %221 = arith.index_cast %149 : i32 to index
    %c0_124 = arith.constant 0 : index
    %c0_125 = arith.constant 0 : index
    %222 = vector.load %arg36[%221, %c0_124, %c0_125] : memref<8x2x32xf32, #tpu.memory_space<vmem>>, vector<1x2x32xf32>
    %223 = vector.shape_cast %222 : vector<1x2x32xf32> to vector<2x32xf32>
    %224 = vector.shape_cast %171 : vector<2x32xf32> to vector<1x2x32xf32>
    tpu.vector_store %arg36[%221, %c0_124, %c0_125], %224 {strides = array<i32>} : memref<8x2x32xf32, #tpu.memory_space<vmem>>, vector<1x2x32xf32>,
    %225 = arith.index_cast %149 : i32 to index
    %c0_126 = arith.constant 0 : index
    %c0_127 = arith.constant 0 : index
    %226 = vector.load %arg37[%225, %c0_126, %c0_127] : memref<8x2x8xf32, #tpu.memory_space<vmem>>, vector<1x2x8xf32>
    %227 = vector.shape_cast %226 : vector<1x2x8xf32> to vector<2x8xf32>
    %228 = vector.shape_cast %167 : vector<2x8xf32> to vector<1x2x8xf32>
    tpu.vector_store %arg37[%225, %c0_126, %c0_127], %228 {strides = array<i32>} : memref<8x2x8xf32, #tpu.memory_space<vmem>>, vector<1x2x8xf32>,
    %c2_i32 = arith.constant 2 : i32
    %c1_i32_128 = arith.constant 1 : i32
    %229 = arith.muli %c2_i32, %c1_i32_128 : i32
    %c0_i32_129 = arith.constant 0 : i32
    %230 = arith.addi %c0_i32_129, %229 : i32
    %c0_130 = arith.constant 0 : index
    %c0_131 = arith.constant 0 : index
    %231 = vector.load %arg38[%c0_130, %c0_131] : memref<2x32xf32, #tpu.memory_space<vmem>>, vector<2x32xf32>
    %cst_132 = arith.constant dense<0.000000e+00> : vector<2x32xf32>
    %232 = tpu.matmul %231, %62, %cst_132 {dimension_numbers = #tpu.dot_dimension_numbers<[1], [0], [0], [1], [0, 0, 1, 1], [], []>} : vector<2x32xf32>, vector<32x32xf32>, vector<2x32xf32> -> vector<2x32xf32>
    %233 = vector.shape_cast %232 : vector<2x32xf32> to vector<2x1x32xf32>
    %234 = vector.broadcast %233 : vector<2x1x32xf32> to vector<2x8x32xf32>
    %235 = arith.addf %11, %234 : vector<2x8x32xf32>
    %236 = math.tanh %235 : vector<2x8x32xf32>
    %237 = vector.broadcast %13 : vector<1x1x32xf32> to vector<2x8x32xf32>
    %238 = arith.mulf %236, %237 : vector<2x8x32xf32>
    %cst_133 = arith.constant dense<0.000000e+00> : vector<2x8xf32>
    %239 = vector.multi_reduction <add>, %238, %cst_133 [2] : vector<2x8x32xf32> to vector<2x8xf32>
    %cst_134 = arith.constant dense<0xFF800000> : vector<2xf32>
    %240 = vector.multi_reduction <maximumf>, %239, %cst_134 [1] : vector<2x8xf32> to vector<2xf32>
    %241 = vector.shape_cast %240 : vector<2xf32> to vector<2x1xf32>
    %242 = vector.broadcast %241 : vector<2x1xf32> to vector<2x8xf32>
    %243 = arith.subf %239, %242 : vector<2x8xf32>
    %244 = math.exp %243 : vector<2x8xf32>
    %cst_135 = arith.constant dense<0.000000e+00> : vector<2xf32>
    %245 = vector.multi_reduction <add>, %244, %cst_135 [1] : vector<2x8xf32> to vector<2xf32>
    %246 = vector.shape_cast %245 : vector<2xf32> to vector<2x1xf32>
    %247 = vector.broadcast %246 : vector<2x1xf32> to vector<2x8xf32>
    %248 = arith.divf %244, %247 : vector<2x8xf32>
    %249 = vector.shape_cast %248 : vector<2x8xf32> to vector<2x8x1xf32>
    %250 = vector.broadcast %249 : vector<2x8x1xf32> to vector<2x8x32xf32>
    %251 = arith.mulf %250, %8 : vector<2x8x32xf32>
    %cst_136 = arith.constant dense<0.000000e+00> : vector<2x32xf32>
    %252 = vector.multi_reduction <add>, %251, %cst_136 [1] : vector<2x8x32xf32> to vector<2x32xf32>
    %253 = tpu.concatenate %252, %231 in 1 : vector<2x32xf32>, vector<2x32xf32> -> vector<2x64xf32>
    %254 = arith.index_cast %230 : i32 to index
    %c0_137 = arith.constant 0 : index
    %c0_138 = arith.constant 0 : index
    %255 = vector.load %arg31[%254, %c0_137, %c0_138] : memref<8x2x32xf32, #tpu.memory_space<vmem>>, vector<1x2x32xf32>
    %256 = vector.shape_cast %255 : vector<1x2x32xf32> to vector<2x32xf32>
    %cst_139 = arith.constant dense<0.000000e+00> : vector<2x32xf32>
    %257 = tpu.matmul %253, %52, %cst_139 {dimension_numbers = #tpu.dot_dimension_numbers<[1], [0], [0], [1], [0, 0, 1, 1], [], []>} : vector<2x64xf32>, vector<64x32xf32>, vector<2x32xf32> -> vector<2x32xf32>
    %258 = arith.addf %256, %257 : vector<2x32xf32>
    %259 = arith.negf %258 : vector<2x32xf32>
    %260 = math.exp %259 : vector<2x32xf32>
    %cst_140 = arith.constant 1.000000e+00 : f32
    %261 = vector.broadcast %cst_140 : f32 to vector<2x32xf32>
    %262 = arith.addf %261, %260 : vector<2x32xf32>
    %263 = arith.divf %261, %262 : vector<2x32xf32>
    %264 = arith.index_cast %230 : i32 to index
    %c0_141 = arith.constant 0 : index
    %c0_142 = arith.constant 0 : index
    %265 = vector.load %arg32[%264, %c0_141, %c0_142] : memref<8x2x32xf32, #tpu.memory_space<vmem>>, vector<1x2x32xf32>
    %266 = vector.shape_cast %265 : vector<1x2x32xf32> to vector<2x32xf32>
    %cst_143 = arith.constant dense<0.000000e+00> : vector<2x32xf32>
    %267 = tpu.matmul %253, %55, %cst_143 {dimension_numbers = #tpu.dot_dimension_numbers<[1], [0], [0], [1], [0, 0, 1, 1], [], []>} : vector<2x64xf32>, vector<64x32xf32>, vector<2x32xf32> -> vector<2x32xf32>
    %268 = arith.addf %266, %267 : vector<2x32xf32>
    %269 = arith.negf %268 : vector<2x32xf32>
    %270 = math.exp %269 : vector<2x32xf32>
    %cst_144 = arith.constant 1.000000e+00 : f32
    %271 = vector.broadcast %cst_144 : f32 to vector<2x32xf32>
    %272 = arith.addf %271, %270 : vector<2x32xf32>
    %273 = arith.divf %271, %272 : vector<2x32xf32>
    %274 = arith.index_cast %230 : i32 to index
    %c0_145 = arith.constant 0 : index
    %c0_146 = arith.constant 0 : index
    %275 = vector.load %arg33[%274, %c0_145, %c0_146] : memref<8x2x32xf32, #tpu.memory_space<vmem>>, vector<1x2x32xf32>
    %276 = vector.shape_cast %275 : vector<1x2x32xf32> to vector<2x32xf32>
    %cst_147 = arith.constant dense<0.000000e+00> : vector<2x32xf32>
    %277 = tpu.matmul %253, %58, %cst_147 {dimension_numbers = #tpu.dot_dimension_numbers<[1], [0], [0], [1], [0, 0, 1, 1], [], []>} : vector<2x64xf32>, vector<64x32xf32>, vector<2x32xf32> -> vector<2x32xf32>
    %278 = arith.addf %276, %277 : vector<2x32xf32>
    %279 = math.tanh %278 : vector<2x32xf32>
    %280 = arith.index_cast %230 : i32 to index
    %c0_148 = arith.constant 0 : index
    %c0_149 = arith.constant 0 : index
    %281 = vector.load %arg34[%280, %c0_148, %c0_149] : memref<8x2x32xf32, #tpu.memory_space<vmem>>, vector<1x2x32xf32>
    %282 = vector.shape_cast %281 : vector<1x2x32xf32> to vector<2x32xf32>
    %cst_150 = arith.constant dense<0.000000e+00> : vector<2x32xf32>
    %283 = tpu.matmul %253, %61, %cst_150 {dimension_numbers = #tpu.dot_dimension_numbers<[1], [0], [0], [1], [0, 0, 1, 1], [], []>} : vector<2x64xf32>, vector<64x32xf32>, vector<2x32xf32> -> vector<2x32xf32>
    %284 = arith.addf %282, %283 : vector<2x32xf32>
    %285 = arith.negf %284 : vector<2x32xf32>
    %286 = math.exp %285 : vector<2x32xf32>
    %cst_151 = arith.constant 1.000000e+00 : f32
    %287 = vector.broadcast %cst_151 : f32 to vector<2x32xf32>
    %288 = arith.addf %287, %286 : vector<2x32xf32>
    %289 = arith.divf %287, %288 : vector<2x32xf32>
    %c0_152 = arith.constant 0 : index
    %c0_153 = arith.constant 0 : index
    %290 = vector.load %arg39[%c0_152, %c0_153] : memref<2x32xf32, #tpu.memory_space<vmem>>, vector<2x32xf32>
    %291 = arith.mulf %273, %290 : vector<2x32xf32>
    %292 = arith.mulf %263, %279 : vector<2x32xf32>
    %293 = arith.addf %291, %292 : vector<2x32xf32>
    %294 = math.tanh %293 : vector<2x32xf32>
    %295 = arith.mulf %289, %294 : vector<2x32xf32>
    %c0_154 = arith.constant 0 : index
    %c0_155 = arith.constant 0 : index
    %296 = vector.load %arg38[%c0_154, %c0_155] : memref<2x32xf32, #tpu.memory_space<vmem>>, vector<2x32xf32>
    tpu.vector_store %arg38[%c0_154, %c0_155], %295 {strides = array<i32>} : memref<2x32xf32, #tpu.memory_space<vmem>>, vector<2x32xf32>,
    %c0_156 = arith.constant 0 : index
    %c0_157 = arith.constant 0 : index
    %297 = vector.load %arg39[%c0_156, %c0_157] : memref<2x32xf32, #tpu.memory_space<vmem>>, vector<2x32xf32>
    tpu.vector_store %arg39[%c0_156, %c0_157], %293 {strides = array<i32>} : memref<2x32xf32, #tpu.memory_space<vmem>>, vector<2x32xf32>,
    %298 = arith.index_cast %230 : i32 to index
    %c0_158 = arith.constant 0 : index
    %c0_159 = arith.constant 0 : index
    %299 = vector.load %arg35[%298, %c0_158, %c0_159] : memref<8x2x32xf32, #tpu.memory_space<vmem>>, vector<1x2x32xf32>
    %300 = vector.shape_cast %299 : vector<1x2x32xf32> to vector<2x32xf32>
    %301 = vector.shape_cast %295 : vector<2x32xf32> to vector<1x2x32xf32>
    tpu.vector_store %arg35[%298, %c0_158, %c0_159], %301 {strides = array<i32>} : memref<8x2x32xf32, #tpu.memory_space<vmem>>, vector<1x2x32xf32>,
    %302 = arith.index_cast %230 : i32 to index
    %c0_160 = arith.constant 0 : index
    %c0_161 = arith.constant 0 : index
    %303 = vector.load %arg36[%302, %c0_160, %c0_161] : memref<8x2x32xf32, #tpu.memory_space<vmem>>, vector<1x2x32xf32>
    %304 = vector.shape_cast %303 : vector<1x2x32xf32> to vector<2x32xf32>
    %305 = vector.shape_cast %252 : vector<2x32xf32> to vector<1x2x32xf32>
    tpu.vector_store %arg36[%302, %c0_160, %c0_161], %305 {strides = array<i32>} : memref<8x2x32xf32, #tpu.memory_space<vmem>>, vector<1x2x32xf32>,
    %306 = arith.index_cast %230 : i32 to index
    %c0_162 = arith.constant 0 : index
    %c0_163 = arith.constant 0 : index
    %307 = vector.load %arg37[%306, %c0_162, %c0_163] : memref<8x2x8xf32, #tpu.memory_space<vmem>>, vector<1x2x8xf32>
    %308 = vector.shape_cast %307 : vector<1x2x8xf32> to vector<2x8xf32>
    %309 = vector.shape_cast %248 : vector<2x8xf32> to vector<1x2x8xf32>
    tpu.vector_store %arg37[%306, %c0_162, %c0_163], %309 {strides = array<i32>} : memref<8x2x8xf32, #tpu.memory_space<vmem>>, vector<1x2x8xf32>,
    %c3_i32 = arith.constant 3 : i32
    %c1_i32_164 = arith.constant 1 : i32
    %310 = arith.muli %c3_i32, %c1_i32_164 : i32
    %c0_i32_165 = arith.constant 0 : i32
    %311 = arith.addi %c0_i32_165, %310 : i32
    %c0_166 = arith.constant 0 : index
    %c0_167 = arith.constant 0 : index
    %312 = vector.load %arg38[%c0_166, %c0_167] : memref<2x32xf32, #tpu.memory_space<vmem>>, vector<2x32xf32>
    %cst_168 = arith.constant dense<0.000000e+00> : vector<2x32xf32>
    %313 = tpu.matmul %312, %62, %cst_168 {dimension_numbers = #tpu.dot_dimension_numbers<[1], [0], [0], [1], [0, 0, 1, 1], [], []>} : vector<2x32xf32>, vector<32x32xf32>, vector<2x32xf32> -> vector<2x32xf32>
    %314 = vector.shape_cast %313 : vector<2x32xf32> to vector<2x1x32xf32>
    %315 = vector.broadcast %314 : vector<2x1x32xf32> to vector<2x8x32xf32>
    %316 = arith.addf %11, %315 : vector<2x8x32xf32>
    %317 = math.tanh %316 : vector<2x8x32xf32>
    %318 = vector.broadcast %13 : vector<1x1x32xf32> to vector<2x8x32xf32>
    %319 = arith.mulf %317, %318 : vector<2x8x32xf32>
    %cst_169 = arith.constant dense<0.000000e+00> : vector<2x8xf32>
    %320 = vector.multi_reduction <add>, %319, %cst_169 [2] : vector<2x8x32xf32> to vector<2x8xf32>
    %cst_170 = arith.constant dense<0xFF800000> : vector<2xf32>
    %321 = vector.multi_reduction <maximumf>, %320, %cst_170 [1] : vector<2x8xf32> to vector<2xf32>
    %322 = vector.shape_cast %321 : vector<2xf32> to vector<2x1xf32>
    %323 = vector.broadcast %322 : vector<2x1xf32> to vector<2x8xf32>
    %324 = arith.subf %320, %323 : vector<2x8xf32>
    %325 = math.exp %324 : vector<2x8xf32>
    %cst_171 = arith.constant dense<0.000000e+00> : vector<2xf32>
    %326 = vector.multi_reduction <add>, %325, %cst_171 [1] : vector<2x8xf32> to vector<2xf32>
    %327 = vector.shape_cast %326 : vector<2xf32> to vector<2x1xf32>
    %328 = vector.broadcast %327 : vector<2x1xf32> to vector<2x8xf32>
    %329 = arith.divf %325, %328 : vector<2x8xf32>
    %330 = vector.shape_cast %329 : vector<2x8xf32> to vector<2x8x1xf32>
    %331 = vector.broadcast %330 : vector<2x8x1xf32> to vector<2x8x32xf32>
    %332 = arith.mulf %331, %8 : vector<2x8x32xf32>
    %cst_172 = arith.constant dense<0.000000e+00> : vector<2x32xf32>
    %333 = vector.multi_reduction <add>, %332, %cst_172 [1] : vector<2x8x32xf32> to vector<2x32xf32>
    %334 = tpu.concatenate %333, %312 in 1 : vector<2x32xf32>, vector<2x32xf32> -> vector<2x64xf32>
    %335 = arith.index_cast %311 : i32 to index
    %c0_173 = arith.constant 0 : index
    %c0_174 = arith.constant 0 : index
    %336 = vector.load %arg31[%335, %c0_173, %c0_174] : memref<8x2x32xf32, #tpu.memory_space<vmem>>, vector<1x2x32xf32>
    %337 = vector.shape_cast %336 : vector<1x2x32xf32> to vector<2x32xf32>
    %cst_175 = arith.constant dense<0.000000e+00> : vector<2x32xf32>
    %338 = tpu.matmul %334, %52, %cst_175 {dimension_numbers = #tpu.dot_dimension_numbers<[1], [0], [0], [1], [0, 0, 1, 1], [], []>} : vector<2x64xf32>, vector<64x32xf32>, vector<2x32xf32> -> vector<2x32xf32>
    %339 = arith.addf %337, %338 : vector<2x32xf32>
    %340 = arith.negf %339 : vector<2x32xf32>
    %341 = math.exp %340 : vector<2x32xf32>
    %cst_176 = arith.constant 1.000000e+00 : f32
    %342 = vector.broadcast %cst_176 : f32 to vector<2x32xf32>
    %343 = arith.addf %342, %341 : vector<2x32xf32>
    %344 = arith.divf %342, %343 : vector<2x32xf32>
    %345 = arith.index_cast %311 : i32 to index
    %c0_177 = arith.constant 0 : index
    %c0_178 = arith.constant 0 : index
    %346 = vector.load %arg32[%345, %c0_177, %c0_178] : memref<8x2x32xf32, #tpu.memory_space<vmem>>, vector<1x2x32xf32>
    %347 = vector.shape_cast %346 : vector<1x2x32xf32> to vector<2x32xf32>
    %cst_179 = arith.constant dense<0.000000e+00> : vector<2x32xf32>
    %348 = tpu.matmul %334, %55, %cst_179 {dimension_numbers = #tpu.dot_dimension_numbers<[1], [0], [0], [1], [0, 0, 1, 1], [], []>} : vector<2x64xf32>, vector<64x32xf32>, vector<2x32xf32> -> vector<2x32xf32>
    %349 = arith.addf %347, %348 : vector<2x32xf32>
    %350 = arith.negf %349 : vector<2x32xf32>
    %351 = math.exp %350 : vector<2x32xf32>
    %cst_180 = arith.constant 1.000000e+00 : f32
    %352 = vector.broadcast %cst_180 : f32 to vector<2x32xf32>
    %353 = arith.addf %352, %351 : vector<2x32xf32>
    %354 = arith.divf %352, %353 : vector<2x32xf32>
    %355 = arith.index_cast %311 : i32 to index
    %c0_181 = arith.constant 0 : index
    %c0_182 = arith.constant 0 : index
    %356 = vector.load %arg33[%355, %c0_181, %c0_182] : memref<8x2x32xf32, #tpu.memory_space<vmem>>, vector<1x2x32xf32>
    %357 = vector.shape_cast %356 : vector<1x2x32xf32> to vector<2x32xf32>
    %cst_183 = arith.constant dense<0.000000e+00> : vector<2x32xf32>
    %358 = tpu.matmul %334, %58, %cst_183 {dimension_numbers = #tpu.dot_dimension_numbers<[1], [0], [0], [1], [0, 0, 1, 1], [], []>} : vector<2x64xf32>, vector<64x32xf32>, vector<2x32xf32> -> vector<2x32xf32>
    %359 = arith.addf %357, %358 : vector<2x32xf32>
    %360 = math.tanh %359 : vector<2x32xf32>
    %361 = arith.index_cast %311 : i32 to index
    %c0_184 = arith.constant 0 : index
    %c0_185 = arith.constant 0 : index
    %362 = vector.load %arg34[%361, %c0_184, %c0_185] : memref<8x2x32xf32, #tpu.memory_space<vmem>>, vector<1x2x32xf32>
    %363 = vector.shape_cast %362 : vector<1x2x32xf32> to vector<2x32xf32>
    %cst_186 = arith.constant dense<0.000000e+00> : vector<2x32xf32>
    %364 = tpu.matmul %334, %61, %cst_186 {dimension_numbers = #tpu.dot_dimension_numbers<[1], [0], [0], [1], [0, 0, 1, 1], [], []>} : vector<2x64xf32>, vector<64x32xf32>, vector<2x32xf32> -> vector<2x32xf32>
    %365 = arith.addf %363, %364 : vector<2x32xf32>
    %366 = arith.negf %365 : vector<2x32xf32>
    %367 = math.exp %366 : vector<2x32xf32>
    %cst_187 = arith.constant 1.000000e+00 : f32
    %368 = vector.broadcast %cst_187 : f32 to vector<2x32xf32>
    %369 = arith.addf %368, %367 : vector<2x32xf32>
    %370 = arith.divf %368, %369 : vector<2x32xf32>
    %c0_188 = arith.constant 0 : index
    %c0_189 = arith.constant 0 : index
    %371 = vector.load %arg39[%c0_188, %c0_189] : memref<2x32xf32, #tpu.memory_space<vmem>>, vector<2x32xf32>
    %372 = arith.mulf %354, %371 : vector<2x32xf32>
    %373 = arith.mulf %344, %360 : vector<2x32xf32>
    %374 = arith.addf %372, %373 : vector<2x32xf32>
    %375 = math.tanh %374 : vector<2x32xf32>
    %376 = arith.mulf %370, %375 : vector<2x32xf32>
    %c0_190 = arith.constant 0 : index
    %c0_191 = arith.constant 0 : index
    %377 = vector.load %arg38[%c0_190, %c0_191] : memref<2x32xf32, #tpu.memory_space<vmem>>, vector<2x32xf32>
    tpu.vector_store %arg38[%c0_190, %c0_191], %376 {strides = array<i32>} : memref<2x32xf32, #tpu.memory_space<vmem>>, vector<2x32xf32>,
    %c0_192 = arith.constant 0 : index
    %c0_193 = arith.constant 0 : index
    %378 = vector.load %arg39[%c0_192, %c0_193] : memref<2x32xf32, #tpu.memory_space<vmem>>, vector<2x32xf32>
    tpu.vector_store %arg39[%c0_192, %c0_193], %374 {strides = array<i32>} : memref<2x32xf32, #tpu.memory_space<vmem>>, vector<2x32xf32>,
    %379 = arith.index_cast %311 : i32 to index
    %c0_194 = arith.constant 0 : index
    %c0_195 = arith.constant 0 : index
    %380 = vector.load %arg35[%379, %c0_194, %c0_195] : memref<8x2x32xf32, #tpu.memory_space<vmem>>, vector<1x2x32xf32>
    %381 = vector.shape_cast %380 : vector<1x2x32xf32> to vector<2x32xf32>
    %382 = vector.shape_cast %376 : vector<2x32xf32> to vector<1x2x32xf32>
    tpu.vector_store %arg35[%379, %c0_194, %c0_195], %382 {strides = array<i32>} : memref<8x2x32xf32, #tpu.memory_space<vmem>>, vector<1x2x32xf32>,
    %383 = arith.index_cast %311 : i32 to index
    %c0_196 = arith.constant 0 : index
    %c0_197 = arith.constant 0 : index
    %384 = vector.load %arg36[%383, %c0_196, %c0_197] : memref<8x2x32xf32, #tpu.memory_space<vmem>>, vector<1x2x32xf32>
    %385 = vector.shape_cast %384 : vector<1x2x32xf32> to vector<2x32xf32>
    %386 = vector.shape_cast %333 : vector<2x32xf32> to vector<1x2x32xf32>
    tpu.vector_store %arg36[%383, %c0_196, %c0_197], %386 {strides = array<i32>} : memref<8x2x32xf32, #tpu.memory_space<vmem>>, vector<1x2x32xf32>,
    %387 = arith.index_cast %311 : i32 to index
    %c0_198 = arith.constant 0 : index
    %c0_199 = arith.constant 0 : index
    %388 = vector.load %arg37[%387, %c0_198, %c0_199] : memref<8x2x8xf32, #tpu.memory_space<vmem>>, vector<1x2x8xf32>
    %389 = vector.shape_cast %388 : vector<1x2x8xf32> to vector<2x8xf32>
    %390 = vector.shape_cast %329 : vector<2x8xf32> to vector<1x2x8xf32>
    tpu.vector_store %arg37[%387, %c0_198, %c0_199], %390 {strides = array<i32>} : memref<8x2x8xf32, #tpu.memory_space<vmem>>, vector<1x2x8xf32>,
    %c4_i32 = arith.constant 4 : i32
    %c1_i32_200 = arith.constant 1 : i32
    %391 = arith.muli %c4_i32, %c1_i32_200 : i32
    %c0_i32_201 = arith.constant 0 : i32
    %392 = arith.addi %c0_i32_201, %391 : i32
    %c0_202 = arith.constant 0 : index
    %c0_203 = arith.constant 0 : index
    %393 = vector.load %arg38[%c0_202, %c0_203] : memref<2x32xf32, #tpu.memory_space<vmem>>, vector<2x32xf32>
    %cst_204 = arith.constant dense<0.000000e+00> : vector<2x32xf32>
    %394 = tpu.matmul %393, %62, %cst_204 {dimension_numbers = #tpu.dot_dimension_numbers<[1], [0], [0], [1], [0, 0, 1, 1], [], []>} : vector<2x32xf32>, vector<32x32xf32>, vector<2x32xf32> -> vector<2x32xf32>
    %395 = vector.shape_cast %394 : vector<2x32xf32> to vector<2x1x32xf32>
    %396 = vector.broadcast %395 : vector<2x1x32xf32> to vector<2x8x32xf32>
    %397 = arith.addf %11, %396 : vector<2x8x32xf32>
    %398 = math.tanh %397 : vector<2x8x32xf32>
    %399 = vector.broadcast %13 : vector<1x1x32xf32> to vector<2x8x32xf32>
    %400 = arith.mulf %398, %399 : vector<2x8x32xf32>
    %cst_205 = arith.constant dense<0.000000e+00> : vector<2x8xf32>
    %401 = vector.multi_reduction <add>, %400, %cst_205 [2] : vector<2x8x32xf32> to vector<2x8xf32>
    %cst_206 = arith.constant dense<0xFF800000> : vector<2xf32>
    %402 = vector.multi_reduction <maximumf>, %401, %cst_206 [1] : vector<2x8xf32> to vector<2xf32>
    %403 = vector.shape_cast %402 : vector<2xf32> to vector<2x1xf32>
    %404 = vector.broadcast %403 : vector<2x1xf32> to vector<2x8xf32>
    %405 = arith.subf %401, %404 : vector<2x8xf32>
    %406 = math.exp %405 : vector<2x8xf32>
    %cst_207 = arith.constant dense<0.000000e+00> : vector<2xf32>
    %407 = vector.multi_reduction <add>, %406, %cst_207 [1] : vector<2x8xf32> to vector<2xf32>
    %408 = vector.shape_cast %407 : vector<2xf32> to vector<2x1xf32>
    %409 = vector.broadcast %408 : vector<2x1xf32> to vector<2x8xf32>
    %410 = arith.divf %406, %409 : vector<2x8xf32>
    %411 = vector.shape_cast %410 : vector<2x8xf32> to vector<2x8x1xf32>
    %412 = vector.broadcast %411 : vector<2x8x1xf32> to vector<2x8x32xf32>
    %413 = arith.mulf %412, %8 : vector<2x8x32xf32>
    %cst_208 = arith.constant dense<0.000000e+00> : vector<2x32xf32>
    %414 = vector.multi_reduction <add>, %413, %cst_208 [1] : vector<2x8x32xf32> to vector<2x32xf32>
    %415 = tpu.concatenate %414, %393 in 1 : vector<2x32xf32>, vector<2x32xf32> -> vector<2x64xf32>
    %416 = arith.index_cast %392 : i32 to index
    %c0_209 = arith.constant 0 : index
    %c0_210 = arith.constant 0 : index
    %417 = vector.load %arg31[%416, %c0_209, %c0_210] : memref<8x2x32xf32, #tpu.memory_space<vmem>>, vector<1x2x32xf32>
    %418 = vector.shape_cast %417 : vector<1x2x32xf32> to vector<2x32xf32>
    %cst_211 = arith.constant dense<0.000000e+00> : vector<2x32xf32>
    %419 = tpu.matmul %415, %52, %cst_211 {dimension_numbers = #tpu.dot_dimension_numbers<[1], [0], [0], [1], [0, 0, 1, 1], [], []>} : vector<2x64xf32>, vector<64x32xf32>, vector<2x32xf32> -> vector<2x32xf32>
    %420 = arith.addf %418, %419 : vector<2x32xf32>
    %421 = arith.negf %420 : vector<2x32xf32>
    %422 = math.exp %421 : vector<2x32xf32>
    %cst_212 = arith.constant 1.000000e+00 : f32
    %423 = vector.broadcast %cst_212 : f32 to vector<2x32xf32>
    %424 = arith.addf %423, %422 : vector<2x32xf32>
    %425 = arith.divf %423, %424 : vector<2x32xf32>
    %426 = arith.index_cast %392 : i32 to index
    %c0_213 = arith.constant 0 : index
    %c0_214 = arith.constant 0 : index
    %427 = vector.load %arg32[%426, %c0_213, %c0_214] : memref<8x2x32xf32, #tpu.memory_space<vmem>>, vector<1x2x32xf32>
    %428 = vector.shape_cast %427 : vector<1x2x32xf32> to vector<2x32xf32>
    %cst_215 = arith.constant dense<0.000000e+00> : vector<2x32xf32>
    %429 = tpu.matmul %415, %55, %cst_215 {dimension_numbers = #tpu.dot_dimension_numbers<[1], [0], [0], [1], [0, 0, 1, 1], [], []>} : vector<2x64xf32>, vector<64x32xf32>, vector<2x32xf32> -> vector<2x32xf32>
    %430 = arith.addf %428, %429 : vector<2x32xf32>
    %431 = arith.negf %430 : vector<2x32xf32>
    %432 = math.exp %431 : vector<2x32xf32>
    %cst_216 = arith.constant 1.000000e+00 : f32
    %433 = vector.broadcast %cst_216 : f32 to vector<2x32xf32>
    %434 = arith.addf %433, %432 : vector<2x32xf32>
    %435 = arith.divf %433, %434 : vector<2x32xf32>
    %436 = arith.index_cast %392 : i32 to index
    %c0_217 = arith.constant 0 : index
    %c0_218 = arith.constant 0 : index
    %437 = vector.load %arg33[%436, %c0_217, %c0_218] : memref<8x2x32xf32, #tpu.memory_space<vmem>>, vector<1x2x32xf32>
    %438 = vector.shape_cast %437 : vector<1x2x32xf32> to vector<2x32xf32>
    %cst_219 = arith.constant dense<0.000000e+00> : vector<2x32xf32>
    %439 = tpu.matmul %415, %58, %cst_219 {dimension_numbers = #tpu.dot_dimension_numbers<[1], [0], [0], [1], [0, 0, 1, 1], [], []>} : vector<2x64xf32>, vector<64x32xf32>, vector<2x32xf32> -> vector<2x32xf32>
    %440 = arith.addf %438, %439 : vector<2x32xf32>
    %441 = math.tanh %440 : vector<2x32xf32>
    %442 = arith.index_cast %392 : i32 to index
    %c0_220 = arith.constant 0 : index
    %c0_221 = arith.constant 0 : index
    %443 = vector.load %arg34[%442, %c0_220, %c0_221] : memref<8x2x32xf32, #tpu.memory_space<vmem>>, vector<1x2x32xf32>
    %444 = vector.shape_cast %443 : vector<1x2x32xf32> to vector<2x32xf32>
    %cst_222 = arith.constant dense<0.000000e+00> : vector<2x32xf32>
    %445 = tpu.matmul %415, %61, %cst_222 {dimension_numbers = #tpu.dot_dimension_numbers<[1], [0], [0], [1], [0, 0, 1, 1], [], []>} : vector<2x64xf32>, vector<64x32xf32>, vector<2x32xf32> -> vector<2x32xf32>
    %446 = arith.addf %444, %445 : vector<2x32xf32>
    %447 = arith.negf %446 : vector<2x32xf32>
    %448 = math.exp %447 : vector<2x32xf32>
    %cst_223 = arith.constant 1.000000e+00 : f32
    %449 = vector.broadcast %cst_223 : f32 to vector<2x32xf32>
    %450 = arith.addf %449, %448 : vector<2x32xf32>
    %451 = arith.divf %449, %450 : vector<2x32xf32>
    %c0_224 = arith.constant 0 : index
    %c0_225 = arith.constant 0 : index
    %452 = vector.load %arg39[%c0_224, %c0_225] : memref<2x32xf32, #tpu.memory_space<vmem>>, vector<2x32xf32>
    %453 = arith.mulf %435, %452 : vector<2x32xf32>
    %454 = arith.mulf %425, %441 : vector<2x32xf32>
    %455 = arith.addf %453, %454 : vector<2x32xf32>
    %456 = math.tanh %455 : vector<2x32xf32>
    %457 = arith.mulf %451, %456 : vector<2x32xf32>
    %c0_226 = arith.constant 0 : index
    %c0_227 = arith.constant 0 : index
    %458 = vector.load %arg38[%c0_226, %c0_227] : memref<2x32xf32, #tpu.memory_space<vmem>>, vector<2x32xf32>
    tpu.vector_store %arg38[%c0_226, %c0_227], %457 {strides = array<i32>} : memref<2x32xf32, #tpu.memory_space<vmem>>, vector<2x32xf32>,
    %c0_228 = arith.constant 0 : index
    %c0_229 = arith.constant 0 : index
    %459 = vector.load %arg39[%c0_228, %c0_229] : memref<2x32xf32, #tpu.memory_space<vmem>>, vector<2x32xf32>
    tpu.vector_store %arg39[%c0_228, %c0_229], %455 {strides = array<i32>} : memref<2x32xf32, #tpu.memory_space<vmem>>, vector<2x32xf32>,
    %460 = arith.index_cast %392 : i32 to index
    %c0_230 = arith.constant 0 : index
    %c0_231 = arith.constant 0 : index
    %461 = vector.load %arg35[%460, %c0_230, %c0_231] : memref<8x2x32xf32, #tpu.memory_space<vmem>>, vector<1x2x32xf32>
    %462 = vector.shape_cast %461 : vector<1x2x32xf32> to vector<2x32xf32>
    %463 = vector.shape_cast %457 : vector<2x32xf32> to vector<1x2x32xf32>
    tpu.vector_store %arg35[%460, %c0_230, %c0_231], %463 {strides = array<i32>} : memref<8x2x32xf32, #tpu.memory_space<vmem>>, vector<1x2x32xf32>,
    %464 = arith.index_cast %392 : i32 to index
    %c0_232 = arith.constant 0 : index
    %c0_233 = arith.constant 0 : index
    %465 = vector.load %arg36[%464, %c0_232, %c0_233] : memref<8x2x32xf32, #tpu.memory_space<vmem>>, vector<1x2x32xf32>
    %466 = vector.shape_cast %465 : vector<1x2x32xf32> to vector<2x32xf32>
    %467 = vector.shape_cast %414 : vector<2x32xf32> to vector<1x2x32xf32>
    tpu.vector_store %arg36[%464, %c0_232, %c0_233], %467 {strides = array<i32>} : memref<8x2x32xf32, #tpu.memory_space<vmem>>, vector<1x2x32xf32>,
    %468 = arith.index_cast %392 : i32 to index
    %c0_234 = arith.constant 0 : index
    %c0_235 = arith.constant 0 : index
    %469 = vector.load %arg37[%468, %c0_234, %c0_235] : memref<8x2x8xf32, #tpu.memory_space<vmem>>, vector<1x2x8xf32>
    %470 = vector.shape_cast %469 : vector<1x2x8xf32> to vector<2x8xf32>
    %471 = vector.shape_cast %410 : vector<2x8xf32> to vector<1x2x8xf32>
    tpu.vector_store %arg37[%468, %c0_234, %c0_235], %471 {strides = array<i32>} : memref<8x2x8xf32, #tpu.memory_space<vmem>>, vector<1x2x8xf32>,
    %c5_i32 = arith.constant 5 : i32
    %c1_i32_236 = arith.constant 1 : i32
    %472 = arith.muli %c5_i32, %c1_i32_236 : i32
    %c0_i32_237 = arith.constant 0 : i32
    %473 = arith.addi %c0_i32_237, %472 : i32
    %c0_238 = arith.constant 0 : index
    %c0_239 = arith.constant 0 : index
    %474 = vector.load %arg38[%c0_238, %c0_239] : memref<2x32xf32, #tpu.memory_space<vmem>>, vector<2x32xf32>
    %cst_240 = arith.constant dense<0.000000e+00> : vector<2x32xf32>
    %475 = tpu.matmul %474, %62, %cst_240 {dimension_numbers = #tpu.dot_dimension_numbers<[1], [0], [0], [1], [0, 0, 1, 1], [], []>} : vector<2x32xf32>, vector<32x32xf32>, vector<2x32xf32> -> vector<2x32xf32>
    %476 = vector.shape_cast %475 : vector<2x32xf32> to vector<2x1x32xf32>
    %477 = vector.broadcast %476 : vector<2x1x32xf32> to vector<2x8x32xf32>
    %478 = arith.addf %11, %477 : vector<2x8x32xf32>
    %479 = math.tanh %478 : vector<2x8x32xf32>
    %480 = vector.broadcast %13 : vector<1x1x32xf32> to vector<2x8x32xf32>
    %481 = arith.mulf %479, %480 : vector<2x8x32xf32>
    %cst_241 = arith.constant dense<0.000000e+00> : vector<2x8xf32>
    %482 = vector.multi_reduction <add>, %481, %cst_241 [2] : vector<2x8x32xf32> to vector<2x8xf32>
    %cst_242 = arith.constant dense<0xFF800000> : vector<2xf32>
    %483 = vector.multi_reduction <maximumf>, %482, %cst_242 [1] : vector<2x8xf32> to vector<2xf32>
    %484 = vector.shape_cast %483 : vector<2xf32> to vector<2x1xf32>
    %485 = vector.broadcast %484 : vector<2x1xf32> to vector<2x8xf32>
    %486 = arith.subf %482, %485 : vector<2x8xf32>
    %487 = math.exp %486 : vector<2x8xf32>
    %cst_243 = arith.constant dense<0.000000e+00> : vector<2xf32>
    %488 = vector.multi_reduction <add>, %487, %cst_243 [1] : vector<2x8xf32> to vector<2xf32>
    %489 = vector.shape_cast %488 : vector<2xf32> to vector<2x1xf32>
    %490 = vector.broadcast %489 : vector<2x1xf32> to vector<2x8xf32>
    %491 = arith.divf %487, %490 : vector<2x8xf32>
    %492 = vector.shape_cast %491 : vector<2x8xf32> to vector<2x8x1xf32>
    %493 = vector.broadcast %492 : vector<2x8x1xf32> to vector<2x8x32xf32>
    %494 = arith.mulf %493, %8 : vector<2x8x32xf32>
    %cst_244 = arith.constant dense<0.000000e+00> : vector<2x32xf32>
    %495 = vector.multi_reduction <add>, %494, %cst_244 [1] : vector<2x8x32xf32> to vector<2x32xf32>
    %496 = tpu.concatenate %495, %474 in 1 : vector<2x32xf32>, vector<2x32xf32> -> vector<2x64xf32>
    %497 = arith.index_cast %473 : i32 to index
    %c0_245 = arith.constant 0 : index
    %c0_246 = arith.constant 0 : index
    %498 = vector.load %arg31[%497, %c0_245, %c0_246] : memref<8x2x32xf32, #tpu.memory_space<vmem>>, vector<1x2x32xf32>
    %499 = vector.shape_cast %498 : vector<1x2x32xf32> to vector<2x32xf32>
    %cst_247 = arith.constant dense<0.000000e+00> : vector<2x32xf32>
    %500 = tpu.matmul %496, %52, %cst_247 {dimension_numbers = #tpu.dot_dimension_numbers<[1], [0], [0], [1], [0, 0, 1, 1], [], []>} : vector<2x64xf32>, vector<64x32xf32>, vector<2x32xf32> -> vector<2x32xf32>
    %501 = arith.addf %499, %500 : vector<2x32xf32>
    %502 = arith.negf %501 : vector<2x32xf32>
    %503 = math.exp %502 : vector<2x32xf32>
    %cst_248 = arith.constant 1.000000e+00 : f32
    %504 = vector.broadcast %cst_248 : f32 to vector<2x32xf32>
    %505 = arith.addf %504, %503 : vector<2x32xf32>
    %506 = arith.divf %504, %505 : vector<2x32xf32>
    %507 = arith.index_cast %473 : i32 to index
    %c0_249 = arith.constant 0 : index
    %c0_250 = arith.constant 0 : index
    %508 = vector.load %arg32[%507, %c0_249, %c0_250] : memref<8x2x32xf32, #tpu.memory_space<vmem>>, vector<1x2x32xf32>
    %509 = vector.shape_cast %508 : vector<1x2x32xf32> to vector<2x32xf32>
    %cst_251 = arith.constant dense<0.000000e+00> : vector<2x32xf32>
    %510 = tpu.matmul %496, %55, %cst_251 {dimension_numbers = #tpu.dot_dimension_numbers<[1], [0], [0], [1], [0, 0, 1, 1], [], []>} : vector<2x64xf32>, vector<64x32xf32>, vector<2x32xf32> -> vector<2x32xf32>
    %511 = arith.addf %509, %510 : vector<2x32xf32>
    %512 = arith.negf %511 : vector<2x32xf32>
    %513 = math.exp %512 : vector<2x32xf32>
    %cst_252 = arith.constant 1.000000e+00 : f32
    %514 = vector.broadcast %cst_252 : f32 to vector<2x32xf32>
    %515 = arith.addf %514, %513 : vector<2x32xf32>
    %516 = arith.divf %514, %515 : vector<2x32xf32>
    %517 = arith.index_cast %473 : i32 to index
    %c0_253 = arith.constant 0 : index
    %c0_254 = arith.constant 0 : index
    %518 = vector.load %arg33[%517, %c0_253, %c0_254] : memref<8x2x32xf32, #tpu.memory_space<vmem>>, vector<1x2x32xf32>
    %519 = vector.shape_cast %518 : vector<1x2x32xf32> to vector<2x32xf32>
    %cst_255 = arith.constant dense<0.000000e+00> : vector<2x32xf32>
    %520 = tpu.matmul %496, %58, %cst_255 {dimension_numbers = #tpu.dot_dimension_numbers<[1], [0], [0], [1], [0, 0, 1, 1], [], []>} : vector<2x64xf32>, vector<64x32xf32>, vector<2x32xf32> -> vector<2x32xf32>
    %521 = arith.addf %519, %520 : vector<2x32xf32>
    %522 = math.tanh %521 : vector<2x32xf32>
    %523 = arith.index_cast %473 : i32 to index
    %c0_256 = arith.constant 0 : index
    %c0_257 = arith.constant 0 : index
    %524 = vector.load %arg34[%523, %c0_256, %c0_257] : memref<8x2x32xf32, #tpu.memory_space<vmem>>, vector<1x2x32xf32>
    %525 = vector.shape_cast %524 : vector<1x2x32xf32> to vector<2x32xf32>
    %cst_258 = arith.constant dense<0.000000e+00> : vector<2x32xf32>
    %526 = tpu.matmul %496, %61, %cst_258 {dimension_numbers = #tpu.dot_dimension_numbers<[1], [0], [0], [1], [0, 0, 1, 1], [], []>} : vector<2x64xf32>, vector<64x32xf32>, vector<2x32xf32> -> vector<2x32xf32>
    %527 = arith.addf %525, %526 : vector<2x32xf32>
    %528 = arith.negf %527 : vector<2x32xf32>
    %529 = math.exp %528 : vector<2x32xf32>
    %cst_259 = arith.constant 1.000000e+00 : f32
    %530 = vector.broadcast %cst_259 : f32 to vector<2x32xf32>
    %531 = arith.addf %530, %529 : vector<2x32xf32>
    %532 = arith.divf %530, %531 : vector<2x32xf32>
    %c0_260 = arith.constant 0 : index
    %c0_261 = arith.constant 0 : index
    %533 = vector.load %arg39[%c0_260, %c0_261] : memref<2x32xf32, #tpu.memory_space<vmem>>, vector<2x32xf32>
    %534 = arith.mulf %516, %533 : vector<2x32xf32>
    %535 = arith.mulf %506, %522 : vector<2x32xf32>
    %536 = arith.addf %534, %535 : vector<2x32xf32>
    %537 = math.tanh %536 : vector<2x32xf32>
    %538 = arith.mulf %532, %537 : vector<2x32xf32>
    %c0_262 = arith.constant 0 : index
    %c0_263 = arith.constant 0 : index
    %539 = vector.load %arg38[%c0_262, %c0_263] : memref<2x32xf32, #tpu.memory_space<vmem>>, vector<2x32xf32>
    tpu.vector_store %arg38[%c0_262, %c0_263], %538 {strides = array<i32>} : memref<2x32xf32, #tpu.memory_space<vmem>>, vector<2x32xf32>,
    %c0_264 = arith.constant 0 : index
    %c0_265 = arith.constant 0 : index
    %540 = vector.load %arg39[%c0_264, %c0_265] : memref<2x32xf32, #tpu.memory_space<vmem>>, vector<2x32xf32>
    tpu.vector_store %arg39[%c0_264, %c0_265], %536 {strides = array<i32>} : memref<2x32xf32, #tpu.memory_space<vmem>>, vector<2x32xf32>,
    %541 = arith.index_cast %473 : i32 to index
    %c0_266 = arith.constant 0 : index
    %c0_267 = arith.constant 0 : index
    %542 = vector.load %arg35[%541, %c0_266, %c0_267] : memref<8x2x32xf32, #tpu.memory_space<vmem>>, vector<1x2x32xf32>
    %543 = vector.shape_cast %542 : vector<1x2x32xf32> to vector<2x32xf32>
    %544 = vector.shape_cast %538 : vector<2x32xf32> to vector<1x2x32xf32>
    tpu.vector_store %arg35[%541, %c0_266, %c0_267], %544 {strides = array<i32>} : memref<8x2x32xf32, #tpu.memory_space<vmem>>, vector<1x2x32xf32>,
    %545 = arith.index_cast %473 : i32 to index
    %c0_268 = arith.constant 0 : index
    %c0_269 = arith.constant 0 : index
    %546 = vector.load %arg36[%545, %c0_268, %c0_269] : memref<8x2x32xf32, #tpu.memory_space<vmem>>, vector<1x2x32xf32>
    %547 = vector.shape_cast %546 : vector<1x2x32xf32> to vector<2x32xf32>
    %548 = vector.shape_cast %495 : vector<2x32xf32> to vector<1x2x32xf32>
    tpu.vector_store %arg36[%545, %c0_268, %c0_269], %548 {strides = array<i32>} : memref<8x2x32xf32, #tpu.memory_space<vmem>>, vector<1x2x32xf32>,
    %549 = arith.index_cast %473 : i32 to index
    %c0_270 = arith.constant 0 : index
    %c0_271 = arith.constant 0 : index
    %550 = vector.load %arg37[%549, %c0_270, %c0_271] : memref<8x2x8xf32, #tpu.memory_space<vmem>>, vector<1x2x8xf32>
    %551 = vector.shape_cast %550 : vector<1x2x8xf32> to vector<2x8xf32>
    %552 = vector.shape_cast %491 : vector<2x8xf32> to vector<1x2x8xf32>
    tpu.vector_store %arg37[%549, %c0_270, %c0_271], %552 {strides = array<i32>} : memref<8x2x8xf32, #tpu.memory_space<vmem>>, vector<1x2x8xf32>,
    %c6_i32 = arith.constant 6 : i32
    %c1_i32_272 = arith.constant 1 : i32
    %553 = arith.muli %c6_i32, %c1_i32_272 : i32
    %c0_i32_273 = arith.constant 0 : i32
    %554 = arith.addi %c0_i32_273, %553 : i32
    %c0_274 = arith.constant 0 : index
    %c0_275 = arith.constant 0 : index
    %555 = vector.load %arg38[%c0_274, %c0_275] : memref<2x32xf32, #tpu.memory_space<vmem>>, vector<2x32xf32>
    %cst_276 = arith.constant dense<0.000000e+00> : vector<2x32xf32>
    %556 = tpu.matmul %555, %62, %cst_276 {dimension_numbers = #tpu.dot_dimension_numbers<[1], [0], [0], [1], [0, 0, 1, 1], [], []>} : vector<2x32xf32>, vector<32x32xf32>, vector<2x32xf32> -> vector<2x32xf32>
    %557 = vector.shape_cast %556 : vector<2x32xf32> to vector<2x1x32xf32>
    %558 = vector.broadcast %557 : vector<2x1x32xf32> to vector<2x8x32xf32>
    %559 = arith.addf %11, %558 : vector<2x8x32xf32>
    %560 = math.tanh %559 : vector<2x8x32xf32>
    %561 = vector.broadcast %13 : vector<1x1x32xf32> to vector<2x8x32xf32>
    %562 = arith.mulf %560, %561 : vector<2x8x32xf32>
    %cst_277 = arith.constant dense<0.000000e+00> : vector<2x8xf32>
    %563 = vector.multi_reduction <add>, %562, %cst_277 [2] : vector<2x8x32xf32> to vector<2x8xf32>
    %cst_278 = arith.constant dense<0xFF800000> : vector<2xf32>
    %564 = vector.multi_reduction <maximumf>, %563, %cst_278 [1] : vector<2x8xf32> to vector<2xf32>
    %565 = vector.shape_cast %564 : vector<2xf32> to vector<2x1xf32>
    %566 = vector.broadcast %565 : vector<2x1xf32> to vector<2x8xf32>
    %567 = arith.subf %563, %566 : vector<2x8xf32>
    %568 = math.exp %567 : vector<2x8xf32>
    %cst_279 = arith.constant dense<0.000000e+00> : vector<2xf32>
    %569 = vector.multi_reduction <add>, %568, %cst_279 [1] : vector<2x8xf32> to vector<2xf32>
    %570 = vector.shape_cast %569 : vector<2xf32> to vector<2x1xf32>
    %571 = vector.broadcast %570 : vector<2x1xf32> to vector<2x8xf32>
    %572 = arith.divf %568, %571 : vector<2x8xf32>
    %573 = vector.shape_cast %572 : vector<2x8xf32> to vector<2x8x1xf32>
    %574 = vector.broadcast %573 : vector<2x8x1xf32> to vector<2x8x32xf32>
    %575 = arith.mulf %574, %8 : vector<2x8x32xf32>
    %cst_280 = arith.constant dense<0.000000e+00> : vector<2x32xf32>
    %576 = vector.multi_reduction <add>, %575, %cst_280 [1] : vector<2x8x32xf32> to vector<2x32xf32>
    %577 = tpu.concatenate %576, %555 in 1 : vector<2x32xf32>, vector<2x32xf32> -> vector<2x64xf32>
    %578 = arith.index_cast %554 : i32 to index
    %c0_281 = arith.constant 0 : index
    %c0_282 = arith.constant 0 : index
    %579 = vector.load %arg31[%578, %c0_281, %c0_282] : memref<8x2x32xf32, #tpu.memory_space<vmem>>, vector<1x2x32xf32>
    %580 = vector.shape_cast %579 : vector<1x2x32xf32> to vector<2x32xf32>
    %cst_283 = arith.constant dense<0.000000e+00> : vector<2x32xf32>
    %581 = tpu.matmul %577, %52, %cst_283 {dimension_numbers = #tpu.dot_dimension_numbers<[1], [0], [0], [1], [0, 0, 1, 1], [], []>} : vector<2x64xf32>, vector<64x32xf32>, vector<2x32xf32> -> vector<2x32xf32>
    %582 = arith.addf %580, %581 : vector<2x32xf32>
    %583 = arith.negf %582 : vector<2x32xf32>
    %584 = math.exp %583 : vector<2x32xf32>
    %cst_284 = arith.constant 1.000000e+00 : f32
    %585 = vector.broadcast %cst_284 : f32 to vector<2x32xf32>
    %586 = arith.addf %585, %584 : vector<2x32xf32>
    %587 = arith.divf %585, %586 : vector<2x32xf32>
    %588 = arith.index_cast %554 : i32 to index
    %c0_285 = arith.constant 0 : index
    %c0_286 = arith.constant 0 : index
    %589 = vector.load %arg32[%588, %c0_285, %c0_286] : memref<8x2x32xf32, #tpu.memory_space<vmem>>, vector<1x2x32xf32>
    %590 = vector.shape_cast %589 : vector<1x2x32xf32> to vector<2x32xf32>
    %cst_287 = arith.constant dense<0.000000e+00> : vector<2x32xf32>
    %591 = tpu.matmul %577, %55, %cst_287 {dimension_numbers = #tpu.dot_dimension_numbers<[1], [0], [0], [1], [0, 0, 1, 1], [], []>} : vector<2x64xf32>, vector<64x32xf32>, vector<2x32xf32> -> vector<2x32xf32>
    %592 = arith.addf %590, %591 : vector<2x32xf32>
    %593 = arith.negf %592 : vector<2x32xf32>
    %594 = math.exp %593 : vector<2x32xf32>
    %cst_288 = arith.constant 1.000000e+00 : f32
    %595 = vector.broadcast %cst_288 : f32 to vector<2x32xf32>
    %596 = arith.addf %595, %594 : vector<2x32xf32>
    %597 = arith.divf %595, %596 : vector<2x32xf32>
    %598 = arith.index_cast %554 : i32 to index
    %c0_289 = arith.constant 0 : index
    %c0_290 = arith.constant 0 : index
    %599 = vector.load %arg33[%598, %c0_289, %c0_290] : memref<8x2x32xf32, #tpu.memory_space<vmem>>, vector<1x2x32xf32>
    %600 = vector.shape_cast %599 : vector<1x2x32xf32> to vector<2x32xf32>
    %cst_291 = arith.constant dense<0.000000e+00> : vector<2x32xf32>
    %601 = tpu.matmul %577, %58, %cst_291 {dimension_numbers = #tpu.dot_dimension_numbers<[1], [0], [0], [1], [0, 0, 1, 1], [], []>} : vector<2x64xf32>, vector<64x32xf32>, vector<2x32xf32> -> vector<2x32xf32>
    %602 = arith.addf %600, %601 : vector<2x32xf32>
    %603 = math.tanh %602 : vector<2x32xf32>
    %604 = arith.index_cast %554 : i32 to index
    %c0_292 = arith.constant 0 : index
    %c0_293 = arith.constant 0 : index
    %605 = vector.load %arg34[%604, %c0_292, %c0_293] : memref<8x2x32xf32, #tpu.memory_space<vmem>>, vector<1x2x32xf32>
    %606 = vector.shape_cast %605 : vector<1x2x32xf32> to vector<2x32xf32>
    %cst_294 = arith.constant dense<0.000000e+00> : vector<2x32xf32>
    %607 = tpu.matmul %577, %61, %cst_294 {dimension_numbers = #tpu.dot_dimension_numbers<[1], [0], [0], [1], [0, 0, 1, 1], [], []>} : vector<2x64xf32>, vector<64x32xf32>, vector<2x32xf32> -> vector<2x32xf32>
    %608 = arith.addf %606, %607 : vector<2x32xf32>
    %609 = arith.negf %608 : vector<2x32xf32>
    %610 = math.exp %609 : vector<2x32xf32>
    %cst_295 = arith.constant 1.000000e+00 : f32
    %611 = vector.broadcast %cst_295 : f32 to vector<2x32xf32>
    %612 = arith.addf %611, %610 : vector<2x32xf32>
    %613 = arith.divf %611, %612 : vector<2x32xf32>
    %c0_296 = arith.constant 0 : index
    %c0_297 = arith.constant 0 : index
    %614 = vector.load %arg39[%c0_296, %c0_297] : memref<2x32xf32, #tpu.memory_space<vmem>>, vector<2x32xf32>
    %615 = arith.mulf %597, %614 : vector<2x32xf32>
    %616 = arith.mulf %587, %603 : vector<2x32xf32>
    %617 = arith.addf %615, %616 : vector<2x32xf32>
    %618 = math.tanh %617 : vector<2x32xf32>
    %619 = arith.mulf %613, %618 : vector<2x32xf32>
    %c0_298 = arith.constant 0 : index
    %c0_299 = arith.constant 0 : index
    %620 = vector.load %arg38[%c0_298, %c0_299] : memref<2x32xf32, #tpu.memory_space<vmem>>, vector<2x32xf32>
    tpu.vector_store %arg38[%c0_298, %c0_299], %619 {strides = array<i32>} : memref<2x32xf32, #tpu.memory_space<vmem>>, vector<2x32xf32>,
    %c0_300 = arith.constant 0 : index
    %c0_301 = arith.constant 0 : index
    %621 = vector.load %arg39[%c0_300, %c0_301] : memref<2x32xf32, #tpu.memory_space<vmem>>, vector<2x32xf32>
    tpu.vector_store %arg39[%c0_300, %c0_301], %617 {strides = array<i32>} : memref<2x32xf32, #tpu.memory_space<vmem>>, vector<2x32xf32>,
    %622 = arith.index_cast %554 : i32 to index
    %c0_302 = arith.constant 0 : index
    %c0_303 = arith.constant 0 : index
    %623 = vector.load %arg35[%622, %c0_302, %c0_303] : memref<8x2x32xf32, #tpu.memory_space<vmem>>, vector<1x2x32xf32>
    %624 = vector.shape_cast %623 : vector<1x2x32xf32> to vector<2x32xf32>
    %625 = vector.shape_cast %619 : vector<2x32xf32> to vector<1x2x32xf32>
    tpu.vector_store %arg35[%622, %c0_302, %c0_303], %625 {strides = array<i32>} : memref<8x2x32xf32, #tpu.memory_space<vmem>>, vector<1x2x32xf32>,
    %626 = arith.index_cast %554 : i32 to index
    %c0_304 = arith.constant 0 : index
    %c0_305 = arith.constant 0 : index
    %627 = vector.load %arg36[%626, %c0_304, %c0_305] : memref<8x2x32xf32, #tpu.memory_space<vmem>>, vector<1x2x32xf32>
    %628 = vector.shape_cast %627 : vector<1x2x32xf32> to vector<2x32xf32>
    %629 = vector.shape_cast %576 : vector<2x32xf32> to vector<1x2x32xf32>
    tpu.vector_store %arg36[%626, %c0_304, %c0_305], %629 {strides = array<i32>} : memref<8x2x32xf32, #tpu.memory_space<vmem>>, vector<1x2x32xf32>,
    %630 = arith.index_cast %554 : i32 to index
    %c0_306 = arith.constant 0 : index
    %c0_307 = arith.constant 0 : index
    %631 = vector.load %arg37[%630, %c0_306, %c0_307] : memref<8x2x8xf32, #tpu.memory_space<vmem>>, vector<1x2x8xf32>
    %632 = vector.shape_cast %631 : vector<1x2x8xf32> to vector<2x8xf32>
    %633 = vector.shape_cast %572 : vector<2x8xf32> to vector<1x2x8xf32>
    tpu.vector_store %arg37[%630, %c0_306, %c0_307], %633 {strides = array<i32>} : memref<8x2x8xf32, #tpu.memory_space<vmem>>, vector<1x2x8xf32>,
    %c7_i32 = arith.constant 7 : i32
    %c1_i32_308 = arith.constant 1 : i32
    %634 = arith.muli %c7_i32, %c1_i32_308 : i32
    %c0_i32_309 = arith.constant 0 : i32
    %635 = arith.addi %c0_i32_309, %634 : i32
    %c0_310 = arith.constant 0 : index
    %c0_311 = arith.constant 0 : index
    %636 = vector.load %arg38[%c0_310, %c0_311] : memref<2x32xf32, #tpu.memory_space<vmem>>, vector<2x32xf32>
    %cst_312 = arith.constant dense<0.000000e+00> : vector<2x32xf32>
    %637 = tpu.matmul %636, %62, %cst_312 {dimension_numbers = #tpu.dot_dimension_numbers<[1], [0], [0], [1], [0, 0, 1, 1], [], []>} : vector<2x32xf32>, vector<32x32xf32>, vector<2x32xf32> -> vector<2x32xf32>
    %638 = vector.shape_cast %637 : vector<2x32xf32> to vector<2x1x32xf32>
    %639 = vector.broadcast %638 : vector<2x1x32xf32> to vector<2x8x32xf32>
    %640 = arith.addf %11, %639 : vector<2x8x32xf32>
    %641 = math.tanh %640 : vector<2x8x32xf32>
    %642 = vector.broadcast %13 : vector<1x1x32xf32> to vector<2x8x32xf32>
    %643 = arith.mulf %641, %642 : vector<2x8x32xf32>
    %cst_313 = arith.constant dense<0.000000e+00> : vector<2x8xf32>
    %644 = vector.multi_reduction <add>, %643, %cst_313 [2] : vector<2x8x32xf32> to vector<2x8xf32>
    %cst_314 = arith.constant dense<0xFF800000> : vector<2xf32>
    %645 = vector.multi_reduction <maximumf>, %644, %cst_314 [1] : vector<2x8xf32> to vector<2xf32>
    %646 = vector.shape_cast %645 : vector<2xf32> to vector<2x1xf32>
    %647 = vector.broadcast %646 : vector<2x1xf32> to vector<2x8xf32>
    %648 = arith.subf %644, %647 : vector<2x8xf32>
    %649 = math.exp %648 : vector<2x8xf32>
    %cst_315 = arith.constant dense<0.000000e+00> : vector<2xf32>
    %650 = vector.multi_reduction <add>, %649, %cst_315 [1] : vector<2x8xf32> to vector<2xf32>
    %651 = vector.shape_cast %650 : vector<2xf32> to vector<2x1xf32>
    %652 = vector.broadcast %651 : vector<2x1xf32> to vector<2x8xf32>
    %653 = arith.divf %649, %652 : vector<2x8xf32>
    %654 = vector.shape_cast %653 : vector<2x8xf32> to vector<2x8x1xf32>
    %655 = vector.broadcast %654 : vector<2x8x1xf32> to vector<2x8x32xf32>
    %656 = arith.mulf %655, %8 : vector<2x8x32xf32>
    %cst_316 = arith.constant dense<0.000000e+00> : vector<2x32xf32>
    %657 = vector.multi_reduction <add>, %656, %cst_316 [1] : vector<2x8x32xf32> to vector<2x32xf32>
    %658 = tpu.concatenate %657, %636 in 1 : vector<2x32xf32>, vector<2x32xf32> -> vector<2x64xf32>
    %659 = arith.index_cast %635 : i32 to index
    %c0_317 = arith.constant 0 : index
    %c0_318 = arith.constant 0 : index
    %660 = vector.load %arg31[%659, %c0_317, %c0_318] : memref<8x2x32xf32, #tpu.memory_space<vmem>>, vector<1x2x32xf32>
    %661 = vector.shape_cast %660 : vector<1x2x32xf32> to vector<2x32xf32>
    %cst_319 = arith.constant dense<0.000000e+00> : vector<2x32xf32>
    %662 = tpu.matmul %658, %52, %cst_319 {dimension_numbers = #tpu.dot_dimension_numbers<[1], [0], [0], [1], [0, 0, 1, 1], [], []>} : vector<2x64xf32>, vector<64x32xf32>, vector<2x32xf32> -> vector<2x32xf32>
    %663 = arith.addf %661, %662 : vector<2x32xf32>
    %664 = arith.negf %663 : vector<2x32xf32>
    %665 = math.exp %664 : vector<2x32xf32>
    %cst_320 = arith.constant 1.000000e+00 : f32
    %666 = vector.broadcast %cst_320 : f32 to vector<2x32xf32>
    %667 = arith.addf %666, %665 : vector<2x32xf32>
    %668 = arith.divf %666, %667 : vector<2x32xf32>
    %669 = arith.index_cast %635 : i32 to index
    %c0_321 = arith.constant 0 : index
    %c0_322 = arith.constant 0 : index
    %670 = vector.load %arg32[%669, %c0_321, %c0_322] : memref<8x2x32xf32, #tpu.memory_space<vmem>>, vector<1x2x32xf32>
    %671 = vector.shape_cast %670 : vector<1x2x32xf32> to vector<2x32xf32>
    %cst_323 = arith.constant dense<0.000000e+00> : vector<2x32xf32>
    %672 = tpu.matmul %658, %55, %cst_323 {dimension_numbers = #tpu.dot_dimension_numbers<[1], [0], [0], [1], [0, 0, 1, 1], [], []>} : vector<2x64xf32>, vector<64x32xf32>, vector<2x32xf32> -> vector<2x32xf32>
    %673 = arith.addf %671, %672 : vector<2x32xf32>
    %674 = arith.negf %673 : vector<2x32xf32>
    %675 = math.exp %674 : vector<2x32xf32>
    %cst_324 = arith.constant 1.000000e+00 : f32
    %676 = vector.broadcast %cst_324 : f32 to vector<2x32xf32>
    %677 = arith.addf %676, %675 : vector<2x32xf32>
    %678 = arith.divf %676, %677 : vector<2x32xf32>
    %679 = arith.index_cast %635 : i32 to index
    %c0_325 = arith.constant 0 : index
    %c0_326 = arith.constant 0 : index
    %680 = vector.load %arg33[%679, %c0_325, %c0_326] : memref<8x2x32xf32, #tpu.memory_space<vmem>>, vector<1x2x32xf32>
    %681 = vector.shape_cast %680 : vector<1x2x32xf32> to vector<2x32xf32>
    %cst_327 = arith.constant dense<0.000000e+00> : vector<2x32xf32>
    %682 = tpu.matmul %658, %58, %cst_327 {dimension_numbers = #tpu.dot_dimension_numbers<[1], [0], [0], [1], [0, 0, 1, 1], [], []>} : vector<2x64xf32>, vector<64x32xf32>, vector<2x32xf32> -> vector<2x32xf32>
    %683 = arith.addf %681, %682 : vector<2x32xf32>
    %684 = math.tanh %683 : vector<2x32xf32>
    %685 = arith.index_cast %635 : i32 to index
    %c0_328 = arith.constant 0 : index
    %c0_329 = arith.constant 0 : index
    %686 = vector.load %arg34[%685, %c0_328, %c0_329] : memref<8x2x32xf32, #tpu.memory_space<vmem>>, vector<1x2x32xf32>
    %687 = vector.shape_cast %686 : vector<1x2x32xf32> to vector<2x32xf32>
    %cst_330 = arith.constant dense<0.000000e+00> : vector<2x32xf32>
    %688 = tpu.matmul %658, %61, %cst_330 {dimension_numbers = #tpu.dot_dimension_numbers<[1], [0], [0], [1], [0, 0, 1, 1], [], []>} : vector<2x64xf32>, vector<64x32xf32>, vector<2x32xf32> -> vector<2x32xf32>
    %689 = arith.addf %687, %688 : vector<2x32xf32>
    %690 = arith.negf %689 : vector<2x32xf32>
    %691 = math.exp %690 : vector<2x32xf32>
    %cst_331 = arith.constant 1.000000e+00 : f32
    %692 = vector.broadcast %cst_331 : f32 to vector<2x32xf32>
    %693 = arith.addf %692, %691 : vector<2x32xf32>
    %694 = arith.divf %692, %693 : vector<2x32xf32>
    %c0_332 = arith.constant 0 : index
    %c0_333 = arith.constant 0 : index
    %695 = vector.load %arg39[%c0_332, %c0_333] : memref<2x32xf32, #tpu.memory_space<vmem>>, vector<2x32xf32>
    %696 = arith.mulf %678, %695 : vector<2x32xf32>
    %697 = arith.mulf %668, %684 : vector<2x32xf32>
    %698 = arith.addf %696, %697 : vector<2x32xf32>
    %699 = math.tanh %698 : vector<2x32xf32>
    %700 = arith.mulf %694, %699 : vector<2x32xf32>
    %c0_334 = arith.constant 0 : index
    %c0_335 = arith.constant 0 : index
    %701 = vector.load %arg38[%c0_334, %c0_335] : memref<2x32xf32, #tpu.memory_space<vmem>>, vector<2x32xf32>
    tpu.vector_store %arg38[%c0_334, %c0_335], %700 {strides = array<i32>} : memref<2x32xf32, #tpu.memory_space<vmem>>, vector<2x32xf32>,
    %c0_336 = arith.constant 0 : index
    %c0_337 = arith.constant 0 : index
    %702 = vector.load %arg39[%c0_336, %c0_337] : memref<2x32xf32, #tpu.memory_space<vmem>>, vector<2x32xf32>
    tpu.vector_store %arg39[%c0_336, %c0_337], %698 {strides = array<i32>} : memref<2x32xf32, #tpu.memory_space<vmem>>, vector<2x32xf32>,
    %703 = arith.index_cast %635 : i32 to index
    %c0_338 = arith.constant 0 : index
    %c0_339 = arith.constant 0 : index
    %704 = vector.load %arg35[%703, %c0_338, %c0_339] : memref<8x2x32xf32, #tpu.memory_space<vmem>>, vector<1x2x32xf32>
    %705 = vector.shape_cast %704 : vector<1x2x32xf32> to vector<2x32xf32>
    %706 = vector.shape_cast %700 : vector<2x32xf32> to vector<1x2x32xf32>
    tpu.vector_store %arg35[%703, %c0_338, %c0_339], %706 {strides = array<i32>} : memref<8x2x32xf32, #tpu.memory_space<vmem>>, vector<1x2x32xf32>,
    %707 = arith.index_cast %635 : i32 to index
    %c0_340 = arith.constant 0 : index
    %c0_341 = arith.constant 0 : index
    %708 = vector.load %arg36[%707, %c0_340, %c0_341] : memref<8x2x32xf32, #tpu.memory_space<vmem>>, vector<1x2x32xf32>
    %709 = vector.shape_cast %708 : vector<1x2x32xf32> to vector<2x32xf32>
    %710 = vector.shape_cast %657 : vector<2x32xf32> to vector<1x2x32xf32>
    tpu.vector_store %arg36[%707, %c0_340, %c0_341], %710 {strides = array<i32>} : memref<8x2x32xf32, #tpu.memory_space<vmem>>, vector<1x2x32xf32>,
    %711 = arith.index_cast %635 : i32 to index
    %c0_342 = arith.constant 0 : index
    %c0_343 = arith.constant 0 : index
    %712 = vector.load %arg37[%711, %c0_342, %c0_343] : memref<8x2x8xf32, #tpu.memory_space<vmem>>, vector<1x2x8xf32>
    %713 = vector.shape_cast %712 : vector<1x2x8xf32> to vector<2x8xf32>
    %714 = vector.shape_cast %653 : vector<2x8xf32> to vector<1x2x8xf32>
    tpu.vector_store %arg37[%711, %c0_342, %c0_343], %714 {strides = array<i32>} : memref<8x2x8xf32, #tpu.memory_space<vmem>>, vector<1x2x8xf32>,
    %c8_i32 = arith.constant 8 : i32
    %c0_344 = arith.constant 0 : index
    %c0_345 = arith.constant 0 : index
    %c0_346 = arith.constant 0 : index
    %715 = vector.load %arg35[%c0_344, %c0_345, %c0_346] : memref<8x2x32xf32, #tpu.memory_space<vmem>>, vector<8x2x32xf32>
    %716 = vector.shape_cast %715 : vector<8x2x32xf32> to vector<16x32xf32>
    %c0_347 = arith.constant 0 : index
    %c0_348 = arith.constant 0 : index
    %c0_349 = arith.constant 0 : index
    %717 = vector.load %arg36[%c0_347, %c0_348, %c0_349] : memref<8x2x32xf32, #tpu.memory_space<vmem>>, vector<8x2x32xf32>
    %718 = vector.shape_cast %717 : vector<8x2x32xf32> to vector<16x32xf32>
    %c0_350 = arith.constant 0 : index
    %c0_351 = arith.constant 0 : index
    %719 = vector.load %arg15[%c0_350, %c0_351] : memref<32x16xf32, #tpu.memory_space<vmem>>, vector<32x16xf32>
    %cst_352 = arith.constant dense<0.000000e+00> : vector<16x16xf32>
    %720 = tpu.matmul %716, %719, %cst_352 {dimension_numbers = #tpu.dot_dimension_numbers<[1], [0], [0], [1], [0, 0, 1, 1], [], []>} : vector<16x32xf32>, vector<32x16xf32>, vector<16x16xf32> -> vector<16x16xf32>
    %c0_353 = arith.constant 0 : index
    %c0_354 = arith.constant 0 : index
    %721 = vector.load %arg16[%c0_353, %c0_354] : memref<32x16xf32, #tpu.memory_space<vmem>>, vector<32x16xf32>
    %cst_355 = arith.constant dense<0.000000e+00> : vector<16x16xf32>
    %722 = tpu.matmul %718, %721, %cst_355 {dimension_numbers = #tpu.dot_dimension_numbers<[1], [0], [0], [1], [0, 0, 1, 1], [], []>} : vector<16x32xf32>, vector<32x16xf32>, vector<16x16xf32> -> vector<16x16xf32>
    %723 = arith.addf %720, %722 : vector<16x16xf32>
    %c0_356 = arith.constant 0 : index
    %c0_357 = arith.constant 0 : index
    %724 = vector.load %arg17[%c0_356, %c0_357] : memref<1x16xf32, #tpu.memory_space<vmem>>, vector<1x16xf32>
    %725 = vector.broadcast %724 : vector<1x16xf32> to vector<16x16xf32>
    %726 = arith.addf %723, %725 : vector<16x16xf32>
    %c0_358 = arith.constant 0 : index
    %c0_359 = arith.constant 0 : index
    %727 = vector.load %arg18[%c0_358, %c0_359] : memref<32x1xf32, #tpu.memory_space<vmem>>, vector<32x1xf32>
    %cst_360 = arith.constant dense<0.000000e+00> : vector<16x1xf32>
    %728 = tpu.matmul %716, %727, %cst_360 {dimension_numbers = #tpu.dot_dimension_numbers<[1], [0], [0], [1], [0, 0, 1, 1], [], []>} : vector<16x32xf32>, vector<32x1xf32>, vector<16x1xf32> -> vector<16x1xf32>
    %c0_361 = arith.constant 0 : index
    %c0_362 = arith.constant 0 : index
    %729 = vector.load %arg19[%c0_361, %c0_362] : memref<32x1xf32, #tpu.memory_space<vmem>>, vector<32x1xf32>
    %cst_363 = arith.constant dense<0.000000e+00> : vector<16x1xf32>
    %730 = tpu.matmul %718, %729, %cst_363 {dimension_numbers = #tpu.dot_dimension_numbers<[1], [0], [0], [1], [0, 0, 1, 1], [], []>} : vector<16x32xf32>, vector<32x1xf32>, vector<16x1xf32> -> vector<16x1xf32>
    %731 = arith.addf %728, %730 : vector<16x1xf32>
    %c0_364 = arith.constant 0 : index
    %c0_365 = arith.constant 0 : index
    %732 = vector.load %arg20[%c0_364, %c0_365] : memref<1x1xf32, #tpu.memory_space<vmem>>, vector<1x1xf32>
    %733 = vector.broadcast %732 : vector<1x1xf32> to vector<16x1xf32>
    %734 = arith.addf %731, %733 : vector<16x1xf32>
    %735 = arith.negf %734 : vector<16x1xf32>
    %736 = math.exp %735 : vector<16x1xf32>
    %cst_366 = arith.constant 1.000000e+00 : f32
    %737 = vector.broadcast %cst_366 : f32 to vector<16x1xf32>
    %738 = arith.addf %737, %736 : vector<16x1xf32>
    %739 = arith.divf %737, %738 : vector<16x1xf32>
    %740 = vector.shape_cast %726 : vector<16x16xf32> to vector<8x2x16xf32>
    %741 = tpu.transpose %740, [1, 0, 2] : vector<8x2x16xf32> -> vector<2x8x16xf32>
    %c0_367 = arith.constant 0 : index
    %c0_368 = arith.constant 0 : index
    %c0_369 = arith.constant 0 : index
    %742 = vector.load %arg27[%c0_367, %c0_368, %c0_369] : memref<2x8x16xf32, #tpu.memory_space<vmem>>, vector<2x8x16xf32>
    tpu.vector_store %arg27[%c0_367, %c0_368, %c0_369], %741 {strides = array<i32>} : memref<2x8x16xf32, #tpu.memory_space<vmem>>, vector<2x8x16xf32>,
    %743 = vector.shape_cast %739 : vector<16x1xf32> to vector<8x2x1xf32>
    %744 = tpu.transpose %743, [1, 0, 2] : vector<8x2x1xf32> -> vector<2x8x1xf32>
    %c0_370 = arith.constant 0 : index
    %c0_371 = arith.constant 0 : index
    %c0_372 = arith.constant 0 : index
    %745 = vector.load %arg29[%c0_370, %c0_371, %c0_372] : memref<2x8x1xf32, #tpu.memory_space<vmem>>, vector<2x8x1xf32>
    tpu.vector_store %arg29[%c0_370, %c0_371, %c0_372], %744 {strides = array<i32>} : memref<2x8x1xf32, #tpu.memory_space<vmem>>, vector<2x8x1xf32>,
    %c0_373 = arith.constant 0 : index
    %c0_374 = arith.constant 0 : index
    %c0_375 = arith.constant 0 : index
    %746 = vector.load %arg37[%c0_373, %c0_374, %c0_375] : memref<8x2x8xf32, #tpu.memory_space<vmem>>, vector<8x2x8xf32>
    %747 = tpu.transpose %746, [1, 0, 2] : vector<8x2x8xf32> -> vector<2x8x8xf32>
    %c0_376 = arith.constant 0 : index
    %c0_377 = arith.constant 0 : index
    %c0_378 = arith.constant 0 : index
    %748 = vector.load %arg30[%c0_376, %c0_377, %c0_378] : memref<2x8x8xf32, #tpu.memory_space<vmem>>, vector<2x8x8xf32>
    tpu.vector_store %arg30[%c0_376, %c0_377, %c0_378], %747 {strides = array<i32>} : memref<2x8x8xf32, #tpu.memory_space<vmem>>, vector<2x8x8xf32>,
    %cst_379 = arith.constant 0.000000e+00 : f32
    %749 = vector.broadcast %cst_379 : f32 to vector<2x1x16xf32>
    %750 = vector.extract_strided_slice %741 {offsets = [0, 0, 0], sizes = [2, 7, 16], strides = [1, 1, 1]} : vector<2x8x16xf32> to vector<2x7x16xf32>
    %751 = tpu.concatenate %749, %750 in 1 : vector<2x1x16xf32>, vector<2x7x16xf32> -> vector<2x8x16xf32>
    %752 = vector.extract_strided_slice %741 {offsets = [0, 1, 0], sizes = [2, 7, 16], strides = [1, 1, 1]} : vector<2x8x16xf32> to vector<2x7x16xf32>
    %753 = tpu.concatenate %752, %749 in 1 : vector<2x7x16xf32>, vector<2x1x16xf32> -> vector<2x8x16xf32>
    %754 = tpu.concatenate %751, %741, %753 in 2 : vector<2x8x16xf32>, vector<2x8x16xf32>, vector<2x8x16xf32> -> vector<2x8x48xf32>
    %755 = vector.shape_cast %754 : vector<2x8x48xf32> to vector<16x48xf32>
    %c0_380 = arith.constant 0 : index
    %c0_381 = arith.constant 0 : index
    %756 = vector.load %arg21[%c0_380, %c0_381] : memref<16x32xf32, #tpu.memory_space<vmem>>, vector<16x32xf32>
    %c0_382 = arith.constant 0 : index
    %c0_383 = arith.constant 0 : index
    %757 = vector.load %arg22[%c0_382, %c0_383] : memref<16x32xf32, #tpu.memory_space<vmem>>, vector<16x32xf32>
    %c0_384 = arith.constant 0 : index
    %c0_385 = arith.constant 0 : index
    %758 = vector.load %arg23[%c0_384, %c0_385] : memref<16x32xf32, #tpu.memory_space<vmem>>, vector<16x32xf32>
    %759 = tpu.concatenate %756, %757, %758 in 0 : vector<16x32xf32>, vector<16x32xf32>, vector<16x32xf32> -> vector<48x32xf32>
    %cst_386 = arith.constant dense<0.000000e+00> : vector<16x32xf32>
    %760 = tpu.matmul %755, %759, %cst_386 {dimension_numbers = #tpu.dot_dimension_numbers<[1], [0], [0], [1], [0, 0, 1, 1], [], []>} : vector<16x48xf32>, vector<48x32xf32>, vector<16x32xf32> -> vector<16x32xf32>
    %c0_387 = arith.constant 0 : index
    %c0_388 = arith.constant 0 : index
    %761 = vector.load %arg24[%c0_387, %c0_388] : memref<1x32xf32, #tpu.memory_space<vmem>>, vector<1x32xf32>
    %762 = vector.broadcast %761 : vector<1x32xf32> to vector<16x32xf32>
    %763 = arith.addf %760, %762 : vector<16x32xf32>
    %764 = math.tanh %763 : vector<16x32xf32>
    %c0_389 = arith.constant 0 : index
    %c0_390 = arith.constant 0 : index
    %765 = vector.load %arg25[%c0_389, %c0_390] : memref<32x16xf32, #tpu.memory_space<vmem>>, vector<32x16xf32>
    %cst_391 = arith.constant dense<0.000000e+00> : vector<16x16xf32>
    %766 = tpu.matmul %764, %765, %cst_391 {dimension_numbers = #tpu.dot_dimension_numbers<[1], [0], [0], [1], [0, 0, 1, 1], [], []>} : vector<16x32xf32>, vector<32x16xf32>, vector<16x16xf32> -> vector<16x16xf32>
    %c0_392 = arith.constant 0 : index
    %c0_393 = arith.constant 0 : index
    %767 = vector.load %arg26[%c0_392, %c0_393] : memref<1x16xf32, #tpu.memory_space<vmem>>, vector<1x16xf32>
    %768 = vector.broadcast %767 : vector<1x16xf32> to vector<16x16xf32>
    %769 = arith.addf %766, %768 : vector<16x16xf32>
    %770 = vector.shape_cast %769 : vector<16x16xf32> to vector<2x8x16xf32>
    %771 = arith.addf %741, %770 : vector<2x8x16xf32>
    %c0_394 = arith.constant 0 : index
    %c0_395 = arith.constant 0 : index
    %c0_396 = arith.constant 0 : index
    %772 = vector.load %arg28[%c0_394, %c0_395, %c0_396] : memref<2x8x16xf32, #tpu.memory_space<vmem>>, vector<2x8x16xf32>
    tpu.vector_store %arg28[%c0_394, %c0_395, %c0_396], %771 {strides = array<i32>} : memref<2x8x16xf32, #tpu.memory_space<vmem>>, vector<2x8x16xf32>,
    return
  }
}

</mosaic_0001>

<llo_original>
// kernel: tpu_custom_call.1
$region0: #{tpu_custom_call.1}
  #allocation0 [shape = 'u32[]', space=smem, size = 0x4, offset = 0x4, fixed_abs, tag = 'smem constant byte address 0x4 - core index']
  #allocation1 [shape = 'u32[144,128]{1,0:T(1,128)}', space=vmem, size = 0x12000, scoped, tag = 'internal scratch']
  #allocation2 [shape = 'f32[8,2,32]{2,1,0:T(2,128)}', space=vmem, size = 0x2000, scoped, tag = 'scratch operand']
  #allocation3 [shape = 'f32[8,2,32]{2,1,0:T(2,128)}', space=vmem, size = 0x2000, scoped, tag = 'scratch operand']
  #allocation4 [shape = 'f32[8,2,32]{2,1,0:T(2,128)}', space=vmem, size = 0x2000, scoped, tag = 'scratch operand']
  #allocation5 [shape = 'f32[8,2,32]{2,1,0:T(2,128)}', space=vmem, size = 0x2000, scoped, tag = 'scratch operand']
  #allocation6 [shape = 'f32[8,2,32]{2,1,0:T(2,128)}', space=vmem, size = 0x2000, scoped, tag = 'scratch operand']
  #allocation7 [shape = 'f32[8,2,32]{2,1,0:T(2,128)}', space=vmem, size = 0x2000, scoped, tag = 'scratch operand']
  #allocation8 [shape = 'f32[8,2,8]{2,1,0:T(2,128)}', space=vmem, size = 0x2000, scoped, tag = 'scratch operand']
  #allocation9 [shape = 'f32[2,32]{1,0:T(2,128)}', space=vmem, size = 0x400, scoped, tag = 'scratch operand']
  #allocation10 [shape = 'f32[2,32]{1,0:T(2,128)}', space=vmem, size = 0x400, scoped, tag = 'scratch operand']
  #allocation11 [shape = 'f32[1,1]{1,0:T(1,128)S(1)}', space=vmem, size = 0x200, scoped, tag = 'scoped memory for tpu_custom_call.1']
  %s0 = inlined_call_operand.smem [shape: u32[31], index: -1, kind: input, shape index: {}]
  %s1 = sld [smem:[%s0]]
  %s2 = scalar_lea.smem %s0, 1
  %s3 = sld [smem:[%s2]]
  %s4 = scalar_lea.smem %s0, 2
  %s5 = sld [smem:[%s4]]
  %s6 = scalar_lea.smem %s0, 3
  %s7 = sld [smem:[%s6]]
  %s8 = scalar_lea.smem %s0, 4
  %s9 = sld [smem:[%s8]]
  %s10 = scalar_lea.smem %s0, 5
  %s11 = sld [smem:[%s10]]
  %s12 = scalar_lea.smem %s0, 6
  %s13 = sld [smem:[%s12]]
  %s14 = scalar_lea.smem %s0, 7
  %s15 = sld [smem:[%s14]]
  %s16 = scalar_lea.smem %s0, 8
  %s17 = sld [smem:[%s16]]
  %s18 = scalar_lea.smem %s0, 9
  %s19 = sld [smem:[%s18]]
  %s20 = scalar_lea.smem %s0, 10
  %s21 = sld [smem:[%s20]]
  %s22 = scalar_lea.smem %s0, 11
  %s23 = sld [smem:[%s22]]
  %s24 = scalar_lea.smem %s0, 12
  %s25 = sld [smem:[%s24]]
  %s26 = scalar_lea.smem %s0, 13
  %s27 = sld [smem:[%s26]]
  %s28 = scalar_lea.smem %s0, 14
  %s29 = sld [smem:[%s28]]
  %s30 = scalar_lea.smem %s0, 15
  %s31 = sld [smem:[%s30]]
  %s32 = scalar_lea.smem %s0, 16
  %s33 = sld [smem:[%s32]]
  %s34 = scalar_lea.smem %s0, 17
  %s35 = sld [smem:[%s34]]
  %s36 = scalar_lea.smem %s0, 18
  %s37 = sld [smem:[%s36]]
  %s38 = scalar_lea.smem %s0, 19
  %s39 = sld [smem:[%s38]]
  %s40 = scalar_lea.smem %s0, 20
  %s41 = sld [smem:[%s40]]
  %s42 = scalar_lea.smem %s0, 21
  %s43 = sld [smem:[%s42]]
  %s44 = scalar_lea.smem %s0, 22
  %s45 = sld [smem:[%s44]]
  %s46 = scalar_lea.smem %s0, 23
  %s47 = sld [smem:[%s46]]
  %s48 = scalar_lea.smem %s0, 24
  %s49 = sld [smem:[%s48]]
  %s50 = scalar_lea.smem %s0, 25
  %s51 = sld [smem:[%s50]]
  %s52 = scalar_lea.smem %s0, 26
  %s53 = sld [smem:[%s52]]
  %s54 = scalar_lea.smem %s0, 27
  %s55 = sld [smem:[%s54]]
  %s56 = scalar_lea.smem %s0, 28
  %s57 = sld [smem:[%s56]]
  %s58 = scalar_lea.smem %s0, 29
  %s59 = sld [smem:[%s58]]
  %s60 = scalar_lea.smem %s0, 30
  %s61 = sld [smem:[%s60]]
  %62 = xla_tuple %s55, %s57, %s59, %s61
  %s63 = sld [smem:[#allocation0]]
  $region182: #{tpu_custom_call.1} parent=0
    _
  %s65 = ssub.s32 1, %s63
  %s66 = scalar_select 0, %s65, %s63
  %v67 = vstv %s41
  %68 = vst [vmem:[#allocation11] sm:$0x1] %v67
  $region1: #{tpu_custom_call.1} parent=0
    #allocation12 [shape = 'u8[8192]{0}', space=vmem, size = 0x2000, scoped, tag = 'input window, operand 0, single buffered']
    #allocation13 [shape = 's32[1]{0}', space=sflag, size = 0x4, scoped, tag = 'scoped memory for tpu_custom_call.1']
    #allocation14 [shape = 's32[1]{0}', space=sflag, size = 0x4, scoped, tag = 'scoped memory for tpu_custom_call.1']
    #allocation15 [shape = 'u8[8192]{0}', space=vmem, size = 0x2000, scoped, tag = 'input window, operand 1, single buffered']
    #allocation16 [shape = 's32[1]{0}', space=sflag, size = 0x4, scoped, tag = 'scoped memory for tpu_custom_call.1']
    #allocation17 [shape = 'u8[512]{0}', space=vmem, size = 0x400, scoped, tag = 'input window, operand 3, single buffered']
    #allocation18 [shape = 'u8[8192]{0}', space=vmem, size = 0x2000, scoped, tag = 'input window, operand 4, single buffered']
    #allocation19 [shape = 's32[1]{0}', space=sflag, size = 0x4, scoped, tag = 'scoped memory for tpu_custom_call.1']
    #allocation20 [shape = 'u8[512]{0}', space=vmem, size = 0x400, scoped, tag = 'input window, operand 5, single buffered']
    #allocation21 [shape = 'u8[512]{0}', space=vmem, size = 0x400, scoped, tag = 'input window, operand 7, single buffered']
    #allocation22 [shape = 's32[1]{0}', space=sflag, size = 0x4, scoped, tag = 'scoped memory for tpu_custom_call.1']
    #allocation23 [shape = 'u8[512]{0}', space=vmem, size = 0x400, scoped, tag = 'input window, operand 14, single buffered']
    #allocation24 [shape = 'u8[8192]{0}', space=vmem, size = 0x2000, scoped, tag = 'input window, operand 21, single buffered']
    #allocation25 [shape = 's32[1]{0}', space=sflag, size = 0x4, scoped, tag = 'scoped memory for tpu_custom_call.1']
    #allocation26 [shape = 'u8[8192]{0}', space=vmem, size = 0x2000, scoped, tag = 'input window, operand 22, single buffered']
    #allocation27 [shape = 'u8[8192]{0}', space=vmem, size = 0x2000, scoped, tag = 'input window, operand 23, single buffered']
    #allocation28 [shape = 's32[1]{0}', space=sflag, size = 0x4, scoped, tag = 'scoped memory for tpu_custom_call.1']
    #allocation29 [shape = 'u8[8192]{0}', space=vmem, size = 0x2000, scoped, tag = 'output window, operand 0, single buffered']
    #allocation30 [shape = 'u8[8192]{0}', space=vmem, size = 0x2000, scoped, tag = 'output window, operand 1, single buffered']
    #allocation31 [shape = 's32[1]{0}', space=sflag, size = 0x4, scoped, tag = 'scoped memory for tpu_custom_call.1']
    #allocation32 [shape = 'u8[8192]{0}', space=vmem, size = 0x2000, scoped, tag = 'output window, operand 3, single buffered']
    %69 = vsyncpa [#allocation13], 0
    %70 = vsyncpa [#allocation16], 0
    %71 = vsyncpa [#allocation19], 0
    %72 = vsyncpa [#allocation22], 0
    %73 = vsyncpa [#allocation25], 0
    %74 = vsyncpa [#allocation28], 0
    %75 = vsyncpa [#allocation14], 0
    %76 = vsyncpa [#allocation31], 0
    // Predicated region
    $region2: #{tpu_custom_call.1} parent=1 // pred_check
      _
    $region3: #{tpu_custom_call.1} parent=1 // pred_check_branch
      %78 = sbr.rel (0) target = $region5
    $region4: #{tpu_custom_call.1} parent=1 // pred_region
      %s80 = ssub.s32 256, 256
      %81 = vsyncadd [#allocation13], %s80
      %s82 = sshll.u32 [#allocation12], 4
      %s83 = int_to_ptr.vmem [resolvable:$true] %s82
      %88 = dma.hbm_to_vmem [thread:$0]  %s1, 256, %s83, [#allocation13], 128, 128, 8
    $region5: #{tpu_custom_call.1} parent=1 // pred_fallthru
      _
    // Predicated region
    $region6: #{tpu_custom_call.1} parent=1 // pred_check
      _
    $region7: #{tpu_custom_call.1} parent=1 // pred_check_branch
      %90 = sbr.rel (0) target = $region9
    $region8: #{tpu_custom_call.1} parent=1 // pred_region
      %s92 = ssub.s32 256, 256
      %93 = vsyncadd [#allocation16], %s92
      %s94 = sshll.u32 [#allocation15], 4
      %s95 = int_to_ptr.vmem [resolvable:$true] %s94
      %100 = dma.hbm_to_vmem [thread:$0]  %s3, 256, %s95, [#allocation16], 128, 128, 8
    $region9: #{tpu_custom_call.1} parent=1 // pred_fallthru
      _
    // Predicated region
    $region10: #{tpu_custom_call.1} parent=1 // pred_check
      _
    $region11: #{tpu_custom_call.1} parent=1 // pred_check_branch
      %102 = sbr.rel (0) target = $region13
    $region12: #{tpu_custom_call.1} parent=1 // pred_region
      _
    $region13: #{tpu_custom_call.1} parent=1 // pred_fallthru
      _
    // Predicated region
    $region14: #{tpu_custom_call.1} parent=1 // pred_check
      _
    $region15: #{tpu_custom_call.1} parent=1 // pred_check_branch
      %104 = sbr.rel (0) target = $region17
    $region16: #{tpu_custom_call.1} parent=1 // pred_region
      %s106 = ssub.s32 16, 16
      %107 = vsyncadd [#allocation16], %s106
      %s109 = sshll.u32 [#allocation17], 4
      %s110 = int_to_ptr.vmem [resolvable:$true] %s109
      %112 = dma.hbm_to_vmem [thread:$0]  %s7, 16, %s110, [#allocation16]
    $region17: #{tpu_custom_call.1} parent=1 // pred_fallthru
      _
    // Predicated region
    $region18: #{tpu_custom_call.1} parent=1 // pred_check
      _
    $region19: #{tpu_custom_call.1} parent=1 // pred_check_branch
      %114 = sbr.rel (0) target = $region21
    $region20: #{tpu_custom_call.1} parent=1 // pred_region
      %s116 = ssub.s32 256, 256
      %117 = vsyncadd [#allocation19], %s116
      %s118 = sshll.u32 [#allocation18], 4
      %s119 = int_to_ptr.vmem [resolvable:$true] %s118
      %124 = dma.hbm_to_vmem [thread:$0]  %s9, 256, %s119, [#allocation19], 128, 128, 8
    $region21: #{tpu_custom_call.1} parent=1 // pred_fallthru
      _
    // Predicated region
    $region22: #{tpu_custom_call.1} parent=1 // pred_check
      _
    $region23: #{tpu_custom_call.1} parent=1 // pred_check_branch
      %126 = sbr.rel (0) target = $region25
    $region24: #{tpu_custom_call.1} parent=1 // pred_region
      %s128 = ssub.s32 16, 16
      %129 = vsyncadd [#allocation19], %s128
      %s131 = sshll.u32 [#allocation20], 4
      %s132 = int_to_ptr.vmem [resolvable:$true] %s131
      %134 = dma.hbm_to_vmem [thread:$0]  %s11, 16, %s132, [#allocation19]
    $region25: #{tpu_custom_call.1} parent=1 // pred_fallthru
      _
    // Predicated region
    $region26: #{tpu_custom_call.1} parent=1 // pred_check
      _
    $region27: #{tpu_custom_call.1} parent=1 // pred_check_branch
      %136 = sbr.rel (0) target = $region29
    $region28: #{tpu_custom_call.1} parent=1 // pred_region
      _
    $region29: #{tpu_custom_call.1} parent=1 // pred_fallthru
      _
    // Predicated region
    $region30: #{tpu_custom_call.1} parent=1 // pred_check
      _
    $region31: #{tpu_custom_call.1} parent=1 // pred_check_branch
      %138 = sbr.rel (0) target = $region33
    $region32: #{tpu_custom_call.1} parent=1 // pred_region
      %s140 = ssub.s32 16, 16
      %141 = vsyncadd [#allocation22], %s140
      %s143 = sshll.u32 [#allocation21], 4
      %s144 = int_to_ptr.vmem [resolvable:$true] %s143
      %146 = dma.hbm_to_vmem [thread:$0]  %s15, 16, %s144, [#allocation22]
    $region33: #{tpu_custom_call.1} parent=1 // pred_fallthru
      _
    // Predicated region
    $region34: #{tpu_custom_call.1} parent=1 // pred_check
      _
    $region35: #{tpu_custom_call.1} parent=1 // pred_check_branch
      %148 = sbr.rel (0) target = $region37
    $region36: #{tpu_custom_call.1} parent=1 // pred_region
      _
    $region37: #{tpu_custom_call.1} parent=1 // pred_fallthru
      _
    // Predicated region
    $region38: #{tpu_custom_call.1} parent=1 // pred_check
      _
    $region39: #{tpu_custom_call.1} parent=1 // pred_check_branch
      %150 = sbr.rel (0) target = $region41
    $region40: #{tpu_custom_call.1} parent=1 // pred_region
      _
    $region41: #{tpu_custom_call.1} parent=1 // pred_fallthru
      _
    // Predicated region
    $region42: #{tpu_custom_call.1} parent=1 // pred_check
      _
    $region43: #{tpu_custom_call.1} parent=1 // pred_check_branch
      %152 = sbr.rel (0) target = $region45
    $region44: #{tpu_custom_call.1} parent=1 // pred_region
      _
    $region45: #{tpu_custom_call.1} parent=1 // pred_fallthru
      _
    // Predicated region
    $region46: #{tpu_custom_call.1} parent=1 // pred_check
      _
    $region47: #{tpu_custom_call.1} parent=1 // pred_check_branch
      %154 = sbr.rel (0) target = $region49
    $region48: #{tpu_custom_call.1} parent=1 // pred_region
      _
    $region49: #{tpu_custom_call.1} parent=1 // pred_fallthru
      _
    // Predicated region
    $region50: #{tpu_custom_call.1} parent=1 // pred_check
      _
    $region51: #{tpu_custom_call.1} parent=1 // pred_check_branch
      %156 = sbr.rel (0) target = $region53
    $region52: #{tpu_custom_call.1} parent=1 // pred_region
      _
    $region53: #{tpu_custom_call.1} parent=1 // pred_fallthru
      _
    // Predicated region
    $region54: #{tpu_custom_call.1} parent=1 // pred_check
      _
    $region55: #{tpu_custom_call.1} parent=1 // pred_check_branch
      %158 = sbr.rel (0) target = $region57
    $region56: #{tpu_custom_call.1} parent=1 // pred_region
      _
    $region57: #{tpu_custom_call.1} parent=1 // pred_fallthru
      _
    // Predicated region
    $region58: #{tpu_custom_call.1} parent=1 // pred_check
      _
    $region59: #{tpu_custom_call.1} parent=1 // pred_check_branch
      %160 = sbr.rel (0) target = $region61
    $region60: #{tpu_custom_call.1} parent=1 // pred_region
      %s162 = ssub.s32 16, 16
      %163 = vsyncadd [#allocation22], %s162
      %s165 = sshll.u32 [#allocation23], 4
      %s166 = int_to_ptr.vmem [resolvable:$true] %s165
      %168 = dma.hbm_to_vmem [thread:$0]  %s29, 16, %s166, [#allocation22]
    $region61: #{tpu_custom_call.1} parent=1 // pred_fallthru
      _
    // Predicated region
    $region62: #{tpu_custom_call.1} parent=1 // pred_check
      _
    $region63: #{tpu_custom_call.1} parent=1 // pred_check_branch
      %170 = sbr.rel (0) target = $region65
    $region64: #{tpu_custom_call.1} parent=1 // pred_region
      _
    $region65: #{tpu_custom_call.1} parent=1 // pred_fallthru
      _
    // Predicated region
    $region66: #{tpu_custom_call.1} parent=1 // pred_check
      _
    $region67: #{tpu_custom_call.1} parent=1 // pred_check_branch
      %172 = sbr.rel (0) target = $region69
    $region68: #{tpu_custom_call.1} parent=1 // pred_region
      _
    $region69: #{tpu_custom_call.1} parent=1 // pred_fallthru
      _
    // Predicated region
    $region70: #{tpu_custom_call.1} parent=1 // pred_check
      _
    $region71: #{tpu_custom_call.1} parent=1 // pred_check_branch
      %174 = sbr.rel (0) target = $region73
    $region72: #{tpu_custom_call.1} parent=1 // pred_region
      _
    $region73: #{tpu_custom_call.1} parent=1 // pred_fallthru
      _
    // Predicated region
    $region74: #{tpu_custom_call.1} parent=1 // pred_check
      _
    $region75: #{tpu_custom_call.1} parent=1 // pred_check_branch
      %176 = sbr.rel (0) target = $region77
    $region76: #{tpu_custom_call.1} parent=1 // pred_region
      _
    $region77: #{tpu_custom_call.1} parent=1 // pred_fallthru
      _
    // Predicated region
    $region78: #{tpu_custom_call.1} parent=1 // pred_check
      _
    $region79: #{tpu_custom_call.1} parent=1 // pred_check_branch
      %178 = sbr.rel (0) target = $region81
    $region80: #{tpu_custom_call.1} parent=1 // pred_region
      _
    $region81: #{tpu_custom_call.1} parent=1 // pred_fallthru
      _
    // Predicated region
    $region82: #{tpu_custom_call.1} parent=1 // pred_check
      _
    $region83: #{tpu_custom_call.1} parent=1 // pred_check_branch
      %180 = sbr.rel (0) target = $region85
    $region84: #{tpu_custom_call.1} parent=1 // pred_region
      _
    $region85: #{tpu_custom_call.1} parent=1 // pred_fallthru
      _
    // Predicated region
    $region86: #{tpu_custom_call.1} parent=1 // pred_check
      _
    $region87: #{tpu_custom_call.1} parent=1 // pred_check_branch
      %182 = sbr.rel (0) target = $region89
    $region88: #{tpu_custom_call.1} parent=1 // pred_region
      %s184 = ssub.s32 256, 256
      %185 = vsyncadd [#allocation25], %s184
      %s186 = sshll.u32 [#allocation24], 4
      %s187 = int_to_ptr.vmem [resolvable:$true] %s186
      %192 = dma.hbm_to_vmem [thread:$0]  %s43, 256, %s187, [#allocation25], 128, 128, 8
    $region89: #{tpu_custom_call.1} parent=1 // pred_fallthru
      _
    // Predicated region
    $region90: #{tpu_custom_call.1} parent=1 // pred_check
      _
    $region91: #{tpu_custom_call.1} parent=1 // pred_check_branch
      %194 = sbr.rel (0) target = $region93
    $region92: #{tpu_custom_call.1} parent=1 // pred_region
      %s196 = ssub.s32 256, 256
      %197 = vsyncadd [#allocation25], %s196
      %s198 = sshll.u32 [#allocation26], 4
      %s199 = int_to_ptr.vmem [resolvable:$true] %s198
      %204 = dma.hbm_to_vmem [thread:$0]  %s45, 256, %s199, [#allocation25], 128, 128, 8
    $region93: #{tpu_custom_call.1} parent=1 // pred_fallthru
      _
    // Predicated region
    $region94: #{tpu_custom_call.1} parent=1 // pred_check
      _
    $region95: #{tpu_custom_call.1} parent=1 // pred_check_branch
      %206 = sbr.rel (0) target = $region97
    $region96: #{tpu_custom_call.1} parent=1 // pred_region
      %s208 = ssub.s32 256, 256
      %209 = vsyncadd [#allocation28], %s208
      %s210 = sshll.u32 [#allocation27], 4
      %s211 = int_to_ptr.vmem [resolvable:$true] %s210
      %216 = dma.hbm_to_vmem [thread:$0]  %s47, 256, %s211, [#allocation28], 128, 128, 8
    $region97: #{tpu_custom_call.1} parent=1 // pred_fallthru
      _
    // Predicated region
    $region98: #{tpu_custom_call.1} parent=1 // pred_check
      _
    $region99: #{tpu_custom_call.1} parent=1 // pred_check_branch
      %218 = sbr.rel (0) target = $region101
    $region100: #{tpu_custom_call.1} parent=1 // pred_region
      _
    $region101: #{tpu_custom_call.1} parent=1 // pred_fallthru
      _
    // Predicated region
    $region102: #{tpu_custom_call.1} parent=1 // pred_check
      _
    $region103: #{tpu_custom_call.1} parent=1 // pred_check_branch
      %220 = sbr.rel (0) target = $region105
    $region104: #{tpu_custom_call.1} parent=1 // pred_region
      _
    $region105: #{tpu_custom_call.1} parent=1 // pred_fallthru
      _
    // Predicated region
    $region106: #{tpu_custom_call.1} parent=1 // pred_check
      _
    $region107: #{tpu_custom_call.1} parent=1 // pred_check_branch
      %222 = sbr.rel (0) target = $region109
    $region108: #{tpu_custom_call.1} parent=1 // pred_region
      _
    $region109: #{tpu_custom_call.1} parent=1 // pred_fallthru
      _
    // Predicated region
    $region110: #{tpu_custom_call.1} parent=1 // pred_check
      _
    $region111: #{tpu_custom_call.1} parent=1 // pred_check_branch
      %224 = sbr.rel (0) target = $region113
    $region112: #{tpu_custom_call.1} parent=1 // pred_region
      %225 = dma.done [#allocation13], 256
    $region113: #{tpu_custom_call.1} parent=1 // pred_fallthru
      _
    // Predicated region
    $region114: #{tpu_custom_call.1} parent=1 // pred_check
      _
    $region115: #{tpu_custom_call.1} parent=1 // pred_check_branch
      %227 = sbr.rel (0) target = $region117
    $region116: #{tpu_custom_call.1} parent=1 // pred_region
      %228 = dma.done [#allocation16], 256
    $region117: #{tpu_custom_call.1} parent=1 // pred_fallthru
      _
    // Predicated region
    $region118: #{tpu_custom_call.1} parent=1 // pred_check
      _
    $region119: #{tpu_custom_call.1} parent=1 // pred_check_branch
      %230 = sbr.rel (0) target = $region121
    $region120: #{tpu_custom_call.1} parent=1 // pred_region
      %231 = dma.done [#allocation16], 16
    $region121: #{tpu_custom_call.1} parent=1 // pred_fallthru
      _
    // Predicated region
    $region122: #{tpu_custom_call.1} parent=1 // pred_check
      _
    $region123: #{tpu_custom_call.1} parent=1 // pred_check_branch
      %233 = sbr.rel (0) target = $region125
    $region124: #{tpu_custom_call.1} parent=1 // pred_region
      %234 = dma.done [#allocation19], 256
    $region125: #{tpu_custom_call.1} parent=1 // pred_fallthru
      _
    // Predicated region
    $region126: #{tpu_custom_call.1} parent=1 // pred_check
      _
    $region127: #{tpu_custom_call.1} parent=1 // pred_check_branch
      %236 = sbr.rel (0) target = $region129
    $region128: #{tpu_custom_call.1} parent=1 // pred_region
      %237 = dma.done [#allocation19], 16
    $region129: #{tpu_custom_call.1} parent=1 // pred_fallthru
      _
    // Predicated region
    $region130: #{tpu_custom_call.1} parent=1 // pred_check
      _
    $region131: #{tpu_custom_call.1} parent=1 // pred_check_branch
      %239 = sbr.rel (0) target = $region133
    $region132: #{tpu_custom_call.1} parent=1 // pred_region
      %240 = dma.done [#allocation22], 16
    $region133: #{tpu_custom_call.1} parent=1 // pred_fallthru
      _
    // Predicated region
    $region134: #{tpu_custom_call.1} parent=1 // pred_check
      _
    $region135: #{tpu_custom_call.1} parent=1 // pred_check_branch
      %242 = sbr.rel (0) target = $region137
    $region136: #{tpu_custom_call.1} parent=1 // pred_region
      %243 = dma.done [#allocation22], 16
    $region137: #{tpu_custom_call.1} parent=1 // pred_fallthru
      _
    // Predicated region
    $region138: #{tpu_custom_call.1} parent=1 // pred_check
      _
    $region139: #{tpu_custom_call.1} parent=1 // pred_check_branch
      %245 = sbr.rel (0) target = $region141
    $region140: #{tpu_custom_call.1} parent=1 // pred_region
      %246 = dma.done [#allocation25], 256
    $region141: #{tpu_custom_call.1} parent=1 // pred_fallthru
      _
    // Predicated region
    $region142: #{tpu_custom_call.1} parent=1 // pred_check
      _
    $region143: #{tpu_custom_call.1} parent=1 // pred_check_branch
      %248 = sbr.rel (0) target = $region145
    $region144: #{tpu_custom_call.1} parent=1 // pred_region
      %249 = dma.done [#allocation25], 256
    $region145: #{tpu_custom_call.1} parent=1 // pred_fallthru
      _
    // Predicated region
    $region146: #{tpu_custom_call.1} parent=1 // pred_check
      _
    $region147: #{tpu_custom_call.1} parent=1 // pred_check_branch
      %251 = sbr.rel (0) target = $region149
    $region148: #{tpu_custom_call.1} parent=1 // pred_region
      %252 = dma.done [#allocation28], 256
    $region149: #{tpu_custom_call.1} parent=1 // pred_fallthru
      _
    %v253 = vld [vmem:[#allocation12] sm:$0xff]
    %v254 = vld [vmem:[#allocation12 + $0x8] sm:$0xff]
    %v255 = vld [vmem:[%s5] sm:$0xff]
    %v256 = vld [vmem:[%s5 + $0x8] sm:$0xff]
    %v257 = vld [vmem:[%s5 + $0x10] sm:$0xff]
    %v258 = vld [vmem:[%s5 + $0x18] sm:$0xff]
    %v259 = vld [vmem:[#allocation17] sm:$0x1]
    %v261 = vlaneseq
    %v262 = vshrl.u32 %v261, 7
    %v263 = vsub.s32 0, %v262
    %v264 = vrot.slane %v259, %v263
    %vm266 = vcmask 261120
    %v268 = vsel %vm266, %v253, 0
    %v271 = vsel %vm266, %v254, 0
    %273 = vmatprep.subr.mxu0 0.0
    %274 = vmatpush1.msra.mxu0 0.0
    %275 = vmatprep.subr.mxu0 0.0
    %276 = vmatpush1.msra.mxu0 0.0
    %277 = vmatprep.subr.mxu0 0.0
    %278 = vmatpush1.msra.mxu0 0.0
    %279 = vmatprep.subr.mxu0 0.0
    %280 = vmatpush1.msra.mxu0 0.0
    %281 = vmatprep.subr.mxu0 0.0
    %282 = vmatpush1.msra.mxu0 0.0
    %283 = vmatprep.subr.mxu0 0.0
    %284 = vmatpush1.msra.mxu0 0.0
    %285 = vmatprep.subr.mxu0 0.0
    %286 = vmatpush1.msra.mxu0 0.0
    %287 = vmatprep.subr.mxu0 0.0
    %288 = vmatpush1.msra.mxu0 0.0
    %289 = vmatprep.subr.mxu0 0.0
    %290 = vmatpush1.msra.mxu0 0.0
    %291 = vmatprep.subr.mxu0 0.0
    %292 = vmatpush1.msra.mxu0 0.0
    %293 = vmatprep.subr.mxu0 0.0
    %294 = vmatpush1.msra.mxu0 0.0
    %295 = vmatprep.subr.mxu0 0.0
    %296 = vmatpush1.msra.mxu0 0.0
    %297 = vmatprep.subr.mxu0 0.0
    %298 = vmatpush1.msra.mxu0 %v258
    %299 = vmatprep.subr.mxu0 0.0
    %300 = vmatpush1.msra.mxu0 %v257
    %301 = vmatprep.subr.mxu0 0.0
    %302 = vmatpush1.msra.mxu0 %v256
    %303 = vmatprep.subr.mxu0 0.0
    %304 = vmatpush1.msra.mxu0 %v255
    %305 = vmatprep.subr.mxu0 0.0
    %306 = vmatpush2.msra.mxu0 0.0
    %307 = vmatprep.subr.mxu0 0.0
    %308 = vmatpush2.msra.mxu0 0.0
    %309 = vmatprep.subr.mxu0 0.0
    %310 = vmatpush2.msra.mxu0 0.0
    %311 = vmatprep.subr.mxu0 0.0
    %312 = vmatpush2.msra.mxu0 0.0
    %313 = vmatprep.subr.mxu0 0.0
    %314 = vmatpush2.msra.mxu0 0.0
    %315 = vmatprep.subr.mxu0 0.0
    %316 = vmatpush2.msra.mxu0 0.0
    %317 = vmatprep.subr.mxu0 0.0
    %318 = vmatpush2.msra.mxu0 0.0
    %319 = vmatprep.subr.mxu0 0.0
    %320 = vmatpush2.msra.mxu0 0.0
    %321 = vmatprep.subr.mxu0 0.0
    %322 = vmatpush2.msra.mxu0 0.0
    %323 = vmatprep.subr.mxu0 0.0
    %324 = vmatpush2.msra.mxu0 0.0
    %325 = vmatprep.subr.mxu0 0.0
    %326 = vmatpush2.msra.mxu0 0.0
    %327 = vmatprep.subr.mxu0 0.0
    %328 = vmatpush2.msra.mxu0 0.0
    %329 = vmatprep.subr.mxu0 0.0
    %330 = vmatpush2.msra.mxu0 0.0
    %331 = vmatprep.subr.mxu0 0.0
    %332 = vmatpush2.msra.mxu0 0.0
    %333 = vmatprep.subr.mxu0 0.0
    %334 = vmatpush2.msra.mxu0 0.0
    %335 = vmatprep.subr.mxu0 0.0
    %336 = vmatpush2.msra.mxu0 0.0
    %337 = vmatprep.mubr.f32.mxu0 0.0
    %338 = vmatmul.mubr.f32.gmra.mxu0 %v268
    %v339 = vpop.f32.mrf.mxu0
    %v340 = vadd.f32 %v264, %v339
    %v341 = vpop.f32.mrf.mxu0
    %342 = vmatprep.mubr.f32.mxu0 0.0
    %343 = vmatmul.mubr.f32.gmra.mxu0 %v271
    %v344 = vpop.f32.mrf.mxu0
    %v345 = vadd.f32 %v264, %v344
    %v346 = vpop.f32.mrf.mxu0
    %347 = vdwg.mxu0
    %v348 = vtanh.pop %v340
    %v349 = vtanh.pop %v345
    %v350 = vld [vmem:[%s19] sm:$0xff]
    %v351 = vld [vmem:[%s19 + $0x8] sm:$0xff]
    %v352 = vld [vmem:[%s19 + $0x10] sm:$0xff]
    %v353 = vld [vmem:[%s19 + $0x18] sm:$0xff]
    %v355 = vsel %vm266, %v348, 0
    %v358 = vsel %vm266, %v349, 0
    %360 = vmatprep.subr.mxu0 0.0
    %361 = vmatpush1.msra.mxu0 0.0
    %362 = vmatprep.subr.mxu0 0.0
    %363 = vmatpush1.msra.mxu0 0.0
    %364 = vmatprep.subr.mxu0 0.0
    %365 = vmatpush1.msra.mxu0 0.0
    %366 = vmatprep.subr.mxu0 0.0
    %367 = vmatpush1.msra.mxu0 0.0
    %368 = vmatprep.subr.mxu0 0.0
    %369 = vmatpush1.msra.mxu0 0.0
    %370 = vmatprep.subr.mxu0 0.0
    %371 = vmatpush1.msra.mxu0 0.0
    %372 = vmatprep.subr.mxu0 0.0
    %373 = vmatpush1.msra.mxu0 0.0
    %374 = vmatprep.subr.mxu0 0.0
    %375 = vmatpush1.msra.mxu0 0.0
    %376 = vmatprep.subr.mxu0 0.0
    %377 = vmatpush1.msra.mxu0 0.0
    %378 = vmatprep.subr.mxu0 0.0
    %379 = vmatpush1.msra.mxu0 0.0
    %380 = vmatprep.subr.mxu0 0.0
    %381 = vmatpush1.msra.mxu0 0.0
    %382 = vmatprep.subr.mxu0 0.0
    %383 = vmatpush1.msra.mxu0 0.0
    %384 = vmatprep.subr.mxu0 0.0
    %385 = vmatpush1.msra.mxu0 %v353
    %386 = vmatprep.subr.mxu0 0.0
    %387 = vmatpush1.msra.mxu0 %v352
    %388 = vmatprep.subr.mxu0 0.0
    %389 = vmatpush1.msra.mxu0 %v351
    %390 = vmatprep.subr.mxu0 0.0
    %391 = vmatpush1.msra.mxu0 %v350
    %392 = vmatprep.subr.mxu0 0.0
    %393 = vmatpush2.msra.mxu0 0.0
    %394 = vmatprep.subr.mxu0 0.0
    %395 = vmatpush2.msra.mxu0 0.0
    %396 = vmatprep.subr.mxu0 0.0
    %397 = vmatpush2.msra.mxu0 0.0
    %398 = vmatprep.subr.mxu0 0.0
    %399 = vmatpush2.msra.mxu0 0.0
    %400 = vmatprep.subr.mxu0 0.0
    %401 = vmatpush2.msra.mxu0 0.0
    %402 = vmatprep.subr.mxu0 0.0
    %403 = vmatpush2.msra.mxu0 0.0
    %404 = vmatprep.subr.mxu0 0.0
    %405 = vmatpush2.msra.mxu0 0.0
    %406 = vmatprep.subr.mxu0 0.0
    %407 = vmatpush2.msra.mxu0 0.0
    %408 = vmatprep.subr.mxu0 0.0
    %409 = vmatpush2.msra.mxu0 0.0
    %410 = vmatprep.subr.mxu0 0.0
    %411 = vmatpush2.msra.mxu0 0.0
    %412 = vmatprep.subr.mxu0 0.0
    %413 = vmatpush2.msra.mxu0 0.0
    %414 = vmatprep.subr.mxu0 0.0
    %415 = vmatpush2.msra.mxu0 0.0
    %416 = vmatprep.subr.mxu0 0.0
    %417 = vmatpush2.msra.mxu0 0.0
    %418 = vmatprep.subr.mxu0 0.0
    %419 = vmatpush2.msra.mxu0 0.0
    %420 = vmatprep.subr.mxu0 0.0
    %421 = vmatpush2.msra.mxu0 0.0
    %422 = vmatprep.subr.mxu0 0.0
    %423 = vmatpush2.msra.mxu0 0.0
    %424 = vmatprep.mubr.f32.mxu0 0.0
    %425 = vmatmul.mubr.f32.gmra.mxu0 %v355
    %v426 = vpop.f32.mrf.mxu0
    %v427 = vadd.f32 0.0, %v426
    %v428 = vpop.f32.mrf.mxu0
    %429 = vmatprep.mubr.f32.mxu0 0.0
    %430 = vmatmul.mubr.f32.gmra.mxu0 %v358
    %v431 = vpop.f32.mrf.mxu0
    %v432 = vadd.f32 0.0, %v431
    %v433 = vpop.f32.mrf.mxu0
    %434 = vdwg.mxu0
    %v435 = vld [vmem:[%s21] sm:$0x1]
    %v436 = vld [vmem:[#allocation15] sm:$0xff]
    %v437 = vld [vmem:[#allocation15 + $0x8] sm:$0xff]
    %v440 = vrot.slane %v436, 7
    %v441 = vrot.slane %v437, 7
    %vm444 = vcmask 1040384
    %v445 = vsel %vm444, 0.0, %v440
    %v446 = vsel %vm444, 0.0, %v441
    %v447 = vcombine.high %v445, 0.0
    %v449 = vunpack.c.l.s4 1983009808
    %v450 = vunpack.c.0.s8 %v449
    %v451 = vlaneseq
    %v452 = vshrl.u32 %v451, 7
    %v453 = vsub.s32 %v450, %v452
    %v454 = vrot.slane %v445, %v453
    %v456 = vunpack.c.l.s4 1983009808
    %v457 = vunpack.c.0.s8 %v456
    %v458 = vlaneseq
    %v459 = vshrl.u32 %v458, 7
    %v460 = vsub.s32 %v457, %v459
    %v461 = vrot.slane %v447, %v460
    %v462 = vcombine.high %v446, 0.0
    %v464 = vunpack.c.l.s4 1983009808
    %v465 = vunpack.c.0.s8 %v464
    %v466 = vlaneseq
    %v467 = vshrl.u32 %v466, 7
    %v468 = vsub.s32 %v465, %v467
    %v469 = vrot.slane %v446, %v468
    %v471 = vunpack.c.l.s4 1983009808
    %v472 = vunpack.c.0.s8 %v471
    %v473 = vlaneseq
    %v474 = vshrl.u32 %v473, 7
    %v475 = vsub.s32 %v472, %v474
    %v476 = vrot.slane %v462, %v475
    %v477 = vcombine.low %v454, %v469
    %v478 = vcombine.high %v454, %v469
    %v480 = vunpack.c.l.s4 1934713408
    %v481 = vunpack.c.0.s8 %v480
    %v482 = vlaneseq
    %v483 = vshrl.u32 %v482, 7
    %v484 = vsub.s32 %v481, %v483
    %v485 = vrot.slane %v477, %v484
    %v487 = vunpack.c.l.s4 1934713408
    %v488 = vunpack.c.0.s8 %v487
    %v489 = vlaneseq
    %v490 = vshrl.u32 %v489, 7
    %v491 = vsub.s32 %v488, %v490
    %v492 = vrot.slane %v478, %v491
    %v493 = vcombine.low %v461, %v476
    %v494 = vcombine.high %v461, %v476
    %v496 = vunpack.c.l.s4 1934713408
    %v497 = vunpack.c.0.s8 %v496
    %v498 = vlaneseq
    %v499 = vshrl.u32 %v498, 7
    %v500 = vsub.s32 %v497, %v499
    %v501 = vrot.slane %v493, %v500
    %v503 = vunpack.c.l.s4 1934713408
    %v504 = vunpack.c.0.s8 %v503
    %v505 = vlaneseq
    %v506 = vshrl.u32 %v505, 7
    %v507 = vsub.s32 %v504, %v506
    %v508 = vrot.slane %v494, %v507
    %v509 = vcombine.high %v485, 0.0
    %v510 = vcombine.high %v492, 0.0
    %v511 = vcombine.high %v501, 0.0
    %v512 = vcombine.high %v508, 0.0
    %v513 = vld [vmem:[#allocation18] sm:$0xff]
    %v514 = vld [vmem:[#allocation18 + $0x8] sm:$0xff]
    %v515 = vld [vmem:[#allocation20] sm:$0x1]
    %v517 = vlaneseq
    %v518 = vshrl.u32 %v517, 7
    %v519 = vsub.s32 0, %v518
    %v520 = vrot.slane %v515, %v519
    %v530 = vcombine.low %v485, %v509
    %v531 = vcombine.low %v492, %v510
    %v533 = vunpack.c.l.s4 1983009808
    %v534 = vunpack.c.0.s8 %v533
    %v535 = vlaneseq
    %v536 = vshrl.u32 %v535, 7
    %v537 = vsub.s32 %v534, %v536
    %v538 = vrot.slane %v530, %v537
    %v540 = vunpack.c.l.s4 1983009808
    %v541 = vunpack.c.0.s8 %v540
    %v542 = vlaneseq
    %v543 = vshrl.u32 %v542, 7
    %v544 = vsub.s32 %v541, %v543
    %v545 = vrot.slane %v531, %v544
    %v546 = vcombine.low %v538, %v545
    %v547 = vcombine.low %v501, %v511
    %v548 = vcombine.low %v508, %v512
    %v550 = vunpack.c.l.s4 1983009808
    %v551 = vunpack.c.0.s8 %v550
    %v552 = vlaneseq
    %v553 = vshrl.u32 %v552, 7
    %v554 = vsub.s32 %v551, %v553
    %v555 = vrot.slane %v547, %v554
    %v557 = vunpack.c.l.s4 1983009808
    %v558 = vunpack.c.0.s8 %v557
    %v559 = vlaneseq
    %v560 = vshrl.u32 %v559, 7
    %v561 = vsub.s32 %v558, %v560
    %v562 = vrot.slane %v548, %v561
    %v563 = vcombine.low %v555, %v562
    %vm564 = vcmask 130048
    %v565 = vsel %vm564, %v546, 0
    %v567 = vsel %vm564, %v563, 0
    %569 = vmatprep.subr.mxu0 0.0
    %570 = vmatpush1.msra.mxu0 0.0
    %571 = vmatprep.subr.mxu0 0.0
    %572 = vmatpush1.msra.mxu0 0.0
    %573 = vmatprep.subr.mxu0 0.0
    %574 = vmatpush1.msra.mxu0 0.0
    %575 = vmatprep.subr.mxu0 0.0
    %576 = vmatpush1.msra.mxu0 0.0
    %577 = vmatprep.subr.mxu0 0.0
    %578 = vmatpush1.msra.mxu0 0.0
    %579 = vmatprep.subr.mxu0 0.0
    %580 = vmatpush1.msra.mxu0 0.0
    %581 = vmatprep.subr.mxu0 0.0
    %582 = vmatpush1.msra.mxu0 0.0
    %583 = vmatprep.subr.mxu0 0.0
    %584 = vmatpush1.msra.mxu0 0.0
    %585 = vmatprep.subr.mxu0 0.0
    %586 = vmatpush1.msra.mxu0 0.0
    %587 = vmatprep.subr.mxu0 0.0
    %588 = vmatpush1.msra.mxu0 0.0
    %589 = vmatprep.subr.mxu0 0.0
    %590 = vmatpush1.msra.mxu0 0.0
    %591 = vmatprep.subr.mxu0 0.0
    %592 = vmatpush1.msra.mxu0 0.0
    %593 = vmatprep.subr.mxu0 0.0
    %594 = vmatpush1.msra.mxu0 0.0
    %595 = vmatprep.subr.mxu0 0.0
    %596 = vmatpush1.msra.mxu0 0.0
    %597 = vmatprep.subr.mxu0 0.0
    %598 = vmatpush1.msra.mxu0 %v514
    %599 = vmatprep.subr.mxu0 0.0
    %600 = vmatpush1.msra.mxu0 %v513
    %601 = vmatprep.subr.mxu0 0.0
    %602 = vmatpush2.msra.mxu0 0.0
    %603 = vmatprep.subr.mxu0 0.0
    %604 = vmatpush2.msra.mxu0 0.0
    %605 = vmatprep.subr.mxu0 0.0
    %606 = vmatpush2.msra.mxu0 0.0
    %607 = vmatprep.subr.mxu0 0.0
    %608 = vmatpush2.msra.mxu0 0.0
    %609 = vmatprep.subr.mxu0 0.0
    %610 = vmatpush2.msra.mxu0 0.0
    %611 = vmatprep.subr.mxu0 0.0
    %612 = vmatpush2.msra.mxu0 0.0
    %613 = vmatprep.subr.mxu0 0.0
    %614 = vmatpush2.msra.mxu0 0.0
    %615 = vmatprep.subr.mxu0 0.0
    %616 = vmatpush2.msra.mxu0 0.0
    %617 = vmatprep.subr.mxu0 0.0
    %618 = vmatpush2.msra.mxu0 0.0
    %619 = vmatprep.subr.mxu0 0.0
    %620 = vmatpush2.msra.mxu0 0.0
    %621 = vmatprep.subr.mxu0 0.0
    %622 = vmatpush2.msra.mxu0 0.0
    %623 = vmatprep.subr.mxu0 0.0
    %624 = vmatpush2.msra.mxu0 0.0
    %625 = vmatprep.subr.mxu0 0.0
    %626 = vmatpush2.msra.mxu0 0.0
    %627 = vmatprep.subr.mxu0 0.0
    %628 = vmatpush2.msra.mxu0 0.0
    %629 = vmatprep.subr.mxu0 0.0
    %630 = vmatpush2.msra.mxu0 0.0
    %631 = vmatprep.subr.mxu0 0.0
    %632 = vmatpush2.msra.mxu0 0.0
    %633 = vmatprep.mubr.f32.mxu0 0.0
    %634 = vmatmul.mubr.f32.gmra.mxu0 %v565
    %v635 = vpop.f32.mrf.mxu0
    %v636 = vadd.f32 %v520, %v635
    %v637 = vpop.f32.mrf.mxu0
    %638 = vmatprep.mubr.f32.mxu0 0.0
    %639 = vmatmul.mubr.f32.gmra.mxu0 %v567
    %v640 = vpop.f32.mrf.mxu0
    %v641 = vadd.f32 %v520, %v640
    %v642 = vpop.f32.mrf.mxu0
    %643 = vdwg.mxu0
    %v644 = vmax.f32 %v636, 0.0
    %v645 = vmax.f32 %v641, 0.0
    %v646 = vld [vmem:[%s13] sm:$0xff]
    %v647 = vld [vmem:[%s13 + $0x8] sm:$0xff]
    %v648 = vld [vmem:[%s13 + $0x10] sm:$0xff]
    %v649 = vld [vmem:[%s13 + $0x18] sm:$0xff]
    %v650 = vld [vmem:[#allocation21] sm:$0x1]
    %v652 = vlaneseq
    %v653 = vshrl.u32 %v652, 7
    %v654 = vsub.s32 0, %v653
    %v655 = vrot.slane %v650, %v654
    %v658 = vsel %vm266, %v644, 0
    %v661 = vsel %vm266, %v645, 0
    %663 = vmatprep.subr.mxu0 0.0
    %664 = vmatpush1.msra.mxu0 0.0
    %665 = vmatprep.subr.mxu0 0.0
    %666 = vmatpush1.msra.mxu0 0.0
    %667 = vmatprep.subr.mxu0 0.0
    %668 = vmatpush1.msra.mxu0 0.0
    %669 = vmatprep.subr.mxu0 0.0
    %670 = vmatpush1.msra.mxu0 0.0
    %671 = vmatprep.subr.mxu0 0.0
    %672 = vmatpush1.msra.mxu0 0.0
    %673 = vmatprep.subr.mxu0 0.0
    %674 = vmatpush1.msra.mxu0 0.0
    %675 = vmatprep.subr.mxu0 0.0
    %676 = vmatpush1.msra.mxu0 0.0
    %677 = vmatprep.subr.mxu0 0.0
    %678 = vmatpush1.msra.mxu0 0.0
    %679 = vmatprep.subr.mxu0 0.0
    %680 = vmatpush1.msra.mxu0 0.0
    %681 = vmatprep.subr.mxu0 0.0
    %682 = vmatpush1.msra.mxu0 0.0
    %683 = vmatprep.subr.mxu0 0.0
    %684 = vmatpush1.msra.mxu0 0.0
    %685 = vmatprep.subr.mxu0 0.0
    %686 = vmatpush1.msra.mxu0 0.0
    %687 = vmatprep.subr.mxu0 0.0
    %688 = vmatpush1.msra.mxu0 %v649
    %689 = vmatprep.subr.mxu0 0.0
    %690 = vmatpush1.msra.mxu0 %v648
    %691 = vmatprep.subr.mxu0 0.0
    %692 = vmatpush1.msra.mxu0 %v647
    %693 = vmatprep.subr.mxu0 0.0
    %694 = vmatpush1.msra.mxu0 %v646
    %695 = vmatprep.subr.mxu0 0.0
    %696 = vmatpush2.msra.mxu0 0.0
    %697 = vmatprep.subr.mxu0 0.0
    %698 = vmatpush2.msra.mxu0 0.0
    %699 = vmatprep.subr.mxu0 0.0
    %700 = vmatpush2.msra.mxu0 0.0
    %701 = vmatprep.subr.mxu0 0.0
    %702 = vmatpush2.msra.mxu0 0.0
    %703 = vmatprep.subr.mxu0 0.0
    %704 = vmatpush2.msra.mxu0 0.0
    %705 = vmatprep.subr.mxu0 0.0
    %706 = vmatpush2.msra.mxu0 0.0
    %707 = vmatprep.subr.mxu0 0.0
    %708 = vmatpush2.msra.mxu0 0.0
    %709 = vmatprep.subr.mxu0 0.0
    %710 = vmatpush2.msra.mxu0 0.0
    %711 = vmatprep.subr.mxu0 0.0
    %712 = vmatpush2.msra.mxu0 0.0
    %713 = vmatprep.subr.mxu0 0.0
    %714 = vmatpush2.msra.mxu0 0.0
    %715 = vmatprep.subr.mxu0 0.0
    %716 = vmatpush2.msra.mxu0 0.0
    %717 = vmatprep.subr.mxu0 0.0
    %718 = vmatpush2.msra.mxu0 0.0
    %719 = vmatprep.subr.mxu0 0.0
    %720 = vmatpush2.msra.mxu0 0.0
    %721 = vmatprep.subr.mxu0 0.0
    %722 = vmatpush2.msra.mxu0 0.0
    %723 = vmatprep.subr.mxu0 0.0
    %724 = vmatpush2.msra.mxu0 0.0
    %725 = vmatprep.subr.mxu0 0.0
    %726 = vmatpush2.msra.mxu0 0.0
    %727 = vmatprep.mubr.f32.mxu0 0.0
    %728 = vmatmul.mubr.f32.gmra.mxu0 %v658
    %v729 = vpop.f32.mrf.mxu0
    %v730 = vadd.f32 %v655, %v729
    %v731 = vpop.f32.mrf.mxu0
    %732 = vmatprep.mubr.f32.mxu0 0.0
    %733 = vmatmul.mubr.f32.gmra.mxu0 %v661
    %v734 = vpop.f32.mrf.mxu0
    %v735 = vadd.f32 %v655, %v734
    %v736 = vpop.f32.mrf.mxu0
    %737 = vdwg.mxu0
    %v738 = vmax.f32 %v730, 0.0
    %v739 = vmax.f32 %v735, 0.0
    %v740 = vld [vmem:[%s23] sm:$0xff]
    %v741 = vld [vmem:[%s23 + $0x8] sm:$0xff]
    %v742 = vld [vmem:[%s23 + $0x10] sm:$0xff]
    %v743 = vld [vmem:[%s23 + $0x18] sm:$0xff]
    %v744 = vld [vmem:[#allocation23] sm:$0x1]
    %v746 = vlaneseq
    %v747 = vshrl.u32 %v746, 7
    %v748 = vsub.s32 0, %v747
    %v749 = vrot.slane %v744, %v748
    %v752 = vsel %vm266, %v738, 0
    %v755 = vsel %vm266, %v739, 0
    %757 = vmatprep.subr.mxu0 0.0
    %758 = vmatpush1.msra.mxu0 0.0
    %759 = vmatprep.subr.mxu0 0.0
    %760 = vmatpush1.msra.mxu0 0.0
    %761 = vmatprep.subr.mxu0 0.0
    %762 = vmatpush1.msra.mxu0 0.0
    %763 = vmatprep.subr.mxu0 0.0
    %764 = vmatpush1.msra.mxu0 0.0
    %765 = vmatprep.subr.mxu0 0.0
    %766 = vmatpush1.msra.mxu0 0.0
    %767 = vmatprep.subr.mxu0 0.0
    %768 = vmatpush1.msra.mxu0 0.0
    %769 = vmatprep.subr.mxu0 0.0
    %770 = vmatpush1.msra.mxu0 0.0
    %771 = vmatprep.subr.mxu0 0.0
    %772 = vmatpush1.msra.mxu0 0.0
    %773 = vmatprep.subr.mxu0 0.0
    %774 = vmatpush1.msra.mxu0 0.0
    %775 = vmatprep.subr.mxu0 0.0
    %776 = vmatpush1.msra.mxu0 0.0
    %777 = vmatprep.subr.mxu0 0.0
    %778 = vmatpush1.msra.mxu0 0.0
    %779 = vmatprep.subr.mxu0 0.0
    %780 = vmatpush1.msra.mxu0 0.0
    %781 = vmatprep.subr.mxu0 0.0
    %782 = vmatpush1.msra.mxu0 %v743
    %783 = vmatprep.subr.mxu0 0.0
    %784 = vmatpush1.msra.mxu0 %v742
    %785 = vmatprep.subr.mxu0 0.0
    %786 = vmatpush1.msra.mxu0 %v741
    %787 = vmatprep.subr.mxu0 0.0
    %788 = vmatpush1.msra.mxu0 %v740
    %789 = vmatprep.subr.mxu0 0.0
    %790 = vmatpush2.msra.mxu0 0.0
    %791 = vmatprep.subr.mxu0 0.0
    %792 = vmatpush2.msra.mxu0 0.0
    %793 = vmatprep.subr.mxu0 0.0
    %794 = vmatpush2.msra.mxu0 0.0
    %795 = vmatprep.subr.mxu0 0.0
    %796 = vmatpush2.msra.mxu0 0.0
    %797 = vmatprep.subr.mxu0 0.0
    %798 = vmatpush2.msra.mxu0 0.0
    %799 = vmatprep.subr.mxu0 0.0
    %800 = vmatpush2.msra.mxu0 0.0
    %801 = vmatprep.subr.mxu0 0.0
    %802 = vmatpush2.msra.mxu0 0.0
    %803 = vmatprep.subr.mxu0 0.0
    %804 = vmatpush2.msra.mxu0 0.0
    %805 = vmatprep.subr.mxu0 0.0
    %806 = vmatpush2.msra.mxu0 0.0
    %807 = vmatprep.subr.mxu0 0.0
    %808 = vmatpush2.msra.mxu0 0.0
    %809 = vmatprep.subr.mxu0 0.0
    %810 = vmatpush2.msra.mxu0 0.0
    %811 = vmatprep.subr.mxu0 0.0
    %812 = vmatpush2.msra.mxu0 0.0
    %813 = vmatprep.subr.mxu0 0.0
    %814 = vmatpush2.msra.mxu0 0.0
    %815 = vmatprep.subr.mxu0 0.0
    %816 = vmatpush2.msra.mxu0 0.0
    %817 = vmatprep.subr.mxu0 0.0
    %818 = vmatpush2.msra.mxu0 0.0
    %819 = vmatprep.subr.mxu0 0.0
    %820 = vmatpush2.msra.mxu0 0.0
    %821 = vmatprep.mubr.f32.mxu0 0.0
    %822 = vmatmul.mubr.f32.gmra.mxu0 %v752
    %v823 = vpop.f32.mrf.mxu0
    %v824 = vadd.f32 %v749, %v823
    %v825 = vpop.f32.mrf.mxu0
    %826 = vmatprep.mubr.f32.mxu0 0.0
    %827 = vmatmul.mubr.f32.gmra.mxu0 %v755
    %v828 = vpop.f32.mrf.mxu0
    %v829 = vadd.f32 %v749, %v828
    %v830 = vpop.f32.mrf.mxu0
    %831 = vdwg.mxu0
    %v834 = vcombine.high %v824, %v824
    %v836 = vunpack.c.l.s4 1983009808
    %v837 = vunpack.c.0.s8 %v836
    %v838 = vlaneseq
    %v839 = vshrl.u32 %v838, 7
    %v840 = vsub.s32 %v837, %v839
    %v841 = vrot.slane %v824, %v840
    %v843 = vunpack.c.l.s4 1983009808
    %v844 = vunpack.c.0.s8 %v843
    %v845 = vlaneseq
    %v846 = vshrl.u32 %v845, 7
    %v847 = vsub.s32 %v844, %v846
    %v848 = vrot.slane %v834, %v847
    %v849 = vcombine.high %v841, %v841
    %v850 = vcombine.high %v848, %v848
    %v851 = vcombine.high %v829, %v829
    %v853 = vunpack.c.l.s4 1983009808
    %v854 = vunpack.c.0.s8 %v853
    %v855 = vlaneseq
    %v856 = vshrl.u32 %v855, 7
    %v857 = vsub.s32 %v854, %v856
    %v858 = vrot.slane %v829, %v857
    %v860 = vunpack.c.l.s4 1983009808
    %v861 = vunpack.c.0.s8 %v860
    %v862 = vlaneseq
    %v863 = vshrl.u32 %v862, 7
    %v864 = vsub.s32 %v861, %v863
    %v865 = vrot.slane %v851, %v864
    %v866 = vcombine.high %v858, %v858
    %v867 = vcombine.high %v865, %v865
    %vm876 = vcmask 254976
    %877 = vst.msk [vmem:[#allocation2] sm:$0x3] %vm876, %v841
    %878 = vst.msk [vmem:[#allocation2 + $0x2] sm:$0x3] %vm876, %v849
    %879 = vst.msk [vmem:[#allocation2 + $0x4] sm:$0x3] %vm876, %v848
    %880 = vst.msk [vmem:[#allocation2 + $0x6] sm:$0x3] %vm876, %v850
    %881 = vst.msk [vmem:[#allocation2 + $0x8] sm:$0x3] %vm876, %v858
    %882 = vst.msk [vmem:[#allocation2 + $0xa] sm:$0x3] %vm876, %v866
    %883 = vst.msk [vmem:[#allocation2 + $0xc] sm:$0x3] %vm876, %v865
    %884 = vst.msk [vmem:[#allocation2 + $0xe] sm:$0x3] %vm876, %v867
    %v886 = vunpack.c.l.s4 1983009808
    %v887 = vunpack.c.0.s8 %v886
    %v888 = vlaneseq
    %v889 = vshrl.u32 %v888, 7
    %v890 = vsub.s32 %v887, %v889
    %v891 = vrot.slane %v841, %v890
    %v893 = vunpack.c.l.s4 1983009808
    %v894 = vunpack.c.0.s8 %v893
    %v895 = vlaneseq
    %v896 = vshrl.u32 %v895, 7
    %v897 = vsub.s32 %v894, %v896
    %v898 = vrot.slane %v849, %v897
    %v900 = vunpack.c.l.s4 1983009808
    %v901 = vunpack.c.0.s8 %v900
    %v902 = vlaneseq
    %v903 = vshrl.u32 %v902, 7
    %v904 = vsub.s32 %v901, %v903
    %v905 = vrot.slane %v848, %v904
    %v907 = vunpack.c.l.s4 1983009808
    %v908 = vunpack.c.0.s8 %v907
    %v909 = vlaneseq
    %v910 = vshrl.u32 %v909, 7
    %v911 = vsub.s32 %v908, %v910
    %v912 = vrot.slane %v850, %v911
    %v914 = vunpack.c.l.s4 1983009808
    %v915 = vunpack.c.0.s8 %v914
    %v916 = vlaneseq
    %v917 = vshrl.u32 %v916, 7
    %v918 = vsub.s32 %v915, %v917
    %v919 = vrot.slane %v858, %v918
    %v921 = vunpack.c.l.s4 1983009808
    %v922 = vunpack.c.0.s8 %v921
    %v923 = vlaneseq
    %v924 = vshrl.u32 %v923, 7
    %v925 = vsub.s32 %v922, %v924
    %v926 = vrot.slane %v866, %v925
    %v928 = vunpack.c.l.s4 1983009808
    %v929 = vunpack.c.0.s8 %v928
    %v930 = vlaneseq
    %v931 = vshrl.u32 %v930, 7
    %v932 = vsub.s32 %v929, %v931
    %v933 = vrot.slane %v865, %v932
    %v935 = vunpack.c.l.s4 1983009808
    %v936 = vunpack.c.0.s8 %v935
    %v937 = vlaneseq
    %v938 = vshrl.u32 %v937, 7
    %v939 = vsub.s32 %v936, %v938
    %v940 = vrot.slane %v867, %v939
    %941 = vrot.lane.b32.xlu0 %v891, 96
    %v942 = vpop.permute.xlu0 %941
    %943 = vrot.lane.b32.xlu0 %v898, 96
    %v944 = vpop.permute.xlu0 %943
    %945 = vrot.lane.b32.xlu0 %v905, 96
    %v946 = vpop.permute.xlu0 %945
    %947 = vrot.lane.b32.xlu0 %v912, 96
    %v948 = vpop.permute.xlu0 %947
    %949 = vrot.lane.b32.xlu0 %v919, 96
    %v950 = vpop.permute.xlu0 %949
    %951 = vrot.lane.b32.xlu0 %v926, 96
    %v952 = vpop.permute.xlu0 %951
    %953 = vrot.lane.b32.xlu0 %v933, 96
    %v954 = vpop.permute.xlu0 %953
    %955 = vrot.lane.b32.xlu0 %v940, 96
    %v956 = vpop.permute.xlu0 %955
    %965 = vst.msk [vmem:[#allocation3] sm:$0x3] %vm876, %v942
    %966 = vst.msk [vmem:[#allocation3 + $0x2] sm:$0x3] %vm876, %v944
    %967 = vst.msk [vmem:[#allocation3 + $0x4] sm:$0x3] %vm876, %v946
    %968 = vst.msk [vmem:[#allocation3 + $0x6] sm:$0x3] %vm876, %v948
    %969 = vst.msk [vmem:[#allocation3 + $0x8] sm:$0x3] %vm876, %v950
    %970 = vst.msk [vmem:[#allocation3 + $0xa] sm:$0x3] %vm876, %v952
    %971 = vst.msk [vmem:[#allocation3 + $0xc] sm:$0x3] %vm876, %v954
    %972 = vst.msk [vmem:[#allocation3 + $0xe] sm:$0x3] %vm876, %v956
    %973 = vrot.lane.b32.xlu0 %v891, 64
    %v974 = vpop.permute.xlu0 %973
    %975 = vrot.lane.b32.xlu0 %v898, 64
    %v976 = vpop.permute.xlu0 %975
    %977 = vrot.lane.b32.xlu0 %v905, 64
    %v978 = vpop.permute.xlu0 %977
    %979 = vrot.lane.b32.xlu0 %v912, 64
    %v980 = vpop.permute.xlu0 %979
    %981 = vrot.lane.b32.xlu0 %v919, 64
    %v982 = vpop.permute.xlu0 %981
    %983 = vrot.lane.b32.xlu0 %v926, 64
    %v984 = vpop.permute.xlu0 %983
    %985 = vrot.lane.b32.xlu0 %v933, 64
    %v986 = vpop.permute.xlu0 %985
    %987 = vrot.lane.b32.xlu0 %v940, 64
    %v988 = vpop.permute.xlu0 %987
    %997 = vst.msk [vmem:[#allocation4] sm:$0x3] %vm876, %v974
    %998 = vst.msk [vmem:[#allocation4 + $0x2] sm:$0x3] %vm876, %v976
    %999 = vst.msk [vmem:[#allocation4 + $0x4] sm:$0x3] %vm876, %v978
    %1000 = vst.msk [vmem:[#allocation4 + $0x6] sm:$0x3] %vm876, %v980
    %1001 = vst.msk [vmem:[#allocation4 + $0x8] sm:$0x3] %vm876, %v982
    %1002 = vst.msk [vmem:[#allocation4 + $0xa] sm:$0x3] %vm876, %v984
    %1003 = vst.msk [vmem:[#allocation4 + $0xc] sm:$0x3] %vm876, %v986
    %1004 = vst.msk [vmem:[#allocation4 + $0xe] sm:$0x3] %vm876, %v988
    %1005 = vrot.lane.b32.xlu0 %v891, 32
    %v1006 = vpop.permute.xlu0 %1005
    %1007 = vrot.lane.b32.xlu0 %v898, 32
    %v1008 = vpop.permute.xlu0 %1007
    %1009 = vrot.lane.b32.xlu0 %v905, 32
    %v1010 = vpop.permute.xlu0 %1009
    %1011 = vrot.lane.b32.xlu0 %v912, 32
    %v1012 = vpop.permute.xlu0 %1011
    %1013 = vrot.lane.b32.xlu0 %v919, 32
    %v1014 = vpop.permute.xlu0 %1013
    %1015 = vrot.lane.b32.xlu0 %v926, 32
    %v1016 = vpop.permute.xlu0 %1015
    %1017 = vrot.lane.b32.xlu0 %v933, 32
    %v1018 = vpop.permute.xlu0 %1017
    %1019 = vrot.lane.b32.xlu0 %v940, 32
    %v1020 = vpop.permute.xlu0 %1019
    %1029 = vst.msk [vmem:[#allocation5] sm:$0x3] %vm876, %v1006
    %1030 = vst.msk [vmem:[#allocation5 + $0x2] sm:$0x3] %vm876, %v1008
    %1031 = vst.msk [vmem:[#allocation5 + $0x4] sm:$0x3] %vm876, %v1010
    %1032 = vst.msk [vmem:[#allocation5 + $0x6] sm:$0x3] %vm876, %v1012
    %1033 = vst.msk [vmem:[#allocation5 + $0x8] sm:$0x3] %vm876, %v1014
    %1034 = vst.msk [vmem:[#allocation5 + $0xa] sm:$0x3] %vm876, %v1016
    %1035 = vst.msk [vmem:[#allocation5 + $0xc] sm:$0x3] %vm876, %v1018
    %1036 = vst.msk [vmem:[#allocation5 + $0xe] sm:$0x3] %vm876, %v1020
    %v1037 = vld [vmem:[%s25] sm:$0xff]
    %v1038 = vld [vmem:[%s25 + $0x8] sm:$0xff]
    %v1039 = vld [vmem:[%s25 + $0x10] sm:$0xff]
    %v1040 = vld [vmem:[%s25 + $0x18] sm:$0xff]
    %v1041 = vld [vmem:[%s27] sm:$0xff]
    %v1042 = vld [vmem:[%s27 + $0x8] sm:$0xff]
    %v1043 = vld [vmem:[%s27 + $0x10] sm:$0xff]
    %v1044 = vld [vmem:[%s27 + $0x18] sm:$0xff]
    %v1045 = vld [vmem:[%s17] sm:$0xff]
    %v1046 = vld [vmem:[%s17 + $0x8] sm:$0xff]
    %v1047 = vld [vmem:[%s17 + $0x10] sm:$0xff]
    %v1048 = vld [vmem:[%s17 + $0x18] sm:$0xff]
    %1049 = vst.msk [vmem:[#allocation9] sm:$0x3] %vm876, 0.0
    %1050 = vst.msk [vmem:[#allocation10] sm:$0x3] %vm876, 0.0
    %v1051 = vld [vmem:[#allocation9] sm:$0x3]
    %v1053 = vsel %vm266, %v1051, 0
    %1055 = vmatprep.subr.mxu0 0.0
    %1056 = vmatpush1.msra.mxu0 0.0
    %1057 = vmatprep.subr.mxu0 0.0
    %1058 = vmatpush1.msra.mxu0 0.0
    %1059 = vmatprep.subr.mxu0 0.0
    %1060 = vmatpush1.msra.mxu0 0.0
    %1061 = vmatprep.subr.mxu0 0.0
    %1062 = vmatpush1.msra.mxu0 0.0
    %1063 = vmatprep.subr.mxu0 0.0
    %1064 = vmatpush1.msra.mxu0 0.0
    %1065 = vmatprep.subr.mxu0 0.0
    %1066 = vmatpush1.msra.mxu0 0.0
    %1067 = vmatprep.subr.mxu0 0.0
    %1068 = vmatpush1.msra.mxu0 0.0
    %1069 = vmatprep.subr.mxu0 0.0
    %1070 = vmatpush1.msra.mxu0 0.0
    %1071 = vmatprep.subr.mxu0 0.0
    %1072 = vmatpush1.msra.mxu0 0.0
    %1073 = vmatprep.subr.mxu0 0.0
    %1074 = vmatpush1.msra.mxu0 0.0
    %1075 = vmatprep.subr.mxu0 0.0
    %1076 = vmatpush1.msra.mxu0 0.0
    %1077 = vmatprep.subr.mxu0 0.0
    %1078 = vmatpush1.msra.mxu0 0.0
    %1079 = vmatprep.subr.mxu0 0.0
    %1080 = vmatpush1.msra.mxu0 %v1048
    %1081 = vmatprep.subr.mxu0 0.0
    %1082 = vmatpush1.msra.mxu0 %v1047
    %1083 = vmatprep.subr.mxu0 0.0
    %1084 = vmatpush1.msra.mxu0 %v1046
    %1085 = vmatprep.subr.mxu0 0.0
    %1086 = vmatpush1.msra.mxu0 %v1045
    %1087 = vmatprep.subr.mxu0 0.0
    %1088 = vmatpush2.msra.mxu0 0.0
    %1089 = vmatprep.subr.mxu0 0.0
    %1090 = vmatpush2.msra.mxu0 0.0
    %1091 = vmatprep.subr.mxu0 0.0
    %1092 = vmatpush2.msra.mxu0 0.0
    %1093 = vmatprep.subr.mxu0 0.0
    %1094 = vmatpush2.msra.mxu0 0.0
    %1095 = vmatprep.subr.mxu0 0.0
    %1096 = vmatpush2.msra.mxu0 0.0
    %1097 = vmatprep.subr.mxu0 0.0
    %1098 = vmatpush2.msra.mxu0 0.0
    %1099 = vmatprep.subr.mxu0 0.0
    %1100 = vmatpush2.msra.mxu0 0.0
    %1101 = vmatprep.subr.mxu0 0.0
    %1102 = vmatpush2.msra.mxu0 0.0
    %1103 = vmatprep.subr.mxu0 0.0
    %1104 = vmatpush2.msra.mxu0 0.0
    %1105 = vmatprep.subr.mxu0 0.0
    %1106 = vmatpush2.msra.mxu0 0.0
    %1107 = vmatprep.subr.mxu0 0.0
    %1108 = vmatpush2.msra.mxu0 0.0
    %1109 = vmatprep.subr.mxu0 0.0
    %1110 = vmatpush2.msra.mxu0 0.0
    %1111 = vmatprep.subr.mxu0 0.0
    %1112 = vmatpush2.msra.mxu0 0.0
    %1113 = vmatprep.subr.mxu0 0.0
    %1114 = vmatpush2.msra.mxu0 0.0
    %1115 = vmatprep.subr.mxu0 0.0
    %1116 = vmatpush2.msra.mxu0 0.0
    %1117 = vmatprep.subr.mxu0 0.0
    %1118 = vmatpush2.msra.mxu0 0.0
    %1119 = vmatprep.mubr.f32.mxu0 0.0
    %1120 = vmatmul.mubr.f32.gmra.mxu0 %v1053
    %v1121 = vpop.f32.mrf.mxu0
    %v1122 = vadd.f32 0.0, %v1121
    %v1123 = vpop.f32.mrf.mxu0
    %1124 = vdwg.mxu0
    %v1127 = vunpack.c.l.s4 1966171168
    %v1128 = vunpack.c.0.s8 %v1127
    %v1129 = vlaneseq
    %v1130 = vshrl.u32 %v1129, 7
    %v1131 = vsub.s32 %v1128, %v1130
    %v1132 = vrot.slane %v1122, %v1131
    %v1133 = vcombine.high %v1132, %v1132
    %v1135 = vunpack.c.l.s4 1966171168
    %v1136 = vunpack.c.0.s8 %v1135
    %v1137 = vlaneseq
    %v1138 = vshrl.u32 %v1137, 7
    %v1139 = vsub.s32 %v1136, %v1138
    %v1140 = vrot.slane %v1132, %v1139
    %v1142 = vunpack.c.l.s4 1966171168
    %v1143 = vunpack.c.0.s8 %v1142
    %v1144 = vlaneseq
    %v1145 = vshrl.u32 %v1144, 7
    %v1146 = vsub.s32 %v1143, %v1145
    %v1147 = vrot.slane %v1133, %v1146
    %v1148 = vlaneseq
    %v1149 = vshrl.u32 %v1148, 7
    %v1150 = vsub.s32 0, %v1149
    %v1151 = vrot.slane %v1140, %v1150
    %v1152 = vlaneseq
    %v1153 = vshrl.u32 %v1152, 7
    %v1154 = vsub.s32 0, %v1153
    %v1155 = vrot.slane %v1147, %v1154
    %v1158 = vadd.f32 %v427, %v1151
    %v1159 = vadd.f32 %v432, %v1155
    %v1160 = vtanh.pop %v1158
    %v1161 = vtanh.pop %v1159
    %v1163 = vlaneseq
    %v1164 = vshrl.u32 %v1163, 7
    %v1165 = vsub.s32 0, %v1164
    %v1166 = vrot.slane %v435, %v1165
    %v1168 = vmul.f32 %v1160, %v1166
    %v1169 = vmul.f32 %v1161, %v1166
    %v1170 = vsel %vm266, %v1168, 0.0
    %1171 = vadd.xlane.f32.xlu0 %v1170
    %v1172 = vpop.xlane.xlu0 %1171
    %v1173 = vsel %vm266, %v1169, 0.0
    %1174 = vadd.xlane.f32.xlu0 %v1173
    %v1175 = vpop.xlane.xlu0 %1174
    %v1178 = vlaneseq
    %v1179 = vand.u32 %v1178, 127
    %v1180 = vlaneseq
    %v1181 = vshrl.u32 %v1180, 7
    %v1182 = vsub.s32 %v1179, %v1181
    %v1183 = vrot.slane %v1172, %v1182
    %v1184 = vlaneseq
    %v1185 = vshrl.u32 %v1184, 7
    %v1186 = vsub.s32 %v1179, %v1185
    %v1187 = vrot.slane %v1175, %v1186
    %vm1188 = vcmask 1041409
    %v1189 = vsel %vm1188, %v1187, %v1183
    %vm1191 = vcmask 58368
    %v1192 = vsel %vm1191, %v1189, -inf
    %1193 = vmax.xlane.f32.xlu0 %v1192
    %v1194 = vpop.xlane.xlu0 %1193
    %v1196 = vlaneseq
    %v1197 = vshrl.u32 %v1196, 7
    %v1198 = vsub.s32 0, %v1197
    %v1199 = vrot.slane %v1194, %v1198
    %v1200 = vlaneseq
    %v1201 = vshrl.u32 %v1200, 7
    %v1202 = vsub.s32 1, %v1201
    %v1203 = vrot.slane %v1194, %v1202
    %v1206 = vsub.f32 %v1172, %v1199
    %v1207 = vsub.f32 %v1175, %v1203
    %v1208 = vmul.f32 %v1206, 1.442695
    %v1209 = vpow.pop %v1208
    %v1210 = vmul.f32 %v1207, 1.442695
    %v1211 = vpow.pop %v1210
    %1214 = vset.pattern.permute.xlu0 0
    %1215 = vperm.xlu0 %1214, %v1209
    %v1216 = vpop.permute.xlu0 %1215
    %1217 = vset.pattern.permute.xlu0 0
    %1218 = vperm.xlu0 %1217, %v1211
    %v1219 = vpop.permute.xlu0 %1218
    %v1220 = vlaneseq
    %v1221 = vshrl.u32 %v1220, 7
    %v1222 = vsub.s32 %v1179, %v1221
    %v1223 = vrot.slane %v1216, %v1222
    %v1224 = vlaneseq
    %v1225 = vshrl.u32 %v1224, 7
    %v1226 = vsub.s32 %v1179, %v1225
    %v1227 = vrot.slane %v1219, %v1226
    %v1228 = vsel %vm1188, %v1227, %v1223
    %v1230 = vsel %vm1191, %v1228, 0.0
    %1231 = vadd.xlane.f32.xlu0 %v1230
    %v1232 = vpop.xlane.xlu0 %1231
    %v1234 = vlaneseq
    %v1235 = vshrl.u32 %v1234, 7
    %v1236 = vsub.s32 0, %v1235
    %v1237 = vrot.slane %v1232, %v1236
    %v1238 = vlaneseq
    %v1239 = vshrl.u32 %v1238, 7
    %v1240 = vsub.s32 1, %v1239
    %v1241 = vrot.slane %v1232, %v1240
    %v1244 = vrcp.pop %v1237
    %v1245 = vmul.f32 %v1209, %v1244
    %v1246 = vrcp.pop %v1241
    %v1247 = vmul.f32 %v1211, %v1246
    %1249 = vset.pattern.permute.xlu0 0
    %1250 = vperm.xlu0 %1249, %v1245
    %v1251 = vpop.permute.xlu0 %1250
    %1254 = vset.pattern.permute.xlu0 0
    %1255 = vperm.xlu0 %1254, %v1247
    %v1256 = vpop.permute.xlu0 %1255
    %v1258 = vmul.f32 %v1251, %v348
    %v1259 = vmul.f32 %v1256, %v349
    %v1260 = vsel %vm266, %v1258, 0.0
    %v1261 = vrot.slane %v1260, 4
    %v1262 = vadd.f32 %v1260, %v1261
    %v1263 = vrot.slane %v1262, 2
    %v1264 = vadd.f32 %v1262, %v1263
    %v1265 = vrot.slane %v1264, 1
    %v1266 = vadd.f32 %v1264, %v1265
    %v1267 = vsel %vm266, %v1259, 0.0
    %v1268 = vrot.slane %v1267, 4
    %v1269 = vadd.f32 %v1267, %v1268
    %v1270 = vrot.slane %v1269, 2
    %v1271 = vadd.f32 %v1269, %v1270
    %v1272 = vrot.slane %v1271, 1
    %v1273 = vadd.f32 %v1271, %v1272
    %v1276 = vsel %vm1188, %v1273, %v1266
    %1278 = vrot.lane.b32.xlu0 %v1051, 32
    %v1279 = vpop.permute.xlu0 %1278
    %v1281 = vsel %vm266, %v1276, %v1279
    %v1282 = vld [vmem:[#allocation2] sm:$0x3]
    %vm1283 = vcmask 523264
    %v1285 = vsel %vm1283, %v1281, 0
    %1287 = vmatprep.subr.mxu0 0.0
    %1288 = vmatpush1.msra.mxu0 0.0
    %1289 = vmatprep.subr.mxu0 0.0
    %1290 = vmatpush1.msra.mxu0 0.0
    %1291 = vmatprep.subr.mxu0 0.0
    %1292 = vmatpush1.msra.mxu0 0.0
    %1293 = vmatprep.subr.mxu0 0.0
    %1294 = vmatpush1.msra.mxu0 0.0
    %1295 = vmatprep.subr.mxu0 0.0
    %1296 = vmatpush1.msra.mxu0 0.0
    %1297 = vmatprep.subr.mxu0 0.0
    %1298 = vmatpush1.msra.mxu0 0.0
    %1299 = vmatprep.subr.mxu0 0.0
    %1300 = vmatpush1.msra.mxu0 0.0
    %1301 = vmatprep.subr.mxu0 0.0
    %1302 = vmatpush1.msra.mxu0 0.0
    %1303 = vmatprep.subr.mxu0 0.0
    %1304 = vmatpush1.msra.mxu0 %v1044
    %1305 = vmatprep.subr.mxu0 0.0
    %1306 = vmatpush1.msra.mxu0 %v1043
    %1307 = vmatprep.subr.mxu0 0.0
    %1308 = vmatpush1.msra.mxu0 %v1042
    %1309 = vmatprep.subr.mxu0 0.0
    %1310 = vmatpush1.msra.mxu0 %v1041
    %1311 = vmatprep.subr.mxu0 0.0
    %1312 = vmatpush1.msra.mxu0 %v1040
    %1313 = vmatprep.subr.mxu0 0.0
    %1314 = vmatpush1.msra.mxu0 %v1039
    %1315 = vmatprep.subr.mxu0 0.0
    %1316 = vmatpush1.msra.mxu0 %v1038
    %1317 = vmatprep.subr.mxu0 0.0
    %1318 = vmatpush1.msra.mxu0 %v1037
    %1319 = vmatprep.subr.mxu0 0.0
    %1320 = vmatpush2.msra.mxu0 0.0
    %1321 = vmatprep.subr.mxu0 0.0
    %1322 = vmatpush2.msra.mxu0 0.0
    %1323 = vmatprep.subr.mxu0 0.0
    %1324 = vmatpush2.msra.mxu0 0.0
    %1325 = vmatprep.subr.mxu0 0.0
    %1326 = vmatpush2.msra.mxu0 0.0
    %1327 = vmatprep.subr.mxu0 0.0
    %1328 = vmatpush2.msra.mxu0 0.0
    %1329 = vmatprep.subr.mxu0 0.0
    %1330 = vmatpush2.msra.mxu0 0.0
    %1331 = vmatprep.subr.mxu0 0.0
    %1332 = vmatpush2.msra.mxu0 0.0
    %1333 = vmatprep.subr.mxu0 0.0
    %1334 = vmatpush2.msra.mxu0 0.0
    %1335 = vmatprep.subr.mxu0 0.0
    %1336 = vmatpush2.msra.mxu0 0.0
    %1337 = vmatprep.subr.mxu0 0.0
    %1338 = vmatpush2.msra.mxu0 0.0
    %1339 = vmatprep.subr.mxu0 0.0
    %1340 = vmatpush2.msra.mxu0 0.0
    %1341 = vmatprep.subr.mxu0 0.0
    %1342 = vmatpush2.msra.mxu0 0.0
    %1343 = vmatprep.subr.mxu0 0.0
    %1344 = vmatpush2.msra.mxu0 0.0
    %1345 = vmatprep.subr.mxu0 0.0
    %1346 = vmatpush2.msra.mxu0 0.0
    %1347 = vmatprep.subr.mxu0 0.0
    %1348 = vmatpush2.msra.mxu0 0.0
    %1349 = vmatprep.subr.mxu0 0.0
    %1350 = vmatpush2.msra.mxu0 0.0
    %1351 = vmatprep.mubr.f32.mxu0 0.0
    %1352 = vmatmul.mubr.f32.gmra.mxu0 %v1285
    %v1353 = vpop.f32.mrf.mxu0
    %v1354 = vadd.f32 0.0, %v1353
    %v1355 = vpop.f32.mrf.mxu0
    %1356 = vdwg.mxu0
    %v1357 = vadd.f32 %v1282, %v1354
    %v1358 = vxor.u32 %v1357, 2147483648
    %v1359 = vmul.f32 %v1358, 1.442695
    %v1360 = vpow.pop %v1359
    %v1361 = vadd.f32 %v1360, 1.0
    %v1362 = vrcp.pop %v1361
    %v1363 = vmul.f32 1.0, %v1362
    %v1364 = vld [vmem:[#allocation3] sm:$0x3]
    %1373 = vrot.lane.b32.xlu0 %v1037, 96
    %v1374 = vpop.permute.xlu0 %1373
    %1375 = vrot.lane.b32.xlu0 %v1038, 96
    %v1376 = vpop.permute.xlu0 %1375
    %1377 = vrot.lane.b32.xlu0 %v1039, 96
    %v1378 = vpop.permute.xlu0 %1377
    %1379 = vrot.lane.b32.xlu0 %v1040, 96
    %v1380 = vpop.permute.xlu0 %1379
    %1381 = vrot.lane.b32.xlu0 %v1041, 96
    %v1382 = vpop.permute.xlu0 %1381
    %1383 = vrot.lane.b32.xlu0 %v1042, 96
    %v1384 = vpop.permute.xlu0 %1383
    %1385 = vrot.lane.b32.xlu0 %v1043, 96
    %v1386 = vpop.permute.xlu0 %1385
    %1387 = vrot.lane.b32.xlu0 %v1044, 96
    %v1388 = vpop.permute.xlu0 %1387
    %1397 = vmatprep.subr.mxu0 0.0
    %1398 = vmatpush1.msra.mxu0 0.0
    %1399 = vmatprep.subr.mxu0 0.0
    %1400 = vmatpush1.msra.mxu0 0.0
    %1401 = vmatprep.subr.mxu0 0.0
    %1402 = vmatpush1.msra.mxu0 0.0
    %1403 = vmatprep.subr.mxu0 0.0
    %1404 = vmatpush1.msra.mxu0 0.0
    %1405 = vmatprep.subr.mxu0 0.0
    %1406 = vmatpush1.msra.mxu0 0.0
    %1407 = vmatprep.subr.mxu0 0.0
    %1408 = vmatpush1.msra.mxu0 0.0
    %1409 = vmatprep.subr.mxu0 0.0
    %1410 = vmatpush1.msra.mxu0 0.0
    %1411 = vmatprep.subr.mxu0 0.0
    %1412 = vmatpush1.msra.mxu0 0.0
    %1413 = vmatprep.subr.mxu0 0.0
    %1414 = vmatpush1.msra.mxu0 %v1388
    %1415 = vmatprep.subr.mxu0 0.0
    %1416 = vmatpush1.msra.mxu0 %v1386
    %1417 = vmatprep.subr.mxu0 0.0
    %1418 = vmatpush1.msra.mxu0 %v1384
    %1419 = vmatprep.subr.mxu0 0.0
    %1420 = vmatpush1.msra.mxu0 %v1382
    %1421 = vmatprep.subr.mxu0 0.0
    %1422 = vmatpush1.msra.mxu0 %v1380
    %1423 = vmatprep.subr.mxu0 0.0
    %1424 = vmatpush1.msra.mxu0 %v1378
    %1425 = vmatprep.subr.mxu0 0.0
    %1426 = vmatpush1.msra.mxu0 %v1376
    %1427 = vmatprep.subr.mxu0 0.0
    %1428 = vmatpush1.msra.mxu0 %v1374
    %1429 = vmatprep.subr.mxu0 0.0
    %1430 = vmatpush2.msra.mxu0 0.0
    %1431 = vmatprep.subr.mxu0 0.0
    %1432 = vmatpush2.msra.mxu0 0.0
    %1433 = vmatprep.subr.mxu0 0.0
    %1434 = vmatpush2.msra.mxu0 0.0
    %1435 = vmatprep.subr.mxu0 0.0
    %1436 = vmatpush2.msra.mxu0 0.0
    %1437 = vmatprep.subr.mxu0 0.0
    %1438 = vmatpush2.msra.mxu0 0.0
    %1439 = vmatprep.subr.mxu0 0.0
    %1440 = vmatpush2.msra.mxu0 0.0
    %1441 = vmatprep.subr.mxu0 0.0
    %1442 = vmatpush2.msra.mxu0 0.0
    %1443 = vmatprep.subr.mxu0 0.0
    %1444 = vmatpush2.msra.mxu0 0.0
    %1445 = vmatprep.subr.mxu0 0.0
    %1446 = vmatpush2.msra.mxu0 0.0
    %1447 = vmatprep.subr.mxu0 0.0
    %1448 = vmatpush2.msra.mxu0 0.0
    %1449 = vmatprep.subr.mxu0 0.0
    %1450 = vmatpush2.msra.mxu0 0.0
    %1451 = vmatprep.subr.mxu0 0.0
    %1452 = vmatpush2.msra.mxu0 0.0
    %1453 = vmatprep.subr.mxu0 0.0
    %1454 = vmatpush2.msra.mxu0 0.0
    %1455 = vmatprep.subr.mxu0 0.0
    %1456 = vmatpush2.msra.mxu0 0.0
    %1457 = vmatprep.subr.mxu0 0.0
    %1458 = vmatpush2.msra.mxu0 0.0
    %1459 = vmatprep.subr.mxu0 0.0
    %1460 = vmatpush2.msra.mxu0 0.0
    %1461 = vmatprep.mubr.f32.mxu0 0.0
    %1462 = vmatmul.mubr.f32.gmra.mxu0 %v1285
    %v1463 = vpop.f32.mrf.mxu0
    %v1464 = vadd.f32 0.0, %v1463
    %v1465 = vpop.f32.mrf.mxu0
    %1466 = vdwg.mxu0
    %v1467 = vadd.f32 %v1364, %v1464
    %v1468 = vxor.u32 %v1467, 2147483648
    %v1469 = vmul.f32 %v1468, 1.442695
    %v1470 = vpow.pop %v1469
    %v1471 = vadd.f32 %v1470, 1.0
    %v1472 = vrcp.pop %v1471
    %v1473 = vmul.f32 1.0, %v1472
    %v1474 = vld [vmem:[#allocation4] sm:$0x3]
    %1475 = vrot.lane.b32.xlu0 %v1037, 64
    %v1476 = vpop.permute.xlu0 %1475
    %1477 = vrot.lane.b32.xlu0 %v1038, 64
    %v1478 = vpop.permute.xlu0 %1477
    %1479 = vrot.lane.b32.xlu0 %v1039, 64
    %v1480 = vpop.permute.xlu0 %1479
    %1481 = vrot.lane.b32.xlu0 %v1040, 64
    %v1482 = vpop.permute.xlu0 %1481
    %1483 = vrot.lane.b32.xlu0 %v1041, 64
    %v1484 = vpop.permute.xlu0 %1483
    %1485 = vrot.lane.b32.xlu0 %v1042, 64
    %v1486 = vpop.permute.xlu0 %1485
    %1487 = vrot.lane.b32.xlu0 %v1043, 64
    %v1488 = vpop.permute.xlu0 %1487
    %1489 = vrot.lane.b32.xlu0 %v1044, 64
    %v1490 = vpop.permute.xlu0 %1489
    %1499 = vmatprep.subr.mxu0 0.0
    %1500 = vmatpush1.msra.mxu0 0.0
    %1501 = vmatprep.subr.mxu0 0.0
    %1502 = vmatpush1.msra.mxu0 0.0
    %1503 = vmatprep.subr.mxu0 0.0
    %1504 = vmatpush1.msra.mxu0 0.0
    %1505 = vmatprep.subr.mxu0 0.0
    %1506 = vmatpush1.msra.mxu0 0.0
    %1507 = vmatprep.subr.mxu0 0.0
    %1508 = vmatpush1.msra.mxu0 0.0
    %1509 = vmatprep.subr.mxu0 0.0
    %1510 = vmatpush1.msra.mxu0 0.0
    %1511 = vmatprep.subr.mxu0 0.0
    %1512 = vmatpush1.msra.mxu0 0.0
    %1513 = vmatprep.subr.mxu0 0.0
    %1514 = vmatpush1.msra.mxu0 0.0
    %1515 = vmatprep.subr.mxu0 0.0
    %1516 = vmatpush1.msra.mxu0 %v1490
    %1517 = vmatprep.subr.mxu0 0.0
    %1518 = vmatpush1.msra.mxu0 %v1488
    %1519 = vmatprep.subr.mxu0 0.0
    %1520 = vmatpush1.msra.mxu0 %v1486
    %1521 = vmatprep.subr.mxu0 0.0
    %1522 = vmatpush1.msra.mxu0 %v1484
    %1523 = vmatprep.subr.mxu0 0.0
    %1524 = vmatpush1.msra.mxu0 %v1482
    %1525 = vmatprep.subr.mxu0 0.0
    %1526 = vmatpush1.msra.mxu0 %v1480
    %1527 = vmatprep.subr.mxu0 0.0
    %1528 = vmatpush1.msra.mxu0 %v1478
    %1529 = vmatprep.subr.mxu0 0.0
    %1530 = vmatpush1.msra.mxu0 %v1476
    %1531 = vmatprep.subr.mxu0 0.0
    %1532 = vmatpush2.msra.mxu0 0.0
    %1533 = vmatprep.subr.mxu0 0.0
    %1534 = vmatpush2.msra.mxu0 0.0
    %1535 = vmatprep.subr.mxu0 0.0
    %1536 = vmatpush2.msra.mxu0 0.0
    %1537 = vmatprep.subr.mxu0 0.0
    %1538 = vmatpush2.msra.mxu0 0.0
    %1539 = vmatprep.subr.mxu0 0.0
    %1540 = vmatpush2.msra.mxu0 0.0
    %1541 = vmatprep.subr.mxu0 0.0
    %1542 = vmatpush2.msra.mxu0 0.0
    %1543 = vmatprep.subr.mxu0 0.0
    %1544 = vmatpush2.msra.mxu0 0.0
    %1545 = vmatprep.subr.mxu0 0.0
    %1546 = vmatpush2.msra.mxu0 0.0
    %1547 = vmatprep.subr.mxu0 0.0
    %1548 = vmatpush2.msra.mxu0 0.0
    %1549 = vmatprep.subr.mxu0 0.0
    %1550 = vmatpush2.msra.mxu0 0.0
    %1551 = vmatprep.subr.mxu0 0.0
    %1552 = vmatpush2.msra.mxu0 0.0
    %1553 = vmatprep.subr.mxu0 0.0
    %1554 = vmatpush2.msra.mxu0 0.0
    %1555 = vmatprep.subr.mxu0 0.0
    %1556 = vmatpush2.msra.mxu0 0.0
    %1557 = vmatprep.subr.mxu0 0.0
    %1558 = vmatpush2.msra.mxu0 0.0
    %1559 = vmatprep.subr.mxu0 0.0
    %1560 = vmatpush2.msra.mxu0 0.0
    %1561 = vmatprep.subr.mxu0 0.0
    %1562 = vmatpush2.msra.mxu0 0.0
    %1563 = vmatprep.mubr.f32.mxu0 0.0
    %1564 = vmatmul.mubr.f32.gmra.mxu0 %v1285
    %v1565 = vpop.f32.mrf.mxu0
    %v1566 = vadd.f32 0.0, %v1565
    %v1567 = vpop.f32.mrf.mxu0
    %1568 = vdwg.mxu0
    %v1569 = vadd.f32 %v1474, %v1566
    %v1570 = vtanh.pop %v1569
    %v1571 = vld [vmem:[#allocation5] sm:$0x3]
    %1572 = vrot.lane.b32.xlu0 %v1037, 32
    %v1573 = vpop.permute.xlu0 %1572
    %1574 = vrot.lane.b32.xlu0 %v1038, 32
    %v1575 = vpop.permute.xlu0 %1574
    %1576 = vrot.lane.b32.xlu0 %v1039, 32
    %v1577 = vpop.permute.xlu0 %1576
    %1578 = vrot.lane.b32.xlu0 %v1040, 32
    %v1579 = vpop.permute.xlu0 %1578
    %1580 = vrot.lane.b32.xlu0 %v1041, 32
    %v1581 = vpop.permute.xlu0 %1580
    %1582 = vrot.lane.b32.xlu0 %v1042, 32
    %v1583 = vpop.permute.xlu0 %1582
    %1584 = vrot.lane.b32.xlu0 %v1043, 32
    %v1585 = vpop.permute.xlu0 %1584
    %1586 = vrot.lane.b32.xlu0 %v1044, 32
    %v1587 = vpop.permute.xlu0 %1586
    %1596 = vmatprep.subr.mxu0 0.0
    %1597 = vmatpush1.msra.mxu0 0.0
    %1598 = vmatprep.subr.mxu0 0.0
    %1599 = vmatpush1.msra.mxu0 0.0
    %1600 = vmatprep.subr.mxu0 0.0
    %1601 = vmatpush1.msra.mxu0 0.0
    %1602 = vmatprep.subr.mxu0 0.0
    %1603 = vmatpush1.msra.mxu0 0.0
    %1604 = vmatprep.subr.mxu0 0.0
    %1605 = vmatpush1.msra.mxu0 0.0
    %1606 = vmatprep.subr.mxu0 0.0
    %1607 = vmatpush1.msra.mxu0 0.0
    %1608 = vmatprep.subr.mxu0 0.0
    %1609 = vmatpush1.msra.mxu0 0.0
    %1610 = vmatprep.subr.mxu0 0.0
    %1611 = vmatpush1.msra.mxu0 0.0
    %1612 = vmatprep.subr.mxu0 0.0
    %1613 = vmatpush1.msra.mxu0 %v1587
    %1614 = vmatprep.subr.mxu0 0.0
    %1615 = vmatpush1.msra.mxu0 %v1585
    %1616 = vmatprep.subr.mxu0 0.0
    %1617 = vmatpush1.msra.mxu0 %v1583
    %1618 = vmatprep.subr.mxu0 0.0
    %1619 = vmatpush1.msra.mxu0 %v1581
    %1620 = vmatprep.subr.mxu0 0.0
    %1621 = vmatpush1.msra.mxu0 %v1579
    %1622 = vmatprep.subr.mxu0 0.0
    %1623 = vmatpush1.msra.mxu0 %v1577
    %1624 = vmatprep.subr.mxu0 0.0
    %1625 = vmatpush1.msra.mxu0 %v1575
    %1626 = vmatprep.subr.mxu0 0.0
    %1627 = vmatpush1.msra.mxu0 %v1573
    %1628 = vmatprep.subr.mxu0 0.0
    %1629 = vmatpush2.msra.mxu0 0.0
    %1630 = vmatprep.subr.mxu0 0.0
    %1631 = vmatpush2.msra.mxu0 0.0
    %1632 = vmatprep.subr.mxu0 0.0
    %1633 = vmatpush2.msra.mxu0 0.0
    %1634 = vmatprep.subr.mxu0 0.0
    %1635 = vmatpush2.msra.mxu0 0.0
    %1636 = vmatprep.subr.mxu0 0.0
    %1637 = vmatpush2.msra.mxu0 0.0
    %1638 = vmatprep.subr.mxu0 0.0
    %1639 = vmatpush2.msra.mxu0 0.0
    %1640 = vmatprep.subr.mxu0 0.0
    %1641 = vmatpush2.msra.mxu0 0.0
    %1642 = vmatprep.subr.mxu0 0.0
    %1643 = vmatpush2.msra.mxu0 0.0
    %1644 = vmatprep.subr.mxu0 0.0
    %1645 = vmatpush2.msra.mxu0 0.0
    %1646 = vmatprep.subr.mxu0 0.0
    %1647 = vmatpush2.msra.mxu0 0.0
    %1648 = vmatprep.subr.mxu0 0.0
    %1649 = vmatpush2.msra.mxu0 0.0
    %1650 = vmatprep.subr.mxu0 0.0
    %1651 = vmatpush2.msra.mxu0 0.0
    %1652 = vmatprep.subr.mxu0 0.0
    %1653 = vmatpush2.msra.mxu0 0.0
    %1654 = vmatprep.subr.mxu0 0.0
    %1655 = vmatpush2.msra.mxu0 0.0
    %1656 = vmatprep.subr.mxu0 0.0
    %1657 = vmatpush2.msra.mxu0 0.0
    %1658 = vmatprep.subr.mxu0 0.0
    %1659 = vmatpush2.msra.mxu0 0.0
    %1660 = vmatprep.mubr.f32.mxu0 0.0
    %1661 = vmatmul.mubr.f32.gmra.mxu0 %v1285
    %v1662 = vpop.f32.mrf.mxu0
    %v1663 = vadd.f32 0.0, %v1662
    %v1664 = vpop.f32.mrf.mxu0
    %1665 = vdwg.mxu0
    %v1666 = vadd.f32 %v1571, %v1663
    %v1667 = vxor.u32 %v1666, 2147483648
    %v1668 = vmul.f32 %v1667, 1.442695
    %v1669 = vpow.pop %v1668
    %v1670 = vadd.f32 %v1669, 1.0
    %v1671 = vrcp.pop %v1670
    %v1672 = vmul.f32 1.0, %v1671
    %v1673 = vld [vmem:[#allocation10] sm:$0x3]
    %v1674 = vmul.f32 %v1473, %v1673
    %v1675 = vmul.f32 %v1363, %v1570
    %v1676 = vadd.f32 %v1674, %v1675
    %v1677 = vtanh.pop %v1676
    %v1678 = vmul.f32 %v1672, %v1677
    %1679 = vst.msk [vmem:[#allocation9] sm:$0x3] %vm876, %v1678
    %1680 = vst.msk [vmem:[#allocation10] sm:$0x3] %vm876, %v1676
    %1681 = vst.msk [vmem:[#allocation6] sm:$0x3] %vm876, %v1678
    %1682 = vst.msk [vmem:[#allocation7] sm:$0x3] %vm876, %v1276
    %v1683 = vlaneseq
    %v1684 = vshrl.u32 %v1683, 7
    %v1685 = vsub.s32 %v1179, %v1684
    %v1686 = vrot.slane %v1251, %v1685
    %v1687 = vlaneseq
    %v1688 = vshrl.u32 %v1687, 7
    %v1689 = vsub.s32 %v1179, %v1688
    %v1690 = vrot.slane %v1256, %v1689
    %v1691 = vsel %vm1188, %v1690, %v1686
    %1693 = vst.msk [vmem:[#allocation8] sm:$0x3] %vm1191, %v1691
    %v1694 = vld [vmem:[#allocation9] sm:$0x3]
    %v1696 = vsel %vm266, %v1694, 0
    %1698 = vmatprep.subr.mxu0 0.0
    %1699 = vmatpush1.msra.mxu0 0.0
    %1700 = vmatprep.subr.mxu0 0.0
    %1701 = vmatpush1.msra.mxu0 0.0
    %1702 = vmatprep.subr.mxu0 0.0
    %1703 = vmatpush1.msra.mxu0 0.0
    %1704 = vmatprep.subr.mxu0 0.0
    %1705 = vmatpush1.msra.mxu0 0.0
    %1706 = vmatprep.subr.mxu0 0.0
    %1707 = vmatpush1.msra.mxu0 0.0
    %1708 = vmatprep.subr.mxu0 0.0
    %1709 = vmatpush1.msra.mxu0 0.0
    %1710 = vmatprep.subr.mxu0 0.0
    %1711 = vmatpush1.msra.mxu0 0.0
    %1712 = vmatprep.subr.mxu0 0.0
    %1713 = vmatpush1.msra.mxu0 0.0
    %1714 = vmatprep.subr.mxu0 0.0
    %1715 = vmatpush1.msra.mxu0 0.0
    %1716 = vmatprep.subr.mxu0 0.0
    %1717 = vmatpush1.msra.mxu0 0.0
    %1718 = vmatprep.subr.mxu0 0.0
    %1719 = vmatpush1.msra.mxu0 0.0
    %1720 = vmatprep.subr.mxu0 0.0
    %1721 = vmatpush1.msra.mxu0 0.0
    %1722 = vmatprep.subr.mxu0 0.0
    %1723 = vmatpush1.msra.mxu0 %v1048
    %1724 = vmatprep.subr.mxu0 0.0
    %1725 = vmatpush1.msra.mxu0 %v1047
    %1726 = vmatprep.subr.mxu0 0.0
    %1727 = vmatpush1.msra.mxu0 %v1046
    %1728 = vmatprep.subr.mxu0 0.0
    %1729 = vmatpush1.msra.mxu0 %v1045
    %1730 = vmatprep.subr.mxu0 0.0
    %1731 = vmatpush2.msra.mxu0 0.0
    %1732 = vmatprep.subr.mxu0 0.0
    %1733 = vmatpush2.msra.mxu0 0.0
    %1734 = vmatprep.subr.mxu0 0.0
    %1735 = vmatpush2.msra.mxu0 0.0
    %1736 = vmatprep.subr.mxu0 0.0
    %1737 = vmatpush2.msra.mxu0 0.0
    %1738 = vmatprep.subr.mxu0 0.0
    %1739 = vmatpush2.msra.mxu0 0.0
    %1740 = vmatprep.subr.mxu0 0.0
    %1741 = vmatpush2.msra.mxu0 0.0
    %1742 = vmatprep.subr.mxu0 0.0
    %1743 = vmatpush2.msra.mxu0 0.0
    %1744 = vmatprep.subr.mxu0 0.0
    %1745 = vmatpush2.msra.mxu0 0.0
    %1746 = vmatprep.subr.mxu0 0.0
    %1747 = vmatpush2.msra.mxu0 0.0
    %1748 = vmatprep.subr.mxu0 0.0
    %1749 = vmatpush2.msra.mxu0 0.0
    %1750 = vmatprep.subr.mxu0 0.0
    %1751 = vmatpush2.msra.mxu0 0.0
    %1752 = vmatprep.subr.mxu0 0.0
    %1753 = vmatpush2.msra.mxu0 0.0
    %1754 = vmatprep.subr.mxu0 0.0
    %1755 = vmatpush2.msra.mxu0 0.0
    %1756 = vmatprep.subr.mxu0 0.0
    %1757 = vmatpush2.msra.mxu0 0.0
    %1758 = vmatprep.subr.mxu0 0.0
    %1759 = vmatpush2.msra.mxu0 0.0
    %1760 = vmatprep.subr.mxu0 0.0
    %1761 = vmatpush2.msra.mxu0 0.0
    %1762 = vmatprep.mubr.f32.mxu0 0.0
    %1763 = vmatmul.mubr.f32.gmra.mxu0 %v1696
    %v1764 = vpop.f32.mrf.mxu0
    %v1765 = vadd.f32 0.0, %v1764
    %v1766 = vpop.f32.mrf.mxu0
    %1767 = vdwg.mxu0
    %v1770 = vunpack.c.l.s4 1966171168
    %v1771 = vunpack.c.0.s8 %v1770
    %v1772 = vlaneseq
    %v1773 = vshrl.u32 %v1772, 7
    %v1774 = vsub.s32 %v1771, %v1773
    %v1775 = vrot.slane %v1765, %v1774
    %v1776 = vcombine.high %v1775, %v1775
    %v1778 = vunpack.c.l.s4 1966171168
    %v1779 = vunpack.c.0.s8 %v1778
    %v1780 = vlaneseq
    %v1781 = vshrl.u32 %v1780, 7
    %v1782 = vsub.s32 %v1779, %v1781
    %v1783 = vrot.slane %v1775, %v1782
    %v1785 = vunpack.c.l.s4 1966171168
    %v1786 = vunpack.c.0.s8 %v1785
    %v1787 = vlaneseq
    %v1788 = vshrl.u32 %v1787, 7
    %v1789 = vsub.s32 %v1786, %v1788
    %v1790 = vrot.slane %v1776, %v1789
    %v1791 = vlaneseq
    %v1792 = vshrl.u32 %v1791, 7
    %v1793 = vsub.s32 0, %v1792
    %v1794 = vrot.slane %v1783, %v1793
    %v1795 = vlaneseq
    %v1796 = vshrl.u32 %v1795, 7
    %v1797 = vsub.s32 0, %v1796
    %v1798 = vrot.slane %v1790, %v1797
    %v1801 = vadd.f32 %v427, %v1794
    %v1802 = vadd.f32 %v432, %v1798
    %v1803 = vtanh.pop %v1801
    %v1804 = vtanh.pop %v1802
    %v1805 = vmul.f32 %v1803, %v1166
    %v1806 = vmul.f32 %v1804, %v1166
    %v1807 = vsel %vm266, %v1805, 0.0
    %1808 = vadd.xlane.f32.xlu0 %v1807
    %v1809 = vpop.xlane.xlu0 %1808
    %v1810 = vsel %vm266, %v1806, 0.0
    %1811 = vadd.xlane.f32.xlu0 %v1810
    %v1812 = vpop.xlane.xlu0 %1811
    %v1815 = vlaneseq
    %v1816 = vshrl.u32 %v1815, 7
    %v1817 = vsub.s32 %v1179, %v1816
    %v1818 = vrot.slane %v1809, %v1817
    %v1819 = vlaneseq
    %v1820 = vshrl.u32 %v1819, 7
    %v1821 = vsub.s32 %v1179, %v1820
    %v1822 = vrot.slane %v1812, %v1821
    %v1823 = vsel %vm1188, %v1822, %v1818
    %v1825 = vsel %vm1191, %v1823, -inf
    %1826 = vmax.xlane.f32.xlu0 %v1825
    %v1827 = vpop.xlane.xlu0 %1826
    %v1829 = vlaneseq
    %v1830 = vshrl.u32 %v1829, 7
    %v1831 = vsub.s32 0, %v1830
    %v1832 = vrot.slane %v1827, %v1831
    %v1833 = vlaneseq
    %v1834 = vshrl.u32 %v1833, 7
    %v1835 = vsub.s32 1, %v1834
    %v1836 = vrot.slane %v1827, %v1835
    %v1839 = vsub.f32 %v1809, %v1832
    %v1840 = vsub.f32 %v1812, %v1836
    %v1841 = vmul.f32 %v1839, 1.442695
    %v1842 = vpow.pop %v1841
    %v1843 = vmul.f32 %v1840, 1.442695
    %v1844 = vpow.pop %v1843
    %1847 = vset.pattern.permute.xlu0 0
    %1848 = vperm.xlu0 %1847, %v1842
    %v1849 = vpop.permute.xlu0 %1848
    %1850 = vset.pattern.permute.xlu0 0
    %1851 = vperm.xlu0 %1850, %v1844
    %v1852 = vpop.permute.xlu0 %1851
    %v1853 = vlaneseq
    %v1854 = vshrl.u32 %v1853, 7
    %v1855 = vsub.s32 %v1179, %v1854
    %v1856 = vrot.slane %v1849, %v1855
    %v1857 = vlaneseq
    %v1858 = vshrl.u32 %v1857, 7
    %v1859 = vsub.s32 %v1179, %v1858
    %v1860 = vrot.slane %v1852, %v1859
    %v1861 = vsel %vm1188, %v1860, %v1856
    %v1863 = vsel %vm1191, %v1861, 0.0
    %1864 = vadd.xlane.f32.xlu0 %v1863
    %v1865 = vpop.xlane.xlu0 %1864
    %v1867 = vlaneseq
    %v1868 = vshrl.u32 %v1867, 7
    %v1869 = vsub.s32 0, %v1868
    %v1870 = vrot.slane %v1865, %v1869
    %v1871 = vlaneseq
    %v1872 = vshrl.u32 %v1871, 7
    %v1873 = vsub.s32 1, %v1872
    %v1874 = vrot.slane %v1865, %v1873
    %v1877 = vrcp.pop %v1870
    %v1878 = vmul.f32 %v1842, %v1877
    %v1879 = vrcp.pop %v1874
    %v1880 = vmul.f32 %v1844, %v1879
    %1882 = vset.pattern.permute.xlu0 0
    %1883 = vperm.xlu0 %1882, %v1878
    %v1884 = vpop.permute.xlu0 %1883
    %1887 = vset.pattern.permute.xlu0 0
    %1888 = vperm.xlu0 %1887, %v1880
    %v1889 = vpop.permute.xlu0 %1888
    %v1891 = vmul.f32 %v1884, %v348
    %v1892 = vmul.f32 %v1889, %v349
    %v1893 = vsel %vm266, %v1891, 0.0
    %v1894 = vrot.slane %v1893, 4
    %v1895 = vadd.f32 %v1893, %v1894
    %v1896 = vrot.slane %v1895, 2
    %v1897 = vadd.f32 %v1895, %v1896
    %v1898 = vrot.slane %v1897, 1
    %v1899 = vadd.f32 %v1897, %v1898
    %v1900 = vsel %vm266, %v1892, 0.0
    %v1901 = vrot.slane %v1900, 4
    %v1902 = vadd.f32 %v1900, %v1901
    %v1903 = vrot.slane %v1902, 2
    %v1904 = vadd.f32 %v1902, %v1903
    %v1905 = vrot.slane %v1904, 1
    %v1906 = vadd.f32 %v1904, %v1905
    %v1909 = vsel %vm1188, %v1906, %v1899
    %1911 = vrot.lane.b32.xlu0 %v1694, 32
    %v1912 = vpop.permute.xlu0 %1911
    %v1914 = vsel %vm266, %v1909, %v1912
    %s1915 = scalar_lea.vmem [#allocation2], 2
    %v1916 = vld [vmem:[%s1915] sm:$0x3]
    %v1918 = vsel %vm1283, %v1914, 0
    %1920 = vmatprep.subr.mxu0 0.0
    %1921 = vmatpush1.msra.mxu0 0.0
    %1922 = vmatprep.subr.mxu0 0.0
    %1923 = vmatpush1.msra.mxu0 0.0
    %1924 = vmatprep.subr.mxu0 0.0
    %1925 = vmatpush1.msra.mxu0 0.0
    %1926 = vmatprep.subr.mxu0 0.0
    %1927 = vmatpush1.msra.mxu0 0.0
    %1928 = vmatprep.subr.mxu0 0.0
    %1929 = vmatpush1.msra.mxu0 0.0
    %1930 = vmatprep.subr.mxu0 0.0
    %1931 = vmatpush1.msra.mxu0 0.0
    %1932 = vmatprep.subr.mxu0 0.0
    %1933 = vmatpush1.msra.mxu0 0.0
    %1934 = vmatprep.subr.mxu0 0.0
    %1935 = vmatpush1.msra.mxu0 0.0
    %1936 = vmatprep.subr.mxu0 0.0
    %1937 = vmatpush1.msra.mxu0 %v1044
    %1938 = vmatprep.subr.mxu0 0.0
    %1939 = vmatpush1.msra.mxu0 %v1043
    %1940 = vmatprep.subr.mxu0 0.0
    %1941 = vmatpush1.msra.mxu0 %v1042
    %1942 = vmatprep.subr.mxu0 0.0
    %1943 = vmatpush1.msra.mxu0 %v1041
    %1944 = vmatprep.subr.mxu0 0.0
    %1945 = vmatpush1.msra.mxu0 %v1040
    %1946 = vmatprep.subr.mxu0 0.0
    %1947 = vmatpush1.msra.mxu0 %v1039
    %1948 = vmatprep.subr.mxu0 0.0
    %1949 = vmatpush1.msra.mxu0 %v1038
    %1950 = vmatprep.subr.mxu0 0.0
    %1951 = vmatpush1.msra.mxu0 %v1037
    %1952 = vmatprep.subr.mxu0 0.0
    %1953 = vmatpush2.msra.mxu0 0.0
    %1954 = vmatprep.subr.mxu0 0.0
    %1955 = vmatpush2.msra.mxu0 0.0
    %1956 = vmatprep.subr.mxu0 0.0
    %1957 = vmatpush2.msra.mxu0 0.0
    %1958 = vmatprep.subr.mxu0 0.0
    %1959 = vmatpush2.msra.mxu0 0.0
    %1960 = vmatprep.subr.mxu0 0.0
    %1961 = vmatpush2.msra.mxu0 0.0
    %1962 = vmatprep.subr.mxu0 0.0
    %1963 = vmatpush2.msra.mxu0 0.0
    %1964 = vmatprep.subr.mxu0 0.0
    %1965 = vmatpush2.msra.mxu0 0.0
    %1966 = vmatprep.subr.mxu0 0.0
    %1967 = vmatpush2.msra.mxu0 0.0
    %1968 = vmatprep.subr.mxu0 0.0
    %1969 = vmatpush2.msra.mxu0 0.0
    %1970 = vmatprep.subr.mxu0 0.0
    %1971 = vmatpush2.msra.mxu0 0.0
    %1972 = vmatprep.subr.mxu0 0.0
    %1973 = vmatpush2.msra.mxu0 0.0
    %1974 = vmatprep.subr.mxu0 0.0
    %1975 = vmatpush2.msra.mxu0 0.0
    %1976 = vmatprep.subr.mxu0 0.0
    %1977 = vmatpush2.msra.mxu0 0.0
    %1978 = vmatprep.subr.mxu0 0.0
    %1979 = vmatpush2.msra.mxu0 0.0
    %1980 = vmatprep.subr.mxu0 0.0
    %1981 = vmatpush2.msra.mxu0 0.0
    %1982 = vmatprep.subr.mxu0 0.0
    %1983 = vmatpush2.msra.mxu0 0.0
    %1984 = vmatprep.mubr.f32.mxu0 0.0
    %1985 = vmatmul.mubr.f32.gmra.mxu0 %v1918
    %v1986 = vpop.f32.mrf.mxu0
    %v1987 = vadd.f32 0.0, %v1986
    %v1988 = vpop.f32.mrf.mxu0
    %1989 = vdwg.mxu0
    %v1990 = vadd.f32 %v1916, %v1987
    %v1991 = vxor.u32 %v1990, 2147483648
    %v1992 = vmul.f32 %v1991, 1.442695
    %v1993 = vpow.pop %v1992
    %v1994 = vadd.f32 %v1993, 1.0
    %v1995 = vrcp.pop %v1994
    %v1996 = vmul.f32 1.0, %v1995
    %s1997 = scalar_lea.vmem [#allocation3], 2
    %v1998 = vld [vmem:[%s1997] sm:$0x3]
    %1999 = vmatprep.subr.mxu0 0.0
    %2000 = vmatpush1.msra.mxu0 0.0
    %2001 = vmatprep.subr.mxu0 0.0
    %2002 = vmatpush1.msra.mxu0 0.0
    %2003 = vmatprep.subr.mxu0 0.0
    %2004 = vmatpush1.msra.mxu0 0.0
    %2005 = vmatprep.subr.mxu0 0.0
    %2006 = vmatpush1.msra.mxu0 0.0
    %2007 = vmatprep.subr.mxu0 0.0
    %2008 = vmatpush1.msra.mxu0 0.0
    %2009 = vmatprep.subr.mxu0 0.0
    %2010 = vmatpush1.msra.mxu0 0.0
    %2011 = vmatprep.subr.mxu0 0.0
    %2012 = vmatpush1.msra.mxu0 0.0
    %2013 = vmatprep.subr.mxu0 0.0
    %2014 = vmatpush1.msra.mxu0 0.0
    %2015 = vmatprep.subr.mxu0 0.0
    %2016 = vmatpush1.msra.mxu0 %v1388
    %2017 = vmatprep.subr.mxu0 0.0
    %2018 = vmatpush1.msra.mxu0 %v1386
    %2019 = vmatprep.subr.mxu0 0.0
    %2020 = vmatpush1.msra.mxu0 %v1384
    %2021 = vmatprep.subr.mxu0 0.0
    %2022 = vmatpush1.msra.mxu0 %v1382
    %2023 = vmatprep.subr.mxu0 0.0
    %2024 = vmatpush1.msra.mxu0 %v1380
    %2025 = vmatprep.subr.mxu0 0.0
    %2026 = vmatpush1.msra.mxu0 %v1378
    %2027 = vmatprep.subr.mxu0 0.0
    %2028 = vmatpush1.msra.mxu0 %v1376
    %2029 = vmatprep.subr.mxu0 0.0
    %2030 = vmatpush1.msra.mxu0 %v1374
    %2031 = vmatprep.subr.mxu0 0.0
    %2032 = vmatpush2.msra.mxu0 0.0
    %2033 = vmatprep.subr.mxu0 0.0
    %2034 = vmatpush2.msra.mxu0 0.0
    %2035 = vmatprep.subr.mxu0 0.0
    %2036 = vmatpush2.msra.mxu0 0.0
    %2037 = vmatprep.subr.mxu0 0.0
    %2038 = vmatpush2.msra.mxu0 0.0
    %2039 = vmatprep.subr.mxu0 0.0
    %2040 = vmatpush2.msra.mxu0 0.0
    %2041 = vmatprep.subr.mxu0 0.0
    %2042 = vmatpush2.msra.mxu0 0.0
    %2043 = vmatprep.subr.mxu0 0.0
    %2044 = vmatpush2.msra.mxu0 0.0
    %2045 = vmatprep.subr.mxu0 0.0
    %2046 = vmatpush2.msra.mxu0 0.0
    %2047 = vmatprep.subr.mxu0 0.0
    %2048 = vmatpush2.msra.mxu0 0.0
    %2049 = vmatprep.subr.mxu0 0.0
    %2050 = vmatpush2.msra.mxu0 0.0
    %2051 = vmatprep.subr.mxu0 0.0
    %2052 = vmatpush2.msra.mxu0 0.0
    %2053 = vmatprep.subr.mxu0 0.0
    %2054 = vmatpush2.msra.mxu0 0.0
    %2055 = vmatprep.subr.mxu0 0.0
    %2056 = vmatpush2.msra.mxu0 0.0
    %2057 = vmatprep.subr.mxu0 0.0
    %2058 = vmatpush2.msra.mxu0 0.0
    %2059 = vmatprep.subr.mxu0 0.0
    %2060 = vmatpush2.msra.mxu0 0.0
    %2061 = vmatprep.subr.mxu0 0.0
    %2062 = vmatpush2.msra.mxu0 0.0
    %2063 = vmatprep.mubr.f32.mxu0 0.0
    %2064 = vmatmul.mubr.f32.gmra.mxu0 %v1918
    %v2065 = vpop.f32.mrf.mxu0
    %v2066 = vadd.f32 0.0, %v2065
    %v2067 = vpop.f32.mrf.mxu0
    %2068 = vdwg.mxu0
    %v2069 = vadd.f32 %v1998, %v2066
    %v2070 = vxor.u32 %v2069, 2147483648
    %v2071 = vmul.f32 %v2070, 1.442695
    %v2072 = vpow.pop %v2071
    %v2073 = vadd.f32 %v2072, 1.0
    %v2074 = vrcp.pop %v2073
    %v2075 = vmul.f32 1.0, %v2074
    %s2076 = scalar_lea.vmem [#allocation4], 2
    %v2077 = vld [vmem:[%s2076] sm:$0x3]
    %2078 = vmatprep.subr.mxu0 0.0
    %2079 = vmatpush1.msra.mxu0 0.0
    %2080 = vmatprep.subr.mxu0 0.0
    %2081 = vmatpush1.msra.mxu0 0.0
    %2082 = vmatprep.subr.mxu0 0.0
    %2083 = vmatpush1.msra.mxu0 0.0
    %2084 = vmatprep.subr.mxu0 0.0
    %2085 = vmatpush1.msra.mxu0 0.0
    %2086 = vmatprep.subr.mxu0 0.0
    %2087 = vmatpush1.msra.mxu0 0.0
    %2088 = vmatprep.subr.mxu0 0.0
    %2089 = vmatpush1.msra.mxu0 0.0
    %2090 = vmatprep.subr.mxu0 0.0
    %2091 = vmatpush1.msra.mxu0 0.0
    %2092 = vmatprep.subr.mxu0 0.0
    %2093 = vmatpush1.msra.mxu0 0.0
    %2094 = vmatprep.subr.mxu0 0.0
    %2095 = vmatpush1.msra.mxu0 %v1490
    %2096 = vmatprep.subr.mxu0 0.0
    %2097 = vmatpush1.msra.mxu0 %v1488
    %2098 = vmatprep.subr.mxu0 0.0
    %2099 = vmatpush1.msra.mxu0 %v1486
    %2100 = vmatprep.subr.mxu0 0.0
    %2101 = vmatpush1.msra.mxu0 %v1484
    %2102 = vmatprep.subr.mxu0 0.0
    %2103 = vmatpush1.msra.mxu0 %v1482
    %2104 = vmatprep.subr.mxu0 0.0
    %2105 = vmatpush1.msra.mxu0 %v1480
    %2106 = vmatprep.subr.mxu0 0.0
    %2107 = vmatpush1.msra.mxu0 %v1478
    %2108 = vmatprep.subr.mxu0 0.0
    %2109 = vmatpush1.msra.mxu0 %v1476
    %2110 = vmatprep.subr.mxu0 0.0
    %2111 = vmatpush2.msra.mxu0 0.0
    %2112 = vmatprep.subr.mxu0 0.0
    %2113 = vmatpush2.msra.mxu0 0.0
    %2114 = vmatprep.subr.mxu0 0.0
    %2115 = vmatpush2.msra.mxu0 0.0
    %2116 = vmatprep.subr.mxu0 0.0
    %2117 = vmatpush2.msra.mxu0 0.0
    %2118 = vmatprep.subr.mxu0 0.0
    %2119 = vmatpush2.msra.mxu0 0.0
    %2120 = vmatprep.subr.mxu0 0.0
    %2121 = vmatpush2.msra.mxu0 0.0
    %2122 = vmatprep.subr.mxu0 0.0
    %2123 = vmatpush2.msra.mxu0 0.0
    %2124 = vmatprep.subr.mxu0 0.0
    %2125 = vmatpush2.msra.mxu0 0.0
    %2126 = vmatprep.subr.mxu0 0.0
    %2127 = vmatpush2.msra.mxu0 0.0
    %2128 = vmatprep.subr.mxu0 0.0
    %2129 = vmatpush2.msra.mxu0 0.0
    %2130 = vmatprep.subr.mxu0 0.0
    %2131 = vmatpush2.msra.mxu0 0.0
    %2132 = vmatprep.subr.mxu0 0.0
    %2133 = vmatpush2.msra.mxu0 0.0
    %2134 = vmatprep.subr.mxu0 0.0
    %2135 = vmatpush2.msra.mxu0 0.0
    %2136 = vmatprep.subr.mxu0 0.0
    %2137 = vmatpush2.msra.mxu0 0.0
    %2138 = vmatprep.subr.mxu0 0.0
    %2139 = vmatpush2.msra.mxu0 0.0
    %2140 = vmatprep.subr.mxu0 0.0
    %2141 = vmatpush2.msra.mxu0 0.0
    %2142 = vmatprep.mubr.f32.mxu0 0.0
    %2143 = vmatmul.mubr.f32.gmra.mxu0 %v1918
    %v2144 = vpop.f32.mrf.mxu0
    %v2145 = vadd.f32 0.0, %v2144
    %v2146 = vpop.f32.mrf.mxu0
    %2147 = vdwg.mxu0
    %v2148 = vadd.f32 %v2077, %v2145
    %v2149 = vtanh.pop %v2148
    %s2150 = scalar_lea.vmem [#allocation5], 2
    %v2151 = vld [vmem:[%s2150] sm:$0x3]
    %2152 = vmatprep.subr.mxu0 0.0
    %2153 = vmatpush1.msra.mxu0 0.0
    %2154 = vmatprep.subr.mxu0 0.0
    %2155 = vmatpush1.msra.mxu0 0.0
    %2156 = vmatprep.subr.mxu0 0.0
    %2157 = vmatpush1.msra.mxu0 0.0
    %2158 = vmatprep.subr.mxu0 0.0
    %2159 = vmatpush1.msra.mxu0 0.0
    %2160 = vmatprep.subr.mxu0 0.0
    %2161 = vmatpush1.msra.mxu0 0.0
    %2162 = vmatprep.subr.mxu0 0.0
    %2163 = vmatpush1.msra.mxu0 0.0
    %2164 = vmatprep.subr.mxu0 0.0
    %2165 = vmatpush1.msra.mxu0 0.0
    %2166 = vmatprep.subr.mxu0 0.0
    %2167 = vmatpush1.msra.mxu0 0.0
    %2168 = vmatprep.subr.mxu0 0.0
    %2169 = vmatpush1.msra.mxu0 %v1587
    %2170 = vmatprep.subr.mxu0 0.0
    %2171 = vmatpush1.msra.mxu0 %v1585
    %2172 = vmatprep.subr.mxu0 0.0
    %2173 = vmatpush1.msra.mxu0 %v1583
    %2174 = vmatprep.subr.mxu0 0.0
    %2175 = vmatpush1.msra.mxu0 %v1581
    %2176 = vmatprep.subr.mxu0 0.0
    %2177 = vmatpush1.msra.mxu0 %v1579
    %2178 = vmatprep.subr.mxu0 0.0
    %2179 = vmatpush1.msra.mxu0 %v1577
    %2180 = vmatprep.subr.mxu0 0.0
    %2181 = vmatpush1.msra.mxu0 %v1575
    %2182 = vmatprep.subr.mxu0 0.0
    %2183 = vmatpush1.msra.mxu0 %v1573
    %2184 = vmatprep.subr.mxu0 0.0
    %2185 = vmatpush2.msra.mxu0 0.0
    %2186 = vmatprep.subr.mxu0 0.0
    %2187 = vmatpush2.msra.mxu0 0.0
    %2188 = vmatprep.subr.mxu0 0.0
    %2189 = vmatpush2.msra.mxu0 0.0
    %2190 = vmatprep.subr.mxu0 0.0
    %2191 = vmatpush2.msra.mxu0 0.0
    %2192 = vmatprep.subr.mxu0 0.0
    %2193 = vmatpush2.msra.mxu0 0.0
    %2194 = vmatprep.subr.mxu0 0.0
    %2195 = vmatpush2.msra.mxu0 0.0
    %2196 = vmatprep.subr.mxu0 0.0
    %2197 = vmatpush2.msra.mxu0 0.0
    %2198 = vmatprep.subr.mxu0 0.0
    %2199 = vmatpush2.msra.mxu0 0.0
    %2200 = vmatprep.subr.mxu0 0.0
    %2201 = vmatpush2.msra.mxu0 0.0
    %2202 = vmatprep.subr.mxu0 0.0
    %2203 = vmatpush2.msra.mxu0 0.0
    %2204 = vmatprep.subr.mxu0 0.0
    %2205 = vmatpush2.msra.mxu0 0.0
    %2206 = vmatprep.subr.mxu0 0.0
    %2207 = vmatpush2.msra.mxu0 0.0
    %2208 = vmatprep.subr.mxu0 0.0
    %2209 = vmatpush2.msra.mxu0 0.0
    %2210 = vmatprep.subr.mxu0 0.0
    %2211 = vmatpush2.msra.mxu0 0.0
    %2212 = vmatprep.subr.mxu0 0.0
    %2213 = vmatpush2.msra.mxu0 0.0
    %2214 = vmatprep.subr.mxu0 0.0
    %2215 = vmatpush2.msra.mxu0 0.0
    %2216 = vmatprep.mubr.f32.mxu0 0.0
    %2217 = vmatmul.mubr.f32.gmra.mxu0 %v1918
    %v2218 = vpop.f32.mrf.mxu0
    %v2219 = vadd.f32 0.0, %v2218
    %v2220 = vpop.f32.mrf.mxu0
    %2221 = vdwg.mxu0
    %v2222 = vadd.f32 %v2151, %v2219
    %v2223 = vxor.u32 %v2222, 2147483648
    %v2224 = vmul.f32 %v2223, 1.442695
    %v2225 = vpow.pop %v2224
    %v2226 = vadd.f32 %v2225, 1.0
    %v2227 = vrcp.pop %v2226
    %v2228 = vmul.f32 1.0, %v2227
    %v2229 = vld [vmem:[#allocation10] sm:$0x3]
    %v2230 = vmul.f32 %v2075, %v2229
    %v2231 = vmul.f32 %v1996, %v2149
    %v2232 = vadd.f32 %v2230, %v2231
    %v2233 = vtanh.pop %v2232
    %v2234 = vmul.f32 %v2228, %v2233
    %2235 = vst.msk [vmem:[#allocation9] sm:$0x3] %vm876, %v2234
    %2236 = vst.msk [vmem:[#allocation10] sm:$0x3] %vm876, %v2232
    %s2237 = scalar_lea.vmem [#allocation6], 2
    %2238 = vst.msk [vmem:[%s2237] sm:$0x3] %vm876, %v2234
    %s2239 = scalar_lea.vmem [#allocation7], 2
    %2240 = vst.msk [vmem:[%s2239] sm:$0x3] %vm876, %v1909
    %v2241 = vlaneseq
    %v2242 = vshrl.u32 %v2241, 7
    %v2243 = vsub.s32 %v1179, %v2242
    %v2244 = vrot.slane %v1884, %v2243
    %v2245 = vlaneseq
    %v2246 = vshrl.u32 %v2245, 7
    %v2247 = vsub.s32 %v1179, %v2246
    %v2248 = vrot.slane %v1889, %v2247
    %v2249 = vsel %vm1188, %v2248, %v2244
    %s2251 = scalar_lea.vmem [#allocation8], 2
    %2252 = vst.msk [vmem:[%s2251] sm:$0x3] %vm1191, %v2249
    %v2253 = vld [vmem:[#allocation9] sm:$0x3]
    %v2255 = vsel %vm266, %v2253, 0
    %2257 = vmatprep.subr.mxu0 0.0
    %2258 = vmatpush1.msra.mxu0 0.0
    %2259 = vmatprep.subr.mxu0 0.0
    %2260 = vmatpush1.msra.mxu0 0.0
    %2261 = vmatprep.subr.mxu0 0.0
    %2262 = vmatpush1.msra.mxu0 0.0
    %2263 = vmatprep.subr.mxu0 0.0
    %2264 = vmatpush1.msra.mxu0 0.0
    %2265 = vmatprep.subr.mxu0 0.0
    %2266 = vmatpush1.msra.mxu0 0.0
    %2267 = vmatprep.subr.mxu0 0.0
    %2268 = vmatpush1.msra.mxu0 0.0
    %2269 = vmatprep.subr.mxu0 0.0
    %2270 = vmatpush1.msra.mxu0 0.0
    %2271 = vmatprep.subr.mxu0 0.0
    %2272 = vmatpush1.msra.mxu0 0.0
    %2273 = vmatprep.subr.mxu0 0.0
    %2274 = vmatpush1.msra.mxu0 0.0
    %2275 = vmatprep.subr.mxu0 0.0
    %2276 = vmatpush1.msra.mxu0 0.0
    %2277 = vmatprep.subr.mxu0 0.0
    %2278 = vmatpush1.msra.mxu0 0.0
    %2279 = vmatprep.subr.mxu0 0.0
    %2280 = vmatpush1.msra.mxu0 0.0
    %2281 = vmatprep.subr.mxu0 0.0
    %2282 = vmatpush1.msra.mxu0 %v1048
    %2283 = vmatprep.subr.mxu0 0.0
    %2284 = vmatpush1.msra.mxu0 %v1047
    %2285 = vmatprep.subr.mxu0 0.0
    %2286 = vmatpush1.msra.mxu0 %v1046
    %2287 = vmatprep.subr.mxu0 0.0
    %2288 = vmatpush1.msra.mxu0 %v1045
    %2289 = vmatprep.subr.mxu0 0.0
    %2290 = vmatpush2.msra.mxu0 0.0
    %2291 = vmatprep.subr.mxu0 0.0
    %2292 = vmatpush2.msra.mxu0 0.0
    %2293 = vmatprep.subr.mxu0 0.0
    %2294 = vmatpush2.msra.mxu0 0.0
    %2295 = vmatprep.subr.mxu0 0.0
    %2296 = vmatpush2.msra.mxu0 0.0
    %2297 = vmatprep.subr.mxu0 0.0
    %2298 = vmatpush2.msra.mxu0 0.0
    %2299 = vmatprep.subr.mxu0 0.0
    %2300 = vmatpush2.msra.mxu0 0.0
    %2301 = vmatprep.subr.mxu0 0.0
    %2302 = vmatpush2.msra.mxu0 0.0
    %2303 = vmatprep.subr.mxu0 0.0
    %2304 = vmatpush2.msra.mxu0 0.0
    %2305 = vmatprep.subr.mxu0 0.0
    %2306 = vmatpush2.msra.mxu0 0.0
    %2307 = vmatprep.subr.mxu0 0.0
    %2308 = vmatpush2.msra.mxu0 0.0
    %2309 = vmatprep.subr.mxu0 0.0
    %2310 = vmatpush2.msra.mxu0 0.0
    %2311 = vmatprep.subr.mxu0 0.0
    %2312 = vmatpush2.msra.mxu0 0.0
    %2313 = vmatprep.subr.mxu0 0.0
    %2314 = vmatpush2.msra.mxu0 0.0
    %2315 = vmatprep.subr.mxu0 0.0
    %2316 = vmatpush2.msra.mxu0 0.0
    %2317 = vmatprep.subr.mxu0 0.0
    %2318 = vmatpush2.msra.mxu0 0.0
    %2319 = vmatprep.subr.mxu0 0.0
    %2320 = vmatpush2.msra.mxu0 0.0
    %2321 = vmatprep.mubr.f32.mxu0 0.0
    %2322 = vmatmul.mubr.f32.gmra.mxu0 %v2255
    %v2323 = vpop.f32.mrf.mxu0
    %v2324 = vadd.f32 0.0, %v2323
    %v2325 = vpop.f32.mrf.mxu0
    %2326 = vdwg.mxu0
    %v2329 = vunpack.c.l.s4 1966171168
    %v2330 = vunpack.c.0.s8 %v2329
    %v2331 = vlaneseq
    %v2332 = vshrl.u32 %v2331, 7
    %v2333 = vsub.s32 %v2330, %v2332
    %v2334 = vrot.slane %v2324, %v2333
    %v2335 = vcombine.high %v2334, %v2334
    %v2337 = vunpack.c.l.s4 1966171168
    %v2338 = vunpack.c.0.s8 %v2337
    %v2339 = vlaneseq
    %v2340 = vshrl.u32 %v2339, 7
    %v2341 = vsub.s32 %v2338, %v2340
    %v2342 = vrot.slane %v2334, %v2341
    %v2344 = vunpack.c.l.s4 1966171168
    %v2345 = vunpack.c.0.s8 %v2344
    %v2346 = vlaneseq
    %v2347 = vshrl.u32 %v2346, 7
    %v2348 = vsub.s32 %v2345, %v2347
    %v2349 = vrot.slane %v2335, %v2348
    %v2350 = vlaneseq
    %v2351 = vshrl.u32 %v2350, 7
    %v2352 = vsub.s32 0, %v2351
    %v2353 = vrot.slane %v2342, %v2352
    %v2354 = vlaneseq
    %v2355 = vshrl.u32 %v2354, 7
    %v2356 = vsub.s32 0, %v2355
    %v2357 = vrot.slane %v2349, %v2356
    %v2360 = vadd.f32 %v427, %v2353
    %v2361 = vadd.f32 %v432, %v2357
    %v2362 = vtanh.pop %v2360
    %v2363 = vtanh.pop %v2361
    %v2364 = vmul.f32 %v2362, %v1166
    %v2365 = vmul.f32 %v2363, %v1166
    %v2366 = vsel %vm266, %v2364, 0.0
    %2367 = vadd.xlane.f32.xlu0 %v2366
    %v2368 = vpop.xlane.xlu0 %2367
    %v2369 = vsel %vm266, %v2365, 0.0
    %2370 = vadd.xlane.f32.xlu0 %v2369
    %v2371 = vpop.xlane.xlu0 %2370
    %v2374 = vlaneseq
    %v2375 = vshrl.u32 %v2374, 7
    %v2376 = vsub.s32 %v1179, %v2375
    %v2377 = vrot.slane %v2368, %v2376
    %v2378 = vlaneseq
    %v2379 = vshrl.u32 %v2378, 7
    %v2380 = vsub.s32 %v1179, %v2379
    %v2381 = vrot.slane %v2371, %v2380
    %v2382 = vsel %vm1188, %v2381, %v2377
    %v2384 = vsel %vm1191, %v2382, -inf
    %2385 = vmax.xlane.f32.xlu0 %v2384
    %v2386 = vpop.xlane.xlu0 %2385
    %v2388 = vlaneseq
    %v2389 = vshrl.u32 %v2388, 7
    %v2390 = vsub.s32 0, %v2389
    %v2391 = vrot.slane %v2386, %v2390
    %v2392 = vlaneseq
    %v2393 = vshrl.u32 %v2392, 7
    %v2394 = vsub.s32 1, %v2393
    %v2395 = vrot.slane %v2386, %v2394
    %v2398 = vsub.f32 %v2368, %v2391
    %v2399 = vsub.f32 %v2371, %v2395
    %v2400 = vmul.f32 %v2398, 1.442695
    %v2401 = vpow.pop %v2400
    %v2402 = vmul.f32 %v2399, 1.442695
    %v2403 = vpow.pop %v2402
    %2406 = vset.pattern.permute.xlu0 0
    %2407 = vperm.xlu0 %2406, %v2401
    %v2408 = vpop.permute.xlu0 %2407
    %2409 = vset.pattern.permute.xlu0 0
    %2410 = vperm.xlu0 %2409, %v2403
    %v2411 = vpop.permute.xlu0 %2410
    %v2412 = vlaneseq
    %v2413 = vshrl.u32 %v2412, 7
    %v2414 = vsub.s32 %v1179, %v2413
    %v2415 = vrot.slane %v2408, %v2414
    %v2416 = vlaneseq
    %v2417 = vshrl.u32 %v2416, 7
    %v2418 = vsub.s32 %v1179, %v2417
    %v2419 = vrot.slane %v2411, %v2418
    %v2420 = vsel %vm1188, %v2419, %v2415
    %v2422 = vsel %vm1191, %v2420, 0.0
    %2423 = vadd.xlane.f32.xlu0 %v2422
    %v2424 = vpop.xlane.xlu0 %2423
    %v2426 = vlaneseq
    %v2427 = vshrl.u32 %v2426, 7
    %v2428 = vsub.s32 0, %v2427
    %v2429 = vrot.slane %v2424, %v2428
    %v2430 = vlaneseq
    %v2431 = vshrl.u32 %v2430, 7
    %v2432 = vsub.s32 1, %v2431
    %v2433 = vrot.slane %v2424, %v2432
    %v2436 = vrcp.pop %v2429
    %v2437 = vmul.f32 %v2401, %v2436
    %v2438 = vrcp.pop %v2433
    %v2439 = vmul.f32 %v2403, %v2438
    %2441 = vset.pattern.permute.xlu0 0
    %2442 = vperm.xlu0 %2441, %v2437
    %v2443 = vpop.permute.xlu0 %2442
    %2446 = vset.pattern.permute.xlu0 0
    %2447 = vperm.xlu0 %2446, %v2439
    %v2448 = vpop.permute.xlu0 %2447
    %v2450 = vmul.f32 %v2443, %v348
    %v2451 = vmul.f32 %v2448, %v349
    %v2452 = vsel %vm266, %v2450, 0.0
    %v2453 = vrot.slane %v2452, 4
    %v2454 = vadd.f32 %v2452, %v2453
    %v2455 = vrot.slane %v2454, 2
    %v2456 = vadd.f32 %v2454, %v2455
    %v2457 = vrot.slane %v2456, 1
    %v2458 = vadd.f32 %v2456, %v2457
    %v2459 = vsel %vm266, %v2451, 0.0
    %v2460 = vrot.slane %v2459, 4
    %v2461 = vadd.f32 %v2459, %v2460
    %v2462 = vrot.slane %v2461, 2
    %v2463 = vadd.f32 %v2461, %v2462
    %v2464 = vrot.slane %v2463, 1
    %v2465 = vadd.f32 %v2463, %v2464
    %v2468 = vsel %vm1188, %v2465, %v2458
    %2470 = vrot.lane.b32.xlu0 %v2253, 32
    %v2471 = vpop.permute.xlu0 %2470
    %v2473 = vsel %vm266, %v2468, %v2471
    %s2474 = scalar_lea.vmem [#allocation2], 4
    %v2475 = vld [vmem:[%s2474] sm:$0x3]
    %v2477 = vsel %vm1283, %v2473, 0
    %2479 = vmatprep.subr.mxu0 0.0
    %2480 = vmatpush1.msra.mxu0 0.0
    %2481 = vmatprep.subr.mxu0 0.0
    %2482 = vmatpush1.msra.mxu0 0.0
    %2483 = vmatprep.subr.mxu0 0.0
    %2484 = vmatpush1.msra.mxu0 0.0
    %2485 = vmatprep.subr.mxu0 0.0
    %2486 = vmatpush1.msra.mxu0 0.0
    %2487 = vmatprep.subr.mxu0 0.0
    %2488 = vmatpush1.msra.mxu0 0.0
    %2489 = vmatprep.subr.mxu0 0.0
    %2490 = vmatpush1.msra.mxu0 0.0
    %2491 = vmatprep.subr.mxu0 0.0
    %2492 = vmatpush1.msra.mxu0 0.0
    %2493 = vmatprep.subr.mxu0 0.0
    %2494 = vmatpush1.msra.mxu0 0.0
    %2495 = vmatprep.subr.mxu0 0.0
    %2496 = vmatpush1.msra.mxu0 %v1044
    %2497 = vmatprep.subr.mxu0 0.0
    %2498 = vmatpush1.msra.mxu0 %v1043
    %2499 = vmatprep.subr.mxu0 0.0
    %2500 = vmatpush1.msra.mxu0 %v1042
    %2501 = vmatprep.subr.mxu0 0.0
    %2502 = vmatpush1.msra.mxu0 %v1041
    %2503 = vmatprep.subr.mxu0 0.0
    %2504 = vmatpush1.msra.mxu0 %v1040
    %2505 = vmatprep.subr.mxu0 0.0
    %2506 = vmatpush1.msra.mxu0 %v1039
    %2507 = vmatprep.subr.mxu0 0.0
    %2508 = vmatpush1.msra.mxu0 %v1038
    %2509 = vmatprep.subr.mxu0 0.0
    %2510 = vmatpush1.msra.mxu0 %v1037
    %2511 = vmatprep.subr.mxu0 0.0
    %2512 = vmatpush2.msra.mxu0 0.0
    %2513 = vmatprep.subr.mxu0 0.0
    %2514 = vmatpush2.msra.mxu0 0.0
    %2515 = vmatprep.subr.mxu0 0.0
    %2516 = vmatpush2.msra.mxu0 0.0
    %2517 = vmatprep.subr.mxu0 0.0
    %2518 = vmatpush2.msra.mxu0 0.0
    %2519 = vmatprep.subr.mxu0 0.0
    %2520 = vmatpush2.msra.mxu0 0.0
    %2521 = vmatprep.subr.mxu0 0.0
    %2522 = vmatpush2.msra.mxu0 0.0
    %2523 = vmatprep.subr.mxu0 0.0
    %2524 = vmatpush2.msra.mxu0 0.0
    %2525 = vmatprep.subr.mxu0 0.0
    %2526 = vmatpush2.msra.mxu0 0.0
    %2527 = vmatprep.subr.mxu0 0.0
    %2528 = vmatpush2.msra.mxu0 0.0
    %2529 = vmatprep.subr.mxu0 0.0
    %2530 = vmatpush2.msra.mxu0 0.0
    %2531 = vmatprep.subr.mxu0 0.0
    %2532 = vmatpush2.msra.mxu0 0.0
    %2533 = vmatprep.subr.mxu0 0.0
    %2534 = vmatpush2.msra.mxu0 0.0
    %2535 = vmatprep.subr.mxu0 0.0
    %2536 = vmatpush2.msra.mxu0 0.0
    %2537 = vmatprep.subr.mxu0 0.0
    %2538 = vmatpush2.msra.mxu0 0.0
    %2539 = vmatprep.subr.mxu0 0.0
    %2540 = vmatpush2.msra.mxu0 0.0
    %2541 = vmatprep.subr.mxu0 0.0
    %2542 = vmatpush2.msra.mxu0 0.0
    %2543 = vmatprep.mubr.f32.mxu0 0.0
    %2544 = vmatmul.mubr.f32.gmra.mxu0 %v2477
    %v2545 = vpop.f32.mrf.mxu0
    %v2546 = vadd.f32 0.0, %v2545
    %v2547 = vpop.f32.mrf.mxu0
    %2548 = vdwg.mxu0
    %v2549 = vadd.f32 %v2475, %v2546
    %v2550 = vxor.u32 %v2549, 2147483648
    %v2551 = vmul.f32 %v2550, 1.442695
    %v2552 = vpow.pop %v2551
    %v2553 = vadd.f32 %v2552, 1.0
    %v2554 = vrcp.pop %v2553
    %v2555 = vmul.f32 1.0, %v2554
    %s2556 = scalar_lea.vmem [#allocation3], 4
    %v2557 = vld [vmem:[%s2556] sm:$0x3]
    %2558 = vmatprep.subr.mxu0 0.0
    %2559 = vmatpush1.msra.mxu0 0.0
    %2560 = vmatprep.subr.mxu0 0.0
    %2561 = vmatpush1.msra.mxu0 0.0
    %2562 = vmatprep.subr.mxu0 0.0
    %2563 = vmatpush1.msra.mxu0 0.0
    %2564 = vmatprep.subr.mxu0 0.0
    %2565 = vmatpush1.msra.mxu0 0.0
    %2566 = vmatprep.subr.mxu0 0.0
    %2567 = vmatpush1.msra.mxu0 0.0
    %2568 = vmatprep.subr.mxu0 0.0
    %2569 = vmatpush1.msra.mxu0 0.0
    %2570 = vmatprep.subr.mxu0 0.0
    %2571 = vmatpush1.msra.mxu0 0.0
    %2572 = vmatprep.subr.mxu0 0.0
    %2573 = vmatpush1.msra.mxu0 0.0
    %2574 = vmatprep.subr.mxu0 0.0
    %2575 = vmatpush1.msra.mxu0 %v1388
    %2576 = vmatprep.subr.mxu0 0.0
    %2577 = vmatpush1.msra.mxu0 %v1386
    %2578 = vmatprep.subr.mxu0 0.0
    %2579 = vmatpush1.msra.mxu0 %v1384
    %2580 = vmatprep.subr.mxu0 0.0
    %2581 = vmatpush1.msra.mxu0 %v1382
    %2582 = vmatprep.subr.mxu0 0.0
    %2583 = vmatpush1.msra.mxu0 %v1380
    %2584 = vmatprep.subr.mxu0 0.0
    %2585 = vmatpush1.msra.mxu0 %v1378
    %2586 = vmatprep.subr.mxu0 0.0
    %2587 = vmatpush1.msra.mxu0 %v1376
    %2588 = vmatprep.subr.mxu0 0.0
    %2589 = vmatpush1.msra.mxu0 %v1374
    %2590 = vmatprep.subr.mxu0 0.0
    %2591 = vmatpush2.msra.mxu0 0.0
    %2592 = vmatprep.subr.mxu0 0.0
    %2593 = vmatpush2.msra.mxu0 0.0
    %2594 = vmatprep.subr.mxu0 0.0
    %2595 = vmatpush2.msra.mxu0 0.0
    %2596 = vmatprep.subr.mxu0 0.0
    %2597 = vmatpush2.msra.mxu0 0.0
    %2598 = vmatprep.subr.mxu0 0.0
    %2599 = vmatpush2.msra.mxu0 0.0
    %2600 = vmatprep.subr.mxu0 0.0
    %2601 = vmatpush2.msra.mxu0 0.0
    %2602 = vmatprep.subr.mxu0 0.0
    %2603 = vmatpush2.msra.mxu0 0.0
    %2604 = vmatprep.subr.mxu0 0.0
    %2605 = vmatpush2.msra.mxu0 0.0
    %2606 = vmatprep.subr.mxu0 0.0
    %2607 = vmatpush2.msra.mxu0 0.0
    %2608 = vmatprep.subr.mxu0 0.0
    %2609 = vmatpush2.msra.mxu0 0.0
    %2610 = vmatprep.subr.mxu0 0.0
    %2611 = vmatpush2.msra.mxu0 0.0
    %2612 = vmatprep.subr.mxu0 0.0
    %2613 = vmatpush2.msra.mxu0 0.0
    %2614 = vmatprep.subr.mxu0 0.0
    %2615 = vmatpush2.msra.mxu0 0.0
    %2616 = vmatprep.subr.mxu0 0.0
    %2617 = vmatpush2.msra.mxu0 0.0
    %2618 = vmatprep.subr.mxu0 0.0
    %2619 = vmatpush2.msra.mxu0 0.0
    %2620 = vmatprep.subr.mxu0 0.0
    %2621 = vmatpush2.msra.mxu0 0.0
    %2622 = vmatprep.mubr.f32.mxu0 0.0
    %2623 = vmatmul.mubr.f32.gmra.mxu0 %v2477
    %v2624 = vpop.f32.mrf.mxu0
    %v2625 = vadd.f32 0.0, %v2624
    %v2626 = vpop.f32.mrf.mxu0
    %2627 = vdwg.mxu0
    %v2628 = vadd.f32 %v2557, %v2625
    %v2629 = vxor.u32 %v2628, 2147483648
    %v2630 = vmul.f32 %v2629, 1.442695
    %v2631 = vpow.pop %v2630
    %v2632 = vadd.f32 %v2631, 1.0
    %v2633 = vrcp.pop %v2632
    %v2634 = vmul.f32 1.0, %v2633
    %s2635 = scalar_lea.vmem [#allocation4], 4
    %v2636 = vld [vmem:[%s2635] sm:$0x3]
    %2637 = vmatprep.subr.mxu0 0.0
    %2638 = vmatpush1.msra.mxu0 0.0
    %2639 = vmatprep.subr.mxu0 0.0
    %2640 = vmatpush1.msra.mxu0 0.0
    %2641 = vmatprep.subr.mxu0 0.0
    %2642 = vmatpush1.msra.mxu0 0.0
    %2643 = vmatprep.subr.mxu0 0.0
    %2644 = vmatpush1.msra.mxu0 0.0
    %2645 = vmatprep.subr.mxu0 0.0
    %2646 = vmatpush1.msra.mxu0 0.0
    %2647 = vmatprep.subr.mxu0 0.0
    %2648 = vmatpush1.msra.mxu0 0.0
    %2649 = vmatprep.subr.mxu0 0.0
    %2650 = vmatpush1.msra.mxu0 0.0
    %2651 = vmatprep.subr.mxu0 0.0
    %2652 = vmatpush1.msra.mxu0 0.0
    %2653 = vmatprep.subr.mxu0 0.0
    %2654 = vmatpush1.msra.mxu0 %v1490
    %2655 = vmatprep.subr.mxu0 0.0
    %2656 = vmatpush1.msra.mxu0 %v1488
    %2657 = vmatprep.subr.mxu0 0.0
    %2658 = vmatpush1.msra.mxu0 %v1486
    %2659 = vmatprep.subr.mxu0 0.0
    %2660 = vmatpush1.msra.mxu0 %v1484
    %2661 = vmatprep.subr.mxu0 0.0
    %2662 = vmatpush1.msra.mxu0 %v1482
    %2663 = vmatprep.subr.mxu0 0.0
    %2664 = vmatpush1.msra.mxu0 %v1480
    %2665 = vmatprep.subr.mxu0 0.0
    %2666 = vmatpush1.msra.mxu0 %v1478
    %2667 = vmatprep.subr.mxu0 0.0
    %2668 = vmatpush1.msra.mxu0 %v1476
    %2669 = vmatprep.subr.mxu0 0.0
    %2670 = vmatpush2.msra.mxu0 0.0
    %2671 = vmatprep.subr.mxu0 0.0
    %2672 = vmatpush2.msra.mxu0 0.0
    %2673 = vmatprep.subr.mxu0 0.0
    %2674 = vmatpush2.msra.mxu0 0.0
    %2675 = vmatprep.subr.mxu0 0.0
    %2676 = vmatpush2.msra.mxu0 0.0
    %2677 = vmatprep.subr.mxu0 0.0
    %2678 = vmatpush2.msra.mxu0 0.0
    %2679 = vmatprep.subr.mxu0 0.0
    %2680 = vmatpush2.msra.mxu0 0.0
    %2681 = vmatprep.subr.mxu0 0.0
    %2682 = vmatpush2.msra.mxu0 0.0
    %2683 = vmatprep.subr.mxu0 0.0
    %2684 = vmatpush2.msra.mxu0 0.0
    %2685 = vmatprep.subr.mxu0 0.0
    %2686 = vmatpush2.msra.mxu0 0.0
    %2687 = vmatprep.subr.mxu0 0.0
    %2688 = vmatpush2.msra.mxu0 0.0
    %2689 = vmatprep.subr.mxu0 0.0
    %2690 = vmatpush2.msra.mxu0 0.0
    %2691 = vmatprep.subr.mxu0 0.0
    %2692 = vmatpush2.msra.mxu0 0.0
    %2693 = vmatprep.subr.mxu0 0.0
    %2694 = vmatpush2.msra.mxu0 0.0
    %2695 = vmatprep.subr.mxu0 0.0
    %2696 = vmatpush2.msra.mxu0 0.0
    %2697 = vmatprep.subr.mxu0 0.0
    %2698 = vmatpush2.msra.mxu0 0.0
    %2699 = vmatprep.subr.mxu0 0.0
    %2700 = vmatpush2.msra.mxu0 0.0
    %2701 = vmatprep.mubr.f32.mxu0 0.0
    %2702 = vmatmul.mubr.f32.gmra.mxu0 %v2477
    %v2703 = vpop.f32.mrf.mxu0
    %v2704 = vadd.f32 0.0, %v2703
    %v2705 = vpop.f32.mrf.mxu0
    %2706 = vdwg.mxu0
    %v2707 = vadd.f32 %v2636, %v2704
    %v2708 = vtanh.pop %v2707
    %s2709 = scalar_lea.vmem [#allocation5], 4
    %v2710 = vld [vmem:[%s2709] sm:$0x3]
    %2711 = vmatprep.subr.mxu0 0.0
    %2712 = vmatpush1.msra.mxu0 0.0
    %2713 = vmatprep.subr.mxu0 0.0
    %2714 = vmatpush1.msra.mxu0 0.0
    %2715 = vmatprep.subr.mxu0 0.0
    %2716 = vmatpush1.msra.mxu0 0.0
    %2717 = vmatprep.subr.mxu0 0.0
    %2718 = vmatpush1.msra.mxu0 0.0
    %2719 = vmatprep.subr.mxu0 0.0
    %2720 = vmatpush1.msra.mxu0 0.0
    %2721 = vmatprep.subr.mxu0 0.0
    %2722 = vmatpush1.msra.mxu0 0.0
    %2723 = vmatprep.subr.mxu0 0.0
    %2724 = vmatpush1.msra.mxu0 0.0
    %2725 = vmatprep.subr.mxu0 0.0
    %2726 = vmatpush1.msra.mxu0 0.0
    %2727 = vmatprep.subr.mxu0 0.0
    %2728 = vmatpush1.msra.mxu0 %v1587
    %2729 = vmatprep.subr.mxu0 0.0
    %2730 = vmatpush1.msra.mxu0 %v1585
    %2731 = vmatprep.subr.mxu0 0.0
    %2732 = vmatpush1.msra.mxu0 %v1583
    %2733 = vmatprep.subr.mxu0 0.0
    %2734 = vmatpush1.msra.mxu0 %v1581
    %2735 = vmatprep.subr.mxu0 0.0
    %2736 = vmatpush1.msra.mxu0 %v1579
    %2737 = vmatprep.subr.mxu0 0.0
    %2738 = vmatpush1.msra.mxu0 %v1577
    %2739 = vmatprep.subr.mxu0 0.0
    %2740 = vmatpush1.msra.mxu0 %v1575
    %2741 = vmatprep.subr.mxu0 0.0
    %2742 = vmatpush1.msra.mxu0 %v1573
    %2743 = vmatprep.subr.mxu0 0.0
    %2744 = vmatpush2.msra.mxu0 0.0
    %2745 = vmatprep.subr.mxu0 0.0
    %2746 = vmatpush2.msra.mxu0 0.0
    %2747 = vmatprep.subr.mxu0 0.0
    %2748 = vmatpush2.msra.mxu0 0.0
    %2749 = vmatprep.subr.mxu0 0.0
    %2750 = vmatpush2.msra.mxu0 0.0
    %2751 = vmatprep.subr.mxu0 0.0
    %2752 = vmatpush2.msra.mxu0 0.0
    %2753 = vmatprep.subr.mxu0 0.0
    %2754 = vmatpush2.msra.mxu0 0.0
    %2755 = vmatprep.subr.mxu0 0.0
    %2756 = vmatpush2.msra.mxu0 0.0
    %2757 = vmatprep.subr.mxu0 0.0
    %2758 = vmatpush2.msra.mxu0 0.0
    %2759 = vmatprep.subr.mxu0 0.0
    %2760 = vmatpush2.msra.mxu0 0.0
    %2761 = vmatprep.subr.mxu0 0.0
    %2762 = vmatpush2.msra.mxu0 0.0
    %2763 = vmatprep.subr.mxu0 0.0
    %2764 = vmatpush2.msra.mxu0 0.0
    %2765 = vmatprep.subr.mxu0 0.0
    %2766 = vmatpush2.msra.mxu0 0.0
    %2767 = vmatprep.subr.mxu0 0.0
    %2768 = vmatpush2.msra.mxu0 0.0
    %2769 = vmatprep.subr.mxu0 0.0
    %2770 = vmatpush2.msra.mxu0 0.0
    %2771 = vmatprep.subr.mxu0 0.0
    %2772 = vmatpush2.msra.mxu0 0.0
    %2773 = vmatprep.subr.mxu0 0.0
    %2774 = vmatpush2.msra.mxu0 0.0
    %2775 = vmatprep.mubr.f32.mxu0 0.0
    %2776 = vmatmul.mubr.f32.gmra.mxu0 %v2477
    %v2777 = vpop.f32.mrf.mxu0
    %v2778 = vadd.f32 0.0, %v2777
    %v2779 = vpop.f32.mrf.mxu0
    %2780 = vdwg.mxu0
    %v2781 = vadd.f32 %v2710, %v2778
    %v2782 = vxor.u32 %v2781, 2147483648
    %v2783 = vmul.f32 %v2782, 1.442695
    %v2784 = vpow.pop %v2783
    %v2785 = vadd.f32 %v2784, 1.0
    %v2786 = vrcp.pop %v2785
    %v2787 = vmul.f32 1.0, %v2786
    %v2788 = vld [vmem:[#allocation10] sm:$0x3]
    %v2789 = vmul.f32 %v2634, %v2788
    %v2790 = vmul.f32 %v2555, %v2708
    %v2791 = vadd.f32 %v2789, %v2790
    %v2792 = vtanh.pop %v2791
    %v2793 = vmul.f32 %v2787, %v2792
    %2794 = vst.msk [vmem:[#allocation9] sm:$0x3] %vm876, %v2793
    %2795 = vst.msk [vmem:[#allocation10] sm:$0x3] %vm876, %v2791
    %s2796 = scalar_lea.vmem [#allocation6], 4
    %2797 = vst.msk [vmem:[%s2796] sm:$0x3] %vm876, %v2793
    %s2798 = scalar_lea.vmem [#allocation7], 4
    %2799 = vst.msk [vmem:[%s2798] sm:$0x3] %vm876, %v2468
    %v2800 = vlaneseq
    %v2801 = vshrl.u32 %v2800, 7
    %v2802 = vsub.s32 %v1179, %v2801
    %v2803 = vrot.slane %v2443, %v2802
    %v2804 = vlaneseq
    %v2805 = vshrl.u32 %v2804, 7
    %v2806 = vsub.s32 %v1179, %v2805
    %v2807 = vrot.slane %v2448, %v2806
    %v2808 = vsel %vm1188, %v2807, %v2803
    %s2810 = scalar_lea.vmem [#allocation8], 4
    %2811 = vst.msk [vmem:[%s2810] sm:$0x3] %vm1191, %v2808
    %v2812 = vld [vmem:[#allocation9] sm:$0x3]
    %v2814 = vsel %vm266, %v2812, 0
    %2816 = vmatprep.subr.mxu0 0.0
    %2817 = vmatpush1.msra.mxu0 0.0
    %2818 = vmatprep.subr.mxu0 0.0
    %2819 = vmatpush1.msra.mxu0 0.0
    %2820 = vmatprep.subr.mxu0 0.0
    %2821 = vmatpush1.msra.mxu0 0.0
    %2822 = vmatprep.subr.mxu0 0.0
    %2823 = vmatpush1.msra.mxu0 0.0
    %2824 = vmatprep.subr.mxu0 0.0
    %2825 = vmatpush1.msra.mxu0 0.0
    %2826 = vmatprep.subr.mxu0 0.0
    %2827 = vmatpush1.msra.mxu0 0.0
    %2828 = vmatprep.subr.mxu0 0.0
    %2829 = vmatpush1.msra.mxu0 0.0
    %2830 = vmatprep.subr.mxu0 0.0
    %2831 = vmatpush1.msra.mxu0 0.0
    %2832 = vmatprep.subr.mxu0 0.0
    %2833 = vmatpush1.msra.mxu0 0.0
    %2834 = vmatprep.subr.mxu0 0.0
    %2835 = vmatpush1.msra.mxu0 0.0
    %2836 = vmatprep.subr.mxu0 0.0
    %2837 = vmatpush1.msra.mxu0 0.0
    %2838 = vmatprep.subr.mxu0 0.0
    %2839 = vmatpush1.msra.mxu0 0.0
    %2840 = vmatprep.subr.mxu0 0.0
    %2841 = vmatpush1.msra.mxu0 %v1048
    %2842 = vmatprep.subr.mxu0 0.0
    %2843 = vmatpush1.msra.mxu0 %v1047
    %2844 = vmatprep.subr.mxu0 0.0
    %2845 = vmatpush1.msra.mxu0 %v1046
    %2846 = vmatprep.subr.mxu0 0.0
    %2847 = vmatpush1.msra.mxu0 %v1045
    %2848 = vmatprep.subr.mxu0 0.0
    %2849 = vmatpush2.msra.mxu0 0.0
    %2850 = vmatprep.subr.mxu0 0.0
    %2851 = vmatpush2.msra.mxu0 0.0
    %2852 = vmatprep.subr.mxu0 0.0
    %2853 = vmatpush2.msra.mxu0 0.0
    %2854 = vmatprep.subr.mxu0 0.0
    %2855 = vmatpush2.msra.mxu0 0.0
    %2856 = vmatprep.subr.mxu0 0.0
    %2857 = vmatpush2.msra.mxu0 0.0
    %2858 = vmatprep.subr.mxu0 0.0
    %2859 = vmatpush2.msra.mxu0 0.0
    %2860 = vmatprep.subr.mxu0 0.0
    %2861 = vmatpush2.msra.mxu0 0.0
    %2862 = vmatprep.subr.mxu0 0.0
    %2863 = vmatpush2.msra.mxu0 0.0
    %2864 = vmatprep.subr.mxu0 0.0
    %2865 = vmatpush2.msra.mxu0 0.0
    %2866 = vmatprep.subr.mxu0 0.0
    %2867 = vmatpush2.msra.mxu0 0.0
    %2868 = vmatprep.subr.mxu0 0.0
    %2869 = vmatpush2.msra.mxu0 0.0
    %2870 = vmatprep.subr.mxu0 0.0
    %2871 = vmatpush2.msra.mxu0 0.0
    %2872 = vmatprep.subr.mxu0 0.0
    %2873 = vmatpush2.msra.mxu0 0.0
    %2874 = vmatprep.subr.mxu0 0.0
    %2875 = vmatpush2.msra.mxu0 0.0
    %2876 = vmatprep.subr.mxu0 0.0
    %2877 = vmatpush2.msra.mxu0 0.0
    %2878 = vmatprep.subr.mxu0 0.0
    %2879 = vmatpush2.msra.mxu0 0.0
    %2880 = vmatprep.mubr.f32.mxu0 0.0
    %2881 = vmatmul.mubr.f32.gmra.mxu0 %v2814
    %v2882 = vpop.f32.mrf.mxu0
    %v2883 = vadd.f32 0.0, %v2882
    %v2884 = vpop.f32.mrf.mxu0
    %2885 = vdwg.mxu0
    %v2888 = vunpack.c.l.s4 1966171168
    %v2889 = vunpack.c.0.s8 %v2888
    %v2890 = vlaneseq
    %v2891 = vshrl.u32 %v2890, 7
    %v2892 = vsub.s32 %v2889, %v2891
    %v2893 = vrot.slane %v2883, %v2892
    %v2894 = vcombine.high %v2893, %v2893
    %v2896 = vunpack.c.l.s4 1966171168
    %v2897 = vunpack.c.0.s8 %v2896
    %v2898 = vlaneseq
    %v2899 = vshrl.u32 %v2898, 7
    %v2900 = vsub.s32 %v2897, %v2899
    %v2901 = vrot.slane %v2893, %v2900
    %v2903 = vunpack.c.l.s4 1966171168
    %v2904 = vunpack.c.0.s8 %v2903
    %v2905 = vlaneseq
    %v2906 = vshrl.u32 %v2905, 7
    %v2907 = vsub.s32 %v2904, %v2906
    %v2908 = vrot.slane %v2894, %v2907
    %v2909 = vlaneseq
    %v2910 = vshrl.u32 %v2909, 7
    %v2911 = vsub.s32 0, %v2910
    %v2912 = vrot.slane %v2901, %v2911
    %v2913 = vlaneseq
    %v2914 = vshrl.u32 %v2913, 7
    %v2915 = vsub.s32 0, %v2914
    %v2916 = vrot.slane %v2908, %v2915
    %v2919 = vadd.f32 %v427, %v2912
    %v2920 = vadd.f32 %v432, %v2916
    %v2921 = vtanh.pop %v2919
    %v2922 = vtanh.pop %v2920
    %v2923 = vmul.f32 %v2921, %v1166
    %v2924 = vmul.f32 %v2922, %v1166
    %v2925 = vsel %vm266, %v2923, 0.0
    %2926 = vadd.xlane.f32.xlu0 %v2925
    %v2927 = vpop.xlane.xlu0 %2926
    %v2928 = vsel %vm266, %v2924, 0.0
    %2929 = vadd.xlane.f32.xlu0 %v2928
    %v2930 = vpop.xlane.xlu0 %2929
    %v2933 = vlaneseq
    %v2934 = vshrl.u32 %v2933, 7
    %v2935 = vsub.s32 %v1179, %v2934
    %v2936 = vrot.slane %v2927, %v2935
    %v2937 = vlaneseq
    %v2938 = vshrl.u32 %v2937, 7
    %v2939 = vsub.s32 %v1179, %v2938
    %v2940 = vrot.slane %v2930, %v2939
    %v2941 = vsel %vm1188, %v2940, %v2936
    %v2943 = vsel %vm1191, %v2941, -inf
    %2944 = vmax.xlane.f32.xlu0 %v2943
    %v2945 = vpop.xlane.xlu0 %2944
    %v2947 = vlaneseq
    %v2948 = vshrl.u32 %v2947, 7
    %v2949 = vsub.s32 0, %v2948
    %v2950 = vrot.slane %v2945, %v2949
    %v2951 = vlaneseq
    %v2952 = vshrl.u32 %v2951, 7
    %v2953 = vsub.s32 1, %v2952
    %v2954 = vrot.slane %v2945, %v2953
    %v2957 = vsub.f32 %v2927, %v2950
    %v2958 = vsub.f32 %v2930, %v2954
    %v2959 = vmul.f32 %v2957, 1.442695
    %v2960 = vpow.pop %v2959
    %v2961 = vmul.f32 %v2958, 1.442695
    %v2962 = vpow.pop %v2961
    %2965 = vset.pattern.permute.xlu0 0
    %2966 = vperm.xlu0 %2965, %v2960
    %v2967 = vpop.permute.xlu0 %2966
    %2968 = vset.pattern.permute.xlu0 0
    %2969 = vperm.xlu0 %2968, %v2962
    %v2970 = vpop.permute.xlu0 %2969
    %v2971 = vlaneseq
    %v2972 = vshrl.u32 %v2971, 7
    %v2973 = vsub.s32 %v1179, %v2972
    %v2974 = vrot.slane %v2967, %v2973
    %v2975 = vlaneseq
    %v2976 = vshrl.u32 %v2975, 7
    %v2977 = vsub.s32 %v1179, %v2976
    %v2978 = vrot.slane %v2970, %v2977
    %v2979 = vsel %vm1188, %v2978, %v2974
    %v2981 = vsel %vm1191, %v2979, 0.0
    %2982 = vadd.xlane.f32.xlu0 %v2981
    %v2983 = vpop.xlane.xlu0 %2982
    %v2985 = vlaneseq
    %v2986 = vshrl.u32 %v2985, 7
    %v2987 = vsub.s32 0, %v2986
    %v2988 = vrot.slane %v2983, %v2987
    %v2989 = vlaneseq
    %v2990 = vshrl.u32 %v2989, 7
    %v2991 = vsub.s32 1, %v2990
    %v2992 = vrot.slane %v2983, %v2991
    %v2995 = vrcp.pop %v2988
    %v2996 = vmul.f32 %v2960, %v2995
    %v2997 = vrcp.pop %v2992
    %v2998 = vmul.f32 %v2962, %v2997
    %3000 = vset.pattern.permute.xlu0 0
    %3001 = vperm.xlu0 %3000, %v2996
    %v3002 = vpop.permute.xlu0 %3001
    %3005 = vset.pattern.permute.xlu0 0
    %3006 = vperm.xlu0 %3005, %v2998
    %v3007 = vpop.permute.xlu0 %3006
    %v3009 = vmul.f32 %v3002, %v348
    %v3010 = vmul.f32 %v3007, %v349
    %v3011 = vsel %vm266, %v3009, 0.0
    %v3012 = vrot.slane %v3011, 4
    %v3013 = vadd.f32 %v3011, %v3012
    %v3014 = vrot.slane %v3013, 2
    %v3015 = vadd.f32 %v3013, %v3014
    %v3016 = vrot.slane %v3015, 1
    %v3017 = vadd.f32 %v3015, %v3016
    %v3018 = vsel %vm266, %v3010, 0.0
    %v3019 = vrot.slane %v3018, 4
    %v3020 = vadd.f32 %v3018, %v3019
    %v3021 = vrot.slane %v3020, 2
    %v3022 = vadd.f32 %v3020, %v3021
    %v3023 = vrot.slane %v3022, 1
    %v3024 = vadd.f32 %v3022, %v3023
    %v3027 = vsel %vm1188, %v3024, %v3017
    %3029 = vrot.lane.b32.xlu0 %v2812, 32
    %v3030 = vpop.permute.xlu0 %3029
    %v3032 = vsel %vm266, %v3027, %v3030
    %s3033 = scalar_lea.vmem [#allocation2], 6
    %v3034 = vld [vmem:[%s3033] sm:$0x3]
    %v3036 = vsel %vm1283, %v3032, 0
    %3038 = vmatprep.subr.mxu0 0.0
    %3039 = vmatpush1.msra.mxu0 0.0
    %3040 = vmatprep.subr.mxu0 0.0
    %3041 = vmatpush1.msra.mxu0 0.0
    %3042 = vmatprep.subr.mxu0 0.0
    %3043 = vmatpush1.msra.mxu0 0.0
    %3044 = vmatprep.subr.mxu0 0.0
    %3045 = vmatpush1.msra.mxu0 0.0
    %3046 = vmatprep.subr.mxu0 0.0
    %3047 = vmatpush1.msra.mxu0 0.0
    %3048 = vmatprep.subr.mxu0 0.0
    %3049 = vmatpush1.msra.mxu0 0.0
    %3050 = vmatprep.subr.mxu0 0.0
    %3051 = vmatpush1.msra.mxu0 0.0
    %3052 = vmatprep.subr.mxu0 0.0
    %3053 = vmatpush1.msra.mxu0 0.0
    %3054 = vmatprep.subr.mxu0 0.0
    %3055 = vmatpush1.msra.mxu0 %v1044
    %3056 = vmatprep.subr.mxu0 0.0
    %3057 = vmatpush1.msra.mxu0 %v1043
    %3058 = vmatprep.subr.mxu0 0.0
    %3059 = vmatpush1.msra.mxu0 %v1042
    %3060 = vmatprep.subr.mxu0 0.0
    %3061 = vmatpush1.msra.mxu0 %v1041
    %3062 = vmatprep.subr.mxu0 0.0
    %3063 = vmatpush1.msra.mxu0 %v1040
    %3064 = vmatprep.subr.mxu0 0.0
    %3065 = vmatpush1.msra.mxu0 %v1039
    %3066 = vmatprep.subr.mxu0 0.0
    %3067 = vmatpush1.msra.mxu0 %v1038
    %3068 = vmatprep.subr.mxu0 0.0
    %3069 = vmatpush1.msra.mxu0 %v1037
    %3070 = vmatprep.subr.mxu0 0.0
    %3071 = vmatpush2.msra.mxu0 0.0
    %3072 = vmatprep.subr.mxu0 0.0
    %3073 = vmatpush2.msra.mxu0 0.0
    %3074 = vmatprep.subr.mxu0 0.0
    %3075 = vmatpush2.msra.mxu0 0.0
    %3076 = vmatprep.subr.mxu0 0.0
    %3077 = vmatpush2.msra.mxu0 0.0
    %3078 = vmatprep.subr.mxu0 0.0
    %3079 = vmatpush2.msra.mxu0 0.0
    %3080 = vmatprep.subr.mxu0 0.0
    %3081 = vmatpush2.msra.mxu0 0.0
    %3082 = vmatprep.subr.mxu0 0.0
    %3083 = vmatpush2.msra.mxu0 0.0
    %3084 = vmatprep.subr.mxu0 0.0
    %3085 = vmatpush2.msra.mxu0 0.0
    %3086 = vmatprep.subr.mxu0 0.0
    %3087 = vmatpush2.msra.mxu0 0.0
    %3088 = vmatprep.subr.mxu0 0.0
    %3089 = vmatpush2.msra.mxu0 0.0
    %3090 = vmatprep.subr.mxu0 0.0
    %3091 = vmatpush2.msra.mxu0 0.0
    %3092 = vmatprep.subr.mxu0 0.0
    %3093 = vmatpush2.msra.mxu0 0.0
    %3094 = vmatprep.subr.mxu0 0.0
    %3095 = vmatpush2.msra.mxu0 0.0
    %3096 = vmatprep.subr.mxu0 0.0
    %3097 = vmatpush2.msra.mxu0 0.0
    %3098 = vmatprep.subr.mxu0 0.0
    %3099 = vmatpush2.msra.mxu0 0.0
    %3100 = vmatprep.subr.mxu0 0.0
    %3101 = vmatpush2.msra.mxu0 0.0
    %3102 = vmatprep.mubr.f32.mxu0 0.0
    %3103 = vmatmul.mubr.f32.gmra.mxu0 %v3036
    %v3104 = vpop.f32.mrf.mxu0
    %v3105 = vadd.f32 0.0, %v3104
    %v3106 = vpop.f32.mrf.mxu0
    %3107 = vdwg.mxu0
    %v3108 = vadd.f32 %v3034, %v3105
    %v3109 = vxor.u32 %v3108, 2147483648
    %v3110 = vmul.f32 %v3109, 1.442695
    %v3111 = vpow.pop %v3110
    %v3112 = vadd.f32 %v3111, 1.0
    %v3113 = vrcp.pop %v3112
    %v3114 = vmul.f32 1.0, %v3113
    %s3115 = scalar_lea.vmem [#allocation3], 6
    %v3116 = vld [vmem:[%s3115] sm:$0x3]
    %3117 = vmatprep.subr.mxu0 0.0
    %3118 = vmatpush1.msra.mxu0 0.0
    %3119 = vmatprep.subr.mxu0 0.0
    %3120 = vmatpush1.msra.mxu0 0.0
    %3121 = vmatprep.subr.mxu0 0.0
    %3122 = vmatpush1.msra.mxu0 0.0
    %3123 = vmatprep.subr.mxu0 0.0
    %3124 = vmatpush1.msra.mxu0 0.0
    %3125 = vmatprep.subr.mxu0 0.0
    %3126 = vmatpush1.msra.mxu0 0.0
    %3127 = vmatprep.subr.mxu0 0.0
    %3128 = vmatpush1.msra.mxu0 0.0
    %3129 = vmatprep.subr.mxu0 0.0
    %3130 = vmatpush1.msra.mxu0 0.0
    %3131 = vmatprep.subr.mxu0 0.0
    %3132 = vmatpush1.msra.mxu0 0.0
    %3133 = vmatprep.subr.mxu0 0.0
    %3134 = vmatpush1.msra.mxu0 %v1388
    %3135 = vmatprep.subr.mxu0 0.0
    %3136 = vmatpush1.msra.mxu0 %v1386
    %3137 = vmatprep.subr.mxu0 0.0
    %3138 = vmatpush1.msra.mxu0 %v1384
    %3139 = vmatprep.subr.mxu0 0.0
    %3140 = vmatpush1.msra.mxu0 %v1382
    %3141 = vmatprep.subr.mxu0 0.0
    %3142 = vmatpush1.msra.mxu0 %v1380
    %3143 = vmatprep.subr.mxu0 0.0
    %3144 = vmatpush1.msra.mxu0 %v1378
    %3145 = vmatprep.subr.mxu0 0.0
    %3146 = vmatpush1.msra.mxu0 %v1376
    %3147 = vmatprep.subr.mxu0 0.0
    %3148 = vmatpush1.msra.mxu0 %v1374
    %3149 = vmatprep.subr.mxu0 0.0
    %3150 = vmatpush2.msra.mxu0 0.0
    %3151 = vmatprep.subr.mxu0 0.0
    %3152 = vmatpush2.msra.mxu0 0.0
    %3153 = vmatprep.subr.mxu0 0.0
    %3154 = vmatpush2.msra.mxu0 0.0
    %3155 = vmatprep.subr.mxu0 0.0
    %3156 = vmatpush2.msra.mxu0 0.0
    %3157 = vmatprep.subr.mxu0 0.0
    %3158 = vmatpush2.msra.mxu0 0.0
    %3159 = vmatprep.subr.mxu0 0.0
    %3160 = vmatpush2.msra.mxu0 0.0
    %3161 = vmatprep.subr.mxu0 0.0
    %3162 = vmatpush2.msra.mxu0 0.0
    %3163 = vmatprep.subr.mxu0 0.0
    %3164 = vmatpush2.msra.mxu0 0.0
    %3165 = vmatprep.subr.mxu0 0.0
    %3166 = vmatpush2.msra.mxu0 0.0
    %3167 = vmatprep.subr.mxu0 0.0
    %3168 = vmatpush2.msra.mxu0 0.0
    %3169 = vmatprep.subr.mxu0 0.0
    %3170 = vmatpush2.msra.mxu0 0.0
    %3171 = vmatprep.subr.mxu0 0.0
    %3172 = vmatpush2.msra.mxu0 0.0
    %3173 = vmatprep.subr.mxu0 0.0
    %3174 = vmatpush2.msra.mxu0 0.0
    %3175 = vmatprep.subr.mxu0 0.0
    %3176 = vmatpush2.msra.mxu0 0.0
    %3177 = vmatprep.subr.mxu0 0.0
    %3178 = vmatpush2.msra.mxu0 0.0
    %3179 = vmatprep.subr.mxu0 0.0
    %3180 = vmatpush2.msra.mxu0 0.0
    %3181 = vmatprep.mubr.f32.mxu0 0.0
    %3182 = vmatmul.mubr.f32.gmra.mxu0 %v3036
    %v3183 = vpop.f32.mrf.mxu0
    %v3184 = vadd.f32 0.0, %v3183
    %v3185 = vpop.f32.mrf.mxu0
    %3186 = vdwg.mxu0
    %v3187 = vadd.f32 %v3116, %v3184
    %v3188 = vxor.u32 %v3187, 2147483648
    %v3189 = vmul.f32 %v3188, 1.442695
    %v3190 = vpow.pop %v3189
    %v3191 = vadd.f32 %v3190, 1.0
    %v3192 = vrcp.pop %v3191
    %v3193 = vmul.f32 1.0, %v3192
    %s3194 = scalar_lea.vmem [#allocation4], 6
    %v3195 = vld [vmem:[%s3194] sm:$0x3]
    %3196 = vmatprep.subr.mxu0 0.0
    %3197 = vmatpush1.msra.mxu0 0.0
    %3198 = vmatprep.subr.mxu0 0.0
    %3199 = vmatpush1.msra.mxu0 0.0
    %3200 = vmatprep.subr.mxu0 0.0
    %3201 = vmatpush1.msra.mxu0 0.0
    %3202 = vmatprep.subr.mxu0 0.0
    %3203 = vmatpush1.msra.mxu0 0.0
    %3204 = vmatprep.subr.mxu0 0.0
    %3205 = vmatpush1.msra.mxu0 0.0
    %3206 = vmatprep.subr.mxu0 0.0
    %3207 = vmatpush1.msra.mxu0 0.0
    %3208 = vmatprep.subr.mxu0 0.0
    %3209 = vmatpush1.msra.mxu0 0.0
    %3210 = vmatprep.subr.mxu0 0.0
    %3211 = vmatpush1.msra.mxu0 0.0
    %3212 = vmatprep.subr.mxu0 0.0
    %3213 = vmatpush1.msra.mxu0 %v1490
    %3214 = vmatprep.subr.mxu0 0.0
    %3215 = vmatpush1.msra.mxu0 %v1488
    %3216 = vmatprep.subr.mxu0 0.0
    %3217 = vmatpush1.msra.mxu0 %v1486
    %3218 = vmatprep.subr.mxu0 0.0
    %3219 = vmatpush1.msra.mxu0 %v1484
    %3220 = vmatprep.subr.mxu0 0.0
    %3221 = vmatpush1.msra.mxu0 %v1482
    %3222 = vmatprep.subr.mxu0 0.0
    %3223 = vmatpush1.msra.mxu0 %v1480
    %3224 = vmatprep.subr.mxu0 0.0
    %3225 = vmatpush1.msra.mxu0 %v1478
    %3226 = vmatprep.subr.mxu0 0.0
    %3227 = vmatpush1.msra.mxu0 %v1476
    %3228 = vmatprep.subr.mxu0 0.0
    %3229 = vmatpush2.msra.mxu0 0.0
    %3230 = vmatprep.subr.mxu0 0.0
    %3231 = vmatpush2.msra.mxu0 0.0
    %3232 = vmatprep.subr.mxu0 0.0
    %3233 = vmatpush2.msra.mxu0 0.0
    %3234 = vmatprep.subr.mxu0 0.0
    %3235 = vmatpush2.msra.mxu0 0.0
    %3236 = vmatprep.subr.mxu0 0.0
    %3237 = vmatpush2.msra.mxu0 0.0
    %3238 = vmatprep.subr.mxu0 0.0
    %3239 = vmatpush2.msra.mxu0 0.0
    %3240 = vmatprep.subr.mxu0 0.0
    %3241 = vmatpush2.msra.mxu0 0.0
    %3242 = vmatprep.subr.mxu0 0.0
    %3243 = vmatpush2.msra.mxu0 0.0
    %3244 = vmatprep.subr.mxu0 0.0
    %3245 = vmatpush2.msra.mxu0 0.0
    %3246 = vmatprep.subr.mxu0 0.0
    %3247 = vmatpush2.msra.mxu0 0.0
    %3248 = vmatprep.subr.mxu0 0.0
    %3249 = vmatpush2.msra.mxu0 0.0
    %3250 = vmatprep.subr.mxu0 0.0
    %3251 = vmatpush2.msra.mxu0 0.0
    %3252 = vmatprep.subr.mxu0 0.0
    %3253 = vmatpush2.msra.mxu0 0.0
    %3254 = vmatprep.subr.mxu0 0.0
    %3255 = vmatpush2.msra.mxu0 0.0
    %3256 = vmatprep.subr.mxu0 0.0
    %3257 = vmatpush2.msra.mxu0 0.0
    %3258 = vmatprep.subr.mxu0 0.0
    %3259 = vmatpush2.msra.mxu0 0.0
    %3260 = vmatprep.mubr.f32.mxu0 0.0
    %3261 = vmatmul.mubr.f32.gmra.mxu0 %v3036
    %v3262 = vpop.f32.mrf.mxu0
    %v3263 = vadd.f32 0.0, %v3262
    %v3264 = vpop.f32.mrf.mxu0
    %3265 = vdwg.mxu0
    %v3266 = vadd.f32 %v3195, %v3263
    %v3267 = vtanh.pop %v3266
    %s3268 = scalar_lea.vmem [#allocation5], 6
    %v3269 = vld [vmem:[%s3268] sm:$0x3]
    %3270 = vmatprep.subr.mxu0 0.0
    %3271 = vmatpush1.msra.mxu0 0.0
    %3272 = vmatprep.subr.mxu0 0.0
    %3273 = vmatpush1.msra.mxu0 0.0
    %3274 = vmatprep.subr.mxu0 0.0
    %3275 = vmatpush1.msra.mxu0 0.0
    %3276 = vmatprep.subr.mxu0 0.0
    %3277 = vmatpush1.msra.mxu0 0.0
    %3278 = vmatprep.subr.mxu0 0.0
    %3279 = vmatpush1.msra.mxu0 0.0
    %3280 = vmatprep.subr.mxu0 0.0
    %3281 = vmatpush1.msra.mxu0 0.0
    %3282 = vmatprep.subr.mxu0 0.0
    %3283 = vmatpush1.msra.mxu0 0.0
    %3284 = vmatprep.subr.mxu0 0.0
    %3285 = vmatpush1.msra.mxu0 0.0
    %3286 = vmatprep.subr.mxu0 0.0
    %3287 = vmatpush1.msra.mxu0 %v1587
    %3288 = vmatprep.subr.mxu0 0.0
    %3289 = vmatpush1.msra.mxu0 %v1585
    %3290 = vmatprep.subr.mxu0 0.0
    %3291 = vmatpush1.msra.mxu0 %v1583
    %3292 = vmatprep.subr.mxu0 0.0
    %3293 = vmatpush1.msra.mxu0 %v1581
    %3294 = vmatprep.subr.mxu0 0.0
    %3295 = vmatpush1.msra.mxu0 %v1579
    %3296 = vmatprep.subr.mxu0 0.0
    %3297 = vmatpush1.msra.mxu0 %v1577
    %3298 = vmatprep.subr.mxu0 0.0
    %3299 = vmatpush1.msra.mxu0 %v1575
    %3300 = vmatprep.subr.mxu0 0.0
    %3301 = vmatpush1.msra.mxu0 %v1573
    %3302 = vmatprep.subr.mxu0 0.0
    %3303 = vmatpush2.msra.mxu0 0.0
    %3304 = vmatprep.subr.mxu0 0.0
    %3305 = vmatpush2.msra.mxu0 0.0
    %3306 = vmatprep.subr.mxu0 0.0
    %3307 = vmatpush2.msra.mxu0 0.0
    %3308 = vmatprep.subr.mxu0 0.0
    %3309 = vmatpush2.msra.mxu0 0.0
    %3310 = vmatprep.subr.mxu0 0.0
    %3311 = vmatpush2.msra.mxu0 0.0
    %3312 = vmatprep.subr.mxu0 0.0
    %3313 = vmatpush2.msra.mxu0 0.0
    %3314 = vmatprep.subr.mxu0 0.0
    %3315 = vmatpush2.msra.mxu0 0.0
    %3316 = vmatprep.subr.mxu0 0.0
    %3317 = vmatpush2.msra.mxu0 0.0
    %3318 = vmatprep.subr.mxu0 0.0
    %3319 = vmatpush2.msra.mxu0 0.0
    %3320 = vmatprep.subr.mxu0 0.0
    %3321 = vmatpush2.msra.mxu0 0.0
    %3322 = vmatprep.subr.mxu0 0.0
    %3323 = vmatpush2.msra.mxu0 0.0
    %3324 = vmatprep.subr.mxu0 0.0
    %3325 = vmatpush2.msra.mxu0 0.0
    %3326 = vmatprep.subr.mxu0 0.0
    %3327 = vmatpush2.msra.mxu0 0.0
    %3328 = vmatprep.subr.mxu0 0.0
    %3329 = vmatpush2.msra.mxu0 0.0
    %3330 = vmatprep.subr.mxu0 0.0
    %3331 = vmatpush2.msra.mxu0 0.0
    %3332 = vmatprep.subr.mxu0 0.0
    %3333 = vmatpush2.msra.mxu0 0.0
    %3334 = vmatprep.mubr.f32.mxu0 0.0
    %3335 = vmatmul.mubr.f32.gmra.mxu0 %v3036
    %v3336 = vpop.f32.mrf.mxu0
    %v3337 = vadd.f32 0.0, %v3336
    %v3338 = vpop.f32.mrf.mxu0
    %3339 = vdwg.mxu0
    %v3340 = vadd.f32 %v3269, %v3337
    %v3341 = vxor.u32 %v3340, 2147483648
    %v3342 = vmul.f32 %v3341, 1.442695
    %v3343 = vpow.pop %v3342
    %v3344 = vadd.f32 %v3343, 1.0
    %v3345 = vrcp.pop %v3344
    %v3346 = vmul.f32 1.0, %v3345
    %v3347 = vld [vmem:[#allocation10] sm:$0x3]
    %v3348 = vmul.f32 %v3193, %v3347
    %v3349 = vmul.f32 %v3114, %v3267
    %v3350 = vadd.f32 %v3348, %v3349
    %v3351 = vtanh.pop %v3350
    %v3352 = vmul.f32 %v3346, %v3351
    %3353 = vst.msk [vmem:[#allocation9] sm:$0x3] %vm876, %v3352
    %3354 = vst.msk [vmem:[#allocation10] sm:$0x3] %vm876, %v3350
    %s3355 = scalar_lea.vmem [#allocation6], 6
    %3356 = vst.msk [vmem:[%s3355] sm:$0x3] %vm876, %v3352
    %s3357 = scalar_lea.vmem [#allocation7], 6
    %3358 = vst.msk [vmem:[%s3357] sm:$0x3] %vm876, %v3027
    %v3359 = vlaneseq
    %v3360 = vshrl.u32 %v3359, 7
    %v3361 = vsub.s32 %v1179, %v3360
    %v3362 = vrot.slane %v3002, %v3361
    %v3363 = vlaneseq
    %v3364 = vshrl.u32 %v3363, 7
    %v3365 = vsub.s32 %v1179, %v3364
    %v3366 = vrot.slane %v3007, %v3365
    %v3367 = vsel %vm1188, %v3366, %v3362
    %s3369 = scalar_lea.vmem [#allocation8], 6
    %3370 = vst.msk [vmem:[%s3369] sm:$0x3] %vm1191, %v3367
    %v3371 = vld [vmem:[#allocation9] sm:$0x3]
    %v3373 = vsel %vm266, %v3371, 0
    %3375 = vmatprep.subr.mxu0 0.0
    %3376 = vmatpush1.msra.mxu0 0.0
    %3377 = vmatprep.subr.mxu0 0.0
    %3378 = vmatpush1.msra.mxu0 0.0
    %3379 = vmatprep.subr.mxu0 0.0
    %3380 = vmatpush1.msra.mxu0 0.0
    %3381 = vmatprep.subr.mxu0 0.0
    %3382 = vmatpush1.msra.mxu0 0.0
    %3383 = vmatprep.subr.mxu0 0.0
    %3384 = vmatpush1.msra.mxu0 0.0
    %3385 = vmatprep.subr.mxu0 0.0
    %3386 = vmatpush1.msra.mxu0 0.0
    %3387 = vmatprep.subr.mxu0 0.0
    %3388 = vmatpush1.msra.mxu0 0.0
    %3389 = vmatprep.subr.mxu0 0.0
    %3390 = vmatpush1.msra.mxu0 0.0
    %3391 = vmatprep.subr.mxu0 0.0
    %3392 = vmatpush1.msra.mxu0 0.0
    %3393 = vmatprep.subr.mxu0 0.0
    %3394 = vmatpush1.msra.mxu0 0.0
    %3395 = vmatprep.subr.mxu0 0.0
    %3396 = vmatpush1.msra.mxu0 0.0
    %3397 = vmatprep.subr.mxu0 0.0
    %3398 = vmatpush1.msra.mxu0 0.0
    %3399 = vmatprep.subr.mxu0 0.0
    %3400 = vmatpush1.msra.mxu0 %v1048
    %3401 = vmatprep.subr.mxu0 0.0
    %3402 = vmatpush1.msra.mxu0 %v1047
    %3403 = vmatprep.subr.mxu0 0.0
    %3404 = vmatpush1.msra.mxu0 %v1046
    %3405 = vmatprep.subr.mxu0 0.0
    %3406 = vmatpush1.msra.mxu0 %v1045
    %3407 = vmatprep.subr.mxu0 0.0
    %3408 = vmatpush2.msra.mxu0 0.0
    %3409 = vmatprep.subr.mxu0 0.0
    %3410 = vmatpush2.msra.mxu0 0.0
    %3411 = vmatprep.subr.mxu0 0.0
    %3412 = vmatpush2.msra.mxu0 0.0
    %3413 = vmatprep.subr.mxu0 0.0
    %3414 = vmatpush2.msra.mxu0 0.0
    %3415 = vmatprep.subr.mxu0 0.0
    %3416 = vmatpush2.msra.mxu0 0.0
    %3417 = vmatprep.subr.mxu0 0.0
    %3418 = vmatpush2.msra.mxu0 0.0
    %3419 = vmatprep.subr.mxu0 0.0
    %3420 = vmatpush2.msra.mxu0 0.0
    %3421 = vmatprep.subr.mxu0 0.0
    %3422 = vmatpush2.msra.mxu0 0.0
    %3423 = vmatprep.subr.mxu0 0.0
    %3424 = vmatpush2.msra.mxu0 0.0
    %3425 = vmatprep.subr.mxu0 0.0
    %3426 = vmatpush2.msra.mxu0 0.0
    %3427 = vmatprep.subr.mxu0 0.0
    %3428 = vmatpush2.msra.mxu0 0.0
    %3429 = vmatprep.subr.mxu0 0.0
    %3430 = vmatpush2.msra.mxu0 0.0
    %3431 = vmatprep.subr.mxu0 0.0
    %3432 = vmatpush2.msra.mxu0 0.0
    %3433 = vmatprep.subr.mxu0 0.0
    %3434 = vmatpush2.msra.mxu0 0.0
    %3435 = vmatprep.subr.mxu0 0.0
    %3436 = vmatpush2.msra.mxu0 0.0
    %3437 = vmatprep.subr.mxu0 0.0
    %3438 = vmatpush2.msra.mxu0 0.0
    %3439 = vmatprep.mubr.f32.mxu0 0.0
    %3440 = vmatmul.mubr.f32.gmra.mxu0 %v3373
    %v3441 = vpop.f32.mrf.mxu0
    %v3442 = vadd.f32 0.0, %v3441
    %v3443 = vpop.f32.mrf.mxu0
    %3444 = vdwg.mxu0
    %v3447 = vunpack.c.l.s4 1966171168
    %v3448 = vunpack.c.0.s8 %v3447
    %v3449 = vlaneseq
    %v3450 = vshrl.u32 %v3449, 7
    %v3451 = vsub.s32 %v3448, %v3450
    %v3452 = vrot.slane %v3442, %v3451
    %v3453 = vcombine.high %v3452, %v3452
    %v3455 = vunpack.c.l.s4 1966171168
    %v3456 = vunpack.c.0.s8 %v3455
    %v3457 = vlaneseq
    %v3458 = vshrl.u32 %v3457, 7
    %v3459 = vsub.s32 %v3456, %v3458
    %v3460 = vrot.slane %v3452, %v3459
    %v3462 = vunpack.c.l.s4 1966171168
    %v3463 = vunpack.c.0.s8 %v3462
    %v3464 = vlaneseq
    %v3465 = vshrl.u32 %v3464, 7
    %v3466 = vsub.s32 %v3463, %v3465
    %v3467 = vrot.slane %v3453, %v3466
    %v3468 = vlaneseq
    %v3469 = vshrl.u32 %v3468, 7
    %v3470 = vsub.s32 0, %v3469
    %v3471 = vrot.slane %v3460, %v3470
    %v3472 = vlaneseq
    %v3473 = vshrl.u32 %v3472, 7
    %v3474 = vsub.s32 0, %v3473
    %v3475 = vrot.slane %v3467, %v3474
    %v3478 = vadd.f32 %v427, %v3471
    %v3479 = vadd.f32 %v432, %v3475
    %v3480 = vtanh.pop %v3478
    %v3481 = vtanh.pop %v3479
    %v3482 = vmul.f32 %v3480, %v1166
    %v3483 = vmul.f32 %v3481, %v1166
    %v3484 = vsel %vm266, %v3482, 0.0
    %3485 = vadd.xlane.f32.xlu0 %v3484
    %v3486 = vpop.xlane.xlu0 %3485
    %v3487 = vsel %vm266, %v3483, 0.0
    %3488 = vadd.xlane.f32.xlu0 %v3487
    %v3489 = vpop.xlane.xlu0 %3488
    %v3492 = vlaneseq
    %v3493 = vshrl.u32 %v3492, 7
    %v3494 = vsub.s32 %v1179, %v3493
    %v3495 = vrot.slane %v3486, %v3494
    %v3496 = vlaneseq
    %v3497 = vshrl.u32 %v3496, 7
    %v3498 = vsub.s32 %v1179, %v3497
    %v3499 = vrot.slane %v3489, %v3498
    %v3500 = vsel %vm1188, %v3499, %v3495
    %v3502 = vsel %vm1191, %v3500, -inf
    %3503 = vmax.xlane.f32.xlu0 %v3502
    %v3504 = vpop.xlane.xlu0 %3503
    %v3506 = vlaneseq
    %v3507 = vshrl.u32 %v3506, 7
    %v3508 = vsub.s32 0, %v3507
    %v3509 = vrot.slane %v3504, %v3508
    %v3510 = vlaneseq
    %v3511 = vshrl.u32 %v3510, 7
    %v3512 = vsub.s32 1, %v3511
    %v3513 = vrot.slane %v3504, %v3512
    %v3516 = vsub.f32 %v3486, %v3509
    %v3517 = vsub.f32 %v3489, %v3513
    %v3518 = vmul.f32 %v3516, 1.442695
    %v3519 = vpow.pop %v3518
    %v3520 = vmul.f32 %v3517, 1.442695
    %v3521 = vpow.pop %v3520
    %3524 = vset.pattern.permute.xlu0 0
    %3525 = vperm.xlu0 %3524, %v3519
    %v3526 = vpop.permute.xlu0 %3525
    %3527 = vset.pattern.permute.xlu0 0
    %3528 = vperm.xlu0 %3527, %v3521
    %v3529 = vpop.permute.xlu0 %3528
    %v3530 = vlaneseq
    %v3531 = vshrl.u32 %v3530, 7
    %v3532 = vsub.s32 %v1179, %v3531
    %v3533 = vrot.slane %v3526, %v3532
    %v3534 = vlaneseq
    %v3535 = vshrl.u32 %v3534, 7
    %v3536 = vsub.s32 %v1179, %v3535
    %v3537 = vrot.slane %v3529, %v3536
    %v3538 = vsel %vm1188, %v3537, %v3533
    %v3540 = vsel %vm1191, %v3538, 0.0
    %3541 = vadd.xlane.f32.xlu0 %v3540
    %v3542 = vpop.xlane.xlu0 %3541
    %v3544 = vlaneseq
    %v3545 = vshrl.u32 %v3544, 7
    %v3546 = vsub.s32 0, %v3545
    %v3547 = vrot.slane %v3542, %v3546
    %v3548 = vlaneseq
    %v3549 = vshrl.u32 %v3548, 7
    %v3550 = vsub.s32 1, %v3549
    %v3551 = vrot.slane %v3542, %v3550
    %v3554 = vrcp.pop %v3547
    %v3555 = vmul.f32 %v3519, %v3554
    %v3556 = vrcp.pop %v3551
    %v3557 = vmul.f32 %v3521, %v3556
    %3559 = vset.pattern.permute.xlu0 0
    %3560 = vperm.xlu0 %3559, %v3555
    %v3561 = vpop.permute.xlu0 %3560
    %3564 = vset.pattern.permute.xlu0 0
    %3565 = vperm.xlu0 %3564, %v3557
    %v3566 = vpop.permute.xlu0 %3565
    %v3568 = vmul.f32 %v3561, %v348
    %v3569 = vmul.f32 %v3566, %v349
    %v3570 = vsel %vm266, %v3568, 0.0
    %v3571 = vrot.slane %v3570, 4
    %v3572 = vadd.f32 %v3570, %v3571
    %v3573 = vrot.slane %v3572, 2
    %v3574 = vadd.f32 %v3572, %v3573
    %v3575 = vrot.slane %v3574, 1
    %v3576 = vadd.f32 %v3574, %v3575
    %v3577 = vsel %vm266, %v3569, 0.0
    %v3578 = vrot.slane %v3577, 4
    %v3579 = vadd.f32 %v3577, %v3578
    %v3580 = vrot.slane %v3579, 2
    %v3581 = vadd.f32 %v3579, %v3580
    %v3582 = vrot.slane %v3581, 1
    %v3583 = vadd.f32 %v3581, %v3582
    %v3586 = vsel %vm1188, %v3583, %v3576
    %3588 = vrot.lane.b32.xlu0 %v3371, 32
    %v3589 = vpop.permute.xlu0 %3588
    %v3591 = vsel %vm266, %v3586, %v3589
    %s3592 = scalar_lea.vmem [#allocation2], 8
    %v3593 = vld [vmem:[%s3592] sm:$0x3]
    %v3595 = vsel %vm1283, %v3591, 0
    %3597 = vmatprep.subr.mxu0 0.0
    %3598 = vmatpush1.msra.mxu0 0.0
    %3599 = vmatprep.subr.mxu0 0.0
    %3600 = vmatpush1.msra.mxu0 0.0
    %3601 = vmatprep.subr.mxu0 0.0
    %3602 = vmatpush1.msra.mxu0 0.0
    %3603 = vmatprep.subr.mxu0 0.0
    %3604 = vmatpush1.msra.mxu0 0.0
    %3605 = vmatprep.subr.mxu0 0.0
    %3606 = vmatpush1.msra.mxu0 0.0
    %3607 = vmatprep.subr.mxu0 0.0
    %3608 = vmatpush1.msra.mxu0 0.0
    %3609 = vmatprep.subr.mxu0 0.0
    %3610 = vmatpush1.msra.mxu0 0.0
    %3611 = vmatprep.subr.mxu0 0.0
    %3612 = vmatpush1.msra.mxu0 0.0
    %3613 = vmatprep.subr.mxu0 0.0
    %3614 = vmatpush1.msra.mxu0 %v1044
    %3615 = vmatprep.subr.mxu0 0.0
    %3616 = vmatpush1.msra.mxu0 %v1043
    %3617 = vmatprep.subr.mxu0 0.0
    %3618 = vmatpush1.msra.mxu0 %v1042
    %3619 = vmatprep.subr.mxu0 0.0
    %3620 = vmatpush1.msra.mxu0 %v1041
    %3621 = vmatprep.subr.mxu0 0.0
    %3622 = vmatpush1.msra.mxu0 %v1040
    %3623 = vmatprep.subr.mxu0 0.0
    %3624 = vmatpush1.msra.mxu0 %v1039
    %3625 = vmatprep.subr.mxu0 0.0
    %3626 = vmatpush1.msra.mxu0 %v1038
    %3627 = vmatprep.subr.mxu0 0.0
    %3628 = vmatpush1.msra.mxu0 %v1037
    %3629 = vmatprep.subr.mxu0 0.0
    %3630 = vmatpush2.msra.mxu0 0.0
    %3631 = vmatprep.subr.mxu0 0.0
    %3632 = vmatpush2.msra.mxu0 0.0
    %3633 = vmatprep.subr.mxu0 0.0
    %3634 = vmatpush2.msra.mxu0 0.0
    %3635 = vmatprep.subr.mxu0 0.0
    %3636 = vmatpush2.msra.mxu0 0.0
    %3637 = vmatprep.subr.mxu0 0.0
    %3638 = vmatpush2.msra.mxu0 0.0
    %3639 = vmatprep.subr.mxu0 0.0
    %3640 = vmatpush2.msra.mxu0 0.0
    %3641 = vmatprep.subr.mxu0 0.0
    %3642 = vmatpush2.msra.mxu0 0.0
    %3643 = vmatprep.subr.mxu0 0.0
    %3644 = vmatpush2.msra.mxu0 0.0
    %3645 = vmatprep.subr.mxu0 0.0
    %3646 = vmatpush2.msra.mxu0 0.0
    %3647 = vmatprep.subr.mxu0 0.0
    %3648 = vmatpush2.msra.mxu0 0.0
    %3649 = vmatprep.subr.mxu0 0.0
    %3650 = vmatpush2.msra.mxu0 0.0
    %3651 = vmatprep.subr.mxu0 0.0
    %3652 = vmatpush2.msra.mxu0 0.0
    %3653 = vmatprep.subr.mxu0 0.0
    %3654 = vmatpush2.msra.mxu0 0.0
    %3655 = vmatprep.subr.mxu0 0.0
    %3656 = vmatpush2.msra.mxu0 0.0
    %3657 = vmatprep.subr.mxu0 0.0
    %3658 = vmatpush2.msra.mxu0 0.0
    %3659 = vmatprep.subr.mxu0 0.0
    %3660 = vmatpush2.msra.mxu0 0.0
    %3661 = vmatprep.mubr.f32.mxu0 0.0
    %3662 = vmatmul.mubr.f32.gmra.mxu0 %v3595
    %v3663 = vpop.f32.mrf.mxu0
    %v3664 = vadd.f32 0.0, %v3663
    %v3665 = vpop.f32.mrf.mxu0
    %3666 = vdwg.mxu0
    %v3667 = vadd.f32 %v3593, %v3664
    %v3668 = vxor.u32 %v3667, 2147483648
    %v3669 = vmul.f32 %v3668, 1.442695
    %v3670 = vpow.pop %v3669
    %v3671 = vadd.f32 %v3670, 1.0
    %v3672 = vrcp.pop %v3671
    %v3673 = vmul.f32 1.0, %v3672
    %s3674 = scalar_lea.vmem [#allocation3], 8
    %v3675 = vld [vmem:[%s3674] sm:$0x3]
    %3676 = vmatprep.subr.mxu0 0.0
    %3677 = vmatpush1.msra.mxu0 0.0
    %3678 = vmatprep.subr.mxu0 0.0
    %3679 = vmatpush1.msra.mxu0 0.0
    %3680 = vmatprep.subr.mxu0 0.0
    %3681 = vmatpush1.msra.mxu0 0.0
    %3682 = vmatprep.subr.mxu0 0.0
    %3683 = vmatpush1.msra.mxu0 0.0
    %3684 = vmatprep.subr.mxu0 0.0
    %3685 = vmatpush1.msra.mxu0 0.0
    %3686 = vmatprep.subr.mxu0 0.0
    %3687 = vmatpush1.msra.mxu0 0.0
    %3688 = vmatprep.subr.mxu0 0.0
    %3689 = vmatpush1.msra.mxu0 0.0
    %3690 = vmatprep.subr.mxu0 0.0
    %3691 = vmatpush1.msra.mxu0 0.0
    %3692 = vmatprep.subr.mxu0 0.0
    %3693 = vmatpush1.msra.mxu0 %v1388
    %3694 = vmatprep.subr.mxu0 0.0
    %3695 = vmatpush1.msra.mxu0 %v1386
    %3696 = vmatprep.subr.mxu0 0.0
    %3697 = vmatpush1.msra.mxu0 %v1384
    %3698 = vmatprep.subr.mxu0 0.0
    %3699 = vmatpush1.msra.mxu0 %v1382
    %3700 = vmatprep.subr.mxu0 0.0
    %3701 = vmatpush1.msra.mxu0 %v1380
    %3702 = vmatprep.subr.mxu0 0.0
    %3703 = vmatpush1.msra.mxu0 %v1378
    %3704 = vmatprep.subr.mxu0 0.0
    %3705 = vmatpush1.msra.mxu0 %v1376
    %3706 = vmatprep.subr.mxu0 0.0
    %3707 = vmatpush1.msra.mxu0 %v1374
    %3708 = vmatprep.subr.mxu0 0.0
    %3709 = vmatpush2.msra.mxu0 0.0
    %3710 = vmatprep.subr.mxu0 0.0
    %3711 = vmatpush2.msra.mxu0 0.0
    %3712 = vmatprep.subr.mxu0 0.0
    %3713 = vmatpush2.msra.mxu0 0.0
    %3714 = vmatprep.subr.mxu0 0.0
    %3715 = vmatpush2.msra.mxu0 0.0
    %3716 = vmatprep.subr.mxu0 0.0
    %3717 = vmatpush2.msra.mxu0 0.0
    %3718 = vmatprep.subr.mxu0 0.0
    %3719 = vmatpush2.msra.mxu0 0.0
    %3720 = vmatprep.subr.mxu0 0.0
    %3721 = vmatpush2.msra.mxu0 0.0
    %3722 = vmatprep.subr.mxu0 0.0
    %3723 = vmatpush2.msra.mxu0 0.0
    %3724 = vmatprep.subr.mxu0 0.0
    %3725 = vmatpush2.msra.mxu0 0.0
    %3726 = vmatprep.subr.mxu0 0.0
    %3727 = vmatpush2.msra.mxu0 0.0
    %3728 = vmatprep.subr.mxu0 0.0
    %3729 = vmatpush2.msra.mxu0 0.0
    %3730 = vmatprep.subr.mxu0 0.0
    %3731 = vmatpush2.msra.mxu0 0.0
    %3732 = vmatprep.subr.mxu0 0.0
    %3733 = vmatpush2.msra.mxu0 0.0
    %3734 = vmatprep.subr.mxu0 0.0
    %3735 = vmatpush2.msra.mxu0 0.0
    %3736 = vmatprep.subr.mxu0 0.0
    %3737 = vmatpush2.msra.mxu0 0.0
    %3738 = vmatprep.subr.mxu0 0.0
    %3739 = vmatpush2.msra.mxu0 0.0
    %3740 = vmatprep.mubr.f32.mxu0 0.0
    %3741 = vmatmul.mubr.f32.gmra.mxu0 %v3595
    %v3742 = vpop.f32.mrf.mxu0
    %v3743 = vadd.f32 0.0, %v3742
    %v3744 = vpop.f32.mrf.mxu0
    %3745 = vdwg.mxu0
    %v3746 = vadd.f32 %v3675, %v3743
    %v3747 = vxor.u32 %v3746, 2147483648
    %v3748 = vmul.f32 %v3747, 1.442695
    %v3749 = vpow.pop %v3748
    %v3750 = vadd.f32 %v3749, 1.0
    %v3751 = vrcp.pop %v3750
    %v3752 = vmul.f32 1.0, %v3751
    %s3753 = scalar_lea.vmem [#allocation4], 8
    %v3754 = vld [vmem:[%s3753] sm:$0x3]
    %3755 = vmatprep.subr.mxu0 0.0
    %3756 = vmatpush1.msra.mxu0 0.0
    %3757 = vmatprep.subr.mxu0 0.0
    %3758 = vmatpush1.msra.mxu0 0.0
    %3759 = vmatprep.subr.mxu0 0.0
    %3760 = vmatpush1.msra.mxu0 0.0
    %3761 = vmatprep.subr.mxu0 0.0
    %3762 = vmatpush1.msra.mxu0 0.0
    %3763 = vmatprep.subr.mxu0 0.0
    %3764 = vmatpush1.msra.mxu0 0.0
    %3765 = vmatprep.subr.mxu0 0.0
    %3766 = vmatpush1.msra.mxu0 0.0
    %3767 = vmatprep.subr.mxu0 0.0
    %3768 = vmatpush1.msra.mxu0 0.0
    %3769 = vmatprep.subr.mxu0 0.0
    %3770 = vmatpush1.msra.mxu0 0.0
    %3771 = vmatprep.subr.mxu0 0.0
    %3772 = vmatpush1.msra.mxu0 %v1490
    %3773 = vmatprep.subr.mxu0 0.0
    %3774 = vmatpush1.msra.mxu0 %v1488
    %3775 = vmatprep.subr.mxu0 0.0
    %3776 = vmatpush1.msra.mxu0 %v1486
    %3777 = vmatprep.subr.mxu0 0.0
    %3778 = vmatpush1.msra.mxu0 %v1484
    %3779 = vmatprep.subr.mxu0 0.0
    %3780 = vmatpush1.msra.mxu0 %v1482
    %3781 = vmatprep.subr.mxu0 0.0
    %3782 = vmatpush1.msra.mxu0 %v1480
    %3783 = vmatprep.subr.mxu0 0.0
    %3784 = vmatpush1.msra.mxu0 %v1478
    %3785 = vmatprep.subr.mxu0 0.0
    %3786 = vmatpush1.msra.mxu0 %v1476
    %3787 = vmatprep.subr.mxu0 0.0
    %3788 = vmatpush2.msra.mxu0 0.0
    %3789 = vmatprep.subr.mxu0 0.0
    %3790 = vmatpush2.msra.mxu0 0.0
    %3791 = vmatprep.subr.mxu0 0.0
    %3792 = vmatpush2.msra.mxu0 0.0
    %3793 = vmatprep.subr.mxu0 0.0
    %3794 = vmatpush2.msra.mxu0 0.0
    %3795 = vmatprep.subr.mxu0 0.0
    %3796 = vmatpush2.msra.mxu0 0.0
    %3797 = vmatprep.subr.mxu0 0.0
    %3798 = vmatpush2.msra.mxu0 0.0
    %3799 = vmatprep.subr.mxu0 0.0
    %3800 = vmatpush2.msra.mxu0 0.0
    %3801 = vmatprep.subr.mxu0 0.0
    %3802 = vmatpush2.msra.mxu0 0.0
    %3803 = vmatprep.subr.mxu0 0.0
    %3804 = vmatpush2.msra.mxu0 0.0
    %3805 = vmatprep.subr.mxu0 0.0
    %3806 = vmatpush2.msra.mxu0 0.0
    %3807 = vmatprep.subr.mxu0 0.0
    %3808 = vmatpush2.msra.mxu0 0.0
    %3809 = vmatprep.subr.mxu0 0.0
    %3810 = vmatpush2.msra.mxu0 0.0
    %3811 = vmatprep.subr.mxu0 0.0
    %3812 = vmatpush2.msra.mxu0 0.0
    %3813 = vmatprep.subr.mxu0 0.0
    %3814 = vmatpush2.msra.mxu0 0.0
    %3815 = vmatprep.subr.mxu0 0.0
    %3816 = vmatpush2.msra.mxu0 0.0
    %3817 = vmatprep.subr.mxu0 0.0
    %3818 = vmatpush2.msra.mxu0 0.0
    %3819 = vmatprep.mubr.f32.mxu0 0.0
    %3820 = vmatmul.mubr.f32.gmra.mxu0 %v3595
    %v3821 = vpop.f32.mrf.mxu0
    %v3822 = vadd.f32 0.0, %v3821
    %v3823 = vpop.f32.mrf.mxu0
    %3824 = vdwg.mxu0
    %v3825 = vadd.f32 %v3754, %v3822
    %v3826 = vtanh.pop %v3825
    %s3827 = scalar_lea.vmem [#allocation5], 8
    %v3828 = vld [vmem:[%s3827] sm:$0x3]
    %3829 = vmatprep.subr.mxu0 0.0
    %3830 = vmatpush1.msra.mxu0 0.0
    %3831 = vmatprep.subr.mxu0 0.0
    %3832 = vmatpush1.msra.mxu0 0.0
    %3833 = vmatprep.subr.mxu0 0.0
    %3834 = vmatpush1.msra.mxu0 0.0
    %3835 = vmatprep.subr.mxu0 0.0
    %3836 = vmatpush1.msra.mxu0 0.0
    %3837 = vmatprep.subr.mxu0 0.0
    %3838 = vmatpush1.msra.mxu0 0.0
    %3839 = vmatprep.subr.mxu0 0.0
    %3840 = vmatpush1.msra.mxu0 0.0
    %3841 = vmatprep.subr.mxu0 0.0
    %3842 = vmatpush1.msra.mxu0 0.0
    %3843 = vmatprep.subr.mxu0 0.0
    %3844 = vmatpush1.msra.mxu0 0.0
    %3845 = vmatprep.subr.mxu0 0.0
    %3846 = vmatpush1.msra.mxu0 %v1587
    %3847 = vmatprep.subr.mxu0 0.0
    %3848 = vmatpush1.msra.mxu0 %v1585
    %3849 = vmatprep.subr.mxu0 0.0
    %3850 = vmatpush1.msra.mxu0 %v1583
    %3851 = vmatprep.subr.mxu0 0.0
    %3852 = vmatpush1.msra.mxu0 %v1581
    %3853 = vmatprep.subr.mxu0 0.0
    %3854 = vmatpush1.msra.mxu0 %v1579
    %3855 = vmatprep.subr.mxu0 0.0
    %3856 = vmatpush1.msra.mxu0 %v1577
    %3857 = vmatprep.subr.mxu0 0.0
    %3858 = vmatpush1.msra.mxu0 %v1575
    %3859 = vmatprep.subr.mxu0 0.0
    %3860 = vmatpush1.msra.mxu0 %v1573
    %3861 = vmatprep.subr.mxu0 0.0
    %3862 = vmatpush2.msra.mxu0 0.0
    %3863 = vmatprep.subr.mxu0 0.0
    %3864 = vmatpush2.msra.mxu0 0.0
    %3865 = vmatprep.subr.mxu0 0.0
    %3866 = vmatpush2.msra.mxu0 0.0
    %3867 = vmatprep.subr.mxu0 0.0
    %3868 = vmatpush2.msra.mxu0 0.0
    %3869 = vmatprep.subr.mxu0 0.0
    %3870 = vmatpush2.msra.mxu0 0.0
    %3871 = vmatprep.subr.mxu0 0.0
    %3872 = vmatpush2.msra.mxu0 0.0
    %3873 = vmatprep.subr.mxu0 0.0
    %3874 = vmatpush2.msra.mxu0 0.0
    %3875 = vmatprep.subr.mxu0 0.0
    %3876 = vmatpush2.msra.mxu0 0.0
    %3877 = vmatprep.subr.mxu0 0.0
    %3878 = vmatpush2.msra.mxu0 0.0
    %3879 = vmatprep.subr.mxu0 0.0
    %3880 = vmatpush2.msra.mxu0 0.0
    %3881 = vmatprep.subr.mxu0 0.0
    %3882 = vmatpush2.msra.mxu0 0.0
    %3883 = vmatprep.subr.mxu0 0.0
    %3884 = vmatpush2.msra.mxu0 0.0
    %3885 = vmatprep.subr.mxu0 0.0
    %3886 = vmatpush2.msra.mxu0 0.0
    %3887 = vmatprep.subr.mxu0 0.0
    %3888 = vmatpush2.msra.mxu0 0.0
    %3889 = vmatprep.subr.mxu0 0.0
    %3890 = vmatpush2.msra.mxu0 0.0
    %3891 = vmatprep.subr.mxu0 0.0
    %3892 = vmatpush2.msra.mxu0 0.0
    %3893 = vmatprep.mubr.f32.mxu0 0.0
    %3894 = vmatmul.mubr.f32.gmra.mxu0 %v3595
    %v3895 = vpop.f32.mrf.mxu0
    %v3896 = vadd.f32 0.0, %v3895
    %v3897 = vpop.f32.mrf.mxu0
    %3898 = vdwg.mxu0
    %v3899 = vadd.f32 %v3828, %v3896
    %v3900 = vxor.u32 %v3899, 2147483648
    %v3901 = vmul.f32 %v3900, 1.442695
    %v3902 = vpow.pop %v3901
    %v3903 = vadd.f32 %v3902, 1.0
    %v3904 = vrcp.pop %v3903
    %v3905 = vmul.f32 1.0, %v3904
    %v3906 = vld [vmem:[#allocation10] sm:$0x3]
    %v3907 = vmul.f32 %v3752, %v3906
    %v3908 = vmul.f32 %v3673, %v3826
    %v3909 = vadd.f32 %v3907, %v3908
    %v3910 = vtanh.pop %v3909
    %v3911 = vmul.f32 %v3905, %v3910
    %3912 = vst.msk [vmem:[#allocation9] sm:$0x3] %vm876, %v3911
    %3913 = vst.msk [vmem:[#allocation10] sm:$0x3] %vm876, %v3909
    %s3914 = scalar_lea.vmem [#allocation6], 8
    %3915 = vst.msk [vmem:[%s3914] sm:$0x3] %vm876, %v3911
    %s3916 = scalar_lea.vmem [#allocation7], 8
    %3917 = vst.msk [vmem:[%s3916] sm:$0x3] %vm876, %v3586
    %v3918 = vlaneseq
    %v3919 = vshrl.u32 %v3918, 7
    %v3920 = vsub.s32 %v1179, %v3919
    %v3921 = vrot.slane %v3561, %v3920
    %v3922 = vlaneseq
    %v3923 = vshrl.u32 %v3922, 7
    %v3924 = vsub.s32 %v1179, %v3923
    %v3925 = vrot.slane %v3566, %v3924
    %v3926 = vsel %vm1188, %v3925, %v3921
    %s3928 = scalar_lea.vmem [#allocation8], 8
    %3929 = vst.msk [vmem:[%s3928] sm:$0x3] %vm1191, %v3926
    %v3930 = vld [vmem:[#allocation9] sm:$0x3]
    %v3932 = vsel %vm266, %v3930, 0
    %3934 = vmatprep.subr.mxu0 0.0
    %3935 = vmatpush1.msra.mxu0 0.0
    %3936 = vmatprep.subr.mxu0 0.0
    %3937 = vmatpush1.msra.mxu0 0.0
    %3938 = vmatprep.subr.mxu0 0.0
    %3939 = vmatpush1.msra.mxu0 0.0
    %3940 = vmatprep.subr.mxu0 0.0
    %3941 = vmatpush1.msra.mxu0 0.0
    %3942 = vmatprep.subr.mxu0 0.0
    %3943 = vmatpush1.msra.mxu0 0.0
    %3944 = vmatprep.subr.mxu0 0.0
    %3945 = vmatpush1.msra.mxu0 0.0
    %3946 = vmatprep.subr.mxu0 0.0
    %3947 = vmatpush1.msra.mxu0 0.0
    %3948 = vmatprep.subr.mxu0 0.0
    %3949 = vmatpush1.msra.mxu0 0.0
    %3950 = vmatprep.subr.mxu0 0.0
    %3951 = vmatpush1.msra.mxu0 0.0
    %3952 = vmatprep.subr.mxu0 0.0
    %3953 = vmatpush1.msra.mxu0 0.0
    %3954 = vmatprep.subr.mxu0 0.0
    %3955 = vmatpush1.msra.mxu0 0.0
    %3956 = vmatprep.subr.mxu0 0.0
    %3957 = vmatpush1.msra.mxu0 0.0
    %3958 = vmatprep.subr.mxu0 0.0
    %3959 = vmatpush1.msra.mxu0 %v1048
    %3960 = vmatprep.subr.mxu0 0.0
    %3961 = vmatpush1.msra.mxu0 %v1047
    %3962 = vmatprep.subr.mxu0 0.0
    %3963 = vmatpush1.msra.mxu0 %v1046
    %3964 = vmatprep.subr.mxu0 0.0
    %3965 = vmatpush1.msra.mxu0 %v1045
    %3966 = vmatprep.subr.mxu0 0.0
    %3967 = vmatpush2.msra.mxu0 0.0
    %3968 = vmatprep.subr.mxu0 0.0
    %3969 = vmatpush2.msra.mxu0 0.0
    %3970 = vmatprep.subr.mxu0 0.0
    %3971 = vmatpush2.msra.mxu0 0.0
    %3972 = vmatprep.subr.mxu0 0.0
    %3973 = vmatpush2.msra.mxu0 0.0
    %3974 = vmatprep.subr.mxu0 0.0
    %3975 = vmatpush2.msra.mxu0 0.0
    %3976 = vmatprep.subr.mxu0 0.0
    %3977 = vmatpush2.msra.mxu0 0.0
    %3978 = vmatprep.subr.mxu0 0.0
    %3979 = vmatpush2.msra.mxu0 0.0
    %3980 = vmatprep.subr.mxu0 0.0
    %3981 = vmatpush2.msra.mxu0 0.0
    %3982 = vmatprep.subr.mxu0 0.0
    %3983 = vmatpush2.msra.mxu0 0.0
    %3984 = vmatprep.subr.mxu0 0.0
    %3985 = vmatpush2.msra.mxu0 0.0
    %3986 = vmatprep.subr.mxu0 0.0
    %3987 = vmatpush2.msra.mxu0 0.0
    %3988 = vmatprep.subr.mxu0 0.0
    %3989 = vmatpush2.msra.mxu0 0.0
    %3990 = vmatprep.subr.mxu0 0.0
    %3991 = vmatpush2.msra.mxu0 0.0
    %3992 = vmatprep.subr.mxu0 0.0
    %3993 = vmatpush2.msra.mxu0 0.0
    %3994 = vmatprep.subr.mxu0 0.0
    %3995 = vmatpush2.msra.mxu0 0.0
    %3996 = vmatprep.subr.mxu0 0.0
    %3997 = vmatpush2.msra.mxu0 0.0
    %3998 = vmatprep.mubr.f32.mxu0 0.0
    %3999 = vmatmul.mubr.f32.gmra.mxu0 %v3932
    %v4000 = vpop.f32.mrf.mxu0
    %v4001 = vadd.f32 0.0, %v4000
    %v4002 = vpop.f32.mrf.mxu0
    %4003 = vdwg.mxu0
    %v4006 = vunpack.c.l.s4 1966171168
    %v4007 = vunpack.c.0.s8 %v4006
    %v4008 = vlaneseq
    %v4009 = vshrl.u32 %v4008, 7
    %v4010 = vsub.s32 %v4007, %v4009
    %v4011 = vrot.slane %v4001, %v4010
    %v4012 = vcombine.high %v4011, %v4011
    %v4014 = vunpack.c.l.s4 1966171168
    %v4015 = vunpack.c.0.s8 %v4014
    %v4016 = vlaneseq
    %v4017 = vshrl.u32 %v4016, 7
    %v4018 = vsub.s32 %v4015, %v4017
    %v4019 = vrot.slane %v4011, %v4018
    %v4021 = vunpack.c.l.s4 1966171168
    %v4022 = vunpack.c.0.s8 %v4021
    %v4023 = vlaneseq
    %v4024 = vshrl.u32 %v4023, 7
    %v4025 = vsub.s32 %v4022, %v4024
    %v4026 = vrot.slane %v4012, %v4025
    %v4027 = vlaneseq
    %v4028 = vshrl.u32 %v4027, 7
    %v4029 = vsub.s32 0, %v4028
    %v4030 = vrot.slane %v4019, %v4029
    %v4031 = vlaneseq
    %v4032 = vshrl.u32 %v4031, 7
    %v4033 = vsub.s32 0, %v4032
    %v4034 = vrot.slane %v4026, %v4033
    %v4037 = vadd.f32 %v427, %v4030
    %v4038 = vadd.f32 %v432, %v4034
    %v4039 = vtanh.pop %v4037
    %v4040 = vtanh.pop %v4038
    %v4041 = vmul.f32 %v4039, %v1166
    %v4042 = vmul.f32 %v4040, %v1166
    %v4043 = vsel %vm266, %v4041, 0.0
    %4044 = vadd.xlane.f32.xlu0 %v4043
    %v4045 = vpop.xlane.xlu0 %4044
    %v4046 = vsel %vm266, %v4042, 0.0
    %4047 = vadd.xlane.f32.xlu0 %v4046
    %v4048 = vpop.xlane.xlu0 %4047
    %v4051 = vlaneseq
    %v4052 = vshrl.u32 %v4051, 7
    %v4053 = vsub.s32 %v1179, %v4052
    %v4054 = vrot.slane %v4045, %v4053
    %v4055 = vlaneseq
    %v4056 = vshrl.u32 %v4055, 7
    %v4057 = vsub.s32 %v1179, %v4056
    %v4058 = vrot.slane %v4048, %v4057
    %v4059 = vsel %vm1188, %v4058, %v4054
    %v4061 = vsel %vm1191, %v4059, -inf
    %4062 = vmax.xlane.f32.xlu0 %v4061
    %v4063 = vpop.xlane.xlu0 %4062
    %v4065 = vlaneseq
    %v4066 = vshrl.u32 %v4065, 7
    %v4067 = vsub.s32 0, %v4066
    %v4068 = vrot.slane %v4063, %v4067
    %v4069 = vlaneseq
    %v4070 = vshrl.u32 %v4069, 7
    %v4071 = vsub.s32 1, %v4070
    %v4072 = vrot.slane %v4063, %v4071
    %v4075 = vsub.f32 %v4045, %v4068
    %v4076 = vsub.f32 %v4048, %v4072
    %v4077 = vmul.f32 %v4075, 1.442695
    %v4078 = vpow.pop %v4077
    %v4079 = vmul.f32 %v4076, 1.442695
    %v4080 = vpow.pop %v4079
    %4083 = vset.pattern.permute.xlu0 0
    %4084 = vperm.xlu0 %4083, %v4078
    %v4085 = vpop.permute.xlu0 %4084
    %4086 = vset.pattern.permute.xlu0 0
    %4087 = vperm.xlu0 %4086, %v4080
    %v4088 = vpop.permute.xlu0 %4087
    %v4089 = vlaneseq
    %v4090 = vshrl.u32 %v4089, 7
    %v4091 = vsub.s32 %v1179, %v4090
    %v4092 = vrot.slane %v4085, %v4091
    %v4093 = vlaneseq
    %v4094 = vshrl.u32 %v4093, 7
    %v4095 = vsub.s32 %v1179, %v4094
    %v4096 = vrot.slane %v4088, %v4095
    %v4097 = vsel %vm1188, %v4096, %v4092
    %v4099 = vsel %vm1191, %v4097, 0.0
    %4100 = vadd.xlane.f32.xlu0 %v4099
    %v4101 = vpop.xlane.xlu0 %4100
    %v4103 = vlaneseq
    %v4104 = vshrl.u32 %v4103, 7
    %v4105 = vsub.s32 0, %v4104
    %v4106 = vrot.slane %v4101, %v4105
    %v4107 = vlaneseq
    %v4108 = vshrl.u32 %v4107, 7
    %v4109 = vsub.s32 1, %v4108
    %v4110 = vrot.slane %v4101, %v4109
    %v4113 = vrcp.pop %v4106
    %v4114 = vmul.f32 %v4078, %v4113
    %v4115 = vrcp.pop %v4110
    %v4116 = vmul.f32 %v4080, %v4115
    %4118 = vset.pattern.permute.xlu0 0
    %4119 = vperm.xlu0 %4118, %v4114
    %v4120 = vpop.permute.xlu0 %4119
    %4123 = vset.pattern.permute.xlu0 0
    %4124 = vperm.xlu0 %4123, %v4116
    %v4125 = vpop.permute.xlu0 %4124
    %v4127 = vmul.f32 %v4120, %v348
    %v4128 = vmul.f32 %v4125, %v349
    %v4129 = vsel %vm266, %v4127, 0.0
    %v4130 = vrot.slane %v4129, 4
    %v4131 = vadd.f32 %v4129, %v4130
    %v4132 = vrot.slane %v4131, 2
    %v4133 = vadd.f32 %v4131, %v4132
    %v4134 = vrot.slane %v4133, 1
    %v4135 = vadd.f32 %v4133, %v4134
    %v4136 = vsel %vm266, %v4128, 0.0
    %v4137 = vrot.slane %v4136, 4
    %v4138 = vadd.f32 %v4136, %v4137
    %v4139 = vrot.slane %v4138, 2
    %v4140 = vadd.f32 %v4138, %v4139
    %v4141 = vrot.slane %v4140, 1
    %v4142 = vadd.f32 %v4140, %v4141
    %v4145 = vsel %vm1188, %v4142, %v4135
    %4147 = vrot.lane.b32.xlu0 %v3930, 32
    %v4148 = vpop.permute.xlu0 %4147
    %v4150 = vsel %vm266, %v4145, %v4148
    %s4151 = scalar_lea.vmem [#allocation2], 10
    %v4152 = vld [vmem:[%s4151] sm:$0x3]
    %v4154 = vsel %vm1283, %v4150, 0
    %4156 = vmatprep.subr.mxu0 0.0
    %4157 = vmatpush1.msra.mxu0 0.0
    %4158 = vmatprep.subr.mxu0 0.0
    %4159 = vmatpush1.msra.mxu0 0.0
    %4160 = vmatprep.subr.mxu0 0.0
    %4161 = vmatpush1.msra.mxu0 0.0
    %4162 = vmatprep.subr.mxu0 0.0
    %4163 = vmatpush1.msra.mxu0 0.0
    %4164 = vmatprep.subr.mxu0 0.0
    %4165 = vmatpush1.msra.mxu0 0.0
    %4166 = vmatprep.subr.mxu0 0.0
    %4167 = vmatpush1.msra.mxu0 0.0
    %4168 = vmatprep.subr.mxu0 0.0
    %4169 = vmatpush1.msra.mxu0 0.0
    %4170 = vmatprep.subr.mxu0 0.0
    %4171 = vmatpush1.msra.mxu0 0.0
    %4172 = vmatprep.subr.mxu0 0.0
    %4173 = vmatpush1.msra.mxu0 %v1044
    %4174 = vmatprep.subr.mxu0 0.0
    %4175 = vmatpush1.msra.mxu0 %v1043
    %4176 = vmatprep.subr.mxu0 0.0
    %4177 = vmatpush1.msra.mxu0 %v1042
    %4178 = vmatprep.subr.mxu0 0.0
    %4179 = vmatpush1.msra.mxu0 %v1041
    %4180 = vmatprep.subr.mxu0 0.0
    %4181 = vmatpush1.msra.mxu0 %v1040
    %4182 = vmatprep.subr.mxu0 0.0
    %4183 = vmatpush1.msra.mxu0 %v1039
    %4184 = vmatprep.subr.mxu0 0.0
    %4185 = vmatpush1.msra.mxu0 %v1038
    %4186 = vmatprep.subr.mxu0 0.0
    %4187 = vmatpush1.msra.mxu0 %v1037
    %4188 = vmatprep.subr.mxu0 0.0
    %4189 = vmatpush2.msra.mxu0 0.0
    %4190 = vmatprep.subr.mxu0 0.0
    %4191 = vmatpush2.msra.mxu0 0.0
    %4192 = vmatprep.subr.mxu0 0.0
    %4193 = vmatpush2.msra.mxu0 0.0
    %4194 = vmatprep.subr.mxu0 0.0
    %4195 = vmatpush2.msra.mxu0 0.0
    %4196 = vmatprep.subr.mxu0 0.0
    %4197 = vmatpush2.msra.mxu0 0.0
    %4198 = vmatprep.subr.mxu0 0.0
    %4199 = vmatpush2.msra.mxu0 0.0
    %4200 = vmatprep.subr.mxu0 0.0
    %4201 = vmatpush2.msra.mxu0 0.0
    %4202 = vmatprep.subr.mxu0 0.0
    %4203 = vmatpush2.msra.mxu0 0.0
    %4204 = vmatprep.subr.mxu0 0.0
    %4205 = vmatpush2.msra.mxu0 0.0
    %4206 = vmatprep.subr.mxu0 0.0
    %4207 = vmatpush2.msra.mxu0 0.0
    %4208 = vmatprep.subr.mxu0 0.0
    %4209 = vmatpush2.msra.mxu0 0.0
    %4210 = vmatprep.subr.mxu0 0.0
    %4211 = vmatpush2.msra.mxu0 0.0
    %4212 = vmatprep.subr.mxu0 0.0
    %4213 = vmatpush2.msra.mxu0 0.0
    %4214 = vmatprep.subr.mxu0 0.0
    %4215 = vmatpush2.msra.mxu0 0.0
    %4216 = vmatprep.subr.mxu0 0.0
    %4217 = vmatpush2.msra.mxu0 0.0
    %4218 = vmatprep.subr.mxu0 0.0
    %4219 = vmatpush2.msra.mxu0 0.0
    %4220 = vmatprep.mubr.f32.mxu0 0.0
    %4221 = vmatmul.mubr.f32.gmra.mxu0 %v4154
    %v4222 = vpop.f32.mrf.mxu0
    %v4223 = vadd.f32 0.0, %v4222
    %v4224 = vpop.f32.mrf.mxu0
    %4225 = vdwg.mxu0
    %v4226 = vadd.f32 %v4152, %v4223
    %v4227 = vxor.u32 %v4226, 2147483648
    %v4228 = vmul.f32 %v4227, 1.442695
    %v4229 = vpow.pop %v4228
    %v4230 = vadd.f32 %v4229, 1.0
    %v4231 = vrcp.pop %v4230
    %v4232 = vmul.f32 1.0, %v4231
    %s4233 = scalar_lea.vmem [#allocation3], 10
    %v4234 = vld [vmem:[%s4233] sm:$0x3]
    %4235 = vmatprep.subr.mxu0 0.0
    %4236 = vmatpush1.msra.mxu0 0.0
    %4237 = vmatprep.subr.mxu0 0.0
    %4238 = vmatpush1.msra.mxu0 0.0
    %4239 = vmatprep.subr.mxu0 0.0
    %4240 = vmatpush1.msra.mxu0 0.0
    %4241 = vmatprep.subr.mxu0 0.0
    %4242 = vmatpush1.msra.mxu0 0.0
    %4243 = vmatprep.subr.mxu0 0.0
    %4244 = vmatpush1.msra.mxu0 0.0
    %4245 = vmatprep.subr.mxu0 0.0
    %4246 = vmatpush1.msra.mxu0 0.0
    %4247 = vmatprep.subr.mxu0 0.0
    %4248 = vmatpush1.msra.mxu0 0.0
    %4249 = vmatprep.subr.mxu0 0.0
    %4250 = vmatpush1.msra.mxu0 0.0
    %4251 = vmatprep.subr.mxu0 0.0
    %4252 = vmatpush1.msra.mxu0 %v1388
    %4253 = vmatprep.subr.mxu0 0.0
    %4254 = vmatpush1.msra.mxu0 %v1386
    %4255 = vmatprep.subr.mxu0 0.0
    %4256 = vmatpush1.msra.mxu0 %v1384
    %4257 = vmatprep.subr.mxu0 0.0
    %4258 = vmatpush1.msra.mxu0 %v1382
    %4259 = vmatprep.subr.mxu0 0.0
    %4260 = vmatpush1.msra.mxu0 %v1380
    %4261 = vmatprep.subr.mxu0 0.0
    %4262 = vmatpush1.msra.mxu0 %v1378
    %4263 = vmatprep.subr.mxu0 0.0
    %4264 = vmatpush1.msra.mxu0 %v1376
    %4265 = vmatprep.subr.mxu0 0.0
    %4266 = vmatpush1.msra.mxu0 %v1374
    %4267 = vmatprep.subr.mxu0 0.0
    %4268 = vmatpush2.msra.mxu0 0.0
    %4269 = vmatprep.subr.mxu0 0.0
    %4270 = vmatpush2.msra.mxu0 0.0
    %4271 = vmatprep.subr.mxu0 0.0
    %4272 = vmatpush2.msra.mxu0 0.0
    %4273 = vmatprep.subr.mxu0 0.0
    %4274 = vmatpush2.msra.mxu0 0.0
    %4275 = vmatprep.subr.mxu0 0.0
    %4276 = vmatpush2.msra.mxu0 0.0
    %4277 = vmatprep.subr.mxu0 0.0
    %4278 = vmatpush2.msra.mxu0 0.0
    %4279 = vmatprep.subr.mxu0 0.0
    %4280 = vmatpush2.msra.mxu0 0.0
    %4281 = vmatprep.subr.mxu0 0.0
    %4282 = vmatpush2.msra.mxu0 0.0
    %4283 = vmatprep.subr.mxu0 0.0
    %4284 = vmatpush2.msra.mxu0 0.0
    %4285 = vmatprep.subr.mxu0 0.0
    %4286 = vmatpush2.msra.mxu0 0.0
    %4287 = vmatprep.subr.mxu0 0.0
    %4288 = vmatpush2.msra.mxu0 0.0
    %4289 = vmatprep.subr.mxu0 0.0
    %4290 = vmatpush2.msra.mxu0 0.0
    %4291 = vmatprep.subr.mxu0 0.0
    %4292 = vmatpush2.msra.mxu0 0.0
    %4293 = vmatprep.subr.mxu0 0.0
    %4294 = vmatpush2.msra.mxu0 0.0
    %4295 = vmatprep.subr.mxu0 0.0
    %4296 = vmatpush2.msra.mxu0 0.0
    %4297 = vmatprep.subr.mxu0 0.0
    %4298 = vmatpush2.msra.mxu0 0.0
    %4299 = vmatprep.mubr.f32.mxu0 0.0
    %4300 = vmatmul.mubr.f32.gmra.mxu0 %v4154
    %v4301 = vpop.f32.mrf.mxu0
    %v4302 = vadd.f32 0.0, %v4301
    %v4303 = vpop.f32.mrf.mxu0
    %4304 = vdwg.mxu0
    %v4305 = vadd.f32 %v4234, %v4302
    %v4306 = vxor.u32 %v4305, 2147483648
    %v4307 = vmul.f32 %v4306, 1.442695
    %v4308 = vpow.pop %v4307
    %v4309 = vadd.f32 %v4308, 1.0
    %v4310 = vrcp.pop %v4309
    %v4311 = vmul.f32 1.0, %v4310
    %s4312 = scalar_lea.vmem [#allocation4], 10
    %v4313 = vld [vmem:[%s4312] sm:$0x3]
    %4314 = vmatprep.subr.mxu0 0.0
    %4315 = vmatpush1.msra.mxu0 0.0
    %4316 = vmatprep.subr.mxu0 0.0
    %4317 = vmatpush1.msra.mxu0 0.0
    %4318 = vmatprep.subr.mxu0 0.0
    %4319 = vmatpush1.msra.mxu0 0.0
    %4320 = vmatprep.subr.mxu0 0.0
    %4321 = vmatpush1.msra.mxu0 0.0
    %4322 = vmatprep.subr.mxu0 0.0
    %4323 = vmatpush1.msra.mxu0 0.0
    %4324 = vmatprep.subr.mxu0 0.0
    %4325 = vmatpush1.msra.mxu0 0.0
    %4326 = vmatprep.subr.mxu0 0.0
    %4327 = vmatpush1.msra.mxu0 0.0
    %4328 = vmatprep.subr.mxu0 0.0
    %4329 = vmatpush1.msra.mxu0 0.0
    %4330 = vmatprep.subr.mxu0 0.0
    %4331 = vmatpush1.msra.mxu0 %v1490
    %4332 = vmatprep.subr.mxu0 0.0
    %4333 = vmatpush1.msra.mxu0 %v1488
    %4334 = vmatprep.subr.mxu0 0.0
    %4335 = vmatpush1.msra.mxu0 %v1486
    %4336 = vmatprep.subr.mxu0 0.0
    %4337 = vmatpush1.msra.mxu0 %v1484
    %4338 = vmatprep.subr.mxu0 0.0
    %4339 = vmatpush1.msra.mxu0 %v1482
    %4340 = vmatprep.subr.mxu0 0.0
    %4341 = vmatpush1.msra.mxu0 %v1480
    %4342 = vmatprep.subr.mxu0 0.0
    %4343 = vmatpush1.msra.mxu0 %v1478
    %4344 = vmatprep.subr.mxu0 0.0
    %4345 = vmatpush1.msra.mxu0 %v1476
    %4346 = vmatprep.subr.mxu0 0.0
    %4347 = vmatpush2.msra.mxu0 0.0
    %4348 = vmatprep.subr.mxu0 0.0
    %4349 = vmatpush2.msra.mxu0 0.0
    %4350 = vmatprep.subr.mxu0 0.0
    %4351 = vmatpush2.msra.mxu0 0.0
    %4352 = vmatprep.subr.mxu0 0.0
    %4353 = vmatpush2.msra.mxu0 0.0
    %4354 = vmatprep.subr.mxu0 0.0
    %4355 = vmatpush2.msra.mxu0 0.0
    %4356 = vmatprep.subr.mxu0 0.0
    %4357 = vmatpush2.msra.mxu0 0.0
    %4358 = vmatprep.subr.mxu0 0.0
    %4359 = vmatpush2.msra.mxu0 0.0
    %4360 = vmatprep.subr.mxu0 0.0
    %4361 = vmatpush2.msra.mxu0 0.0
    %4362 = vmatprep.subr.mxu0 0.0
    %4363 = vmatpush2.msra.mxu0 0.0
    %4364 = vmatprep.subr.mxu0 0.0
    %4365 = vmatpush2.msra.mxu0 0.0
    %4366 = vmatprep.subr.mxu0 0.0
    %4367 = vmatpush2.msra.mxu0 0.0
    %4368 = vmatprep.subr.mxu0 0.0
    %4369 = vmatpush2.msra.mxu0 0.0
    %4370 = vmatprep.subr.mxu0 0.0
    %4371 = vmatpush2.msra.mxu0 0.0
    %4372 = vmatprep.subr.mxu0 0.0
    %4373 = vmatpush2.msra.mxu0 0.0
    %4374 = vmatprep.subr.mxu0 0.0
    %4375 = vmatpush2.msra.mxu0 0.0
    %4376 = vmatprep.subr.mxu0 0.0
    %4377 = vmatpush2.msra.mxu0 0.0
    %4378 = vmatprep.mubr.f32.mxu0 0.0
    %4379 = vmatmul.mubr.f32.gmra.mxu0 %v4154
    %v4380 = vpop.f32.mrf.mxu0
    %v4381 = vadd.f32 0.0, %v4380
    %v4382 = vpop.f32.mrf.mxu0
    %4383 = vdwg.mxu0
    %v4384 = vadd.f32 %v4313, %v4381
    %v4385 = vtanh.pop %v4384
    %s4386 = scalar_lea.vmem [#allocation5], 10
    %v4387 = vld [vmem:[%s4386] sm:$0x3]
    %4388 = vmatprep.subr.mxu0 0.0
    %4389 = vmatpush1.msra.mxu0 0.0
    %4390 = vmatprep.subr.mxu0 0.0
    %4391 = vmatpush1.msra.mxu0 0.0
    %4392 = vmatprep.subr.mxu0 0.0
    %4393 = vmatpush1.msra.mxu0 0.0
    %4394 = vmatprep.subr.mxu0 0.0
    %4395 = vmatpush1.msra.mxu0 0.0
    %4396 = vmatprep.subr.mxu0 0.0
    %4397 = vmatpush1.msra.mxu0 0.0
    %4398 = vmatprep.subr.mxu0 0.0
    %4399 = vmatpush1.msra.mxu0 0.0
    %4400 = vmatprep.subr.mxu0 0.0
    %4401 = vmatpush1.msra.mxu0 0.0
    %4402 = vmatprep.subr.mxu0 0.0
    %4403 = vmatpush1.msra.mxu0 0.0
    %4404 = vmatprep.subr.mxu0 0.0
    %4405 = vmatpush1.msra.mxu0 %v1587
    %4406 = vmatprep.subr.mxu0 0.0
    %4407 = vmatpush1.msra.mxu0 %v1585
    %4408 = vmatprep.subr.mxu0 0.0
    %4409 = vmatpush1.msra.mxu0 %v1583
    %4410 = vmatprep.subr.mxu0 0.0
    %4411 = vmatpush1.msra.mxu0 %v1581
    %4412 = vmatprep.subr.mxu0 0.0
    %4413 = vmatpush1.msra.mxu0 %v1579
    %4414 = vmatprep.subr.mxu0 0.0
    %4415 = vmatpush1.msra.mxu0 %v1577
    %4416 = vmatprep.subr.mxu0 0.0
    %4417 = vmatpush1.msra.mxu0 %v1575
    %4418 = vmatprep.subr.mxu0 0.0
    %4419 = vmatpush1.msra.mxu0 %v1573
    %4420 = vmatprep.subr.mxu0 0.0
    %4421 = vmatpush2.msra.mxu0 0.0
    %4422 = vmatprep.subr.mxu0 0.0
    %4423 = vmatpush2.msra.mxu0 0.0
    %4424 = vmatprep.subr.mxu0 0.0
    %4425 = vmatpush2.msra.mxu0 0.0
    %4426 = vmatprep.subr.mxu0 0.0
    %4427 = vmatpush2.msra.mxu0 0.0
    %4428 = vmatprep.subr.mxu0 0.0
    %4429 = vmatpush2.msra.mxu0 0.0
    %4430 = vmatprep.subr.mxu0 0.0
    %4431 = vmatpush2.msra.mxu0 0.0
    %4432 = vmatprep.subr.mxu0 0.0
    %4433 = vmatpush2.msra.mxu0 0.0
    %4434 = vmatprep.subr.mxu0 0.0
    %4435 = vmatpush2.msra.mxu0 0.0
    %4436 = vmatprep.subr.mxu0 0.0
    %4437 = vmatpush2.msra.mxu0 0.0
    %4438 = vmatprep.subr.mxu0 0.0
    %4439 = vmatpush2.msra.mxu0 0.0
    %4440 = vmatprep.subr.mxu0 0.0
    %4441 = vmatpush2.msra.mxu0 0.0
    %4442 = vmatprep.subr.mxu0 0.0
    %4443 = vmatpush2.msra.mxu0 0.0
    %4444 = vmatprep.subr.mxu0 0.0
    %4445 = vmatpush2.msra.mxu0 0.0
    %4446 = vmatprep.subr.mxu0 0.0
    %4447 = vmatpush2.msra.mxu0 0.0
    %4448 = vmatprep.subr.mxu0 0.0
    %4449 = vmatpush2.msra.mxu0 0.0
    %4450 = vmatprep.subr.mxu0 0.0
    %4451 = vmatpush2.msra.mxu0 0.0
    %4452 = vmatprep.mubr.f32.mxu0 0.0
    %4453 = vmatmul.mubr.f32.gmra.mxu0 %v4154
    %v4454 = vpop.f32.mrf.mxu0
    %v4455 = vadd.f32 0.0, %v4454
    %v4456 = vpop.f32.mrf.mxu0
    %4457 = vdwg.mxu0
    %v4458 = vadd.f32 %v4387, %v4455
    %v4459 = vxor.u32 %v4458, 2147483648
    %v4460 = vmul.f32 %v4459, 1.442695
    %v4461 = vpow.pop %v4460
    %v4462 = vadd.f32 %v4461, 1.0
    %v4463 = vrcp.pop %v4462
    %v4464 = vmul.f32 1.0, %v4463
    %v4465 = vld [vmem:[#allocation10] sm:$0x3]
    %v4466 = vmul.f32 %v4311, %v4465
    %v4467 = vmul.f32 %v4232, %v4385
    %v4468 = vadd.f32 %v4466, %v4467
    %v4469 = vtanh.pop %v4468
    %v4470 = vmul.f32 %v4464, %v4469
    %4471 = vst.msk [vmem:[#allocation9] sm:$0x3] %vm876, %v4470
    %4472 = vst.msk [vmem:[#allocation10] sm:$0x3] %vm876, %v4468
    %s4473 = scalar_lea.vmem [#allocation6], 10
    %4474 = vst.msk [vmem:[%s4473] sm:$0x3] %vm876, %v4470
    %s4475 = scalar_lea.vmem [#allocation7], 10
    %4476 = vst.msk [vmem:[%s4475] sm:$0x3] %vm876, %v4145
    %v4477 = vlaneseq
    %v4478 = vshrl.u32 %v4477, 7
    %v4479 = vsub.s32 %v1179, %v4478
    %v4480 = vrot.slane %v4120, %v4479
    %v4481 = vlaneseq
    %v4482 = vshrl.u32 %v4481, 7
    %v4483 = vsub.s32 %v1179, %v4482
    %v4484 = vrot.slane %v4125, %v4483
    %v4485 = vsel %vm1188, %v4484, %v4480
    %s4487 = scalar_lea.vmem [#allocation8], 10
    %4488 = vst.msk [vmem:[%s4487] sm:$0x3] %vm1191, %v4485
    %v4489 = vld [vmem:[#allocation9] sm:$0x3]
    %v4491 = vsel %vm266, %v4489, 0
    %4493 = vmatprep.subr.mxu0 0.0
    %4494 = vmatpush1.msra.mxu0 0.0
    %4495 = vmatprep.subr.mxu0 0.0
    %4496 = vmatpush1.msra.mxu0 0.0
    %4497 = vmatprep.subr.mxu0 0.0
    %4498 = vmatpush1.msra.mxu0 0.0
    %4499 = vmatprep.subr.mxu0 0.0
    %4500 = vmatpush1.msra.mxu0 0.0
    %4501 = vmatprep.subr.mxu0 0.0
    %4502 = vmatpush1.msra.mxu0 0.0
    %4503 = vmatprep.subr.mxu0 0.0
    %4504 = vmatpush1.msra.mxu0 0.0
    %4505 = vmatprep.subr.mxu0 0.0
    %4506 = vmatpush1.msra.mxu0 0.0
    %4507 = vmatprep.subr.mxu0 0.0
    %4508 = vmatpush1.msra.mxu0 0.0
    %4509 = vmatprep.subr.mxu0 0.0
    %4510 = vmatpush1.msra.mxu0 0.0
    %4511 = vmatprep.subr.mxu0 0.0
    %4512 = vmatpush1.msra.mxu0 0.0
    %4513 = vmatprep.subr.mxu0 0.0
    %4514 = vmatpush1.msra.mxu0 0.0
    %4515 = vmatprep.subr.mxu0 0.0
    %4516 = vmatpush1.msra.mxu0 0.0
    %4517 = vmatprep.subr.mxu0 0.0
    %4518 = vmatpush1.msra.mxu0 %v1048
    %4519 = vmatprep.subr.mxu0 0.0
    %4520 = vmatpush1.msra.mxu0 %v1047
    %4521 = vmatprep.subr.mxu0 0.0
    %4522 = vmatpush1.msra.mxu0 %v1046
    %4523 = vmatprep.subr.mxu0 0.0
    %4524 = vmatpush1.msra.mxu0 %v1045
    %4525 = vmatprep.subr.mxu0 0.0
    %4526 = vmatpush2.msra.mxu0 0.0
    %4527 = vmatprep.subr.mxu0 0.0
    %4528 = vmatpush2.msra.mxu0 0.0
    %4529 = vmatprep.subr.mxu0 0.0
    %4530 = vmatpush2.msra.mxu0 0.0
    %4531 = vmatprep.subr.mxu0 0.0
    %4532 = vmatpush2.msra.mxu0 0.0
    %4533 = vmatprep.subr.mxu0 0.0
    %4534 = vmatpush2.msra.mxu0 0.0
    %4535 = vmatprep.subr.mxu0 0.0
    %4536 = vmatpush2.msra.mxu0 0.0
    %4537 = vmatprep.subr.mxu0 0.0
    %4538 = vmatpush2.msra.mxu0 0.0
    %4539 = vmatprep.subr.mxu0 0.0
    %4540 = vmatpush2.msra.mxu0 0.0
    %4541 = vmatprep.subr.mxu0 0.0
    %4542 = vmatpush2.msra.mxu0 0.0
    %4543 = vmatprep.subr.mxu0 0.0
    %4544 = vmatpush2.msra.mxu0 0.0
    %4545 = vmatprep.subr.mxu0 0.0
    %4546 = vmatpush2.msra.mxu0 0.0
    %4547 = vmatprep.subr.mxu0 0.0
    %4548 = vmatpush2.msra.mxu0 0.0
    %4549 = vmatprep.subr.mxu0 0.0
    %4550 = vmatpush2.msra.mxu0 0.0
    %4551 = vmatprep.subr.mxu0 0.0
    %4552 = vmatpush2.msra.mxu0 0.0
    %4553 = vmatprep.subr.mxu0 0.0
    %4554 = vmatpush2.msra.mxu0 0.0
    %4555 = vmatprep.subr.mxu0 0.0
    %4556 = vmatpush2.msra.mxu0 0.0
    %4557 = vmatprep.mubr.f32.mxu0 0.0
    %4558 = vmatmul.mubr.f32.gmra.mxu0 %v4491
    %v4559 = vpop.f32.mrf.mxu0
    %v4560 = vadd.f32 0.0, %v4559
    %v4561 = vpop.f32.mrf.mxu0
    %4562 = vdwg.mxu0
    %v4565 = vunpack.c.l.s4 1966171168
    %v4566 = vunpack.c.0.s8 %v4565
    %v4567 = vlaneseq
    %v4568 = vshrl.u32 %v4567, 7
    %v4569 = vsub.s32 %v4566, %v4568
    %v4570 = vrot.slane %v4560, %v4569
    %v4571 = vcombine.high %v4570, %v4570
    %v4573 = vunpack.c.l.s4 1966171168
    %v4574 = vunpack.c.0.s8 %v4573
    %v4575 = vlaneseq
    %v4576 = vshrl.u32 %v4575, 7
    %v4577 = vsub.s32 %v4574, %v4576
    %v4578 = vrot.slane %v4570, %v4577
    %v4580 = vunpack.c.l.s4 1966171168
    %v4581 = vunpack.c.0.s8 %v4580
    %v4582 = vlaneseq
    %v4583 = vshrl.u32 %v4582, 7
    %v4584 = vsub.s32 %v4581, %v4583
    %v4585 = vrot.slane %v4571, %v4584
    %v4586 = vlaneseq
    %v4587 = vshrl.u32 %v4586, 7
    %v4588 = vsub.s32 0, %v4587
    %v4589 = vrot.slane %v4578, %v4588
    %v4590 = vlaneseq
    %v4591 = vshrl.u32 %v4590, 7
    %v4592 = vsub.s32 0, %v4591
    %v4593 = vrot.slane %v4585, %v4592
    %v4596 = vadd.f32 %v427, %v4589
    %v4597 = vadd.f32 %v432, %v4593
    %v4598 = vtanh.pop %v4596
    %v4599 = vtanh.pop %v4597
    %v4600 = vmul.f32 %v4598, %v1166
    %v4601 = vmul.f32 %v4599, %v1166
    %v4602 = vsel %vm266, %v4600, 0.0
    %4603 = vadd.xlane.f32.xlu0 %v4602
    %v4604 = vpop.xlane.xlu0 %4603
    %v4605 = vsel %vm266, %v4601, 0.0
    %4606 = vadd.xlane.f32.xlu0 %v4605
    %v4607 = vpop.xlane.xlu0 %4606
    %v4610 = vlaneseq
    %v4611 = vshrl.u32 %v4610, 7
    %v4612 = vsub.s32 %v1179, %v4611
    %v4613 = vrot.slane %v4604, %v4612
    %v4614 = vlaneseq
    %v4615 = vshrl.u32 %v4614, 7
    %v4616 = vsub.s32 %v1179, %v4615
    %v4617 = vrot.slane %v4607, %v4616
    %v4618 = vsel %vm1188, %v4617, %v4613
    %v4620 = vsel %vm1191, %v4618, -inf
    %4621 = vmax.xlane.f32.xlu0 %v4620
    %v4622 = vpop.xlane.xlu0 %4621
    %v4624 = vlaneseq
    %v4625 = vshrl.u32 %v4624, 7
    %v4626 = vsub.s32 0, %v4625
    %v4627 = vrot.slane %v4622, %v4626
    %v4628 = vlaneseq
    %v4629 = vshrl.u32 %v4628, 7
    %v4630 = vsub.s32 1, %v4629
    %v4631 = vrot.slane %v4622, %v4630
    %v4634 = vsub.f32 %v4604, %v4627
    %v4635 = vsub.f32 %v4607, %v4631
    %v4636 = vmul.f32 %v4634, 1.442695
    %v4637 = vpow.pop %v4636
    %v4638 = vmul.f32 %v4635, 1.442695
    %v4639 = vpow.pop %v4638
    %4642 = vset.pattern.permute.xlu0 0
    %4643 = vperm.xlu0 %4642, %v4637
    %v4644 = vpop.permute.xlu0 %4643
    %4645 = vset.pattern.permute.xlu0 0
    %4646 = vperm.xlu0 %4645, %v4639
    %v4647 = vpop.permute.xlu0 %4646
    %v4648 = vlaneseq
    %v4649 = vshrl.u32 %v4648, 7
    %v4650 = vsub.s32 %v1179, %v4649
    %v4651 = vrot.slane %v4644, %v4650
    %v4652 = vlaneseq
    %v4653 = vshrl.u32 %v4652, 7
    %v4654 = vsub.s32 %v1179, %v4653
    %v4655 = vrot.slane %v4647, %v4654
    %v4656 = vsel %vm1188, %v4655, %v4651
    %v4658 = vsel %vm1191, %v4656, 0.0
    %4659 = vadd.xlane.f32.xlu0 %v4658
    %v4660 = vpop.xlane.xlu0 %4659
    %v4662 = vlaneseq
    %v4663 = vshrl.u32 %v4662, 7
    %v4664 = vsub.s32 0, %v4663
    %v4665 = vrot.slane %v4660, %v4664
    %v4666 = vlaneseq
    %v4667 = vshrl.u32 %v4666, 7
    %v4668 = vsub.s32 1, %v4667
    %v4669 = vrot.slane %v4660, %v4668
    %v4672 = vrcp.pop %v4665
    %v4673 = vmul.f32 %v4637, %v4672
    %v4674 = vrcp.pop %v4669
    %v4675 = vmul.f32 %v4639, %v4674
    %4677 = vset.pattern.permute.xlu0 0
    %4678 = vperm.xlu0 %4677, %v4673
    %v4679 = vpop.permute.xlu0 %4678
    %4682 = vset.pattern.permute.xlu0 0
    %4683 = vperm.xlu0 %4682, %v4675
    %v4684 = vpop.permute.xlu0 %4683
    %v4686 = vmul.f32 %v4679, %v348
    %v4687 = vmul.f32 %v4684, %v349
    %v4688 = vsel %vm266, %v4686, 0.0
    %v4689 = vrot.slane %v4688, 4
    %v4690 = vadd.f32 %v4688, %v4689
    %v4691 = vrot.slane %v4690, 2
    %v4692 = vadd.f32 %v4690, %v4691
    %v4693 = vrot.slane %v4692, 1
    %v4694 = vadd.f32 %v4692, %v4693
    %v4695 = vsel %vm266, %v4687, 0.0
    %v4696 = vrot.slane %v4695, 4
    %v4697 = vadd.f32 %v4695, %v4696
    %v4698 = vrot.slane %v4697, 2
    %v4699 = vadd.f32 %v4697, %v4698
    %v4700 = vrot.slane %v4699, 1
    %v4701 = vadd.f32 %v4699, %v4700
    %v4704 = vsel %vm1188, %v4701, %v4694
    %4706 = vrot.lane.b32.xlu0 %v4489, 32
    %v4707 = vpop.permute.xlu0 %4706
    %v4709 = vsel %vm266, %v4704, %v4707
    %s4710 = scalar_lea.vmem [#allocation2], 12
    %v4711 = vld [vmem:[%s4710] sm:$0x3]
    %v4713 = vsel %vm1283, %v4709, 0
    %4715 = vmatprep.subr.mxu0 0.0
    %4716 = vmatpush1.msra.mxu0 0.0
    %4717 = vmatprep.subr.mxu0 0.0
    %4718 = vmatpush1.msra.mxu0 0.0
    %4719 = vmatprep.subr.mxu0 0.0
    %4720 = vmatpush1.msra.mxu0 0.0
    %4721 = vmatprep.subr.mxu0 0.0
    %4722 = vmatpush1.msra.mxu0 0.0
    %4723 = vmatprep.subr.mxu0 0.0
    %4724 = vmatpush1.msra.mxu0 0.0
    %4725 = vmatprep.subr.mxu0 0.0
    %4726 = vmatpush1.msra.mxu0 0.0
    %4727 = vmatprep.subr.mxu0 0.0
    %4728 = vmatpush1.msra.mxu0 0.0
    %4729 = vmatprep.subr.mxu0 0.0
    %4730 = vmatpush1.msra.mxu0 0.0
    %4731 = vmatprep.subr.mxu0 0.0
    %4732 = vmatpush1.msra.mxu0 %v1044
    %4733 = vmatprep.subr.mxu0 0.0
    %4734 = vmatpush1.msra.mxu0 %v1043
    %4735 = vmatprep.subr.mxu0 0.0
    %4736 = vmatpush1.msra.mxu0 %v1042
    %4737 = vmatprep.subr.mxu0 0.0
    %4738 = vmatpush1.msra.mxu0 %v1041
    %4739 = vmatprep.subr.mxu0 0.0
    %4740 = vmatpush1.msra.mxu0 %v1040
    %4741 = vmatprep.subr.mxu0 0.0
    %4742 = vmatpush1.msra.mxu0 %v1039
    %4743 = vmatprep.subr.mxu0 0.0
    %4744 = vmatpush1.msra.mxu0 %v1038
    %4745 = vmatprep.subr.mxu0 0.0
    %4746 = vmatpush1.msra.mxu0 %v1037
    %4747 = vmatprep.subr.mxu0 0.0
    %4748 = vmatpush2.msra.mxu0 0.0
    %4749 = vmatprep.subr.mxu0 0.0
    %4750 = vmatpush2.msra.mxu0 0.0
    %4751 = vmatprep.subr.mxu0 0.0
    %4752 = vmatpush2.msra.mxu0 0.0
    %4753 = vmatprep.subr.mxu0 0.0
    %4754 = vmatpush2.msra.mxu0 0.0
    %4755 = vmatprep.subr.mxu0 0.0
    %4756 = vmatpush2.msra.mxu0 0.0
    %4757 = vmatprep.subr.mxu0 0.0
    %4758 = vmatpush2.msra.mxu0 0.0
    %4759 = vmatprep.subr.mxu0 0.0
    %4760 = vmatpush2.msra.mxu0 0.0
    %4761 = vmatprep.subr.mxu0 0.0
    %4762 = vmatpush2.msra.mxu0 0.0
    %4763 = vmatprep.subr.mxu0 0.0
    %4764 = vmatpush2.msra.mxu0 0.0
    %4765 = vmatprep.subr.mxu0 0.0
    %4766 = vmatpush2.msra.mxu0 0.0
    %4767 = vmatprep.subr.mxu0 0.0
    %4768 = vmatpush2.msra.mxu0 0.0
    %4769 = vmatprep.subr.mxu0 0.0
    %4770 = vmatpush2.msra.mxu0 0.0
    %4771 = vmatprep.subr.mxu0 0.0
    %4772 = vmatpush2.msra.mxu0 0.0
    %4773 = vmatprep.subr.mxu0 0.0
    %4774 = vmatpush2.msra.mxu0 0.0
    %4775 = vmatprep.subr.mxu0 0.0
    %4776 = vmatpush2.msra.mxu0 0.0
    %4777 = vmatprep.subr.mxu0 0.0
    %4778 = vmatpush2.msra.mxu0 0.0
    %4779 = vmatprep.mubr.f32.mxu0 0.0
    %4780 = vmatmul.mubr.f32.gmra.mxu0 %v4713
    %v4781 = vpop.f32.mrf.mxu0
    %v4782 = vadd.f32 0.0, %v4781
    %v4783 = vpop.f32.mrf.mxu0
    %4784 = vdwg.mxu0
    %v4785 = vadd.f32 %v4711, %v4782
    %v4786 = vxor.u32 %v4785, 2147483648
    %v4787 = vmul.f32 %v4786, 1.442695
    %v4788 = vpow.pop %v4787
    %v4789 = vadd.f32 %v4788, 1.0
    %v4790 = vrcp.pop %v4789
    %v4791 = vmul.f32 1.0, %v4790
    %s4792 = scalar_lea.vmem [#allocation3], 12
    %v4793 = vld [vmem:[%s4792] sm:$0x3]
    %4794 = vmatprep.subr.mxu0 0.0
    %4795 = vmatpush1.msra.mxu0 0.0
    %4796 = vmatprep.subr.mxu0 0.0
    %4797 = vmatpush1.msra.mxu0 0.0
    %4798 = vmatprep.subr.mxu0 0.0
    %4799 = vmatpush1.msra.mxu0 0.0
    %4800 = vmatprep.subr.mxu0 0.0
    %4801 = vmatpush1.msra.mxu0 0.0
    %4802 = vmatprep.subr.mxu0 0.0
    %4803 = vmatpush1.msra.mxu0 0.0
    %4804 = vmatprep.subr.mxu0 0.0
    %4805 = vmatpush1.msra.mxu0 0.0
    %4806 = vmatprep.subr.mxu0 0.0
    %4807 = vmatpush1.msra.mxu0 0.0
    %4808 = vmatprep.subr.mxu0 0.0
    %4809 = vmatpush1.msra.mxu0 0.0
    %4810 = vmatprep.subr.mxu0 0.0
    %4811 = vmatpush1.msra.mxu0 %v1388
    %4812 = vmatprep.subr.mxu0 0.0
    %4813 = vmatpush1.msra.mxu0 %v1386
    %4814 = vmatprep.subr.mxu0 0.0
    %4815 = vmatpush1.msra.mxu0 %v1384
    %4816 = vmatprep.subr.mxu0 0.0
    %4817 = vmatpush1.msra.mxu0 %v1382
    %4818 = vmatprep.subr.mxu0 0.0
    %4819 = vmatpush1.msra.mxu0 %v1380
    %4820 = vmatprep.subr.mxu0 0.0
    %4821 = vmatpush1.msra.mxu0 %v1378
    %4822 = vmatprep.subr.mxu0 0.0
    %4823 = vmatpush1.msra.mxu0 %v1376
    %4824 = vmatprep.subr.mxu0 0.0
    %4825 = vmatpush1.msra.mxu0 %v1374
    %4826 = vmatprep.subr.mxu0 0.0
    %4827 = vmatpush2.msra.mxu0 0.0
    %4828 = vmatprep.subr.mxu0 0.0
    %4829 = vmatpush2.msra.mxu0 0.0
    %4830 = vmatprep.subr.mxu0 0.0
    %4831 = vmatpush2.msra.mxu0 0.0
    %4832 = vmatprep.subr.mxu0 0.0
    %4833 = vmatpush2.msra.mxu0 0.0
    %4834 = vmatprep.subr.mxu0 0.0
    %4835 = vmatpush2.msra.mxu0 0.0
    %4836 = vmatprep.subr.mxu0 0.0
    %4837 = vmatpush2.msra.mxu0 0.0
    %4838 = vmatprep.subr.mxu0 0.0
    %4839 = vmatpush2.msra.mxu0 0.0
    %4840 = vmatprep.subr.mxu0 0.0
    %4841 = vmatpush2.msra.mxu0 0.0
    %4842 = vmatprep.subr.mxu0 0.0
    %4843 = vmatpush2.msra.mxu0 0.0
    %4844 = vmatprep.subr.mxu0 0.0
    %4845 = vmatpush2.msra.mxu0 0.0
    %4846 = vmatprep.subr.mxu0 0.0
    %4847 = vmatpush2.msra.mxu0 0.0
    %4848 = vmatprep.subr.mxu0 0.0
    %4849 = vmatpush2.msra.mxu0 0.0
    %4850 = vmatprep.subr.mxu0 0.0
    %4851 = vmatpush2.msra.mxu0 0.0
    %4852 = vmatprep.subr.mxu0 0.0
    %4853 = vmatpush2.msra.mxu0 0.0
    %4854 = vmatprep.subr.mxu0 0.0
    %4855 = vmatpush2.msra.mxu0 0.0
    %4856 = vmatprep.subr.mxu0 0.0
    %4857 = vmatpush2.msra.mxu0 0.0
    %4858 = vmatprep.mubr.f32.mxu0 0.0
    %4859 = vmatmul.mubr.f32.gmra.mxu0 %v4713
    %v4860 = vpop.f32.mrf.mxu0
    %v4861 = vadd.f32 0.0, %v4860
    %v4862 = vpop.f32.mrf.mxu0
    %4863 = vdwg.mxu0
    %v4864 = vadd.f32 %v4793, %v4861
    %v4865 = vxor.u32 %v4864, 2147483648
    %v4866 = vmul.f32 %v4865, 1.442695
    %v4867 = vpow.pop %v4866
    %v4868 = vadd.f32 %v4867, 1.0
    %v4869 = vrcp.pop %v4868
    %v4870 = vmul.f32 1.0, %v4869
    %s4871 = scalar_lea.vmem [#allocation4], 12
    %v4872 = vld [vmem:[%s4871] sm:$0x3]
    %4873 = vmatprep.subr.mxu0 0.0
    %4874 = vmatpush1.msra.mxu0 0.0
    %4875 = vmatprep.subr.mxu0 0.0
    %4876 = vmatpush1.msra.mxu0 0.0
    %4877 = vmatprep.subr.mxu0 0.0
    %4878 = vmatpush1.msra.mxu0 0.0
    %4879 = vmatprep.subr.mxu0 0.0
    %4880 = vmatpush1.msra.mxu0 0.0
    %4881 = vmatprep.subr.mxu0 0.0
    %4882 = vmatpush1.msra.mxu0 0.0
    %4883 = vmatprep.subr.mxu0 0.0
    %4884 = vmatpush1.msra.mxu0 0.0
    %4885 = vmatprep.subr.mxu0 0.0
    %4886 = vmatpush1.msra.mxu0 0.0
    %4887 = vmatprep.subr.mxu0 0.0
    %4888 = vmatpush1.msra.mxu0 0.0
    %4889 = vmatprep.subr.mxu0 0.0
    %4890 = vmatpush1.msra.mxu0 %v1490
    %4891 = vmatprep.subr.mxu0 0.0
    %4892 = vmatpush1.msra.mxu0 %v1488
    %4893 = vmatprep.subr.mxu0 0.0
    %4894 = vmatpush1.msra.mxu0 %v1486
    %4895 = vmatprep.subr.mxu0 0.0
    %4896 = vmatpush1.msra.mxu0 %v1484
    %4897 = vmatprep.subr.mxu0 0.0
    %4898 = vmatpush1.msra.mxu0 %v1482
    %4899 = vmatprep.subr.mxu0 0.0
    %4900 = vmatpush1.msra.mxu0 %v1480
    %4901 = vmatprep.subr.mxu0 0.0
    %4902 = vmatpush1.msra.mxu0 %v1478
    %4903 = vmatprep.subr.mxu0 0.0
    %4904 = vmatpush1.msra.mxu0 %v1476
    %4905 = vmatprep.subr.mxu0 0.0
    %4906 = vmatpush2.msra.mxu0 0.0
    %4907 = vmatprep.subr.mxu0 0.0
    %4908 = vmatpush2.msra.mxu0 0.0
    %4909 = vmatprep.subr.mxu0 0.0
    %4910 = vmatpush2.msra.mxu0 0.0
    %4911 = vmatprep.subr.mxu0 0.0
    %4912 = vmatpush2.msra.mxu0 0.0
    %4913 = vmatprep.subr.mxu0 0.0
    %4914 = vmatpush2.msra.mxu0 0.0
    %4915 = vmatprep.subr.mxu0 0.0
    %4916 = vmatpush2.msra.mxu0 0.0
    %4917 = vmatprep.subr.mxu0 0.0
    %4918 = vmatpush2.msra.mxu0 0.0
    %4919 = vmatprep.subr.mxu0 0.0
    %4920 = vmatpush2.msra.mxu0 0.0
    %4921 = vmatprep.subr.mxu0 0.0
    %4922 = vmatpush2.msra.mxu0 0.0
    %4923 = vmatprep.subr.mxu0 0.0
    %4924 = vmatpush2.msra.mxu0 0.0
    %4925 = vmatprep.subr.mxu0 0.0
    %4926 = vmatpush2.msra.mxu0 0.0
    %4927 = vmatprep.subr.mxu0 0.0
    %4928 = vmatpush2.msra.mxu0 0.0
    %4929 = vmatprep.subr.mxu0 0.0
    %4930 = vmatpush2.msra.mxu0 0.0
    %4931 = vmatprep.subr.mxu0 0.0
    %4932 = vmatpush2.msra.mxu0 0.0
    %4933 = vmatprep.subr.mxu0 0.0
    %4934 = vmatpush2.msra.mxu0 0.0
    %4935 = vmatprep.subr.mxu0 0.0
    %4936 = vmatpush2.msra.mxu0 0.0
    %4937 = vmatprep.mubr.f32.mxu0 0.0
    %4938 = vmatmul.mubr.f32.gmra.mxu0 %v4713
    %v4939 = vpop.f32.mrf.mxu0
    %v4940 = vadd.f32 0.0, %v4939
    %v4941 = vpop.f32.mrf.mxu0
    %4942 = vdwg.mxu0
    %v4943 = vadd.f32 %v4872, %v4940
    %v4944 = vtanh.pop %v4943
    %s4945 = scalar_lea.vmem [#allocation5], 12
    %v4946 = vld [vmem:[%s4945] sm:$0x3]
    %4947 = vmatprep.subr.mxu0 0.0
    %4948 = vmatpush1.msra.mxu0 0.0
    %4949 = vmatprep.subr.mxu0 0.0
    %4950 = vmatpush1.msra.mxu0 0.0
    %4951 = vmatprep.subr.mxu0 0.0
    %4952 = vmatpush1.msra.mxu0 0.0
    %4953 = vmatprep.subr.mxu0 0.0
    %4954 = vmatpush1.msra.mxu0 0.0
    %4955 = vmatprep.subr.mxu0 0.0
    %4956 = vmatpush1.msra.mxu0 0.0
    %4957 = vmatprep.subr.mxu0 0.0
    %4958 = vmatpush1.msra.mxu0 0.0
    %4959 = vmatprep.subr.mxu0 0.0
    %4960 = vmatpush1.msra.mxu0 0.0
    %4961 = vmatprep.subr.mxu0 0.0
    %4962 = vmatpush1.msra.mxu0 0.0
    %4963 = vmatprep.subr.mxu0 0.0
    %4964 = vmatpush1.msra.mxu0 %v1587
    %4965 = vmatprep.subr.mxu0 0.0
    %4966 = vmatpush1.msra.mxu0 %v1585
    %4967 = vmatprep.subr.mxu0 0.0
    %4968 = vmatpush1.msra.mxu0 %v1583
    %4969 = vmatprep.subr.mxu0 0.0
    %4970 = vmatpush1.msra.mxu0 %v1581
    %4971 = vmatprep.subr.mxu0 0.0
    %4972 = vmatpush1.msra.mxu0 %v1579
    %4973 = vmatprep.subr.mxu0 0.0
    %4974 = vmatpush1.msra.mxu0 %v1577
    %4975 = vmatprep.subr.mxu0 0.0
    %4976 = vmatpush1.msra.mxu0 %v1575
    %4977 = vmatprep.subr.mxu0 0.0
    %4978 = vmatpush1.msra.mxu0 %v1573
    %4979 = vmatprep.subr.mxu0 0.0
    %4980 = vmatpush2.msra.mxu0 0.0
    %4981 = vmatprep.subr.mxu0 0.0
    %4982 = vmatpush2.msra.mxu0 0.0
    %4983 = vmatprep.subr.mxu0 0.0
    %4984 = vmatpush2.msra.mxu0 0.0
    %4985 = vmatprep.subr.mxu0 0.0
    %4986 = vmatpush2.msra.mxu0 0.0
    %4987 = vmatprep.subr.mxu0 0.0
    %4988 = vmatpush2.msra.mxu0 0.0
    %4989 = vmatprep.subr.mxu0 0.0
    %4990 = vmatpush2.msra.mxu0 0.0
    %4991 = vmatprep.subr.mxu0 0.0
    %4992 = vmatpush2.msra.mxu0 0.0
    %4993 = vmatprep.subr.mxu0 0.0
    %4994 = vmatpush2.msra.mxu0 0.0
    %4995 = vmatprep.subr.mxu0 0.0
    %4996 = vmatpush2.msra.mxu0 0.0
    %4997 = vmatprep.subr.mxu0 0.0
    %4998 = vmatpush2.msra.mxu0 0.0
    %4999 = vmatprep.subr.mxu0 0.0
    %5000 = vmatpush2.msra.mxu0 0.0
    %5001 = vmatprep.subr.mxu0 0.0
    %5002 = vmatpush2.msra.mxu0 0.0
    %5003 = vmatprep.subr.mxu0 0.0
    %5004 = vmatpush2.msra.mxu0 0.0
    %5005 = vmatprep.subr.mxu0 0.0
    %5006 = vmatpush2.msra.mxu0 0.0
    %5007 = vmatprep.subr.mxu0 0.0
    %5008 = vmatpush2.msra.mxu0 0.0
    %5009 = vmatprep.subr.mxu0 0.0
    %5010 = vmatpush2.msra.mxu0 0.0
    %5011 = vmatprep.mubr.f32.mxu0 0.0
    %5012 = vmatmul.mubr.f32.gmra.mxu0 %v4713
    %v5013 = vpop.f32.mrf.mxu0
    %v5014 = vadd.f32 0.0, %v5013
    %v5015 = vpop.f32.mrf.mxu0
    %5016 = vdwg.mxu0
    %v5017 = vadd.f32 %v4946, %v5014
    %v5018 = vxor.u32 %v5017, 2147483648
    %v5019 = vmul.f32 %v5018, 1.442695
    %v5020 = vpow.pop %v5019
    %v5021 = vadd.f32 %v5020, 1.0
    %v5022 = vrcp.pop %v5021
    %v5023 = vmul.f32 1.0, %v5022
    %v5024 = vld [vmem:[#allocation10] sm:$0x3]
    %v5025 = vmul.f32 %v4870, %v5024
    %v5026 = vmul.f32 %v4791, %v4944
    %v5027 = vadd.f32 %v5025, %v5026
    %v5028 = vtanh.pop %v5027
    %v5029 = vmul.f32 %v5023, %v5028
    %5030 = vst.msk [vmem:[#allocation9] sm:$0x3] %vm876, %v5029
    %5031 = vst.msk [vmem:[#allocation10] sm:$0x3] %vm876, %v5027
    %s5032 = scalar_lea.vmem [#allocation6], 12
    %5033 = vst.msk [vmem:[%s5032] sm:$0x3] %vm876, %v5029
    %s5034 = scalar_lea.vmem [#allocation7], 12
    %5035 = vst.msk [vmem:[%s5034] sm:$0x3] %vm876, %v4704
    %v5036 = vlaneseq
    %v5037 = vshrl.u32 %v5036, 7
    %v5038 = vsub.s32 %v1179, %v5037
    %v5039 = vrot.slane %v4679, %v5038
    %v5040 = vlaneseq
    %v5041 = vshrl.u32 %v5040, 7
    %v5042 = vsub.s32 %v1179, %v5041
    %v5043 = vrot.slane %v4684, %v5042
    %v5044 = vsel %vm1188, %v5043, %v5039
    %s5046 = scalar_lea.vmem [#allocation8], 12
    %5047 = vst.msk [vmem:[%s5046] sm:$0x3] %vm1191, %v5044
    %v5048 = vld [vmem:[#allocation9] sm:$0x3]
    %v5050 = vsel %vm266, %v5048, 0
    %5052 = vmatprep.subr.mxu0 0.0
    %5053 = vmatpush1.msra.mxu0 0.0
    %5054 = vmatprep.subr.mxu0 0.0
    %5055 = vmatpush1.msra.mxu0 0.0
    %5056 = vmatprep.subr.mxu0 0.0
    %5057 = vmatpush1.msra.mxu0 0.0
    %5058 = vmatprep.subr.mxu0 0.0
    %5059 = vmatpush1.msra.mxu0 0.0
    %5060 = vmatprep.subr.mxu0 0.0
    %5061 = vmatpush1.msra.mxu0 0.0
    %5062 = vmatprep.subr.mxu0 0.0
    %5063 = vmatpush1.msra.mxu0 0.0
    %5064 = vmatprep.subr.mxu0 0.0
    %5065 = vmatpush1.msra.mxu0 0.0
    %5066 = vmatprep.subr.mxu0 0.0
    %5067 = vmatpush1.msra.mxu0 0.0
    %5068 = vmatprep.subr.mxu0 0.0
    %5069 = vmatpush1.msra.mxu0 0.0
    %5070 = vmatprep.subr.mxu0 0.0
    %5071 = vmatpush1.msra.mxu0 0.0
    %5072 = vmatprep.subr.mxu0 0.0
    %5073 = vmatpush1.msra.mxu0 0.0
    %5074 = vmatprep.subr.mxu0 0.0
    %5075 = vmatpush1.msra.mxu0 0.0
    %5076 = vmatprep.subr.mxu0 0.0
    %5077 = vmatpush1.msra.mxu0 %v1048
    %5078 = vmatprep.subr.mxu0 0.0
    %5079 = vmatpush1.msra.mxu0 %v1047
    %5080 = vmatprep.subr.mxu0 0.0
    %5081 = vmatpush1.msra.mxu0 %v1046
    %5082 = vmatprep.subr.mxu0 0.0
    %5083 = vmatpush1.msra.mxu0 %v1045
    %5084 = vmatprep.subr.mxu0 0.0
    %5085 = vmatpush2.msra.mxu0 0.0
    %5086 = vmatprep.subr.mxu0 0.0
    %5087 = vmatpush2.msra.mxu0 0.0
    %5088 = vmatprep.subr.mxu0 0.0
    %5089 = vmatpush2.msra.mxu0 0.0
    %5090 = vmatprep.subr.mxu0 0.0
    %5091 = vmatpush2.msra.mxu0 0.0
    %5092 = vmatprep.subr.mxu0 0.0
    %5093 = vmatpush2.msra.mxu0 0.0
    %5094 = vmatprep.subr.mxu0 0.0
    %5095 = vmatpush2.msra.mxu0 0.0
    %5096 = vmatprep.subr.mxu0 0.0
    %5097 = vmatpush2.msra.mxu0 0.0
    %5098 = vmatprep.subr.mxu0 0.0
    %5099 = vmatpush2.msra.mxu0 0.0
    %5100 = vmatprep.subr.mxu0 0.0
    %5101 = vmatpush2.msra.mxu0 0.0
    %5102 = vmatprep.subr.mxu0 0.0
    %5103 = vmatpush2.msra.mxu0 0.0
    %5104 = vmatprep.subr.mxu0 0.0
    %5105 = vmatpush2.msra.mxu0 0.0
    %5106 = vmatprep.subr.mxu0 0.0
    %5107 = vmatpush2.msra.mxu0 0.0
    %5108 = vmatprep.subr.mxu0 0.0
    %5109 = vmatpush2.msra.mxu0 0.0
    %5110 = vmatprep.subr.mxu0 0.0
    %5111 = vmatpush2.msra.mxu0 0.0
    %5112 = vmatprep.subr.mxu0 0.0
    %5113 = vmatpush2.msra.mxu0 0.0
    %5114 = vmatprep.subr.mxu0 0.0
    %5115 = vmatpush2.msra.mxu0 0.0
    %5116 = vmatprep.mubr.f32.mxu0 0.0
    %5117 = vmatmul.mubr.f32.gmra.mxu0 %v5050
    %v5118 = vpop.f32.mrf.mxu0
    %v5119 = vadd.f32 0.0, %v5118
    %v5120 = vpop.f32.mrf.mxu0
    %5121 = vdwg.mxu0
    %v5124 = vunpack.c.l.s4 1966171168
    %v5125 = vunpack.c.0.s8 %v5124
    %v5126 = vlaneseq
    %v5127 = vshrl.u32 %v5126, 7
    %v5128 = vsub.s32 %v5125, %v5127
    %v5129 = vrot.slane %v5119, %v5128
    %v5130 = vcombine.high %v5129, %v5129
    %v5132 = vunpack.c.l.s4 1966171168
    %v5133 = vunpack.c.0.s8 %v5132
    %v5134 = vlaneseq
    %v5135 = vshrl.u32 %v5134, 7
    %v5136 = vsub.s32 %v5133, %v5135
    %v5137 = vrot.slane %v5129, %v5136
    %v5139 = vunpack.c.l.s4 1966171168
    %v5140 = vunpack.c.0.s8 %v5139
    %v5141 = vlaneseq
    %v5142 = vshrl.u32 %v5141, 7
    %v5143 = vsub.s32 %v5140, %v5142
    %v5144 = vrot.slane %v5130, %v5143
    %v5145 = vlaneseq
    %v5146 = vshrl.u32 %v5145, 7
    %v5147 = vsub.s32 0, %v5146
    %v5148 = vrot.slane %v5137, %v5147
    %v5149 = vlaneseq
    %v5150 = vshrl.u32 %v5149, 7
    %v5151 = vsub.s32 0, %v5150
    %v5152 = vrot.slane %v5144, %v5151
    %v5155 = vadd.f32 %v427, %v5148
    %v5156 = vadd.f32 %v432, %v5152
    %v5157 = vtanh.pop %v5155
    %v5158 = vtanh.pop %v5156
    %v5159 = vmul.f32 %v5157, %v1166
    %v5160 = vmul.f32 %v5158, %v1166
    %v5161 = vsel %vm266, %v5159, 0.0
    %5162 = vadd.xlane.f32.xlu0 %v5161
    %v5163 = vpop.xlane.xlu0 %5162
    %v5164 = vsel %vm266, %v5160, 0.0
    %5165 = vadd.xlane.f32.xlu0 %v5164
    %v5166 = vpop.xlane.xlu0 %5165
    %v5169 = vlaneseq
    %v5170 = vshrl.u32 %v5169, 7
    %v5171 = vsub.s32 %v1179, %v5170
    %v5172 = vrot.slane %v5163, %v5171
    %v5173 = vlaneseq
    %v5174 = vshrl.u32 %v5173, 7
    %v5175 = vsub.s32 %v1179, %v5174
    %v5176 = vrot.slane %v5166, %v5175
    %v5177 = vsel %vm1188, %v5176, %v5172
    %v5179 = vsel %vm1191, %v5177, -inf
    %5180 = vmax.xlane.f32.xlu0 %v5179
    %v5181 = vpop.xlane.xlu0 %5180
    %v5183 = vlaneseq
    %v5184 = vshrl.u32 %v5183, 7
    %v5185 = vsub.s32 0, %v5184
    %v5186 = vrot.slane %v5181, %v5185
    %v5187 = vlaneseq
    %v5188 = vshrl.u32 %v5187, 7
    %v5189 = vsub.s32 1, %v5188
    %v5190 = vrot.slane %v5181, %v5189
    %v5193 = vsub.f32 %v5163, %v5186
    %v5194 = vsub.f32 %v5166, %v5190
    %v5195 = vmul.f32 %v5193, 1.442695
    %v5196 = vpow.pop %v5195
    %v5197 = vmul.f32 %v5194, 1.442695
    %v5198 = vpow.pop %v5197
    %5201 = vset.pattern.permute.xlu0 0
    %5202 = vperm.xlu0 %5201, %v5196
    %v5203 = vpop.permute.xlu0 %5202
    %5204 = vset.pattern.permute.xlu0 0
    %5205 = vperm.xlu0 %5204, %v5198
    %v5206 = vpop.permute.xlu0 %5205
    %v5207 = vlaneseq
    %v5208 = vshrl.u32 %v5207, 7
    %v5209 = vsub.s32 %v1179, %v5208
    %v5210 = vrot.slane %v5203, %v5209
    %v5211 = vlaneseq
    %v5212 = vshrl.u32 %v5211, 7
    %v5213 = vsub.s32 %v1179, %v5212
    %v5214 = vrot.slane %v5206, %v5213
    %v5215 = vsel %vm1188, %v5214, %v5210
    %v5217 = vsel %vm1191, %v5215, 0.0
    %5218 = vadd.xlane.f32.xlu0 %v5217
    %v5219 = vpop.xlane.xlu0 %5218
    %v5221 = vlaneseq
    %v5222 = vshrl.u32 %v5221, 7
    %v5223 = vsub.s32 0, %v5222
    %v5224 = vrot.slane %v5219, %v5223
    %v5225 = vlaneseq
    %v5226 = vshrl.u32 %v5225, 7
    %v5227 = vsub.s32 1, %v5226
    %v5228 = vrot.slane %v5219, %v5227
    %v5231 = vrcp.pop %v5224
    %v5232 = vmul.f32 %v5196, %v5231
    %v5233 = vrcp.pop %v5228
    %v5234 = vmul.f32 %v5198, %v5233
    %5236 = vset.pattern.permute.xlu0 0
    %5237 = vperm.xlu0 %5236, %v5232
    %v5238 = vpop.permute.xlu0 %5237
    %5241 = vset.pattern.permute.xlu0 0
    %5242 = vperm.xlu0 %5241, %v5234
    %v5243 = vpop.permute.xlu0 %5242
    %v5245 = vmul.f32 %v5238, %v348
    %v5246 = vmul.f32 %v5243, %v349
    %v5247 = vsel %vm266, %v5245, 0.0
    %v5248 = vrot.slane %v5247, 4
    %v5249 = vadd.f32 %v5247, %v5248
    %v5250 = vrot.slane %v5249, 2
    %v5251 = vadd.f32 %v5249, %v5250
    %v5252 = vrot.slane %v5251, 1
    %v5253 = vadd.f32 %v5251, %v5252
    %v5254 = vsel %vm266, %v5246, 0.0
    %v5255 = vrot.slane %v5254, 4
    %v5256 = vadd.f32 %v5254, %v5255
    %v5257 = vrot.slane %v5256, 2
    %v5258 = vadd.f32 %v5256, %v5257
    %v5259 = vrot.slane %v5258, 1
    %v5260 = vadd.f32 %v5258, %v5259
    %v5263 = vsel %vm1188, %v5260, %v5253
    %5265 = vrot.lane.b32.xlu0 %v5048, 32
    %v5266 = vpop.permute.xlu0 %5265
    %v5268 = vsel %vm266, %v5263, %v5266
    %s5269 = scalar_lea.vmem [#allocation2], 14
    %v5270 = vld [vmem:[%s5269] sm:$0x3]
    %v5272 = vsel %vm1283, %v5268, 0
    %5274 = vmatprep.subr.mxu0 0.0
    %5275 = vmatpush1.msra.mxu0 0.0
    %5276 = vmatprep.subr.mxu0 0.0
    %5277 = vmatpush1.msra.mxu0 0.0
    %5278 = vmatprep.subr.mxu0 0.0
    %5279 = vmatpush1.msra.mxu0 0.0
    %5280 = vmatprep.subr.mxu0 0.0
    %5281 = vmatpush1.msra.mxu0 0.0
    %5282 = vmatprep.subr.mxu0 0.0
    %5283 = vmatpush1.msra.mxu0 0.0
    %5284 = vmatprep.subr.mxu0 0.0
    %5285 = vmatpush1.msra.mxu0 0.0
    %5286 = vmatprep.subr.mxu0 0.0
    %5287 = vmatpush1.msra.mxu0 0.0
    %5288 = vmatprep.subr.mxu0 0.0
    %5289 = vmatpush1.msra.mxu0 0.0
    %5290 = vmatprep.subr.mxu0 0.0
    %5291 = vmatpush1.msra.mxu0 %v1044
    %5292 = vmatprep.subr.mxu0 0.0
    %5293 = vmatpush1.msra.mxu0 %v1043
    %5294 = vmatprep.subr.mxu0 0.0
    %5295 = vmatpush1.msra.mxu0 %v1042
    %5296 = vmatprep.subr.mxu0 0.0
    %5297 = vmatpush1.msra.mxu0 %v1041
    %5298 = vmatprep.subr.mxu0 0.0
    %5299 = vmatpush1.msra.mxu0 %v1040
    %5300 = vmatprep.subr.mxu0 0.0
    %5301 = vmatpush1.msra.mxu0 %v1039
    %5302 = vmatprep.subr.mxu0 0.0
    %5303 = vmatpush1.msra.mxu0 %v1038
    %5304 = vmatprep.subr.mxu0 0.0
    %5305 = vmatpush1.msra.mxu0 %v1037
    %5306 = vmatprep.subr.mxu0 0.0
    %5307 = vmatpush2.msra.mxu0 0.0
    %5308 = vmatprep.subr.mxu0 0.0
    %5309 = vmatpush2.msra.mxu0 0.0
    %5310 = vmatprep.subr.mxu0 0.0
    %5311 = vmatpush2.msra.mxu0 0.0
    %5312 = vmatprep.subr.mxu0 0.0
    %5313 = vmatpush2.msra.mxu0 0.0
    %5314 = vmatprep.subr.mxu0 0.0
    %5315 = vmatpush2.msra.mxu0 0.0
    %5316 = vmatprep.subr.mxu0 0.0
    %5317 = vmatpush2.msra.mxu0 0.0
    %5318 = vmatprep.subr.mxu0 0.0
    %5319 = vmatpush2.msra.mxu0 0.0
    %5320 = vmatprep.subr.mxu0 0.0
    %5321 = vmatpush2.msra.mxu0 0.0
    %5322 = vmatprep.subr.mxu0 0.0
    %5323 = vmatpush2.msra.mxu0 0.0
    %5324 = vmatprep.subr.mxu0 0.0
    %5325 = vmatpush2.msra.mxu0 0.0
    %5326 = vmatprep.subr.mxu0 0.0
    %5327 = vmatpush2.msra.mxu0 0.0
    %5328 = vmatprep.subr.mxu0 0.0
    %5329 = vmatpush2.msra.mxu0 0.0
    %5330 = vmatprep.subr.mxu0 0.0
    %5331 = vmatpush2.msra.mxu0 0.0
    %5332 = vmatprep.subr.mxu0 0.0
    %5333 = vmatpush2.msra.mxu0 0.0
    %5334 = vmatprep.subr.mxu0 0.0
    %5335 = vmatpush2.msra.mxu0 0.0
    %5336 = vmatprep.subr.mxu0 0.0
    %5337 = vmatpush2.msra.mxu0 0.0
    %5338 = vmatprep.mubr.f32.mxu0 0.0
    %5339 = vmatmul.mubr.f32.gmra.mxu0 %v5272
    %v5340 = vpop.f32.mrf.mxu0
    %v5341 = vadd.f32 0.0, %v5340
    %v5342 = vpop.f32.mrf.mxu0
    %5343 = vdwg.mxu0
    %v5344 = vadd.f32 %v5270, %v5341
    %v5345 = vxor.u32 %v5344, 2147483648
    %v5346 = vmul.f32 %v5345, 1.442695
    %v5347 = vpow.pop %v5346
    %v5348 = vadd.f32 %v5347, 1.0
    %v5349 = vrcp.pop %v5348
    %v5350 = vmul.f32 1.0, %v5349
    %s5351 = scalar_lea.vmem [#allocation3], 14
    %v5352 = vld [vmem:[%s5351] sm:$0x3]
    %5353 = vmatprep.subr.mxu0 0.0
    %5354 = vmatpush1.msra.mxu0 0.0
    %5355 = vmatprep.subr.mxu0 0.0
    %5356 = vmatpush1.msra.mxu0 0.0
    %5357 = vmatprep.subr.mxu0 0.0
    %5358 = vmatpush1.msra.mxu0 0.0
    %5359 = vmatprep.subr.mxu0 0.0
    %5360 = vmatpush1.msra.mxu0 0.0
    %5361 = vmatprep.subr.mxu0 0.0
    %5362 = vmatpush1.msra.mxu0 0.0
    %5363 = vmatprep.subr.mxu0 0.0
    %5364 = vmatpush1.msra.mxu0 0.0
    %5365 = vmatprep.subr.mxu0 0.0
    %5366 = vmatpush1.msra.mxu0 0.0
    %5367 = vmatprep.subr.mxu0 0.0
    %5368 = vmatpush1.msra.mxu0 0.0
    %5369 = vmatprep.subr.mxu0 0.0
    %5370 = vmatpush1.msra.mxu0 %v1388
    %5371 = vmatprep.subr.mxu0 0.0
    %5372 = vmatpush1.msra.mxu0 %v1386
    %5373 = vmatprep.subr.mxu0 0.0
    %5374 = vmatpush1.msra.mxu0 %v1384
    %5375 = vmatprep.subr.mxu0 0.0
    %5376 = vmatpush1.msra.mxu0 %v1382
    %5377 = vmatprep.subr.mxu0 0.0
    %5378 = vmatpush1.msra.mxu0 %v1380
    %5379 = vmatprep.subr.mxu0 0.0
    %5380 = vmatpush1.msra.mxu0 %v1378
    %5381 = vmatprep.subr.mxu0 0.0
    %5382 = vmatpush1.msra.mxu0 %v1376
    %5383 = vmatprep.subr.mxu0 0.0
    %5384 = vmatpush1.msra.mxu0 %v1374
    %5385 = vmatprep.subr.mxu0 0.0
    %5386 = vmatpush2.msra.mxu0 0.0
    %5387 = vmatprep.subr.mxu0 0.0
    %5388 = vmatpush2.msra.mxu0 0.0
    %5389 = vmatprep.subr.mxu0 0.0
    %5390 = vmatpush2.msra.mxu0 0.0
    %5391 = vmatprep.subr.mxu0 0.0
    %5392 = vmatpush2.msra.mxu0 0.0
    %5393 = vmatprep.subr.mxu0 0.0
    %5394 = vmatpush2.msra.mxu0 0.0
    %5395 = vmatprep.subr.mxu0 0.0
    %5396 = vmatpush2.msra.mxu0 0.0
    %5397 = vmatprep.subr.mxu0 0.0
    %5398 = vmatpush2.msra.mxu0 0.0
    %5399 = vmatprep.subr.mxu0 0.0
    %5400 = vmatpush2.msra.mxu0 0.0
    %5401 = vmatprep.subr.mxu0 0.0
    %5402 = vmatpush2.msra.mxu0 0.0
    %5403 = vmatprep.subr.mxu0 0.0
    %5404 = vmatpush2.msra.mxu0 0.0
    %5405 = vmatprep.subr.mxu0 0.0
    %5406 = vmatpush2.msra.mxu0 0.0
    %5407 = vmatprep.subr.mxu0 0.0
    %5408 = vmatpush2.msra.mxu0 0.0
    %5409 = vmatprep.subr.mxu0 0.0
    %5410 = vmatpush2.msra.mxu0 0.0
    %5411 = vmatprep.subr.mxu0 0.0
    %5412 = vmatpush2.msra.mxu0 0.0
    %5413 = vmatprep.subr.mxu0 0.0
    %5414 = vmatpush2.msra.mxu0 0.0
    %5415 = vmatprep.subr.mxu0 0.0
    %5416 = vmatpush2.msra.mxu0 0.0
    %5417 = vmatprep.mubr.f32.mxu0 0.0
    %5418 = vmatmul.mubr.f32.gmra.mxu0 %v5272
    %v5419 = vpop.f32.mrf.mxu0
    %v5420 = vadd.f32 0.0, %v5419
    %v5421 = vpop.f32.mrf.mxu0
    %5422 = vdwg.mxu0
    %v5423 = vadd.f32 %v5352, %v5420
    %v5424 = vxor.u32 %v5423, 2147483648
    %v5425 = vmul.f32 %v5424, 1.442695
    %v5426 = vpow.pop %v5425
    %v5427 = vadd.f32 %v5426, 1.0
    %v5428 = vrcp.pop %v5427
    %v5429 = vmul.f32 1.0, %v5428
    %s5430 = scalar_lea.vmem [#allocation4], 14
    %v5431 = vld [vmem:[%s5430] sm:$0x3]
    %5432 = vmatprep.subr.mxu0 0.0
    %5433 = vmatpush1.msra.mxu0 0.0
    %5434 = vmatprep.subr.mxu0 0.0
    %5435 = vmatpush1.msra.mxu0 0.0
    %5436 = vmatprep.subr.mxu0 0.0
    %5437 = vmatpush1.msra.mxu0 0.0
    %5438 = vmatprep.subr.mxu0 0.0
    %5439 = vmatpush1.msra.mxu0 0.0
    %5440 = vmatprep.subr.mxu0 0.0
    %5441 = vmatpush1.msra.mxu0 0.0
    %5442 = vmatprep.subr.mxu0 0.0
    %5443 = vmatpush1.msra.mxu0 0.0
    %5444 = vmatprep.subr.mxu0 0.0
    %5445 = vmatpush1.msra.mxu0 0.0
    %5446 = vmatprep.subr.mxu0 0.0
    %5447 = vmatpush1.msra.mxu0 0.0
    %5448 = vmatprep.subr.mxu0 0.0
    %5449 = vmatpush1.msra.mxu0 %v1490
    %5450 = vmatprep.subr.mxu0 0.0
    %5451 = vmatpush1.msra.mxu0 %v1488
    %5452 = vmatprep.subr.mxu0 0.0
    %5453 = vmatpush1.msra.mxu0 %v1486
    %5454 = vmatprep.subr.mxu0 0.0
    %5455 = vmatpush1.msra.mxu0 %v1484
    %5456 = vmatprep.subr.mxu0 0.0
    %5457 = vmatpush1.msra.mxu0 %v1482
    %5458 = vmatprep.subr.mxu0 0.0
    %5459 = vmatpush1.msra.mxu0 %v1480
    %5460 = vmatprep.subr.mxu0 0.0
    %5461 = vmatpush1.msra.mxu0 %v1478
    %5462 = vmatprep.subr.mxu0 0.0
    %5463 = vmatpush1.msra.mxu0 %v1476
    %5464 = vmatprep.subr.mxu0 0.0
    %5465 = vmatpush2.msra.mxu0 0.0
    %5466 = vmatprep.subr.mxu0 0.0
    %5467 = vmatpush2.msra.mxu0 0.0
    %5468 = vmatprep.subr.mxu0 0.0
    %5469 = vmatpush2.msra.mxu0 0.0
    %5470 = vmatprep.subr.mxu0 0.0
    %5471 = vmatpush2.msra.mxu0 0.0
    %5472 = vmatprep.subr.mxu0 0.0
    %5473 = vmatpush2.msra.mxu0 0.0
    %5474 = vmatprep.subr.mxu0 0.0
    %5475 = vmatpush2.msra.mxu0 0.0
    %5476 = vmatprep.subr.mxu0 0.0
    %5477 = vmatpush2.msra.mxu0 0.0
    %5478 = vmatprep.subr.mxu0 0.0
    %5479 = vmatpush2.msra.mxu0 0.0
    %5480 = vmatprep.subr.mxu0 0.0
    %5481 = vmatpush2.msra.mxu0 0.0
    %5482 = vmatprep.subr.mxu0 0.0
    %5483 = vmatpush2.msra.mxu0 0.0
    %5484 = vmatprep.subr.mxu0 0.0
    %5485 = vmatpush2.msra.mxu0 0.0
    %5486 = vmatprep.subr.mxu0 0.0
    %5487 = vmatpush2.msra.mxu0 0.0
    %5488 = vmatprep.subr.mxu0 0.0
    %5489 = vmatpush2.msra.mxu0 0.0
    %5490 = vmatprep.subr.mxu0 0.0
    %5491 = vmatpush2.msra.mxu0 0.0
    %5492 = vmatprep.subr.mxu0 0.0
    %5493 = vmatpush2.msra.mxu0 0.0
    %5494 = vmatprep.subr.mxu0 0.0
    %5495 = vmatpush2.msra.mxu0 0.0
    %5496 = vmatprep.mubr.f32.mxu0 0.0
    %5497 = vmatmul.mubr.f32.gmra.mxu0 %v5272
    %v5498 = vpop.f32.mrf.mxu0
    %v5499 = vadd.f32 0.0, %v5498
    %v5500 = vpop.f32.mrf.mxu0
    %5501 = vdwg.mxu0
    %v5502 = vadd.f32 %v5431, %v5499
    %v5503 = vtanh.pop %v5502
    %s5504 = scalar_lea.vmem [#allocation5], 14
    %v5505 = vld [vmem:[%s5504] sm:$0x3]
    %5506 = vmatprep.subr.mxu0 0.0
    %5507 = vmatpush1.msra.mxu0 0.0
    %5508 = vmatprep.subr.mxu0 0.0
    %5509 = vmatpush1.msra.mxu0 0.0
    %5510 = vmatprep.subr.mxu0 0.0
    %5511 = vmatpush1.msra.mxu0 0.0
    %5512 = vmatprep.subr.mxu0 0.0
    %5513 = vmatpush1.msra.mxu0 0.0
    %5514 = vmatprep.subr.mxu0 0.0
    %5515 = vmatpush1.msra.mxu0 0.0
    %5516 = vmatprep.subr.mxu0 0.0
    %5517 = vmatpush1.msra.mxu0 0.0
    %5518 = vmatprep.subr.mxu0 0.0
    %5519 = vmatpush1.msra.mxu0 0.0
    %5520 = vmatprep.subr.mxu0 0.0
    %5521 = vmatpush1.msra.mxu0 0.0
    %5522 = vmatprep.subr.mxu0 0.0
    %5523 = vmatpush1.msra.mxu0 %v1587
    %5524 = vmatprep.subr.mxu0 0.0
    %5525 = vmatpush1.msra.mxu0 %v1585
    %5526 = vmatprep.subr.mxu0 0.0
    %5527 = vmatpush1.msra.mxu0 %v1583
    %5528 = vmatprep.subr.mxu0 0.0
    %5529 = vmatpush1.msra.mxu0 %v1581
    %5530 = vmatprep.subr.mxu0 0.0
    %5531 = vmatpush1.msra.mxu0 %v1579
    %5532 = vmatprep.subr.mxu0 0.0
    %5533 = vmatpush1.msra.mxu0 %v1577
    %5534 = vmatprep.subr.mxu0 0.0
    %5535 = vmatpush1.msra.mxu0 %v1575
    %5536 = vmatprep.subr.mxu0 0.0
    %5537 = vmatpush1.msra.mxu0 %v1573
    %5538 = vmatprep.subr.mxu0 0.0
    %5539 = vmatpush2.msra.mxu0 0.0
    %5540 = vmatprep.subr.mxu0 0.0
    %5541 = vmatpush2.msra.mxu0 0.0
    %5542 = vmatprep.subr.mxu0 0.0
    %5543 = vmatpush2.msra.mxu0 0.0
    %5544 = vmatprep.subr.mxu0 0.0
    %5545 = vmatpush2.msra.mxu0 0.0
    %5546 = vmatprep.subr.mxu0 0.0
    %5547 = vmatpush2.msra.mxu0 0.0
    %5548 = vmatprep.subr.mxu0 0.0
    %5549 = vmatpush2.msra.mxu0 0.0
    %5550 = vmatprep.subr.mxu0 0.0
    %5551 = vmatpush2.msra.mxu0 0.0
    %5552 = vmatprep.subr.mxu0 0.0
    %5553 = vmatpush2.msra.mxu0 0.0
    %5554 = vmatprep.subr.mxu0 0.0
    %5555 = vmatpush2.msra.mxu0 0.0
    %5556 = vmatprep.subr.mxu0 0.0
    %5557 = vmatpush2.msra.mxu0 0.0
    %5558 = vmatprep.subr.mxu0 0.0
    %5559 = vmatpush2.msra.mxu0 0.0
    %5560 = vmatprep.subr.mxu0 0.0
    %5561 = vmatpush2.msra.mxu0 0.0
    %5562 = vmatprep.subr.mxu0 0.0
    %5563 = vmatpush2.msra.mxu0 0.0
    %5564 = vmatprep.subr.mxu0 0.0
    %5565 = vmatpush2.msra.mxu0 0.0
    %5566 = vmatprep.subr.mxu0 0.0
    %5567 = vmatpush2.msra.mxu0 0.0
    %5568 = vmatprep.subr.mxu0 0.0
    %5569 = vmatpush2.msra.mxu0 0.0
    %5570 = vmatprep.mubr.f32.mxu0 0.0
    %5571 = vmatmul.mubr.f32.gmra.mxu0 %v5272
    %v5572 = vpop.f32.mrf.mxu0
    %v5573 = vadd.f32 0.0, %v5572
    %v5574 = vpop.f32.mrf.mxu0
    %5575 = vdwg.mxu0
    %v5576 = vadd.f32 %v5505, %v5573
    %v5577 = vxor.u32 %v5576, 2147483648
    %v5578 = vmul.f32 %v5577, 1.442695
    %v5579 = vpow.pop %v5578
    %v5580 = vadd.f32 %v5579, 1.0
    %v5581 = vrcp.pop %v5580
    %v5582 = vmul.f32 1.0, %v5581
    %v5583 = vld [vmem:[#allocation10] sm:$0x3]
    %v5584 = vmul.f32 %v5429, %v5583
    %v5585 = vmul.f32 %v5350, %v5503
    %v5586 = vadd.f32 %v5584, %v5585
    %v5587 = vtanh.pop %v5586
    %v5588 = vmul.f32 %v5582, %v5587
    %5589 = vst.msk [vmem:[#allocation9] sm:$0x3] %vm876, %v5588
    %5590 = vst.msk [vmem:[#allocation10] sm:$0x3] %vm876, %v5586
    %s5591 = scalar_lea.vmem [#allocation6], 14
    %5592 = vst.msk [vmem:[%s5591] sm:$0x3] %vm876, %v5588
    %s5593 = scalar_lea.vmem [#allocation7], 14
    %5594 = vst.msk [vmem:[%s5593] sm:$0x3] %vm876, %v5263
    %v5595 = vlaneseq
    %v5596 = vshrl.u32 %v5595, 7
    %v5597 = vsub.s32 %v1179, %v5596
    %v5598 = vrot.slane %v5238, %v5597
    %v5599 = vlaneseq
    %v5600 = vshrl.u32 %v5599, 7
    %v5601 = vsub.s32 %v1179, %v5600
    %v5602 = vrot.slane %v5243, %v5601
    %v5603 = vsel %vm1188, %v5602, %v5598
    %s5605 = scalar_lea.vmem [#allocation8], 14
    %5606 = vst.msk [vmem:[%s5605] sm:$0x3] %vm1191, %v5603
    %v5607 = vld [vmem:[#allocation6] sm:$0x3]
    %v5608 = vld [vmem:[#allocation6 + $0x2] sm:$0x3]
    %v5609 = vld [vmem:[#allocation6 + $0x4] sm:$0x3]
    %v5610 = vld [vmem:[#allocation6 + $0x6] sm:$0x3]
    %v5611 = vld [vmem:[#allocation6 + $0x8] sm:$0x3]
    %v5612 = vld [vmem:[#allocation6 + $0xa] sm:$0x3]
    %v5613 = vld [vmem:[#allocation6 + $0xc] sm:$0x3]
    %v5614 = vld [vmem:[#allocation6 + $0xe] sm:$0x3]
    %v5615 = vld [vmem:[#allocation7] sm:$0x3]
    %v5616 = vld [vmem:[#allocation7 + $0x2] sm:$0x3]
    %v5617 = vld [vmem:[#allocation7 + $0x4] sm:$0x3]
    %v5618 = vld [vmem:[#allocation7 + $0x6] sm:$0x3]
    %v5619 = vld [vmem:[#allocation7 + $0x8] sm:$0x3]
    %v5620 = vld [vmem:[#allocation7 + $0xa] sm:$0x3]
    %v5621 = vld [vmem:[#allocation7 + $0xc] sm:$0x3]
    %v5622 = vld [vmem:[#allocation7 + $0xe] sm:$0x3]
    %v5623 = vld [vmem:[%s31] sm:$0xff]
    %v5624 = vld [vmem:[%s31 + $0x8] sm:$0xff]
    %v5625 = vld [vmem:[%s31 + $0x10] sm:$0xff]
    %v5626 = vld [vmem:[%s31 + $0x18] sm:$0xff]
    %v5627 = vld [vmem:[%s33] sm:$0xff]
    %v5628 = vld [vmem:[%s33 + $0x8] sm:$0xff]
    %v5629 = vld [vmem:[%s33 + $0x10] sm:$0xff]
    %v5630 = vld [vmem:[%s33 + $0x18] sm:$0xff]
    %v5639 = vcombine.low %v5615, %v5616
    %v5640 = vcombine.low %v5617, %v5618
    %v5642 = vunpack.c.l.s4 1983009808
    %v5643 = vunpack.c.0.s8 %v5642
    %v5644 = vlaneseq
    %v5645 = vshrl.u32 %v5644, 7
    %v5646 = vsub.s32 %v5643, %v5645
    %v5647 = vrot.slane %v5639, %v5646
    %v5649 = vunpack.c.l.s4 1983009808
    %v5650 = vunpack.c.0.s8 %v5649
    %v5651 = vlaneseq
    %v5652 = vshrl.u32 %v5651, 7
    %v5653 = vsub.s32 %v5650, %v5652
    %v5654 = vrot.slane %v5640, %v5653
    %v5655 = vcombine.low %v5647, %v5654
    %v5656 = vcombine.low %v5619, %v5620
    %v5657 = vcombine.low %v5621, %v5622
    %v5659 = vunpack.c.l.s4 1983009808
    %v5660 = vunpack.c.0.s8 %v5659
    %v5661 = vlaneseq
    %v5662 = vshrl.u32 %v5661, 7
    %v5663 = vsub.s32 %v5660, %v5662
    %v5664 = vrot.slane %v5656, %v5663
    %v5666 = vunpack.c.l.s4 1983009808
    %v5667 = vunpack.c.0.s8 %v5666
    %v5668 = vlaneseq
    %v5669 = vshrl.u32 %v5668, 7
    %v5670 = vsub.s32 %v5667, %v5669
    %v5671 = vrot.slane %v5657, %v5670
    %v5672 = vcombine.low %v5664, %v5671
    %v5673 = vsel %vm266, %v5655, 0
    %v5675 = vsel %vm266, %v5672, 0
    %5677 = vmatprep.subr.mxu0 0.0
    %5678 = vmatpush1.msra.mxu0 0.0
    %5679 = vmatprep.subr.mxu0 0.0
    %5680 = vmatpush1.msra.mxu0 0.0
    %5681 = vmatprep.subr.mxu0 0.0
    %5682 = vmatpush1.msra.mxu0 0.0
    %5683 = vmatprep.subr.mxu0 0.0
    %5684 = vmatpush1.msra.mxu0 0.0
    %5685 = vmatprep.subr.mxu0 0.0
    %5686 = vmatpush1.msra.mxu0 0.0
    %5687 = vmatprep.subr.mxu0 0.0
    %5688 = vmatpush1.msra.mxu0 0.0
    %5689 = vmatprep.subr.mxu0 0.0
    %5690 = vmatpush1.msra.mxu0 0.0
    %5691 = vmatprep.subr.mxu0 0.0
    %5692 = vmatpush1.msra.mxu0 0.0
    %5693 = vmatprep.subr.mxu0 0.0
    %5694 = vmatpush1.msra.mxu0 0.0
    %5695 = vmatprep.subr.mxu0 0.0
    %5696 = vmatpush1.msra.mxu0 0.0
    %5697 = vmatprep.subr.mxu0 0.0
    %5698 = vmatpush1.msra.mxu0 0.0
    %5699 = vmatprep.subr.mxu0 0.0
    %5700 = vmatpush1.msra.mxu0 0.0
    %5701 = vmatprep.subr.mxu0 0.0
    %5702 = vmatpush1.msra.mxu0 %v5630
    %5703 = vmatprep.subr.mxu0 0.0
    %5704 = vmatpush1.msra.mxu0 %v5629
    %5705 = vmatprep.subr.mxu0 0.0
    %5706 = vmatpush1.msra.mxu0 %v5628
    %5707 = vmatprep.subr.mxu0 0.0
    %5708 = vmatpush1.msra.mxu0 %v5627
    %5709 = vmatprep.subr.mxu0 0.0
    %5710 = vmatpush2.msra.mxu0 0.0
    %5711 = vmatprep.subr.mxu0 0.0
    %5712 = vmatpush2.msra.mxu0 0.0
    %5713 = vmatprep.subr.mxu0 0.0
    %5714 = vmatpush2.msra.mxu0 0.0
    %5715 = vmatprep.subr.mxu0 0.0
    %5716 = vmatpush2.msra.mxu0 0.0
    %5717 = vmatprep.subr.mxu0 0.0
    %5718 = vmatpush2.msra.mxu0 0.0
    %5719 = vmatprep.subr.mxu0 0.0
    %5720 = vmatpush2.msra.mxu0 0.0
    %5721 = vmatprep.subr.mxu0 0.0
    %5722 = vmatpush2.msra.mxu0 0.0
    %5723 = vmatprep.subr.mxu0 0.0
    %5724 = vmatpush2.msra.mxu0 0.0
    %5725 = vmatprep.subr.mxu0 0.0
    %5726 = vmatpush2.msra.mxu0 0.0
    %5727 = vmatprep.subr.mxu0 0.0
    %5728 = vmatpush2.msra.mxu0 0.0
    %5729 = vmatprep.subr.mxu0 0.0
    %5730 = vmatpush2.msra.mxu0 0.0
    %5731 = vmatprep.subr.mxu0 0.0
    %5732 = vmatpush2.msra.mxu0 0.0
    %5733 = vmatprep.subr.mxu0 0.0
    %5734 = vmatpush2.msra.mxu0 0.0
    %5735 = vmatprep.subr.mxu0 0.0
    %5736 = vmatpush2.msra.mxu0 0.0
    %5737 = vmatprep.subr.mxu0 0.0
    %5738 = vmatpush2.msra.mxu0 0.0
    %5739 = vmatprep.subr.mxu0 0.0
    %5740 = vmatpush2.msra.mxu0 0.0
    %5741 = vmatprep.mubr.f32.mxu0 0.0
    %5742 = vmatmul.mubr.f32.gmra.mxu0 %v5673
    %v5743 = vpop.f32.mrf.mxu0
    %v5744 = vadd.f32 0.0, %v5743
    %v5745 = vpop.f32.mrf.mxu0
    %5746 = vmatprep.mubr.f32.mxu0 0.0
    %5747 = vmatmul.mubr.f32.gmra.mxu0 %v5675
    %v5748 = vpop.f32.mrf.mxu0
    %v5749 = vadd.f32 0.0, %v5748
    %v5750 = vpop.f32.mrf.mxu0
    %5751 = vdwg.mxu0
    %v5760 = vcombine.low %v5607, %v5608
    %v5761 = vcombine.low %v5609, %v5610
    %v5763 = vunpack.c.l.s4 1983009808
    %v5764 = vunpack.c.0.s8 %v5763
    %v5765 = vlaneseq
    %v5766 = vshrl.u32 %v5765, 7
    %v5767 = vsub.s32 %v5764, %v5766
    %v5768 = vrot.slane %v5760, %v5767
    %v5770 = vunpack.c.l.s4 1983009808
    %v5771 = vunpack.c.0.s8 %v5770
    %v5772 = vlaneseq
    %v5773 = vshrl.u32 %v5772, 7
    %v5774 = vsub.s32 %v5771, %v5773
    %v5775 = vrot.slane %v5761, %v5774
    %v5776 = vcombine.low %v5768, %v5775
    %v5777 = vcombine.low %v5611, %v5612
    %v5778 = vcombine.low %v5613, %v5614
    %v5780 = vunpack.c.l.s4 1983009808
    %v5781 = vunpack.c.0.s8 %v5780
    %v5782 = vlaneseq
    %v5783 = vshrl.u32 %v5782, 7
    %v5784 = vsub.s32 %v5781, %v5783
    %v5785 = vrot.slane %v5777, %v5784
    %v5787 = vunpack.c.l.s4 1983009808
    %v5788 = vunpack.c.0.s8 %v5787
    %v5789 = vlaneseq
    %v5790 = vshrl.u32 %v5789, 7
    %v5791 = vsub.s32 %v5788, %v5790
    %v5792 = vrot.slane %v5778, %v5791
    %v5793 = vcombine.low %v5785, %v5792
    %v5794 = vsel %vm266, %v5776, 0
    %v5796 = vsel %vm266, %v5793, 0
    %5798 = vmatprep.subr.mxu0 0.0
    %5799 = vmatpush1.msra.mxu0 0.0
    %5800 = vmatprep.subr.mxu0 0.0
    %5801 = vmatpush1.msra.mxu0 0.0
    %5802 = vmatprep.subr.mxu0 0.0
    %5803 = vmatpush1.msra.mxu0 0.0
    %5804 = vmatprep.subr.mxu0 0.0
    %5805 = vmatpush1.msra.mxu0 0.0
    %5806 = vmatprep.subr.mxu0 0.0
    %5807 = vmatpush1.msra.mxu0 0.0
    %5808 = vmatprep.subr.mxu0 0.0
    %5809 = vmatpush1.msra.mxu0 0.0
    %5810 = vmatprep.subr.mxu0 0.0
    %5811 = vmatpush1.msra.mxu0 0.0
    %5812 = vmatprep.subr.mxu0 0.0
    %5813 = vmatpush1.msra.mxu0 0.0
    %5814 = vmatprep.subr.mxu0 0.0
    %5815 = vmatpush1.msra.mxu0 0.0
    %5816 = vmatprep.subr.mxu0 0.0
    %5817 = vmatpush1.msra.mxu0 0.0
    %5818 = vmatprep.subr.mxu0 0.0
    %5819 = vmatpush1.msra.mxu0 0.0
    %5820 = vmatprep.subr.mxu0 0.0
    %5821 = vmatpush1.msra.mxu0 0.0
    %5822 = vmatprep.subr.mxu0 0.0
    %5823 = vmatpush1.msra.mxu0 %v5626
    %5824 = vmatprep.subr.mxu0 0.0
    %5825 = vmatpush1.msra.mxu0 %v5625
    %5826 = vmatprep.subr.mxu0 0.0
    %5827 = vmatpush1.msra.mxu0 %v5624
    %5828 = vmatprep.subr.mxu0 0.0
    %5829 = vmatpush1.msra.mxu0 %v5623
    %5830 = vmatprep.subr.mxu0 0.0
    %5831 = vmatpush2.msra.mxu0 0.0
    %5832 = vmatprep.subr.mxu0 0.0
    %5833 = vmatpush2.msra.mxu0 0.0
    %5834 = vmatprep.subr.mxu0 0.0
    %5835 = vmatpush2.msra.mxu0 0.0
    %5836 = vmatprep.subr.mxu0 0.0
    %5837 = vmatpush2.msra.mxu0 0.0
    %5838 = vmatprep.subr.mxu0 0.0
    %5839 = vmatpush2.msra.mxu0 0.0
    %5840 = vmatprep.subr.mxu0 0.0
    %5841 = vmatpush2.msra.mxu0 0.0
    %5842 = vmatprep.subr.mxu0 0.0
    %5843 = vmatpush2.msra.mxu0 0.0
    %5844 = vmatprep.subr.mxu0 0.0
    %5845 = vmatpush2.msra.mxu0 0.0
    %5846 = vmatprep.subr.mxu0 0.0
    %5847 = vmatpush2.msra.mxu0 0.0
    %5848 = vmatprep.subr.mxu0 0.0
    %5849 = vmatpush2.msra.mxu0 0.0
    %5850 = vmatprep.subr.mxu0 0.0
    %5851 = vmatpush2.msra.mxu0 0.0
    %5852 = vmatprep.subr.mxu0 0.0
    %5853 = vmatpush2.msra.mxu0 0.0
    %5854 = vmatprep.subr.mxu0 0.0
    %5855 = vmatpush2.msra.mxu0 0.0
    %5856 = vmatprep.subr.mxu0 0.0
    %5857 = vmatpush2.msra.mxu0 0.0
    %5858 = vmatprep.subr.mxu0 0.0
    %5859 = vmatpush2.msra.mxu0 0.0
    %5860 = vmatprep.subr.mxu0 0.0
    %5861 = vmatpush2.msra.mxu0 0.0
    %5862 = vmatprep.mubr.f32.mxu0 0.0
    %5863 = vmatmul.mubr.f32.gmra.mxu0 %v5794
    %v5864 = vpop.f32.mrf.mxu0
    %v5865 = vadd.f32 %v5744, %v5864
    %v5866 = vpop.f32.mrf.mxu0
    %5867 = vmatprep.mubr.f32.mxu0 0.0
    %5868 = vmatmul.mubr.f32.gmra.mxu0 %v5796
    %v5869 = vpop.f32.mrf.mxu0
    %v5870 = vadd.f32 %v5749, %v5869
    %v5871 = vpop.f32.mrf.mxu0
    %5872 = vdwg.mxu0
    %v5873 = vld [vmem:[%s35] sm:$0x1]
    %v5875 = vlaneseq
    %v5876 = vshrl.u32 %v5875, 7
    %v5877 = vsub.s32 0, %v5876
    %v5878 = vrot.slane %v5873, %v5877
    %v5880 = vadd.f32 %v5865, %v5878
    %v5881 = vadd.f32 %v5870, %v5878
    %v5882 = vld [vmem:[%s37] sm:$0xff]
    %v5883 = vld [vmem:[%s37 + $0x8] sm:$0xff]
    %v5884 = vld [vmem:[%s37 + $0x10] sm:$0xff]
    %v5885 = vld [vmem:[%s37 + $0x18] sm:$0xff]
    %v5886 = vld [vmem:[%s39] sm:$0xff]
    %v5887 = vld [vmem:[%s39 + $0x8] sm:$0xff]
    %v5888 = vld [vmem:[%s39 + $0x10] sm:$0xff]
    %v5889 = vld [vmem:[%s39 + $0x18] sm:$0xff]
    %5890 = vmatprep.subr.mxu0 0.0
    %5891 = vmatpush1.msra.mxu0 0.0
    %5892 = vmatprep.subr.mxu0 0.0
    %5893 = vmatpush1.msra.mxu0 0.0
    %5894 = vmatprep.subr.mxu0 0.0
    %5895 = vmatpush1.msra.mxu0 0.0
    %5896 = vmatprep.subr.mxu0 0.0
    %5897 = vmatpush1.msra.mxu0 0.0
    %5898 = vmatprep.subr.mxu0 0.0
    %5899 = vmatpush1.msra.mxu0 0.0
    %5900 = vmatprep.subr.mxu0 0.0
    %5901 = vmatpush1.msra.mxu0 0.0
    %5902 = vmatprep.subr.mxu0 0.0
    %5903 = vmatpush1.msra.mxu0 0.0
    %5904 = vmatprep.subr.mxu0 0.0
    %5905 = vmatpush1.msra.mxu0 0.0
    %5906 = vmatprep.subr.mxu0 0.0
    %5907 = vmatpush1.msra.mxu0 0.0
    %5908 = vmatprep.subr.mxu0 0.0
    %5909 = vmatpush1.msra.mxu0 0.0
    %5910 = vmatprep.subr.mxu0 0.0
    %5911 = vmatpush1.msra.mxu0 0.0
    %5912 = vmatprep.subr.mxu0 0.0
    %5913 = vmatpush1.msra.mxu0 0.0
    %5914 = vmatprep.subr.mxu0 0.0
    %5915 = vmatpush1.msra.mxu0 %v5889
    %5916 = vmatprep.subr.mxu0 0.0
    %5917 = vmatpush1.msra.mxu0 %v5888
    %5918 = vmatprep.subr.mxu0 0.0
    %5919 = vmatpush1.msra.mxu0 %v5887
    %5920 = vmatprep.subr.mxu0 0.0
    %5921 = vmatpush1.msra.mxu0 %v5886
    %5922 = vmatprep.subr.mxu0 0.0
    %5923 = vmatpush2.msra.mxu0 0.0
    %5924 = vmatprep.subr.mxu0 0.0
    %5925 = vmatpush2.msra.mxu0 0.0
    %5926 = vmatprep.subr.mxu0 0.0
    %5927 = vmatpush2.msra.mxu0 0.0
    %5928 = vmatprep.subr.mxu0 0.0
    %5929 = vmatpush2.msra.mxu0 0.0
    %5930 = vmatprep.subr.mxu0 0.0
    %5931 = vmatpush2.msra.mxu0 0.0
    %5932 = vmatprep.subr.mxu0 0.0
    %5933 = vmatpush2.msra.mxu0 0.0
    %5934 = vmatprep.subr.mxu0 0.0
    %5935 = vmatpush2.msra.mxu0 0.0
    %5936 = vmatprep.subr.mxu0 0.0
    %5937 = vmatpush2.msra.mxu0 0.0
    %5938 = vmatprep.subr.mxu0 0.0
    %5939 = vmatpush2.msra.mxu0 0.0
    %5940 = vmatprep.subr.mxu0 0.0
    %5941 = vmatpush2.msra.mxu0 0.0
    %5942 = vmatprep.subr.mxu0 0.0
    %5943 = vmatpush2.msra.mxu0 0.0
    %5944 = vmatprep.subr.mxu0 0.0
    %5945 = vmatpush2.msra.mxu0 0.0
    %5946 = vmatprep.subr.mxu0 0.0
    %5947 = vmatpush2.msra.mxu0 0.0
    %5948 = vmatprep.subr.mxu0 0.0
    %5949 = vmatpush2.msra.mxu0 0.0
    %5950 = vmatprep.subr.mxu0 0.0
    %5951 = vmatpush2.msra.mxu0 0.0
    %5952 = vmatprep.subr.mxu0 0.0
    %5953 = vmatpush2.msra.mxu0 0.0
    %5954 = vmatprep.mubr.f32.mxu0 0.0
    %5955 = vmatmul.mubr.f32.gmra.mxu0 %v5673
    %v5956 = vpop.f32.mrf.mxu0
    %v5957 = vadd.f32 0.0, %v5956
    %v5958 = vpop.f32.mrf.mxu0
    %5959 = vmatprep.mubr.f32.mxu0 0.0
    %5960 = vmatmul.mubr.f32.gmra.mxu0 %v5675
    %v5961 = vpop.f32.mrf.mxu0
    %v5962 = vadd.f32 0.0, %v5961
    %v5963 = vpop.f32.mrf.mxu0
    %5964 = vdwg.mxu0
    %5965 = vmatprep.subr.mxu0 0.0
    %5966 = vmatpush1.msra.mxu0 0.0
    %5967 = vmatprep.subr.mxu0 0.0
    %5968 = vmatpush1.msra.mxu0 0.0
    %5969 = vmatprep.subr.mxu0 0.0
    %5970 = vmatpush1.msra.mxu0 0.0
    %5971 = vmatprep.subr.mxu0 0.0
    %5972 = vmatpush1.msra.mxu0 0.0
    %5973 = vmatprep.subr.mxu0 0.0
    %5974 = vmatpush1.msra.mxu0 0.0
    %5975 = vmatprep.subr.mxu0 0.0
    %5976 = vmatpush1.msra.mxu0 0.0
    %5977 = vmatprep.subr.mxu0 0.0
    %5978 = vmatpush1.msra.mxu0 0.0
    %5979 = vmatprep.subr.mxu0 0.0
    %5980 = vmatpush1.msra.mxu0 0.0
    %5981 = vmatprep.subr.mxu0 0.0
    %5982 = vmatpush1.msra.mxu0 0.0
    %5983 = vmatprep.subr.mxu0 0.0
    %5984 = vmatpush1.msra.mxu0 0.0
    %5985 = vmatprep.subr.mxu0 0.0
    %5986 = vmatpush1.msra.mxu0 0.0
    %5987 = vmatprep.subr.mxu0 0.0
    %5988 = vmatpush1.msra.mxu0 0.0
    %5989 = vmatprep.subr.mxu0 0.0
    %5990 = vmatpush1.msra.mxu0 %v5885
    %5991 = vmatprep.subr.mxu0 0.0
    %5992 = vmatpush1.msra.mxu0 %v5884
    %5993 = vmatprep.subr.mxu0 0.0
    %5994 = vmatpush1.msra.mxu0 %v5883
    %5995 = vmatprep.subr.mxu0 0.0
    %5996 = vmatpush1.msra.mxu0 %v5882
    %5997 = vmatprep.subr.mxu0 0.0
    %5998 = vmatpush2.msra.mxu0 0.0
    %5999 = vmatprep.subr.mxu0 0.0
    %6000 = vmatpush2.msra.mxu0 0.0
    %6001 = vmatprep.subr.mxu0 0.0
    %6002 = vmatpush2.msra.mxu0 0.0
    %6003 = vmatprep.subr.mxu0 0.0
    %6004 = vmatpush2.msra.mxu0 0.0
    %6005 = vmatprep.subr.mxu0 0.0
    %6006 = vmatpush2.msra.mxu0 0.0
    %6007 = vmatprep.subr.mxu0 0.0
    %6008 = vmatpush2.msra.mxu0 0.0
    %6009 = vmatprep.subr.mxu0 0.0
    %6010 = vmatpush2.msra.mxu0 0.0
    %6011 = vmatprep.subr.mxu0 0.0
    %6012 = vmatpush2.msra.mxu0 0.0
    %6013 = vmatprep.subr.mxu0 0.0
    %6014 = vmatpush2.msra.mxu0 0.0
    %6015 = vmatprep.subr.mxu0 0.0
    %6016 = vmatpush2.msra.mxu0 0.0
    %6017 = vmatprep.subr.mxu0 0.0
    %6018 = vmatpush2.msra.mxu0 0.0
    %6019 = vmatprep.subr.mxu0 0.0
    %6020 = vmatpush2.msra.mxu0 0.0
    %6021 = vmatprep.subr.mxu0 0.0
    %6022 = vmatpush2.msra.mxu0 0.0
    %6023 = vmatprep.subr.mxu0 0.0
    %6024 = vmatpush2.msra.mxu0 0.0
    %6025 = vmatprep.subr.mxu0 0.0
    %6026 = vmatpush2.msra.mxu0 0.0
    %6027 = vmatprep.subr.mxu0 0.0
    %6028 = vmatpush2.msra.mxu0 0.0
    %6029 = vmatprep.mubr.f32.mxu0 0.0
    %6030 = vmatmul.mubr.f32.gmra.mxu0 %v5794
    %v6031 = vpop.f32.mrf.mxu0
    %v6032 = vadd.f32 %v5957, %v6031
    %v6033 = vpop.f32.mrf.mxu0
    %6034 = vmatprep.mubr.f32.mxu0 0.0
    %6035 = vmatmul.mubr.f32.gmra.mxu0 %v5796
    %v6036 = vpop.f32.mrf.mxu0
    %v6037 = vadd.f32 %v5962, %v6036
    %v6038 = vpop.f32.mrf.mxu0
    %6039 = vdwg.mxu0
    %v6040 = vld [vmem:[#allocation11] sm:$0x1]
    %v6042 = vlaneseq
    %v6043 = vshrl.u32 %v6042, 7
    %v6044 = vsub.s32 0, %v6043
    %v6045 = vrot.slane %v6040, %v6044
    %v6047 = vadd.f32 %v6032, %v6045
    %v6048 = vadd.f32 %v6037, %v6045
    %v6049 = vxor.u32 %v6047, 2147483648
    %v6050 = vxor.u32 %v6048, 2147483648
    %v6051 = vmul.f32 %v6049, 1.442695
    %v6052 = vpow.pop %v6051
    %v6053 = vmul.f32 %v6050, 1.442695
    %v6054 = vpow.pop %v6053
    %v6055 = vadd.f32 %v6052, 1.0
    %v6056 = vadd.f32 %v6054, 1.0
    %v6057 = vrcp.pop %v6055
    %v6058 = vmul.f32 1.0, %v6057
    %v6059 = vrcp.pop %v6056
    %v6060 = vmul.f32 1.0, %v6059
    %v6063 = vcombine.high %v5880, %v5880
    %v6065 = vunpack.c.l.s4 1983009808
    %v6066 = vunpack.c.0.s8 %v6065
    %v6067 = vlaneseq
    %v6068 = vshrl.u32 %v6067, 7
    %v6069 = vsub.s32 %v6066, %v6068
    %v6070 = vrot.slane %v5880, %v6069
    %v6072 = vunpack.c.l.s4 1983009808
    %v6073 = vunpack.c.0.s8 %v6072
    %v6074 = vlaneseq
    %v6075 = vshrl.u32 %v6074, 7
    %v6076 = vsub.s32 %v6073, %v6075
    %v6077 = vrot.slane %v6063, %v6076
    %v6078 = vcombine.high %v6070, %v6070
    %v6079 = vcombine.high %v6077, %v6077
    %v6080 = vcombine.high %v5881, %v5881
    %v6082 = vunpack.c.l.s4 1983009808
    %v6083 = vunpack.c.0.s8 %v6082
    %v6084 = vlaneseq
    %v6085 = vshrl.u32 %v6084, 7
    %v6086 = vsub.s32 %v6083, %v6085
    %v6087 = vrot.slane %v5881, %v6086
    %v6089 = vunpack.c.l.s4 1983009808
    %v6090 = vunpack.c.0.s8 %v6089
    %v6091 = vlaneseq
    %v6092 = vshrl.u32 %v6091, 7
    %v6093 = vsub.s32 %v6090, %v6092
    %v6094 = vrot.slane %v6080, %v6093
    %v6095 = vcombine.high %v6087, %v6087
    %v6096 = vcombine.high %v6094, %v6094
    %v6105 = vcombine.low %v6070, %v6078
    %v6107 = vunpack.c.l.s4 1934713408
    %v6108 = vunpack.c.0.s8 %v6107
    %v6109 = vlaneseq
    %v6110 = vshrl.u32 %v6109, 7
    %v6111 = vsub.s32 %v6108, %v6110
    %v6112 = vrot.slane %v6105, %v6111
    %v6113 = vcombine.high %v6112, 0.0
    %v6114 = vcombine.low %v6077, %v6079
    %v6116 = vunpack.c.l.s4 1934713408
    %v6117 = vunpack.c.0.s8 %v6116
    %v6118 = vlaneseq
    %v6119 = vshrl.u32 %v6118, 7
    %v6120 = vsub.s32 %v6117, %v6119
    %v6121 = vrot.slane %v6114, %v6120
    %v6122 = vcombine.high %v6121, 0.0
    %v6123 = vcombine.low %v6087, %v6095
    %v6125 = vunpack.c.l.s4 1934713408
    %v6126 = vunpack.c.0.s8 %v6125
    %v6127 = vlaneseq
    %v6128 = vshrl.u32 %v6127, 7
    %v6129 = vsub.s32 %v6126, %v6128
    %v6130 = vrot.slane %v6123, %v6129
    %v6131 = vcombine.high %v6130, 0.0
    %v6132 = vcombine.low %v6094, %v6096
    %v6134 = vunpack.c.l.s4 1934713408
    %v6135 = vunpack.c.0.s8 %v6134
    %v6136 = vlaneseq
    %v6137 = vshrl.u32 %v6136, 7
    %v6138 = vsub.s32 %v6135, %v6137
    %v6139 = vrot.slane %v6132, %v6138
    %v6140 = vcombine.high %v6139, 0.0
    %v6149 = vcombine.low %v6112, %v6121
    %v6150 = vcombine.low %v6130, %v6139
    %v6152 = vunpack.c.l.s4 1983009808
    %v6153 = vunpack.c.0.s8 %v6152
    %v6154 = vlaneseq
    %v6155 = vshrl.u32 %v6154, 7
    %v6156 = vsub.s32 %v6153, %v6155
    %v6157 = vrot.slane %v6149, %v6156
    %v6159 = vunpack.c.l.s4 1983009808
    %v6160 = vunpack.c.0.s8 %v6159
    %v6161 = vlaneseq
    %v6162 = vshrl.u32 %v6161, 7
    %v6163 = vsub.s32 %v6160, %v6162
    %v6164 = vrot.slane %v6150, %v6163
    %v6165 = vcombine.low %v6157, %v6164
    %v6166 = vcombine.low %v6113, %v6122
    %v6167 = vcombine.low %v6131, %v6140
    %v6169 = vunpack.c.l.s4 1983009808
    %v6170 = vunpack.c.0.s8 %v6169
    %v6171 = vlaneseq
    %v6172 = vshrl.u32 %v6171, 7
    %v6173 = vsub.s32 %v6170, %v6172
    %v6174 = vrot.slane %v6166, %v6173
    %v6176 = vunpack.c.l.s4 1983009808
    %v6177 = vunpack.c.0.s8 %v6176
    %v6178 = vlaneseq
    %v6179 = vshrl.u32 %v6178, 7
    %v6180 = vsub.s32 %v6177, %v6179
    %v6181 = vrot.slane %v6167, %v6180
    %v6182 = vcombine.low %v6174, %v6181
    %6185 = vst.msk [vmem:[#allocation29] sm:$0xff] %vm564, %v6165
    %6186 = vst.msk [vmem:[#allocation29 + $0x8] sm:$0xff] %vm564, %v6182
    %v6189 = vcombine.high %v6058, %v6058
    %v6191 = vunpack.c.l.s4 1983009808
    %v6192 = vunpack.c.0.s8 %v6191
    %v6193 = vlaneseq
    %v6194 = vshrl.u32 %v6193, 7
    %v6195 = vsub.s32 %v6192, %v6194
    %v6196 = vrot.slane %v6058, %v6195
    %v6198 = vunpack.c.l.s4 1983009808
    %v6199 = vunpack.c.0.s8 %v6198
    %v6200 = vlaneseq
    %v6201 = vshrl.u32 %v6200, 7
    %v6202 = vsub.s32 %v6199, %v6201
    %v6203 = vrot.slane %v6189, %v6202
    %v6204 = vcombine.high %v6196, %v6196
    %v6205 = vcombine.high %v6203, %v6203
    %v6206 = vcombine.high %v6060, %v6060
    %v6208 = vunpack.c.l.s4 1983009808
    %v6209 = vunpack.c.0.s8 %v6208
    %v6210 = vlaneseq
    %v6211 = vshrl.u32 %v6210, 7
    %v6212 = vsub.s32 %v6209, %v6211
    %v6213 = vrot.slane %v6060, %v6212
    %v6215 = vunpack.c.l.s4 1983009808
    %v6216 = vunpack.c.0.s8 %v6215
    %v6217 = vlaneseq
    %v6218 = vshrl.u32 %v6217, 7
    %v6219 = vsub.s32 %v6216, %v6218
    %v6220 = vrot.slane %v6206, %v6219
    %v6221 = vcombine.high %v6213, %v6213
    %v6222 = vcombine.high %v6220, %v6220
    %v6231 = vcombine.low %v6196, %v6204
    %v6233 = vunpack.c.l.s4 1934713408
    %v6234 = vunpack.c.0.s8 %v6233
    %v6235 = vlaneseq
    %v6236 = vshrl.u32 %v6235, 7
    %v6237 = vsub.s32 %v6234, %v6236
    %v6238 = vrot.slane %v6231, %v6237
    %v6239 = vcombine.high %v6238, 0.0
    %v6240 = vcombine.low %v6203, %v6205
    %v6242 = vunpack.c.l.s4 1934713408
    %v6243 = vunpack.c.0.s8 %v6242
    %v6244 = vlaneseq
    %v6245 = vshrl.u32 %v6244, 7
    %v6246 = vsub.s32 %v6243, %v6245
    %v6247 = vrot.slane %v6240, %v6246
    %v6248 = vcombine.high %v6247, 0.0
    %v6249 = vcombine.low %v6213, %v6221
    %v6251 = vunpack.c.l.s4 1934713408
    %v6252 = vunpack.c.0.s8 %v6251
    %v6253 = vlaneseq
    %v6254 = vshrl.u32 %v6253, 7
    %v6255 = vsub.s32 %v6252, %v6254
    %v6256 = vrot.slane %v6249, %v6255
    %v6257 = vcombine.high %v6256, 0.0
    %v6258 = vcombine.low %v6220, %v6222
    %v6260 = vunpack.c.l.s4 1934713408
    %v6261 = vunpack.c.0.s8 %v6260
    %v6262 = vlaneseq
    %v6263 = vshrl.u32 %v6262, 7
    %v6264 = vsub.s32 %v6261, %v6263
    %v6265 = vrot.slane %v6258, %v6264
    %v6266 = vcombine.high %v6265, 0.0
    %v6275 = vcombine.low %v6238, %v6247
    %v6276 = vcombine.low %v6256, %v6265
    %v6278 = vunpack.c.l.s4 1983009808
    %v6279 = vunpack.c.0.s8 %v6278
    %v6280 = vlaneseq
    %v6281 = vshrl.u32 %v6280, 7
    %v6282 = vsub.s32 %v6279, %v6281
    %v6283 = vrot.slane %v6275, %v6282
    %v6285 = vunpack.c.l.s4 1983009808
    %v6286 = vunpack.c.0.s8 %v6285
    %v6287 = vlaneseq
    %v6288 = vshrl.u32 %v6287, 7
    %v6289 = vsub.s32 %v6286, %v6288
    %v6290 = vrot.slane %v6276, %v6289
    %v6291 = vcombine.low %v6283, %v6290
    %v6292 = vcombine.low %v6239, %v6248
    %v6293 = vcombine.low %v6257, %v6266
    %v6295 = vunpack.c.l.s4 1983009808
    %v6296 = vunpack.c.0.s8 %v6295
    %v6297 = vlaneseq
    %v6298 = vshrl.u32 %v6297, 7
    %v6299 = vsub.s32 %v6296, %v6298
    %v6300 = vrot.slane %v6292, %v6299
    %v6302 = vunpack.c.l.s4 1983009808
    %v6303 = vunpack.c.0.s8 %v6302
    %v6304 = vlaneseq
    %v6305 = vshrl.u32 %v6304, 7
    %v6306 = vsub.s32 %v6303, %v6305
    %v6307 = vrot.slane %v6293, %v6306
    %v6308 = vcombine.low %v6300, %v6307
    %vm6311 = vcmask 7168
    %6312 = vst.msk [vmem:[%s59] sm:$0xff] %vm6311, %v6291
    %6313 = vst.msk [vmem:[%s59 + $0x8] sm:$0xff] %vm6311, %v6308
    %v6314 = vld [vmem:[#allocation8] sm:$0x3]
    %v6315 = vld [vmem:[#allocation8 + $0x2] sm:$0x3]
    %v6316 = vld [vmem:[#allocation8 + $0x4] sm:$0x3]
    %v6317 = vld [vmem:[#allocation8 + $0x6] sm:$0x3]
    %v6318 = vld [vmem:[#allocation8 + $0x8] sm:$0x3]
    %v6319 = vld [vmem:[#allocation8 + $0xa] sm:$0x3]
    %v6320 = vld [vmem:[#allocation8 + $0xc] sm:$0x3]
    %v6321 = vld [vmem:[#allocation8 + $0xe] sm:$0x3]
    %v6322 = vcombine.low %v6314, %v6316
    %v6324 = vunpack.c.l.s4 1983009808
    %v6325 = vunpack.c.0.s8 %v6324
    %v6326 = vlaneseq
    %v6327 = vshrl.u32 %v6326, 7
    %v6328 = vsub.s32 %v6325, %v6327
    %v6329 = vrot.slane %v6322, %v6328
    %v6330 = vcombine.low %v6315, %v6317
    %v6332 = vunpack.c.l.s4 1983009808
    %v6333 = vunpack.c.0.s8 %v6332
    %v6334 = vlaneseq
    %v6335 = vshrl.u32 %v6334, 7
    %v6336 = vsub.s32 %v6333, %v6335
    %v6337 = vrot.slane %v6330, %v6336
    %v6338 = vcombine.low %v6318, %v6320
    %v6340 = vunpack.c.l.s4 1983009808
    %v6341 = vunpack.c.0.s8 %v6340
    %v6342 = vlaneseq
    %v6343 = vshrl.u32 %v6342, 7
    %v6344 = vsub.s32 %v6341, %v6343
    %v6345 = vrot.slane %v6338, %v6344
    %v6346 = vcombine.low %v6319, %v6321
    %v6348 = vunpack.c.l.s4 1983009808
    %v6349 = vunpack.c.0.s8 %v6348
    %v6350 = vlaneseq
    %v6351 = vshrl.u32 %v6350, 7
    %v6352 = vsub.s32 %v6349, %v6351
    %v6353 = vrot.slane %v6346, %v6352
    %v6354 = vcombine.low %v6329, %v6337
    %v6356 = vunpack.c.l.s4 1934713408
    %v6357 = vunpack.c.0.s8 %v6356
    %v6358 = vlaneseq
    %v6359 = vshrl.u32 %v6358, 7
    %v6360 = vsub.s32 %v6357, %v6359
    %v6361 = vrot.slane %v6354, %v6360
    %v6362 = vcombine.low %v6345, %v6353
    %v6364 = vunpack.c.l.s4 1934713408
    %v6365 = vunpack.c.0.s8 %v6364
    %v6366 = vlaneseq
    %v6367 = vshrl.u32 %v6366, 7
    %v6368 = vsub.s32 %v6365, %v6367
    %v6369 = vrot.slane %v6362, %v6368
    %v6370 = vcombine.low %v6361, %v6369
    %v6371 = vcombine.high %v6361, %v6369
    %vm6372 = vcmask 64512
    %6373 = vst.msk [vmem:[#allocation32] sm:$0xff] %vm6372, %v6370
    %6374 = vst.msk [vmem:[#allocation32 + $0x8] sm:$0xff] %vm6372, %v6371
    %v6375 = vrot.slane %v6165, 7
    %v6376 = vrot.slane %v6182, 7
    %v6379 = vsel %vm444, 0.0, %v6375
    %v6380 = vsel %vm444, 0.0, %v6376
    %v6381 = vrot.slane %v6165, 1
    %v6382 = vrot.slane %v6182, 1
    %vm6385 = vcmask 1046528
    %v6386 = vsel %vm6385, %v6381, 0.0
    %v6387 = vsel %vm6385, %v6382, 0.0
    %6388 = vrot.lane.b32.xlu0 %v6165, 16
    %v6389 = vpop.permute.xlu0 %6388
    %6390 = vrot.lane.b32.xlu0 %v6182, 16
    %v6391 = vpop.permute.xlu0 %6390
    %6396 = vrot.lane.b32.xlu0 %v6386, 32
    %v6397 = vpop.permute.xlu0 %6396
    %6398 = vrot.lane.b32.xlu0 %v6387, 32
    %v6399 = vpop.permute.xlu0 %6398
    %v6402 = vsel %vm564, %v6379, %v6389
    %v6403 = vsel %vm564, %v6380, %v6391
    %v6404 = vsel %vm266, %v6402, %v6397
    %v6405 = vsel %vm266, %v6403, %v6399
    %v6406 = vld [vmem:[#allocation24] sm:$0xff]
    %v6407 = vld [vmem:[#allocation24 + $0x8] sm:$0xff]
    %v6408 = vld [vmem:[#allocation26] sm:$0xff]
    %v6409 = vld [vmem:[#allocation26 + $0x8] sm:$0xff]
    %v6410 = vld [vmem:[#allocation27] sm:$0xff]
    %v6411 = vld [vmem:[#allocation27 + $0x8] sm:$0xff]
    %v6412 = vld [vmem:[%s49] sm:$0x1]
    %v6414 = vlaneseq
    %v6415 = vshrl.u32 %v6414, 7
    %v6416 = vsub.s32 0, %v6415
    %v6417 = vrot.slane %v6412, %v6416
    %vm6419 = vcmask 392192
    %v6421 = vsel %vm6419, %v6404, 0
    %v6424 = vsel %vm6419, %v6405, 0
    %6426 = vmatprep.subr.mxu0 0.0
    %6427 = vmatpush1.msra.mxu0 0.0
    %6428 = vmatprep.subr.mxu0 0.0
    %6429 = vmatpush1.msra.mxu0 0.0
    %6430 = vmatprep.subr.mxu0 0.0
    %6431 = vmatpush1.msra.mxu0 0.0
    %6432 = vmatprep.subr.mxu0 0.0
    %6433 = vmatpush1.msra.mxu0 0.0
    %6434 = vmatprep.subr.mxu0 0.0
    %6435 = vmatpush1.msra.mxu0 0.0
    %6436 = vmatprep.subr.mxu0 0.0
    %6437 = vmatpush1.msra.mxu0 0.0
    %6438 = vmatprep.subr.mxu0 0.0
    %6439 = vmatpush1.msra.mxu0 0.0
    %6440 = vmatprep.subr.mxu0 0.0
    %6441 = vmatpush1.msra.mxu0 0.0
    %6442 = vmatprep.subr.mxu0 0.0
    %6443 = vmatpush1.msra.mxu0 0.0
    %6444 = vmatprep.subr.mxu0 0.0
    %6445 = vmatpush1.msra.mxu0 0.0
    %6446 = vmatprep.subr.mxu0 0.0
    %6447 = vmatpush1.msra.mxu0 %v6411
    %6448 = vmatprep.subr.mxu0 0.0
    %6449 = vmatpush1.msra.mxu0 %v6410
    %6450 = vmatprep.subr.mxu0 0.0
    %6451 = vmatpush1.msra.mxu0 %v6409
    %6452 = vmatprep.subr.mxu0 0.0
    %6453 = vmatpush1.msra.mxu0 %v6408
    %6454 = vmatprep.subr.mxu0 0.0
    %6455 = vmatpush1.msra.mxu0 %v6407
    %6456 = vmatprep.subr.mxu0 0.0
    %6457 = vmatpush1.msra.mxu0 %v6406
    %6458 = vmatprep.subr.mxu0 0.0
    %6459 = vmatpush2.msra.mxu0 0.0
    %6460 = vmatprep.subr.mxu0 0.0
    %6461 = vmatpush2.msra.mxu0 0.0
    %6462 = vmatprep.subr.mxu0 0.0
    %6463 = vmatpush2.msra.mxu0 0.0
    %6464 = vmatprep.subr.mxu0 0.0
    %6465 = vmatpush2.msra.mxu0 0.0
    %6466 = vmatprep.subr.mxu0 0.0
    %6467 = vmatpush2.msra.mxu0 0.0
    %6468 = vmatprep.subr.mxu0 0.0
    %6469 = vmatpush2.msra.mxu0 0.0
    %6470 = vmatprep.subr.mxu0 0.0
    %6471 = vmatpush2.msra.mxu0 0.0
    %6472 = vmatprep.subr.mxu0 0.0
    %6473 = vmatpush2.msra.mxu0 0.0
    %6474 = vmatprep.subr.mxu0 0.0
    %6475 = vmatpush2.msra.mxu0 0.0
    %6476 = vmatprep.subr.mxu0 0.0
    %6477 = vmatpush2.msra.mxu0 0.0
    %6478 = vmatprep.subr.mxu0 0.0
    %6479 = vmatpush2.msra.mxu0 0.0
    %6480 = vmatprep.subr.mxu0 0.0
    %6481 = vmatpush2.msra.mxu0 0.0
    %6482 = vmatprep.subr.mxu0 0.0
    %6483 = vmatpush2.msra.mxu0 0.0
    %6484 = vmatprep.subr.mxu0 0.0
    %6485 = vmatpush2.msra.mxu0 0.0
    %6486 = vmatprep.subr.mxu0 0.0
    %6487 = vmatpush2.msra.mxu0 0.0
    %6488 = vmatprep.subr.mxu0 0.0
    %6489 = vmatpush2.msra.mxu0 0.0
    %6490 = vmatprep.mubr.f32.mxu0 0.0
    %6491 = vmatmul.mubr.f32.gmra.mxu0 %v6421
    %v6492 = vpop.f32.mrf.mxu0
    %v6493 = vadd.f32 %v6417, %v6492
    %v6494 = vpop.f32.mrf.mxu0
    %6495 = vmatprep.mubr.f32.mxu0 0.0
    %6496 = vmatmul.mubr.f32.gmra.mxu0 %v6424
    %v6497 = vpop.f32.mrf.mxu0
    %v6498 = vadd.f32 %v6417, %v6497
    %v6499 = vpop.f32.mrf.mxu0
    %6500 = vdwg.mxu0
    %v6501 = vtanh.pop %v6493
    %v6502 = vtanh.pop %v6498
    %v6503 = vld [vmem:[%s51] sm:$0xff]
    %v6504 = vld [vmem:[%s51 + $0x8] sm:$0xff]
    %v6505 = vld [vmem:[%s51 + $0x10] sm:$0xff]
    %v6506 = vld [vmem:[%s51 + $0x18] sm:$0xff]
    %v6507 = vld [vmem:[%s53] sm:$0x1]
    %v6509 = vlaneseq
    %v6510 = vshrl.u32 %v6509, 7
    %v6511 = vsub.s32 0, %v6510
    %v6512 = vrot.slane %v6507, %v6511
    %v6515 = vsel %vm266, %v6501, 0
    %v6518 = vsel %vm266, %v6502, 0
    %6520 = vmatprep.subr.mxu0 0.0
    %6521 = vmatpush1.msra.mxu0 0.0
    %6522 = vmatprep.subr.mxu0 0.0
    %6523 = vmatpush1.msra.mxu0 0.0
    %6524 = vmatprep.subr.mxu0 0.0
    %6525 = vmatpush1.msra.mxu0 0.0
    %6526 = vmatprep.subr.mxu0 0.0
    %6527 = vmatpush1.msra.mxu0 0.0
    %6528 = vmatprep.subr.mxu0 0.0
    %6529 = vmatpush1.msra.mxu0 0.0
    %6530 = vmatprep.subr.mxu0 0.0
    %6531 = vmatpush1.msra.mxu0 0.0
    %6532 = vmatprep.subr.mxu0 0.0
    %6533 = vmatpush1.msra.mxu0 0.0
    %6534 = vmatprep.subr.mxu0 0.0
    %6535 = vmatpush1.msra.mxu0 0.0
    %6536 = vmatprep.subr.mxu0 0.0
    %6537 = vmatpush1.msra.mxu0 0.0
    %6538 = vmatprep.subr.mxu0 0.0
    %6539 = vmatpush1.msra.mxu0 0.0
    %6540 = vmatprep.subr.mxu0 0.0
    %6541 = vmatpush1.msra.mxu0 0.0
    %6542 = vmatprep.subr.mxu0 0.0
    %6543 = vmatpush1.msra.mxu0 0.0
    %6544 = vmatprep.subr.mxu0 0.0
    %6545 = vmatpush1.msra.mxu0 %v6506
    %6546 = vmatprep.subr.mxu0 0.0
    %6547 = vmatpush1.msra.mxu0 %v6505
    %6548 = vmatprep.subr.mxu0 0.0
    %6549 = vmatpush1.msra.mxu0 %v6504
    %6550 = vmatprep.subr.mxu0 0.0
    %6551 = vmatpush1.msra.mxu0 %v6503
    %6552 = vmatprep.subr.mxu0 0.0
    %6553 = vmatpush2.msra.mxu0 0.0
    %6554 = vmatprep.subr.mxu0 0.0
    %6555 = vmatpush2.msra.mxu0 0.0
    %6556 = vmatprep.subr.mxu0 0.0
    %6557 = vmatpush2.msra.mxu0 0.0
    %6558 = vmatprep.subr.mxu0 0.0
    %6559 = vmatpush2.msra.mxu0 0.0
    %6560 = vmatprep.subr.mxu0 0.0
    %6561 = vmatpush2.msra.mxu0 0.0
    %6562 = vmatprep.subr.mxu0 0.0
    %6563 = vmatpush2.msra.mxu0 0.0
    %6564 = vmatprep.subr.mxu0 0.0
    %6565 = vmatpush2.msra.mxu0 0.0
    %6566 = vmatprep.subr.mxu0 0.0
    %6567 = vmatpush2.msra.mxu0 0.0
    %6568 = vmatprep.subr.mxu0 0.0
    %6569 = vmatpush2.msra.mxu0 0.0
    %6570 = vmatprep.subr.mxu0 0.0
    %6571 = vmatpush2.msra.mxu0 0.0
    %6572 = vmatprep.subr.mxu0 0.0
    %6573 = vmatpush2.msra.mxu0 0.0
    %6574 = vmatprep.subr.mxu0 0.0
    %6575 = vmatpush2.msra.mxu0 0.0
    %6576 = vmatprep.subr.mxu0 0.0
    %6577 = vmatpush2.msra.mxu0 0.0
    %6578 = vmatprep.subr.mxu0 0.0
    %6579 = vmatpush2.msra.mxu0 0.0
    %6580 = vmatprep.subr.mxu0 0.0
    %6581 = vmatpush2.msra.mxu0 0.0
    %6582 = vmatprep.subr.mxu0 0.0
    %6583 = vmatpush2.msra.mxu0 0.0
    %6584 = vmatprep.mubr.f32.mxu0 0.0
    %6585 = vmatmul.mubr.f32.gmra.mxu0 %v6515
    %v6586 = vpop.f32.mrf.mxu0
    %v6587 = vadd.f32 %v6512, %v6586
    %v6588 = vpop.f32.mrf.mxu0
    %6589 = vmatprep.mubr.f32.mxu0 0.0
    %6590 = vmatmul.mubr.f32.gmra.mxu0 %v6518
    %v6591 = vpop.f32.mrf.mxu0
    %v6592 = vadd.f32 %v6512, %v6591
    %v6593 = vpop.f32.mrf.mxu0
    %6594 = vdwg.mxu0
    %v6597 = vcombine.high %v6587, %v6587
    %v6599 = vunpack.c.l.s4 1983009808
    %v6600 = vunpack.c.0.s8 %v6599
    %v6601 = vlaneseq
    %v6602 = vshrl.u32 %v6601, 7
    %v6603 = vsub.s32 %v6600, %v6602
    %v6604 = vrot.slane %v6587, %v6603
    %v6606 = vunpack.c.l.s4 1983009808
    %v6607 = vunpack.c.0.s8 %v6606
    %v6608 = vlaneseq
    %v6609 = vshrl.u32 %v6608, 7
    %v6610 = vsub.s32 %v6607, %v6609
    %v6611 = vrot.slane %v6597, %v6610
    %v6612 = vcombine.high %v6604, %v6604
    %v6613 = vcombine.high %v6611, %v6611
    %v6614 = vcombine.high %v6592, %v6592
    %v6616 = vunpack.c.l.s4 1983009808
    %v6617 = vunpack.c.0.s8 %v6616
    %v6618 = vlaneseq
    %v6619 = vshrl.u32 %v6618, 7
    %v6620 = vsub.s32 %v6617, %v6619
    %v6621 = vrot.slane %v6592, %v6620
    %v6623 = vunpack.c.l.s4 1983009808
    %v6624 = vunpack.c.0.s8 %v6623
    %v6625 = vlaneseq
    %v6626 = vshrl.u32 %v6625, 7
    %v6627 = vsub.s32 %v6624, %v6626
    %v6628 = vrot.slane %v6614, %v6627
    %v6629 = vcombine.high %v6621, %v6621
    %v6630 = vcombine.high %v6628, %v6628
    %v6639 = vadd.f32 %v6112, %v6604
    %v6640 = vadd.f32 %v6121, %v6612
    %v6641 = vadd.f32 %v6130, %v6611
    %v6642 = vadd.f32 %v6139, %v6613
    %v6643 = vadd.f32 %v6113, %v6621
    %v6644 = vadd.f32 %v6122, %v6629
    %v6645 = vadd.f32 %v6131, %v6628
    %v6646 = vadd.f32 %v6140, %v6630
    %v6655 = vcombine.low %v6639, %v6640
    %v6656 = vcombine.low %v6641, %v6642
    %v6658 = vunpack.c.l.s4 1983009808
    %v6659 = vunpack.c.0.s8 %v6658
    %v6660 = vlaneseq
    %v6661 = vshrl.u32 %v6660, 7
    %v6662 = vsub.s32 %v6659, %v6661
    %v6663 = vrot.slane %v6655, %v6662
    %v6665 = vunpack.c.l.s4 1983009808
    %v6666 = vunpack.c.0.s8 %v6665
    %v6667 = vlaneseq
    %v6668 = vshrl.u32 %v6667, 7
    %v6669 = vsub.s32 %v6666, %v6668
    %v6670 = vrot.slane %v6656, %v6669
    %v6671 = vcombine.low %v6663, %v6670
    %v6672 = vcombine.low %v6643, %v6644
    %v6673 = vcombine.low %v6645, %v6646
    %v6675 = vunpack.c.l.s4 1983009808
    %v6676 = vunpack.c.0.s8 %v6675
    %v6677 = vlaneseq
    %v6678 = vshrl.u32 %v6677, 7
    %v6679 = vsub.s32 %v6676, %v6678
    %v6680 = vrot.slane %v6672, %v6679
    %v6682 = vunpack.c.l.s4 1983009808
    %v6683 = vunpack.c.0.s8 %v6682
    %v6684 = vlaneseq
    %v6685 = vshrl.u32 %v6684, 7
    %v6686 = vsub.s32 %v6683, %v6685
    %v6687 = vrot.slane %v6673, %v6686
    %v6688 = vcombine.low %v6680, %v6687
    %6691 = vst.msk [vmem:[#allocation30] sm:$0xff] %vm564, %v6671
    %6692 = vst.msk [vmem:[#allocation30 + $0x8] sm:$0xff] %vm564, %v6688
    // Predicated region
    $region150: #{tpu_custom_call.1} parent=1 // pred_check
      _
    $region151: #{tpu_custom_call.1} parent=1 // pred_check_branch
      %6694 = sbr.rel (0) target = $region153
    $region152: #{tpu_custom_call.1} parent=1 // pred_region
      %s6696 = ssub.s32 256, 256
      %6697 = vsyncadd [#allocation14], %s6696
      %s6698 = sshll.u32 [#allocation29], 4
      %s6699 = int_to_ptr.vmem [resolvable:$true] %s6698
      %6704 = dma.vmem_to_hbm [thread:$0]  %s6699, 256, %s55, [#allocation14], 128, 128, 8
    $region153: #{tpu_custom_call.1} parent=1 // pred_fallthru
      _
    // Predicated region
    $region154: #{tpu_custom_call.1} parent=1 // pred_check
      _
    $region155: #{tpu_custom_call.1} parent=1 // pred_check_branch
      %6706 = sbr.rel (0) target = $region157
    $region156: #{tpu_custom_call.1} parent=1 // pred_region
      %s6708 = ssub.s32 256, 256
      %6709 = vsyncadd [#allocation31], %s6708
      %s6710 = sshll.u32 [#allocation30], 4
      %s6711 = int_to_ptr.vmem [resolvable:$true] %s6710
      %6716 = dma.vmem_to_hbm [thread:$0]  %s6711, 256, %s57, [#allocation31], 128, 128, 8
    $region157: #{tpu_custom_call.1} parent=1 // pred_fallthru
      _
    // Predicated region
    $region158: #{tpu_custom_call.1} parent=1 // pred_check
      _
    $region159: #{tpu_custom_call.1} parent=1 // pred_check_branch
      %6718 = sbr.rel (0) target = $region161
    $region160: #{tpu_custom_call.1} parent=1 // pred_region
      _
    $region161: #{tpu_custom_call.1} parent=1 // pred_fallthru
      _
    // Predicated region
    $region162: #{tpu_custom_call.1} parent=1 // pred_check
      _
    $region163: #{tpu_custom_call.1} parent=1 // pred_check_branch
      %6720 = sbr.rel (0) target = $region165
    $region164: #{tpu_custom_call.1} parent=1 // pred_region
      %s6722 = ssub.s32 256, 256
      %6723 = vsyncadd [#allocation31], %s6722
      %s6724 = sshll.u32 [#allocation32], 4
      %s6725 = int_to_ptr.vmem [resolvable:$true] %s6724
      %6730 = dma.vmem_to_hbm [thread:$0]  %s6725, 256, %s61, [#allocation31], 128, 128, 8
    $region165: #{tpu_custom_call.1} parent=1 // pred_fallthru
      _
    // Predicated region
    $region166: #{tpu_custom_call.1} parent=1 // pred_check
      _
    $region167: #{tpu_custom_call.1} parent=1 // pred_check_branch
      %6732 = sbr.rel (0) target = $region169
    $region168: #{tpu_custom_call.1} parent=1 // pred_region
      %6733 = dma.done [#allocation14], 256
    $region169: #{tpu_custom_call.1} parent=1 // pred_fallthru
      _
    // Predicated region
    $region170: #{tpu_custom_call.1} parent=1 // pred_check
      _
    $region171: #{tpu_custom_call.1} parent=1 // pred_check_branch
      %6735 = sbr.rel (0) target = $region173
    $region172: #{tpu_custom_call.1} parent=1 // pred_region
      %6736 = dma.done [#allocation31], 256
    $region173: #{tpu_custom_call.1} parent=1 // pred_fallthru
      _
    // Predicated region
    $region174: #{tpu_custom_call.1} parent=1 // pred_check
      _
    $region175: #{tpu_custom_call.1} parent=1 // pred_check_branch
      %6738 = sbr.rel (0) target = $region177
    $region176: #{tpu_custom_call.1} parent=1 // pred_region
      _
    $region177: #{tpu_custom_call.1} parent=1 // pred_fallthru
      _
    // Predicated region
    $region178: #{tpu_custom_call.1} parent=1 // pred_check
      _
    $region179: #{tpu_custom_call.1} parent=1 // pred_check_branch
      %6740 = sbr.rel (0) target = $region181
    $region180: #{tpu_custom_call.1} parent=1 // pred_region
      %6741 = dma.done [#allocation31], 256
    $region181: #{tpu_custom_call.1} parent=1 // pred_fallthru
      _
    %6742 = vsyncpa [#allocation13], 1
    %6743 = vsyncpa [#allocation16], 1
    %6744 = vsyncpa [#allocation19], 1
    %6745 = vsyncpa [#allocation22], 1
    %6746 = vsyncpa [#allocation25], 1
    %6747 = vsyncpa [#allocation28], 1
    %6748 = vsyncpa [#allocation14], 1
    %6749 = vsyncpa [#allocation31], 1

</llo_original>
